<compile_context>
chip_gen: v5e
topology: v5e:2x2
jax: 0.10.0
libtpu: 0.0.40
codegen_flags: <defaults>
</compile_context>

<pallas_src>
import math

import jax
import jax.numpy as jnp
from jax.experimental import pallas as pl
from jax.experimental.pallas import tpu as pltpu


# ----------------------------- model config ---------------------------------
class Args:
    vocab_size = 256
    block_size = 32
    n_embed = 128
    n_head = 4
    n_layer = 2
    dropout = 0.0      # -> dropout layers are identity
    bias = False       # -> no Linear biases
    flash_attn = False


# --------------------------- in-kernel helpers -------------------------------
def _rms_norm(x, w, eps=1e-6):
    # x: (N, D) f32 ; w: (1, D) f32
    # Matches torch:  weight * x / (sqrt(mean(x^2, -1)) + eps)
    ms = jnp.mean(x * x, axis=-1, keepdims=True)
    inv = pl.reciprocal(jnp.sqrt(ms) + eps, approx=True)   # EUP, ~2^-12 rel err
    return (w * x) * inv


def _gelu_exact(x):
    # torch.nn.GELU() default (erf-based, not tanh approx)
    return 0.5 * x * (1.0 + jax.lax.erf(x * (1.0 / math.sqrt(2.0))))


# ----------------------------- fused Pallas kernel ---------------------------
def gpt_fused_kernel(x0_ref, mask_ref, n1w_ref, qw_ref, kw_ref, vw_ref, cpw_ref,
                     n2w_ref, upw_ref, dww_ref, nfw_ref, wteT_ref,
                     logits_ref, x_sc):
    """Grid axis 0 = layer index. x stays resident in VMEM scratch `x_sc`.

    qw/kw/vw refs: (H, D, hs) bf16 (scale folded into Q), cpw ref: (H, hs, D)
    bf16, up/down refs: (D, 4D)/(4D, D) bf16.  mask ref: (BS, BS) f32 additive
    bias, block-diagonal over batch and causal within each sequence.
    The last grid step also applies the final RMSNorm + tied lm_head.
    """
    l = pl.program_id(0)
    n_layer = pl.num_programs(0)
    BS, D = x_sc.shape
    H = qw_ref.shape[0]

    @pl.when(l == 0)
    def _():
        x_sc[...] = x0_ref[...]

    x = x_sc[...]                                            # (BS, D) f32
    mask = mask_ref[...]                                     # (BS, BS) f32 bias

    # ---------------- attention: x + c_proj(attn(rmsnorm(x))) ----------------
    xn = _rms_norm(x, n1w_ref[...])                          # (BS, D) f32
    xnb = xn.astype(jnp.bfloat16)                            # bf16 operand for MXU

    attn = jnp.zeros((BS, D), jnp.float32)
    for h in range(H):                                       # static, tiny loop
        q_h = jnp.dot(xnb, qw_ref[h], preferred_element_type=jnp.float32)  # (BS,hs)
        k_h = jnp.dot(xnb, kw_ref[h], preferred_element_type=jnp.float32)
        v_h = jnp.dot(xnb, vw_ref[h], preferred_element_type=jnp.float32)
        # scores = q @ k^T  (contract last dims; no explicit transpose/relayout)
        s = jax.lax.dot_general(q_h, k_h, (((1,), (1,)), ((), ())),
                                preferred_element_type=jnp.float32)         # (BS,BS)
        s = s + mask
        s = s - jnp.max(s, axis=-1, keepdims=True)
        p = jnp.exp(s)
        p = p * pl.reciprocal(jnp.sum(p, axis=-1, keepdims=True), approx=True)
        y_h = jnp.dot(p, v_h, preferred_element_type=jnp.float32)           # (BS,hs)
        # fold head straight into the output projection (no concat / relayout)
        attn = attn + jnp.dot(y_h.astype(jnp.bfloat16), cpw_ref[h],
                              preferred_element_type=jnp.float32)           # (BS,D)
    x = x + attn

    # -------------------------------- MLP -----------------------------------
    xn2 = _rms_norm(x, n2w_ref[...])
    h1 = jnp.dot(xn2.astype(jnp.bfloat16), upw_ref[...],
                 preferred_element_type=jnp.float32)          # (BS, 4D)
    h1 = _gelu_exact(h1)
    x = x + jnp.dot(h1.astype(jnp.bfloat16), dww_ref[...],
                    preferred_element_type=jnp.float32)       # (BS, D)

    x_sc[...] = x

    # --------------------- final norm + tied lm_head -------------------------
    @pl.when(l == n_layer - 1)
    def _():
        xf = _rms_norm(x, nfw_ref[...])                       # (BS, D)
        logits_ref[...] = jnp.dot(xf.astype(jnp.bfloat16), wteT_ref[...],
                                  preferred_element_type=jnp.float32)       # (BS, V)


def run_gpt_stack(x2d, mask, kp):
    """One pallas_call over all layers + head. x2d: (BS, D) f32, mask: (BS, BS)."""
    BS, D = x2d.shape
    L, H, _, hs = kp['q_wT'].shape
    F4 = kp['up_wT'].shape[2]
    V = kp['wteT'].shape[1]

    resident2d = lambda l: (0, 0)            # same block every layer -> stays in VMEM
    per_layer3 = lambda l: (l, 0, 0)         # leading dim indexes the layer stack
    per_layer4 = lambda l: (l, 0, 0, 0)

    grid_spec = pltpu.PrefetchScalarGridSpec(
        num_scalar_prefetch=0,
        grid=(L,),
        in_specs=[
            pl.BlockSpec((BS, D), resident2d),             # x0 (loaded once)
            pl.BlockSpec((BS, BS), resident2d),            # block-causal additive bias
            pl.BlockSpec((None, 1, D), per_layer3),        # norm1_w   (L,1,D) f32
            pl.BlockSpec((None, H, D, hs), per_layer4),    # q_wT      (L,H,D,hs) bf16
            pl.BlockSpec((None, H, D, hs), per_layer4),    # k_wT
            pl.BlockSpec((None, H, D, hs), per_layer4),    # v_wT
            pl.BlockSpec((None, H, hs, D), per_layer4),    # cproj_hT  (L,H,hs,D) bf16
            pl.BlockSpec((None, 1, D), per_layer3),        # norm2_w
            pl.BlockSpec((None, D, F4), per_layer3),       # up_wT     (L,D,4D) bf16
            pl.BlockSpec((None, F4, D), per_layer3),       # down_wT   (L,4D,D) bf16
            pl.BlockSpec((1, D), resident2d),              # norm_f_w  f32
            pl.BlockSpec((D, V), resident2d),              # wte^T (tied lm_head) bf16
        ],
        out_specs=pl.BlockSpec((BS, V), resident2d),       # logits (BS, V) f32
        scratch_shapes=[pltpu.VMEM((BS, D), jnp.float32)], # resident activations
    )

    return pl.pallas_call(
        gpt_fused_kernel,
        out_shape=jax.ShapeDtypeStruct((BS, V), jnp.float32),
        grid_spec=grid_spec,
        compiler_params=pltpu.CompilerParams(
            dimension_semantics=("arbitrary",),            # layers are sequential
        ),
    )(x2d, mask, kp['norm1_w'], kp['q_wT'], kp['k_wT'], kp['v_wT'],
      kp['cproj_hT'], kp['norm2_w'], kp['up_wT'], kp['down_wT'],
      kp['norm_f_w'], kp['wteT'])


# ---------------- weight prep (transpose / split / fold / bf16, once) --------
def prepare_kernel_params(params, args):
    D = args.n_embed
    H = args.n_head
    hs = D // H
    scale = 1.0 / math.sqrt(hs)          # folded into Q output columns
    wdt = jnp.bfloat16

    n1, n2, qw, kw, vw, cpw, upw, dww = [], [], [], [], [], [], [], []
    for layer in params['layers']:
        n1.append(layer['norm1_w'].reshape(1, D))
        n2.append(layer['norm2_w'].reshape(1, D))
        qkvT = layer['qkv_w'].T                             # (D, 3D): cols = [q|k|v]
        qT, kT, vT = qkvT[:, :D], qkvT[:, D:2 * D], qkvT[:, 2 * D:]
        # per-head output-column split -> (H, D, hs)
        qw.append((qT * scale).reshape(D, H, hs).transpose(1, 0, 2))
        kw.append(kT.reshape(D, H, hs).transpose(1, 0, 2))
        vw.append(vT.reshape(D, H, hs).transpose(1, 0, 2))
        # c_proj^T rows grouped per head -> (H, hs, D)
        cpw.append(layer['c_proj_w'].T.reshape(H, hs, D))
        upw.append(layer['up_w'].T)                          # (D, 4D)
        dww.append(layer['down_w'].T)                        # (4D, D)

    return {
        'norm1_w': jnp.stack(n1).astype(jnp.float32),        # (L,1,D)
        'norm2_w': jnp.stack(n2).astype(jnp.float32),        # (L,1,D)
        'q_wT': jnp.stack(qw).astype(wdt),                   # (L,H,D,hs)
        'k_wT': jnp.stack(kw).astype(wdt),                   # (L,H,D,hs)
        'v_wT': jnp.stack(vw).astype(wdt),                   # (L,H,D,hs)
        'cproj_hT': jnp.stack(cpw).astype(wdt),              # (L,H,hs,D)
        'up_wT': jnp.stack(upw).astype(wdt),                 # (L,D,4D)
        'down_wT': jnp.stack(dww).astype(wdt),               # (L,4D,D)
        'norm_f_w': params['norm_f_w'].reshape(1, D).astype(jnp.float32),
        'wteT': params['wte'].T.astype(wdt),                 # (D, V)
    }


def build_block_causal_bias(batch, seq):
    """(BS, BS) f32 additive bias: 0 where same batch AND key<=query, else -1e30."""
    BS = batch * seq
    tok = jnp.arange(BS)
    b = tok // seq
    s = tok % seq
    ok = (b[:, None] == b[None, :]) & (s[None, :] <= s[:, None])
    return jnp.where(ok, 0.0, -1e30).astype(jnp.float32)


# ------------------------------ GPT forward ----------------------------------
def gpt_forward(idx, params, kparams, args):
    B, S = idx.shape
    assert S <= args.block_size
    # Embedding gathers are glue (data-dependent indexing) kept in plain JAX.
    x = params['wte'][idx] + params['wpe'][jnp.arange(S)][None, :, :]   # (B,S,D)
    x2d = x.reshape(B * S, args.n_embed).astype(jnp.float32)
    mask = build_block_causal_bias(B, S)
    # dropout(p=0) is identity
    logits2d = run_gpt_stack(x2d, mask, kparams)
    return logits2d.reshape(B, S, -1)


# ------------------------- deterministic param init --------------------------
def init_params(args, key):
    D, V = args.n_embed, args.vocab_size
    n_keys = 2 + 4 * args.n_layer
    keys = list(jax.random.split(key, n_keys))
    std = 0.02

    params = {
        'wte': std * jax.random.normal(keys[0], (V, D), jnp.float32),   # tied lm_head
        'wpe': std * jax.random.normal(keys[1], (args.block_size, D), jnp.float32),
        'norm_f_w': jnp.ones((1, D), jnp.float32),
        'layers': [],
    }
    kidx = 2
    cproj_std = 0.02 / math.sqrt(2 * args.n_layer)
    for _ in range(args.n_layer):
        layer = {
            'norm1_w': jnp.ones((1, D), jnp.float32),
            'norm2_w': jnp.ones((1, D), jnp.float32),
            'qkv_w': std * jax.random.normal(keys[kidx + 0], (3 * D, D), jnp.float32),
            'c_proj_w': cproj_std * jax.random.normal(keys[kidx + 1], (D, D), jnp.float32),
            'up_w': std * jax.random.normal(keys[kidx + 2], (4 * D, D), jnp.float32),
            'down_w': std * jax.random.normal(keys[kidx + 3], (D, 4 * D), jnp.float32),
        }
        kidx += 4
        params['layers'].append(layer)
    return params


# --------------------------- pure-JAX reference (f32) -------------------------
def ref_forward(idx, params, args):
    B, S = idx.shape
    D = args.n_embed
    H = args.n_head
    hs = D // H

    def rms(x, w):
        ms = jnp.mean(x * x, axis=-1, keepdims=True)
        return w.reshape(1, 1, D) * x / (jnp.sqrt(ms) + 1e-6)

    x = params['wte'][idx] + params['wpe'][jnp.arange(S)][None]
    causal = jnp.tril(jnp.ones((S, S), bool))
    for layer in params['layers']:
        xn = rms(x, layer['norm1_w'])
        qkv = xn @ layer['qkv_w'].T
        q, k, v = jnp.split(qkv, 3, axis=-1)
        q = q.reshape(B, S, H, hs).transpose(0, 2, 1, 3)
        k = k.reshape(B, S, H, hs).transpose(0, 2, 1, 3)
        v = v.reshape(B, S, H, hs).transpose(0, 2, 1, 3)
        s = (q @ k.transpose(0, 1, 3, 2)) / math.sqrt(hs)
        s = jnp.where(causal[None, None], s, -jnp.inf)
        p = jax.nn.softmax(s, axis=-1)
        y = (p @ v).transpose(0, 2, 1, 3).reshape(B, S, D)
        x = x + y @ layer['c_proj_w'].T
        xn2 = rms(x, layer['norm2_w'])
        h1 = jax.nn.gelu(xn2 @ layer['up_w'].T, approximate=False)
        x = x + h1 @ layer['down_w'].T
    x = rms(x, params['norm_f_w'])
    return x @ params['wte'].T


# ---------------------------------- main --------------------------------------
if __name__ == "__main__":
    args = Args()
    B, S = 4, 32          # M = B*S = 128 -> full MXU row tile

    key = jax.random.PRNGKey(0)
    pkey, ikey = jax.random.split(key)
    params = init_params(args, pkey)
    kparams = prepare_kernel_params(params, args)
    idx = jax.random.randint(ikey, (B, S), 0, args.vocab_size, dtype=jnp.int32)

    logits = gpt_forward(idx, params, kparams, args)
    logits = jax.block_until_ready(logits)

    assert logits.shape == (B, S, args.vocab_size)
    assert jnp.all(jnp.isfinite(logits))

    # Sanity check against a pure-f32 JAX reference.  The kernel uses bf16
    # weights + approx reciprocals, so tolerance is loosened accordingly
    # (expected max |diff| ~5e-3; any structural bug is O(1)).
    ref = jax.block_until_ready(ref_forward(idx, params, args))
    assert jnp.allclose(logits, ref, rtol=2e-2, atol=2e-2), \
        float(jnp.max(jnp.abs(logits - ref)))

    print("KERNEL_OK")
</pallas_src>

<mosaic_0001>
module attributes {stable_mosaic.version = 11 : i64} {
  func.func @gpt_fused_kernel(%arg0: i32, %arg1: memref<128x128xf32, #tpu.memory_space<vmem>>, %arg2: memref<128x128xf32, #tpu.memory_space<vmem>>, %arg3: memref<1x1x128xf32, #tpu.memory_space<vmem>>, %arg4: memref<1x4x128x32xbf16, #tpu.memory_space<vmem>>, %arg5: memref<1x4x128x32xbf16, #tpu.memory_space<vmem>>, %arg6: memref<1x4x128x32xbf16, #tpu.memory_space<vmem>>, %arg7: memref<1x4x32x128xbf16, #tpu.memory_space<vmem>>, %arg8: memref<1x1x128xf32, #tpu.memory_space<vmem>>, %arg9: memref<1x128x512xbf16, #tpu.memory_space<vmem>>, %arg10: memref<1x512x128xbf16, #tpu.memory_space<vmem>>, %arg11: memref<1x128xf32, #tpu.memory_space<vmem>>, %arg12: memref<128x256xbf16, #tpu.memory_space<vmem>>, %arg13: memref<128x256xf32, #tpu.memory_space<vmem>>, %arg14: memref<128x128xf32, #tpu.memory_space<vmem>>) attributes {dimension_semantics = [#tpu.dimension_semantics<arbitrary>], iteration_bounds = array<i64: 2>, scalar_prefetch = 0 : i64, scratch_operands = 1 : i64, tpu.core_type = #tpu.core_type<tc>, window_params = [{pipeline_mode = #tpu.pipeline_mode<synchronous>, transform_indices = @transform_0, window_bounds = array<i64: 128, 128>}, {pipeline_mode = #tpu.pipeline_mode<synchronous>, transform_indices = @transform_1, window_bounds = array<i64: 128, 128>}, {transform_indices = @transform_2, window_bounds = array<i64: 1, 1, 128>}, {transform_indices = @transform_3, window_bounds = array<i64: 1, 4, 128, 32>}, {transform_indices = @transform_4, window_bounds = array<i64: 1, 4, 128, 32>}, {transform_indices = @transform_5, window_bounds = array<i64: 1, 4, 128, 32>}, {transform_indices = @transform_6, window_bounds = array<i64: 1, 4, 32, 128>}, {transform_indices = @transform_7, window_bounds = array<i64: 1, 1, 128>}, {transform_indices = @transform_8, window_bounds = array<i64: 1, 128, 512>}, {transform_indices = @transform_9, window_bounds = array<i64: 1, 512, 128>}, {pipeline_mode = #tpu.pipeline_mode<synchronous>, transform_indices = @transform_10, window_bounds = array<i64: 1, 128>}, {pipeline_mode = #tpu.pipeline_mode<synchronous>, transform_indices = @transform_11, window_bounds = array<i64: 128, 256>}, {pipeline_mode = #tpu.pipeline_mode<synchronous>, transform_indices = @transform_12, window_bounds = array<i64: 128, 256>}]} {
    %c0_i32 = arith.constant 0 : i32
    %0 = arith.cmpi eq, %arg0, %c0_i32 : i32
    %1 = arith.extui %0 : i1 to i32
    %c0_i32_0 = arith.constant 0 : i32
    %2 = arith.cmpi ne, %1, %c0_i32_0 : i32
    scf.if %2 {
      %c0_123 = arith.constant 0 : index
      %c0_124 = arith.constant 0 : index
      %167 = vector.load %arg1[%c0_123, %c0_124] : memref<128x128xf32, #tpu.memory_space<vmem>>, vector<128x128xf32>
      %c0_125 = arith.constant 0 : index
      %c0_126 = arith.constant 0 : index
      %168 = vector.load %arg14[%c0_125, %c0_126] : memref<128x128xf32, #tpu.memory_space<vmem>>, vector<128x128xf32>
      tpu.vector_store %arg14[%c0_125, %c0_126], %167 {strides = array<i32>} : memref<128x128xf32, #tpu.memory_space<vmem>>, vector<128x128xf32>,
    } else {
    }
    %c0 = arith.constant 0 : index
    %c0_1 = arith.constant 0 : index
    %3 = vector.load %arg14[%c0, %c0_1] : memref<128x128xf32, #tpu.memory_space<vmem>>, vector<128x128xf32>
    %c0_2 = arith.constant 0 : index
    %c0_3 = arith.constant 0 : index
    %4 = vector.load %arg2[%c0_2, %c0_3] : memref<128x128xf32, #tpu.memory_space<vmem>>, vector<128x128xf32>
    %c0_4 = arith.constant 0 : index
    %c0_5 = arith.constant 0 : index
    %c0_6 = arith.constant 0 : index
    %5 = vector.load %arg3[%c0_4, %c0_5, %c0_6] : memref<1x1x128xf32, #tpu.memory_space<vmem>>, vector<1x1x128xf32>
    %6 = vector.shape_cast %5 : vector<1x1x128xf32> to vector<1x128xf32>
    %7 = arith.mulf %3, %3 : vector<128x128xf32>
    %cst = arith.constant dense<0.000000e+00> : vector<128xf32>
    %8 = vector.multi_reduction <add>, %7, %cst [1] : vector<128x128xf32> to vector<128xf32>
    %9 = vector.shape_cast %8 : vector<128xf32> to vector<128x1xf32>
    %cst_7 = arith.constant 1.280000e+02 : f32
    %10 = vector.broadcast %cst_7 : f32 to vector<128x1xf32>
    %11 = arith.divf %9, %10 : vector<128x1xf32>
    %12 = math.sqrt %11 : vector<128x1xf32>
    %cst_8 = arith.constant 9.99999997E-7 : f32
    %13 = vector.broadcast %cst_8 : f32 to vector<128x1xf32>
    %14 = arith.addf %12, %13 : vector<128x1xf32>
    %15 = tpu.reciprocal %14 {approx = true} : vector<128x1xf32> -> vector<128x1xf32>
    %16 = vector.broadcast %6 : vector<1x128xf32> to vector<128x128xf32>
    %17 = arith.mulf %16, %3 : vector<128x128xf32>
    %18 = vector.broadcast %15 : vector<128x1xf32> to vector<128x128xf32>
    %19 = arith.mulf %17, %18 : vector<128x128xf32>
    %20 = arith.truncf %19 : vector<128x128xf32> to vector<128x128xbf16>
    %cst_9 = arith.constant 0.000000e+00 : f32
    %21 = vector.broadcast %cst_9 : f32 to vector<128x128xf32>
    %c0_10 = arith.constant 0 : index
    %c0_11 = arith.constant 0 : index
    %c0_12 = arith.constant 0 : index
    %c0_13 = arith.constant 0 : index
    %22 = vector.load %arg4[%c0_10, %c0_11, %c0_12, %c0_13] : memref<1x4x128x32xbf16, #tpu.memory_space<vmem>>, vector<1x1x128x32xbf16>
    %23 = vector.shape_cast %22 : vector<1x1x128x32xbf16> to vector<128x32xbf16>
    %cst_14 = arith.constant dense<0.000000e+00> : vector<128x32xf32>
    %24 = tpu.matmul %20, %23, %cst_14 {dimension_numbers = #tpu.dot_dimension_numbers<[1], [0], [0], [1], [0, 0, 1, 1], [], []>} : vector<128x128xbf16>, vector<128x32xbf16>, vector<128x32xf32> -> vector<128x32xf32>
    %c0_15 = arith.constant 0 : index
    %c0_16 = arith.constant 0 : index
    %c0_17 = arith.constant 0 : index
    %c0_18 = arith.constant 0 : index
    %25 = vector.load %arg5[%c0_15, %c0_16, %c0_17, %c0_18] : memref<1x4x128x32xbf16, #tpu.memory_space<vmem>>, vector<1x1x128x32xbf16>
    %26 = vector.shape_cast %25 : vector<1x1x128x32xbf16> to vector<128x32xbf16>
    %cst_19 = arith.constant dense<0.000000e+00> : vector<128x32xf32>
    %27 = tpu.matmul %20, %26, %cst_19 {dimension_numbers = #tpu.dot_dimension_numbers<[1], [0], [0], [1], [0, 0, 1, 1], [], []>} : vector<128x128xbf16>, vector<128x32xbf16>, vector<128x32xf32> -> vector<128x32xf32>
    %c0_20 = arith.constant 0 : index
    %c0_21 = arith.constant 0 : index
    %c0_22 = arith.constant 0 : index
    %c0_23 = arith.constant 0 : index
    %28 = vector.load %arg6[%c0_20, %c0_21, %c0_22, %c0_23] : memref<1x4x128x32xbf16, #tpu.memory_space<vmem>>, vector<1x1x128x32xbf16>
    %29 = vector.shape_cast %28 : vector<1x1x128x32xbf16> to vector<128x32xbf16>
    %cst_24 = arith.constant dense<0.000000e+00> : vector<128x32xf32>
    %30 = tpu.matmul %20, %29, %cst_24 {dimension_numbers = #tpu.dot_dimension_numbers<[1], [0], [0], [1], [0, 0, 1, 1], [], []>} : vector<128x128xbf16>, vector<128x32xbf16>, vector<128x32xf32> -> vector<128x32xf32>
    %cst_25 = arith.constant dense<0.000000e+00> : vector<128x128xf32>
    %31 = tpu.matmul %24, %27, %cst_25 {dimension_numbers = #tpu.dot_dimension_numbers<[1], [1], [0], [0], [0, 0, 1, 0], [], []>} : vector<128x32xf32>, vector<128x32xf32>, vector<128x128xf32> -> vector<128x128xf32>
    %32 = arith.addf %31, %4 : vector<128x128xf32>
    %cst_26 = arith.constant dense<0xFF800000> : vector<128xf32>
    %33 = vector.multi_reduction <maximumf>, %32, %cst_26 [1] : vector<128x128xf32> to vector<128xf32>
    %34 = vector.shape_cast %33 : vector<128xf32> to vector<128x1xf32>
    %35 = vector.broadcast %34 : vector<128x1xf32> to vector<128x128xf32>
    %36 = arith.subf %32, %35 : vector<128x128xf32>
    %37 = math.exp %36 : vector<128x128xf32>
    %cst_27 = arith.constant dense<0.000000e+00> : vector<128xf32>
    %38 = vector.multi_reduction <add>, %37, %cst_27 [1] : vector<128x128xf32> to vector<128xf32>
    %39 = vector.shape_cast %38 : vector<128xf32> to vector<128x1xf32>
    %40 = tpu.reciprocal %39 {approx = true} : vector<128x1xf32> -> vector<128x1xf32>
    %41 = vector.broadcast %40 : vector<128x1xf32> to vector<128x128xf32>
    %42 = arith.mulf %37, %41 : vector<128x128xf32>
    %cst_28 = arith.constant dense<0.000000e+00> : vector<128x32xf32>
    %43 = tpu.matmul %42, %30, %cst_28 {dimension_numbers = #tpu.dot_dimension_numbers<[1], [0], [0], [1], [0, 0, 1, 1], [], []>} : vector<128x128xf32>, vector<128x32xf32>, vector<128x32xf32> -> vector<128x32xf32>
    %44 = arith.truncf %43 : vector<128x32xf32> to vector<128x32xbf16>
    %c0_29 = arith.constant 0 : index
    %c0_30 = arith.constant 0 : index
    %c0_31 = arith.constant 0 : index
    %c0_32 = arith.constant 0 : index
    %45 = vector.load %arg7[%c0_29, %c0_30, %c0_31, %c0_32] : memref<1x4x32x128xbf16, #tpu.memory_space<vmem>>, vector<1x1x32x128xbf16>
    %46 = vector.shape_cast %45 : vector<1x1x32x128xbf16> to vector<32x128xbf16>
    %cst_33 = arith.constant dense<0.000000e+00> : vector<128x128xf32>
    %47 = tpu.matmul %44, %46, %cst_33 {dimension_numbers = #tpu.dot_dimension_numbers<[1], [0], [0], [1], [0, 0, 1, 1], [], []>} : vector<128x32xbf16>, vector<32x128xbf16>, vector<128x128xf32> -> vector<128x128xf32>
    %48 = arith.addf %21, %47 : vector<128x128xf32>
    %c0_34 = arith.constant 0 : index
    %c1 = arith.constant 1 : index
    %c0_35 = arith.constant 0 : index
    %c0_36 = arith.constant 0 : index
    %49 = vector.load %arg4[%c0_34, %c1, %c0_35, %c0_36] : memref<1x4x128x32xbf16, #tpu.memory_space<vmem>>, vector<1x1x128x32xbf16>
    %50 = vector.shape_cast %49 : vector<1x1x128x32xbf16> to vector<128x32xbf16>
    %cst_37 = arith.constant dense<0.000000e+00> : vector<128x32xf32>
    %51 = tpu.matmul %20, %50, %cst_37 {dimension_numbers = #tpu.dot_dimension_numbers<[1], [0], [0], [1], [0, 0, 1, 1], [], []>} : vector<128x128xbf16>, vector<128x32xbf16>, vector<128x32xf32> -> vector<128x32xf32>
    %c0_38 = arith.constant 0 : index
    %c1_39 = arith.constant 1 : index
    %c0_40 = arith.constant 0 : index
    %c0_41 = arith.constant 0 : index
    %52 = vector.load %arg5[%c0_38, %c1_39, %c0_40, %c0_41] : memref<1x4x128x32xbf16, #tpu.memory_space<vmem>>, vector<1x1x128x32xbf16>
    %53 = vector.shape_cast %52 : vector<1x1x128x32xbf16> to vector<128x32xbf16>
    %cst_42 = arith.constant dense<0.000000e+00> : vector<128x32xf32>
    %54 = tpu.matmul %20, %53, %cst_42 {dimension_numbers = #tpu.dot_dimension_numbers<[1], [0], [0], [1], [0, 0, 1, 1], [], []>} : vector<128x128xbf16>, vector<128x32xbf16>, vector<128x32xf32> -> vector<128x32xf32>
    %c0_43 = arith.constant 0 : index
    %c1_44 = arith.constant 1 : index
    %c0_45 = arith.constant 0 : index
    %c0_46 = arith.constant 0 : index
    %55 = vector.load %arg6[%c0_43, %c1_44, %c0_45, %c0_46] : memref<1x4x128x32xbf16, #tpu.memory_space<vmem>>, vector<1x1x128x32xbf16>
    %56 = vector.shape_cast %55 : vector<1x1x128x32xbf16> to vector<128x32xbf16>
    %cst_47 = arith.constant dense<0.000000e+00> : vector<128x32xf32>
    %57 = tpu.matmul %20, %56, %cst_47 {dimension_numbers = #tpu.dot_dimension_numbers<[1], [0], [0], [1], [0, 0, 1, 1], [], []>} : vector<128x128xbf16>, vector<128x32xbf16>, vector<128x32xf32> -> vector<128x32xf32>
    %cst_48 = arith.constant dense<0.000000e+00> : vector<128x128xf32>
    %58 = tpu.matmul %51, %54, %cst_48 {dimension_numbers = #tpu.dot_dimension_numbers<[1], [1], [0], [0], [0, 0, 1, 0], [], []>} : vector<128x32xf32>, vector<128x32xf32>, vector<128x128xf32> -> vector<128x128xf32>
    %59 = arith.addf %58, %4 : vector<128x128xf32>
    %cst_49 = arith.constant dense<0xFF800000> : vector<128xf32>
    %60 = vector.multi_reduction <maximumf>, %59, %cst_49 [1] : vector<128x128xf32> to vector<128xf32>
    %61 = vector.shape_cast %60 : vector<128xf32> to vector<128x1xf32>
    %62 = vector.broadcast %61 : vector<128x1xf32> to vector<128x128xf32>
    %63 = arith.subf %59, %62 : vector<128x128xf32>
    %64 = math.exp %63 : vector<128x128xf32>
    %cst_50 = arith.constant dense<0.000000e+00> : vector<128xf32>
    %65 = vector.multi_reduction <add>, %64, %cst_50 [1] : vector<128x128xf32> to vector<128xf32>
    %66 = vector.shape_cast %65 : vector<128xf32> to vector<128x1xf32>
    %67 = tpu.reciprocal %66 {approx = true} : vector<128x1xf32> -> vector<128x1xf32>
    %68 = vector.broadcast %67 : vector<128x1xf32> to vector<128x128xf32>
    %69 = arith.mulf %64, %68 : vector<128x128xf32>
    %cst_51 = arith.constant dense<0.000000e+00> : vector<128x32xf32>
    %70 = tpu.matmul %69, %57, %cst_51 {dimension_numbers = #tpu.dot_dimension_numbers<[1], [0], [0], [1], [0, 0, 1, 1], [], []>} : vector<128x128xf32>, vector<128x32xf32>, vector<128x32xf32> -> vector<128x32xf32>
    %71 = arith.truncf %70 : vector<128x32xf32> to vector<128x32xbf16>
    %c0_52 = arith.constant 0 : index
    %c1_53 = arith.constant 1 : index
    %c0_54 = arith.constant 0 : index
    %c0_55 = arith.constant 0 : index
    %72 = vector.load %arg7[%c0_52, %c1_53, %c0_54, %c0_55] : memref<1x4x32x128xbf16, #tpu.memory_space<vmem>>, vector<1x1x32x128xbf16>
    %73 = vector.shape_cast %72 : vector<1x1x32x128xbf16> to vector<32x128xbf16>
    %cst_56 = arith.constant dense<0.000000e+00> : vector<128x128xf32>
    %74 = tpu.matmul %71, %73, %cst_56 {dimension_numbers = #tpu.dot_dimension_numbers<[1], [0], [0], [1], [0, 0, 1, 1], [], []>} : vector<128x32xbf16>, vector<32x128xbf16>, vector<128x128xf32> -> vector<128x128xf32>
    %75 = arith.addf %48, %74 : vector<128x128xf32>
    %c0_57 = arith.constant 0 : index
    %c2 = arith.constant 2 : index
    %c0_58 = arith.constant 0 : index
    %c0_59 = arith.constant 0 : index
    %76 = vector.load %arg4[%c0_57, %c2, %c0_58, %c0_59] : memref<1x4x128x32xbf16, #tpu.memory_space<vmem>>, vector<1x1x128x32xbf16>
    %77 = vector.shape_cast %76 : vector<1x1x128x32xbf16> to vector<128x32xbf16>
    %cst_60 = arith.constant dense<0.000000e+00> : vector<128x32xf32>
    %78 = tpu.matmul %20, %77, %cst_60 {dimension_numbers = #tpu.dot_dimension_numbers<[1], [0], [0], [1], [0, 0, 1, 1], [], []>} : vector<128x128xbf16>, vector<128x32xbf16>, vector<128x32xf32> -> vector<128x32xf32>
    %c0_61 = arith.constant 0 : index
    %c2_62 = arith.constant 2 : index
    %c0_63 = arith.constant 0 : index
    %c0_64 = arith.constant 0 : index
    %79 = vector.load %arg5[%c0_61, %c2_62, %c0_63, %c0_64] : memref<1x4x128x32xbf16, #tpu.memory_space<vmem>>, vector<1x1x128x32xbf16>
    %80 = vector.shape_cast %79 : vector<1x1x128x32xbf16> to vector<128x32xbf16>
    %cst_65 = arith.constant dense<0.000000e+00> : vector<128x32xf32>
    %81 = tpu.matmul %20, %80, %cst_65 {dimension_numbers = #tpu.dot_dimension_numbers<[1], [0], [0], [1], [0, 0, 1, 1], [], []>} : vector<128x128xbf16>, vector<128x32xbf16>, vector<128x32xf32> -> vector<128x32xf32>
    %c0_66 = arith.constant 0 : index
    %c2_67 = arith.constant 2 : index
    %c0_68 = arith.constant 0 : index
    %c0_69 = arith.constant 0 : index
    %82 = vector.load %arg6[%c0_66, %c2_67, %c0_68, %c0_69] : memref<1x4x128x32xbf16, #tpu.memory_space<vmem>>, vector<1x1x128x32xbf16>
    %83 = vector.shape_cast %82 : vector<1x1x128x32xbf16> to vector<128x32xbf16>
    %cst_70 = arith.constant dense<0.000000e+00> : vector<128x32xf32>
    %84 = tpu.matmul %20, %83, %cst_70 {dimension_numbers = #tpu.dot_dimension_numbers<[1], [0], [0], [1], [0, 0, 1, 1], [], []>} : vector<128x128xbf16>, vector<128x32xbf16>, vector<128x32xf32> -> vector<128x32xf32>
    %cst_71 = arith.constant dense<0.000000e+00> : vector<128x128xf32>
    %85 = tpu.matmul %78, %81, %cst_71 {dimension_numbers = #tpu.dot_dimension_numbers<[1], [1], [0], [0], [0, 0, 1, 0], [], []>} : vector<128x32xf32>, vector<128x32xf32>, vector<128x128xf32> -> vector<128x128xf32>
    %86 = arith.addf %85, %4 : vector<128x128xf32>
    %cst_72 = arith.constant dense<0xFF800000> : vector<128xf32>
    %87 = vector.multi_reduction <maximumf>, %86, %cst_72 [1] : vector<128x128xf32> to vector<128xf32>
    %88 = vector.shape_cast %87 : vector<128xf32> to vector<128x1xf32>
    %89 = vector.broadcast %88 : vector<128x1xf32> to vector<128x128xf32>
    %90 = arith.subf %86, %89 : vector<128x128xf32>
    %91 = math.exp %90 : vector<128x128xf32>
    %cst_73 = arith.constant dense<0.000000e+00> : vector<128xf32>
    %92 = vector.multi_reduction <add>, %91, %cst_73 [1] : vector<128x128xf32> to vector<128xf32>
    %93 = vector.shape_cast %92 : vector<128xf32> to vector<128x1xf32>
    %94 = tpu.reciprocal %93 {approx = true} : vector<128x1xf32> -> vector<128x1xf32>
    %95 = vector.broadcast %94 : vector<128x1xf32> to vector<128x128xf32>
    %96 = arith.mulf %91, %95 : vector<128x128xf32>
    %cst_74 = arith.constant dense<0.000000e+00> : vector<128x32xf32>
    %97 = tpu.matmul %96, %84, %cst_74 {dimension_numbers = #tpu.dot_dimension_numbers<[1], [0], [0], [1], [0, 0, 1, 1], [], []>} : vector<128x128xf32>, vector<128x32xf32>, vector<128x32xf32> -> vector<128x32xf32>
    %98 = arith.truncf %97 : vector<128x32xf32> to vector<128x32xbf16>
    %c0_75 = arith.constant 0 : index
    %c2_76 = arith.constant 2 : index
    %c0_77 = arith.constant 0 : index
    %c0_78 = arith.constant 0 : index
    %99 = vector.load %arg7[%c0_75, %c2_76, %c0_77, %c0_78] : memref<1x4x32x128xbf16, #tpu.memory_space<vmem>>, vector<1x1x32x128xbf16>
    %100 = vector.shape_cast %99 : vector<1x1x32x128xbf16> to vector<32x128xbf16>
    %cst_79 = arith.constant dense<0.000000e+00> : vector<128x128xf32>
    %101 = tpu.matmul %98, %100, %cst_79 {dimension_numbers = #tpu.dot_dimension_numbers<[1], [0], [0], [1], [0, 0, 1, 1], [], []>} : vector<128x32xbf16>, vector<32x128xbf16>, vector<128x128xf32> -> vector<128x128xf32>
    %102 = arith.addf %75, %101 : vector<128x128xf32>
    %c0_80 = arith.constant 0 : index
    %c3 = arith.constant 3 : index
    %c0_81 = arith.constant 0 : index
    %c0_82 = arith.constant 0 : index
    %103 = vector.load %arg4[%c0_80, %c3, %c0_81, %c0_82] : memref<1x4x128x32xbf16, #tpu.memory_space<vmem>>, vector<1x1x128x32xbf16>
    %104 = vector.shape_cast %103 : vector<1x1x128x32xbf16> to vector<128x32xbf16>
    %cst_83 = arith.constant dense<0.000000e+00> : vector<128x32xf32>
    %105 = tpu.matmul %20, %104, %cst_83 {dimension_numbers = #tpu.dot_dimension_numbers<[1], [0], [0], [1], [0, 0, 1, 1], [], []>} : vector<128x128xbf16>, vector<128x32xbf16>, vector<128x32xf32> -> vector<128x32xf32>
    %c0_84 = arith.constant 0 : index
    %c3_85 = arith.constant 3 : index
    %c0_86 = arith.constant 0 : index
    %c0_87 = arith.constant 0 : index
    %106 = vector.load %arg5[%c0_84, %c3_85, %c0_86, %c0_87] : memref<1x4x128x32xbf16, #tpu.memory_space<vmem>>, vector<1x1x128x32xbf16>
    %107 = vector.shape_cast %106 : vector<1x1x128x32xbf16> to vector<128x32xbf16>
    %cst_88 = arith.constant dense<0.000000e+00> : vector<128x32xf32>
    %108 = tpu.matmul %20, %107, %cst_88 {dimension_numbers = #tpu.dot_dimension_numbers<[1], [0], [0], [1], [0, 0, 1, 1], [], []>} : vector<128x128xbf16>, vector<128x32xbf16>, vector<128x32xf32> -> vector<128x32xf32>
    %c0_89 = arith.constant 0 : index
    %c3_90 = arith.constant 3 : index
    %c0_91 = arith.constant 0 : index
    %c0_92 = arith.constant 0 : index
    %109 = vector.load %arg6[%c0_89, %c3_90, %c0_91, %c0_92] : memref<1x4x128x32xbf16, #tpu.memory_space<vmem>>, vector<1x1x128x32xbf16>
    %110 = vector.shape_cast %109 : vector<1x1x128x32xbf16> to vector<128x32xbf16>
    %cst_93 = arith.constant dense<0.000000e+00> : vector<128x32xf32>
    %111 = tpu.matmul %20, %110, %cst_93 {dimension_numbers = #tpu.dot_dimension_numbers<[1], [0], [0], [1], [0, 0, 1, 1], [], []>} : vector<128x128xbf16>, vector<128x32xbf16>, vector<128x32xf32> -> vector<128x32xf32>
    %cst_94 = arith.constant dense<0.000000e+00> : vector<128x128xf32>
    %112 = tpu.matmul %105, %108, %cst_94 {dimension_numbers = #tpu.dot_dimension_numbers<[1], [1], [0], [0], [0, 0, 1, 0], [], []>} : vector<128x32xf32>, vector<128x32xf32>, vector<128x128xf32> -> vector<128x128xf32>
    %113 = arith.addf %112, %4 : vector<128x128xf32>
    %cst_95 = arith.constant dense<0xFF800000> : vector<128xf32>
    %114 = vector.multi_reduction <maximumf>, %113, %cst_95 [1] : vector<128x128xf32> to vector<128xf32>
    %115 = vector.shape_cast %114 : vector<128xf32> to vector<128x1xf32>
    %116 = vector.broadcast %115 : vector<128x1xf32> to vector<128x128xf32>
    %117 = arith.subf %113, %116 : vector<128x128xf32>
    %118 = math.exp %117 : vector<128x128xf32>
    %cst_96 = arith.constant dense<0.000000e+00> : vector<128xf32>
    %119 = vector.multi_reduction <add>, %118, %cst_96 [1] : vector<128x128xf32> to vector<128xf32>
    %120 = vector.shape_cast %119 : vector<128xf32> to vector<128x1xf32>
    %121 = tpu.reciprocal %120 {approx = true} : vector<128x1xf32> -> vector<128x1xf32>
    %122 = vector.broadcast %121 : vector<128x1xf32> to vector<128x128xf32>
    %123 = arith.mulf %118, %122 : vector<128x128xf32>
    %cst_97 = arith.constant dense<0.000000e+00> : vector<128x32xf32>
    %124 = tpu.matmul %123, %111, %cst_97 {dimension_numbers = #tpu.dot_dimension_numbers<[1], [0], [0], [1], [0, 0, 1, 1], [], []>} : vector<128x128xf32>, vector<128x32xf32>, vector<128x32xf32> -> vector<128x32xf32>
    %125 = arith.truncf %124 : vector<128x32xf32> to vector<128x32xbf16>
    %c0_98 = arith.constant 0 : index
    %c3_99 = arith.constant 3 : index
    %c0_100 = arith.constant 0 : index
    %c0_101 = arith.constant 0 : index
    %126 = vector.load %arg7[%c0_98, %c3_99, %c0_100, %c0_101] : memref<1x4x32x128xbf16, #tpu.memory_space<vmem>>, vector<1x1x32x128xbf16>
    %127 = vector.shape_cast %126 : vector<1x1x32x128xbf16> to vector<32x128xbf16>
    %cst_102 = arith.constant dense<0.000000e+00> : vector<128x128xf32>
    %128 = tpu.matmul %125, %127, %cst_102 {dimension_numbers = #tpu.dot_dimension_numbers<[1], [0], [0], [1], [0, 0, 1, 1], [], []>} : vector<128x32xbf16>, vector<32x128xbf16>, vector<128x128xf32> -> vector<128x128xf32>
    %129 = arith.addf %102, %128 : vector<128x128xf32>
    %130 = arith.addf %3, %129 : vector<128x128xf32>
    %c0_103 = arith.constant 0 : index
    %c0_104 = arith.constant 0 : index
    %c0_105 = arith.constant 0 : index
    %131 = vector.load %arg8[%c0_103, %c0_104, %c0_105] : memref<1x1x128xf32, #tpu.memory_space<vmem>>, vector<1x1x128xf32>
    %132 = vector.shape_cast %131 : vector<1x1x128xf32> to vector<1x128xf32>
    %133 = arith.mulf %130, %130 : vector<128x128xf32>
    %cst_106 = arith.constant dense<0.000000e+00> : vector<128xf32>
    %134 = vector.multi_reduction <add>, %133, %cst_106 [1] : vector<128x128xf32> to vector<128xf32>
    %135 = vector.shape_cast %134 : vector<128xf32> to vector<128x1xf32>
    %cst_107 = arith.constant 1.280000e+02 : f32
    %136 = vector.broadcast %cst_107 : f32 to vector<128x1xf32>
    %137 = arith.divf %135, %136 : vector<128x1xf32>
    %138 = math.sqrt %137 : vector<128x1xf32>
    %cst_108 = arith.constant 9.99999997E-7 : f32
    %139 = vector.broadcast %cst_108 : f32 to vector<128x1xf32>
    %140 = arith.addf %138, %139 : vector<128x1xf32>
    %141 = tpu.reciprocal %140 {approx = true} : vector<128x1xf32> -> vector<128x1xf32>
    %142 = vector.broadcast %132 : vector<1x128xf32> to vector<128x128xf32>
    %143 = arith.mulf %142, %130 : vector<128x128xf32>
    %144 = vector.broadcast %141 : vector<128x1xf32> to vector<128x128xf32>
    %145 = arith.mulf %143, %144 : vector<128x128xf32>
    %146 = arith.truncf %145 : vector<128x128xf32> to vector<128x128xbf16>
    %c0_109 = arith.constant 0 : index
    %c0_110 = arith.constant 0 : index
    %c0_111 = arith.constant 0 : index
    %147 = vector.load %arg9[%c0_109, %c0_110, %c0_111] : memref<1x128x512xbf16, #tpu.memory_space<vmem>>, vector<1x128x512xbf16>
    %148 = vector.shape_cast %147 : vector<1x128x512xbf16> to vector<128x512xbf16>
    %cst_112 = arith.constant dense<0.000000e+00> : vector<128x512xf32>
    %149 = tpu.matmul %146, %148, %cst_112 {dimension_numbers = #tpu.dot_dimension_numbers<[1], [0], [0], [1], [0, 0, 1, 1], [], []>} : vector<128x128xbf16>, vector<128x512xbf16>, vector<128x512xf32> -> vector<128x512xf32>
    %cst_113 = arith.constant 5.000000e-01 : f32
    %150 = vector.broadcast %cst_113 : f32 to vector<128x512xf32>
    %151 = arith.mulf %150, %149 : vector<128x512xf32>
    %cst_114 = arith.constant 0.707106769 : f32
    %152 = vector.broadcast %cst_114 : f32 to vector<128x512xf32>
    %153 = arith.mulf %149, %152 : vector<128x512xf32>
    %154 = math.erf %153 : vector<128x512xf32>
    %cst_115 = arith.constant 1.000000e+00 : f32
    %155 = vector.broadcast %cst_115 : f32 to vector<128x512xf32>
    %156 = arith.addf %155, %154 : vector<128x512xf32>
    %157 = arith.mulf %151, %156 : vector<128x512xf32>
    %158 = arith.truncf %157 : vector<128x512xf32> to vector<128x512xbf16>
    %c0_116 = arith.constant 0 : index
    %c0_117 = arith.constant 0 : index
    %c0_118 = arith.constant 0 : index
    %159 = vector.load %arg10[%c0_116, %c0_117, %c0_118] : memref<1x512x128xbf16, #tpu.memory_space<vmem>>, vector<1x512x128xbf16>
    %160 = vector.shape_cast %159 : vector<1x512x128xbf16> to vector<512x128xbf16>
    %cst_119 = arith.constant dense<0.000000e+00> : vector<128x128xf32>
    %161 = tpu.matmul %158, %160, %cst_119 {dimension_numbers = #tpu.dot_dimension_numbers<[1], [0], [0], [1], [0, 0, 1, 1], [], []>} : vector<128x512xbf16>, vector<512x128xbf16>, vector<128x128xf32> -> vector<128x128xf32>
    %162 = arith.addf %130, %161 : vector<128x128xf32>
    %c0_120 = arith.constant 0 : index
    %c0_121 = arith.constant 0 : index
    %163 = vector.load %arg14[%c0_120, %c0_121] : memref<128x128xf32, #tpu.memory_space<vmem>>, vector<128x128xf32>
    tpu.vector_store %arg14[%c0_120, %c0_121], %162 {strides = array<i32>} : memref<128x128xf32, #tpu.memory_space<vmem>>, vector<128x128xf32>,
    %c1_i32 = arith.constant 1 : i32
    %164 = arith.cmpi eq, %arg0, %c1_i32 : i32
    %165 = arith.extui %164 : i1 to i32
    %c0_i32_122 = arith.constant 0 : i32
    %166 = arith.cmpi ne, %165, %c0_i32_122 : i32
    scf.if %166 {
      %c0_123 = arith.constant 0 : index
      %c0_124 = arith.constant 0 : index
      %167 = vector.load %arg11[%c0_123, %c0_124] : memref<1x128xf32, #tpu.memory_space<vmem>>, vector<1x128xf32>
      %168 = arith.mulf %162, %162 : vector<128x128xf32>
      %cst_125 = arith.constant dense<0.000000e+00> : vector<128xf32>
      %169 = vector.multi_reduction <add>, %168, %cst_125 [1] : vector<128x128xf32> to vector<128xf32>
      %170 = vector.shape_cast %169 : vector<128xf32> to vector<128x1xf32>
      %cst_126 = arith.constant 1.280000e+02 : f32
      %171 = vector.broadcast %cst_126 : f32 to vector<128x1xf32>
      %172 = arith.divf %170, %171 : vector<128x1xf32>
      %173 = math.sqrt %172 : vector<128x1xf32>
      %cst_127 = arith.constant 9.99999997E-7 : f32
      %174 = vector.broadcast %cst_127 : f32 to vector<128x1xf32>
      %175 = arith.addf %173, %174 : vector<128x1xf32>
      %176 = tpu.reciprocal %175 {approx = true} : vector<128x1xf32> -> vector<128x1xf32>
      %177 = vector.broadcast %167 : vector<1x128xf32> to vector<128x128xf32>
      %178 = arith.mulf %177, %162 : vector<128x128xf32>
      %179 = vector.broadcast %176 : vector<128x1xf32> to vector<128x128xf32>
      %180 = arith.mulf %178, %179 : vector<128x128xf32>
      %181 = arith.truncf %180 : vector<128x128xf32> to vector<128x128xbf16>
      %c0_128 = arith.constant 0 : index
      %c0_129 = arith.constant 0 : index
      %182 = vector.load %arg12[%c0_128, %c0_129] : memref<128x256xbf16, #tpu.memory_space<vmem>>, vector<128x256xbf16>
      %cst_130 = arith.constant dense<0.000000e+00> : vector<128x256xf32>
      %183 = tpu.matmul %181, %182, %cst_130 {dimension_numbers = #tpu.dot_dimension_numbers<[1], [0], [0], [1], [0, 0, 1, 1], [], []>} : vector<128x128xbf16>, vector<128x256xbf16>, vector<128x256xf32> -> vector<128x256xf32>
      %c0_131 = arith.constant 0 : index
      %c0_132 = arith.constant 0 : index
      %184 = vector.load %arg13[%c0_131, %c0_132] : memref<128x256xf32, #tpu.memory_space<vmem>>, vector<128x256xf32>
      tpu.vector_store %arg13[%c0_131, %c0_132], %183 {strides = array<i32>} : memref<128x256xf32, #tpu.memory_space<vmem>>, vector<128x256xf32>,
    } else {
    }
    return
  }
  func.func @transform_0(%arg0: i32) -> (i32, i32) {
    %c0_i32 = arith.constant 0 : i32
    %c0_i32_0 = arith.constant 0 : i32
    %c0_i32_1 = arith.constant 0 : i32
    return %c0_i32, %c0_i32_0 : i32, i32
  }
  func.func @transform_1(%arg0: i32) -> (i32, i32) {
    %c0_i32 = arith.constant 0 : i32
    %c0_i32_0 = arith.constant 0 : i32
    %c0_i32_1 = arith.constant 0 : i32
    return %c0_i32, %c0_i32_0 : i32, i32
  }
  func.func @transform_2(%arg0: i32) -> (i32, i32, i32) {
    %c0_i32 = arith.constant 0 : i32
    %c0_i32_0 = arith.constant 0 : i32
    %c0_i32_1 = arith.constant 0 : i32
    return %arg0, %c0_i32, %c0_i32_0 : i32, i32, i32
  }
  func.func @transform_3(%arg0: i32) -> (i32, i32, i32, i32) {
    %c0_i32 = arith.constant 0 : i32
    %c0_i32_0 = arith.constant 0 : i32
    %c0_i32_1 = arith.constant 0 : i32
    %c0_i32_2 = arith.constant 0 : i32
    return %arg0, %c0_i32, %c0_i32_0, %c0_i32_1 : i32, i32, i32, i32
  }
  func.func @transform_4(%arg0: i32) -> (i32, i32, i32, i32) {
    %c0_i32 = arith.constant 0 : i32
    %c0_i32_0 = arith.constant 0 : i32
    %c0_i32_1 = arith.constant 0 : i32
    %c0_i32_2 = arith.constant 0 : i32
    return %arg0, %c0_i32, %c0_i32_0, %c0_i32_1 : i32, i32, i32, i32
  }
  func.func @transform_5(%arg0: i32) -> (i32, i32, i32, i32) {
    %c0_i32 = arith.constant 0 : i32
    %c0_i32_0 = arith.constant 0 : i32
    %c0_i32_1 = arith.constant 0 : i32
    %c0_i32_2 = arith.constant 0 : i32
    return %arg0, %c0_i32, %c0_i32_0, %c0_i32_1 : i32, i32, i32, i32
  }
  func.func @transform_6(%arg0: i32) -> (i32, i32, i32, i32) {
    %c0_i32 = arith.constant 0 : i32
    %c0_i32_0 = arith.constant 0 : i32
    %c0_i32_1 = arith.constant 0 : i32
    %c0_i32_2 = arith.constant 0 : i32
    return %arg0, %c0_i32, %c0_i32_0, %c0_i32_1 : i32, i32, i32, i32
  }
  func.func @transform_7(%arg0: i32) -> (i32, i32, i32) {
    %c0_i32 = arith.constant 0 : i32
    %c0_i32_0 = arith.constant 0 : i32
    %c0_i32_1 = arith.constant 0 : i32
    return %arg0, %c0_i32, %c0_i32_0 : i32, i32, i32
  }
  func.func @transform_8(%arg0: i32) -> (i32, i32, i32) {
    %c0_i32 = arith.constant 0 : i32
    %c0_i32_0 = arith.constant 0 : i32
    %c0_i32_1 = arith.constant 0 : i32
    return %arg0, %c0_i32, %c0_i32_0 : i32, i32, i32
  }
  func.func @transform_9(%arg0: i32) -> (i32, i32, i32) {
    %c0_i32 = arith.constant 0 : i32
    %c0_i32_0 = arith.constant 0 : i32
    %c0_i32_1 = arith.constant 0 : i32
    return %arg0, %c0_i32, %c0_i32_0 : i32, i32, i32
  }
  func.func @transform_10(%arg0: i32) -> (i32, i32) {
    %c0_i32 = arith.constant 0 : i32
    %c0_i32_0 = arith.constant 0 : i32
    %c0_i32_1 = arith.constant 0 : i32
    return %c0_i32, %c0_i32_0 : i32, i32
  }
  func.func @transform_11(%arg0: i32) -> (i32, i32) {
    %c0_i32 = arith.constant 0 : i32
    %c0_i32_0 = arith.constant 0 : i32
    %c0_i32_1 = arith.constant 0 : i32
    return %c0_i32, %c0_i32_0 : i32, i32
  }
  func.func @transform_12(%arg0: i32) -> (i32, i32) {
    %c0_i32 = arith.constant 0 : i32
    %c0_i32_0 = arith.constant 0 : i32
    %c0_i32_1 = arith.constant 0 : i32
    return %c0_i32, %c0_i32_0 : i32, i32
  }
}

</mosaic_0001>

<llo_original>
// kernel: tpu_custom_call.1
$region0: #{tpu_custom_call.1}
  #allocation0 [shape = 'u32[]', space=smem, size = 0x4, offset = 0x4, fixed_abs, tag = 'smem constant byte address 0x4 - core index']
  #allocation1 [shape = 'u32[72,128]{1,0:T(1,128)}', space=vmem, size = 0x9000, scoped, tag = 'internal scratch']
  #allocation2 [shape = 'f32[128,128]{1,0:T(8,128)}', space=vmem, size = 0x10000, scoped, tag = 'scratch operand']
  %s0 = inlined_call_operand.vmem [shape: f32[128,128], index: 0, kind: input, shape index: {}]
  %s1 = inlined_call_operand.vmem [shape: f32[128,128], index: 1, kind: input, shape index: {}]
  %s2 = inlined_call_operand.vmem [shape: f32[2,1,128], index: 2, kind: input, shape index: {}]
  %s3 = inlined_call_operand.vmem [shape: bf16[2,4,128,32], index: 3, kind: input, shape index: {}]
  %s4 = inlined_call_operand.vmem [shape: bf16[2,4,128,32], index: 4, kind: input, shape index: {}]
  %s5 = inlined_call_operand.vmem [shape: bf16[2,4,128,32], index: 5, kind: input, shape index: {}]
  %s6 = inlined_call_operand.vmem [shape: bf16[2,4,32,128], index: 6, kind: input, shape index: {}]
  %s7 = inlined_call_operand.vmem [shape: f32[2,1,128], index: 7, kind: input, shape index: {}]
  %s8 = inlined_call_operand.vmem [shape: bf16[2,128,512], index: 8, kind: input, shape index: {}]
  %s9 = inlined_call_operand.vmem [shape: bf16[2,512,128], index: 9, kind: input, shape index: {}]
  %s10 = inlined_call_operand.vmem [shape: f32[1,128], index: 10, kind: input, shape index: {}]
  %s11 = inlined_call_operand.vmem [shape: bf16[128,256], index: 11, kind: input, shape index: {}]
  %s12 = inlined_call_operand.hbm [shape: f32[128,256], index: 12, kind: output, shape index: {}]
  %s13 = sld [smem:[#allocation0]]
  $region89: #{tpu_custom_call.1} parent=0
    _
  %s15 = ssub.s32 1, %s13
  %s16 = scalar_select 0, %s15, %s13
  $region1: #{tpu_custom_call.1} parent=0
    #allocation3 [shape = 'u8[131072]{0}', space=vmem, size = 0x20000, scoped, tag = 'output window, operand 0, single buffered']
    #allocation4 [shape = 's32[2]{0}', space=sflag, size = 0x8, scoped, tag = 'scoped memory for tpu_custom_call.1']
    %17 = vsyncpa [#allocation4], 0
    loop: start=0, step=1, limit=4
    $region2: #{tpu_custom_call.1} parent=1 // loop_pre_header
      _
    $region3: #{tpu_custom_call.1} parent=1 // loop_header
      %s19 = sphi 0, %s23
      %p20 = scmp.ge.s32.totalorder %s19, 4
      %s27 = sphi 0, %s27
      %s29 = sphi 0, %s27
      %s30 = sphi 0, %s29
      %s44 = sphi 0, %s30
      %s48 = sphi 0, %s48
      %s50 = sphi 0, %s48
      %s51 = sphi 0, %s50
      %s65 = sphi 0, %s51
      %s71 = sphi 0, %s73
      %s74 = sphi 0, %s71
      %s75 = sphi 0, %s74
      %s91 = sphi 0, %s75
      %s97 = sphi 0, %s99
      %s100 = sphi 0, %s97
      %s101 = sphi 0, %s100
      %s117 = sphi 0, %s101
      %s123 = sphi 0, %s125
      %s126 = sphi 0, %s123
      %s127 = sphi 0, %s126
      %s143 = sphi 0, %s127
      %s149 = sphi 0, %s151
      %s152 = sphi 0, %s149
      %s153 = sphi 0, %s152
      %s169 = sphi 0, %s153
      %s175 = sphi 0, %s177
      %s178 = sphi 0, %s175
      %s179 = sphi 0, %s178
      %s195 = sphi 0, %s179
      %s201 = sphi 0, %s203
      %s204 = sphi 0, %s201
      %s205 = sphi 0, %s204
      %s221 = sphi 0, %s205
      %s227 = sphi 0, %s229
      %s230 = sphi 0, %s227
      %s231 = sphi 0, %s230
      %s247 = sphi 0, %s231
      %s253 = sphi 0, %s255
      %s256 = sphi 0, %s253
      %s257 = sphi 0, %s256
      %s273 = sphi 0, %s257
      %s277 = sphi 0, %s277
      %s279 = sphi 0, %s277
      %s280 = sphi 0, %s279
      %s294 = sphi 0, %s280
      %s298 = sphi 0, %s298
      %s300 = sphi 0, %s298
      %s301 = sphi 0, %s300
      %s315 = sphi 0, %s301
      %s319 = sphi 0, %s319
      %s321 = sphi 0, %s319
      %s322 = sphi 0, %s321
      %s336 = sphi 0, %s322
    $region4: #{tpu_custom_call.1} parent=1 // loop_header_branch
      %22 = sbr.rel (%p20) target = $region8
    $region5: #{tpu_custom_call.1} parent=1 // loop_body
      %s24 = ssub.s32 %s19, 1
      %s25 = ssub.s32 %s19, 2
      %s26 = sadd.s32 %s19, 1
      %s28 = sadd.s32 %s27, 1
      %p31 = scmp.eq.s32.totalorder %s19, 1
      %p32 = scmp.ne.s32.totalorder %s27, %s29
      %p33 = scmp.eq.s32.totalorder %s19, 0
      %p34 = por %p32, %p33
      %p35 = scmp.ne.s32.totalorder %s27, %s29
      %p36 = scmp.eq.s32.totalorder %s24, 1
      %p37 = por %p35, %p36
      %p38 = scmp.ne.s32.totalorder %s29, %s30
      %p39 = scmp.eq.s32.totalorder %s24, 0
      %p40 = por %p38, %p39
      %p41 = scmp.ne.s32.totalorder %s29, %s30
      %p42 = scmp.eq.s32.totalorder %s25, 1
      %p43 = por %p41, %p42
      %p45 = scmp.ne.s32.totalorder %s30, %s44
      %p46 = scmp.eq.s32.totalorder %s25, 0
      %p47 = por %p45, %p46
      %s49 = sadd.s32 %s48, 1
      %p52 = scmp.eq.s32.totalorder %s19, 1
      %p53 = scmp.ne.s32.totalorder %s48, %s50
      %p54 = scmp.eq.s32.totalorder %s19, 0
      %p55 = por %p53, %p54
      %p56 = scmp.ne.s32.totalorder %s48, %s50
      %p57 = scmp.eq.s32.totalorder %s24, 1
      %p58 = por %p56, %p57
      %p59 = scmp.ne.s32.totalorder %s50, %s51
      %p60 = scmp.eq.s32.totalorder %s24, 0
      %p61 = por %p59, %p60
      %p62 = scmp.ne.s32.totalorder %s50, %s51
      %p63 = scmp.eq.s32.totalorder %s25, 1
      %p64 = por %p62, %p63
      %p66 = scmp.ne.s32.totalorder %s51, %s65
      %p67 = scmp.eq.s32.totalorder %s25, 0
      %p68 = por %p66, %p67
      %s69 = ssub.s32 %s19, %s26
      %p70 = scmp.eq.s32.totalorder %s69, 0
      %s72 = sadd.s32 %s71, 1
      %s73 = scalar_select %p70, %s71, %s72
      %p76 = pneg %p70
      %p77 = scmp.eq.s32.totalorder %s19, 1
      %p78 = por %p76, %p77
      %p79 = scmp.ne.s32.totalorder %s71, %s74
      %p80 = scmp.eq.s32.totalorder %s19, 0
      %p81 = por %p79, %p80
      %p82 = scmp.ne.s32.totalorder %s71, %s74
      %p83 = scmp.eq.s32.totalorder %s24, 1
      %p84 = por %p82, %p83
      %p85 = scmp.ne.s32.totalorder %s74, %s75
      %p86 = scmp.eq.s32.totalorder %s24, 0
      %p87 = por %p85, %p86
      %p88 = scmp.ne.s32.totalorder %s74, %s75
      %p89 = scmp.eq.s32.totalorder %s25, 1
      %p90 = por %p88, %p89
      %p92 = scmp.ne.s32.totalorder %s75, %s91
      %p93 = scmp.eq.s32.totalorder %s25, 0
      %p94 = por %p92, %p93
      %s95 = ssub.s32 %s19, %s26
      %p96 = scmp.eq.s32.totalorder %s95, 0
      %s98 = sadd.s32 %s97, 1
      %s99 = scalar_select %p96, %s97, %s98
      %p102 = pneg %p96
      %p103 = scmp.eq.s32.totalorder %s19, 1
      %p104 = por %p102, %p103
      %p105 = scmp.ne.s32.totalorder %s97, %s100
      %p106 = scmp.eq.s32.totalorder %s19, 0
      %p107 = por %p105, %p106
      %p108 = scmp.ne.s32.totalorder %s97, %s100
      %p109 = scmp.eq.s32.totalorder %s24, 1
      %p110 = por %p108, %p109
      %p111 = scmp.ne.s32.totalorder %s100, %s101
      %p112 = scmp.eq.s32.totalorder %s24, 0
      %p113 = por %p111, %p112
      %p114 = scmp.ne.s32.totalorder %s100, %s101
      %p115 = scmp.eq.s32.totalorder %s25, 1
      %p116 = por %p114, %p115
      %p118 = scmp.ne.s32.totalorder %s101, %s117
      %p119 = scmp.eq.s32.totalorder %s25, 0
      %p120 = por %p118, %p119
      %s121 = ssub.s32 %s19, %s26
      %p122 = scmp.eq.s32.totalorder %s121, 0
      %s124 = sadd.s32 %s123, 1
      %s125 = scalar_select %p122, %s123, %s124
      %p128 = pneg %p122
      %p129 = scmp.eq.s32.totalorder %s19, 1
      %p130 = por %p128, %p129
      %p131 = scmp.ne.s32.totalorder %s123, %s126
      %p132 = scmp.eq.s32.totalorder %s19, 0
      %p133 = por %p131, %p132
      %p134 = scmp.ne.s32.totalorder %s123, %s126
      %p135 = scmp.eq.s32.totalorder %s24, 1
      %p136 = por %p134, %p135
      %p137 = scmp.ne.s32.totalorder %s126, %s127
      %p138 = scmp.eq.s32.totalorder %s24, 0
      %p139 = por %p137, %p138
      %p140 = scmp.ne.s32.totalorder %s126, %s127
      %p141 = scmp.eq.s32.totalorder %s25, 1
      %p142 = por %p140, %p141
      %p144 = scmp.ne.s32.totalorder %s127, %s143
      %p145 = scmp.eq.s32.totalorder %s25, 0
      %p146 = por %p144, %p145
      %s147 = ssub.s32 %s19, %s26
      %p148 = scmp.eq.s32.totalorder %s147, 0
      %s150 = sadd.s32 %s149, 1
      %s151 = scalar_select %p148, %s149, %s150
      %p154 = pneg %p148
      %p155 = scmp.eq.s32.totalorder %s19, 1
      %p156 = por %p154, %p155
      %p157 = scmp.ne.s32.totalorder %s149, %s152
      %p158 = scmp.eq.s32.totalorder %s19, 0
      %p159 = por %p157, %p158
      %p160 = scmp.ne.s32.totalorder %s149, %s152
      %p161 = scmp.eq.s32.totalorder %s24, 1
      %p162 = por %p160, %p161
      %p163 = scmp.ne.s32.totalorder %s152, %s153
      %p164 = scmp.eq.s32.totalorder %s24, 0
      %p165 = por %p163, %p164
      %p166 = scmp.ne.s32.totalorder %s152, %s153
      %p167 = scmp.eq.s32.totalorder %s25, 1
      %p168 = por %p166, %p167
      %p170 = scmp.ne.s32.totalorder %s153, %s169
      %p171 = scmp.eq.s32.totalorder %s25, 0
      %p172 = por %p170, %p171
      %s173 = ssub.s32 %s19, %s26
      %p174 = scmp.eq.s32.totalorder %s173, 0
      %s176 = sadd.s32 %s175, 1
      %s177 = scalar_select %p174, %s175, %s176
      %p180 = pneg %p174
      %p181 = scmp.eq.s32.totalorder %s19, 1
      %p182 = por %p180, %p181
      %p183 = scmp.ne.s32.totalorder %s175, %s178
      %p184 = scmp.eq.s32.totalorder %s19, 0
      %p185 = por %p183, %p184
      %p186 = scmp.ne.s32.totalorder %s175, %s178
      %p187 = scmp.eq.s32.totalorder %s24, 1
      %p188 = por %p186, %p187
      %p189 = scmp.ne.s32.totalorder %s178, %s179
      %p190 = scmp.eq.s32.totalorder %s24, 0
      %p191 = por %p189, %p190
      %p192 = scmp.ne.s32.totalorder %s178, %s179
      %p193 = scmp.eq.s32.totalorder %s25, 1
      %p194 = por %p192, %p193
      %p196 = scmp.ne.s32.totalorder %s179, %s195
      %p197 = scmp.eq.s32.totalorder %s25, 0
      %p198 = por %p196, %p197
      %s199 = ssub.s32 %s19, %s26
      %p200 = scmp.eq.s32.totalorder %s199, 0
      %s202 = sadd.s32 %s201, 1
      %s203 = scalar_select %p200, %s201, %s202
      %p206 = pneg %p200
      %p207 = scmp.eq.s32.totalorder %s19, 1
      %p208 = por %p206, %p207
      %p209 = scmp.ne.s32.totalorder %s201, %s204
      %p210 = scmp.eq.s32.totalorder %s19, 0
      %p211 = por %p209, %p210
      %p212 = scmp.ne.s32.totalorder %s201, %s204
      %p213 = scmp.eq.s32.totalorder %s24, 1
      %p214 = por %p212, %p213
      %p215 = scmp.ne.s32.totalorder %s204, %s205
      %p216 = scmp.eq.s32.totalorder %s24, 0
      %p217 = por %p215, %p216
      %p218 = scmp.ne.s32.totalorder %s204, %s205
      %p219 = scmp.eq.s32.totalorder %s25, 1
      %p220 = por %p218, %p219
      %p222 = scmp.ne.s32.totalorder %s205, %s221
      %p223 = scmp.eq.s32.totalorder %s25, 0
      %p224 = por %p222, %p223
      %s225 = ssub.s32 %s19, %s26
      %p226 = scmp.eq.s32.totalorder %s225, 0
      %s228 = sadd.s32 %s227, 1
      %s229 = scalar_select %p226, %s227, %s228
      %p232 = pneg %p226
      %p233 = scmp.eq.s32.totalorder %s19, 1
      %p234 = por %p232, %p233
      %p235 = scmp.ne.s32.totalorder %s227, %s230
      %p236 = scmp.eq.s32.totalorder %s19, 0
      %p237 = por %p235, %p236
      %p238 = scmp.ne.s32.totalorder %s227, %s230
      %p239 = scmp.eq.s32.totalorder %s24, 1
      %p240 = por %p238, %p239
      %p241 = scmp.ne.s32.totalorder %s230, %s231
      %p242 = scmp.eq.s32.totalorder %s24, 0
      %p243 = por %p241, %p242
      %p244 = scmp.ne.s32.totalorder %s230, %s231
      %p245 = scmp.eq.s32.totalorder %s25, 1
      %p246 = por %p244, %p245
      %p248 = scmp.ne.s32.totalorder %s231, %s247
      %p249 = scmp.eq.s32.totalorder %s25, 0
      %p250 = por %p248, %p249
      %s251 = ssub.s32 %s19, %s26
      %p252 = scmp.eq.s32.totalorder %s251, 0
      %s254 = sadd.s32 %s253, 1
      %s255 = scalar_select %p252, %s253, %s254
      %p258 = pneg %p252
      %p259 = scmp.eq.s32.totalorder %s19, 1
      %p260 = por %p258, %p259
      %p261 = scmp.ne.s32.totalorder %s253, %s256
      %p262 = scmp.eq.s32.totalorder %s19, 0
      %p263 = por %p261, %p262
      %p264 = scmp.ne.s32.totalorder %s253, %s256
      %p265 = scmp.eq.s32.totalorder %s24, 1
      %p266 = por %p264, %p265
      %p267 = scmp.ne.s32.totalorder %s256, %s257
      %p268 = scmp.eq.s32.totalorder %s24, 0
      %p269 = por %p267, %p268
      %p270 = scmp.ne.s32.totalorder %s256, %s257
      %p271 = scmp.eq.s32.totalorder %s25, 1
      %p272 = por %p270, %p271
      %p274 = scmp.ne.s32.totalorder %s257, %s273
      %p275 = scmp.eq.s32.totalorder %s25, 0
      %p276 = por %p274, %p275
      %s278 = sadd.s32 %s277, 1
      %p281 = scmp.eq.s32.totalorder %s19, 1
      %p282 = scmp.ne.s32.totalorder %s277, %s279
      %p283 = scmp.eq.s32.totalorder %s19, 0
      %p284 = por %p282, %p283
      %p285 = scmp.ne.s32.totalorder %s277, %s279
      %p286 = scmp.eq.s32.totalorder %s24, 1
      %p287 = por %p285, %p286
      %p288 = scmp.ne.s32.totalorder %s279, %s280
      %p289 = scmp.eq.s32.totalorder %s24, 0
      %p290 = por %p288, %p289
      %p291 = scmp.ne.s32.totalorder %s279, %s280
      %p292 = scmp.eq.s32.totalorder %s25, 1
      %p293 = por %p291, %p292
      %p295 = scmp.ne.s32.totalorder %s280, %s294
      %p296 = scmp.eq.s32.totalorder %s25, 0
      %p297 = por %p295, %p296
      %s299 = sadd.s32 %s298, 1
      %p302 = scmp.eq.s32.totalorder %s19, 1
      %p303 = scmp.ne.s32.totalorder %s298, %s300
      %p304 = scmp.eq.s32.totalorder %s19, 0
      %p305 = por %p303, %p304
      %p306 = scmp.ne.s32.totalorder %s298, %s300
      %p307 = scmp.eq.s32.totalorder %s24, 1
      %p308 = por %p306, %p307
      %p309 = scmp.ne.s32.totalorder %s300, %s301
      %p310 = scmp.eq.s32.totalorder %s24, 0
      %p311 = por %p309, %p310
      %p312 = scmp.ne.s32.totalorder %s300, %s301
      %p313 = scmp.eq.s32.totalorder %s25, 1
      %p314 = por %p312, %p313
      %p316 = scmp.ne.s32.totalorder %s301, %s315
      %p317 = scmp.eq.s32.totalorder %s25, 0
      %p318 = por %p316, %p317
      %s320 = sadd.s32 %s319, 1
      %p323 = scmp.eq.s32.totalorder %s19, 1
      %p324 = scmp.ne.s32.totalorder %s319, %s321
      %p325 = scmp.eq.s32.totalorder %s19, 0
      %p326 = por %p324, %p325
      %p327 = scmp.ne.s32.totalorder %s319, %s321
      %p328 = scmp.eq.s32.totalorder %s24, 1
      %p329 = por %p327, %p328
      %p330 = scmp.ne.s32.totalorder %s321, %s322
      %p331 = scmp.eq.s32.totalorder %s24, 0
      %p332 = por %p330, %p331
      %p333 = scmp.ne.s32.totalorder %s321, %s322
      %p334 = scmp.eq.s32.totalorder %s25, 1
      %p335 = por %p333, %p334
      %p337 = scmp.ne.s32.totalorder %s322, %s336
      %p338 = scmp.eq.s32.totalorder %s25, 0
      %p339 = por %p337, %p338
      %p340 = scmp.le.s32.totalorder 1, %s19
      %p341 = scmp.lt.s32.totalorder %s19, 3
      %p342 = pnand %p340, %p341
      %p343 = pneg %p342
      // Predicated region
      $region9: #{tpu_custom_call.1} parent=5 // pred_check
        _
      $region10: #{tpu_custom_call.1} parent=5 // pred_check_branch
        %345 = sbr.rel (%p342) target = $region12
      $region11: #{tpu_custom_call.1} parent=5 // pred_region
        %s346 = ssub.s32 %s19, 1
        // Predicated region
        $region13: #{tpu_custom_call.1} parent=11 // pred_check
          %p347 = pneg %p40
        $region14: #{tpu_custom_call.1} parent=11 // pred_check_branch
          %349 = sbr.rel (%p347) target = $region16
        $region15: #{tpu_custom_call.1} parent=11 // pred_region
          _
        $region16: #{tpu_custom_call.1} parent=11 // pred_fallthru
          _
        // Predicated region
        $region17: #{tpu_custom_call.1} parent=11 // pred_check
          %p350 = pneg %p61
        $region18: #{tpu_custom_call.1} parent=11 // pred_check_branch
          %352 = sbr.rel (%p350) target = $region20
        $region19: #{tpu_custom_call.1} parent=11 // pred_region
          _
        $region20: #{tpu_custom_call.1} parent=11 // pred_fallthru
          _
        // Predicated region
        $region21: #{tpu_custom_call.1} parent=11 // pred_check
          %p353 = pneg %p290
        $region22: #{tpu_custom_call.1} parent=11 // pred_check_branch
          %355 = sbr.rel (%p353) target = $region24
        $region23: #{tpu_custom_call.1} parent=11 // pred_region
          _
        $region24: #{tpu_custom_call.1} parent=11 // pred_fallthru
          _
        // Predicated region
        $region25: #{tpu_custom_call.1} parent=11 // pred_check
          %p356 = pneg %p311
        $region26: #{tpu_custom_call.1} parent=11 // pred_check_branch
          %358 = sbr.rel (%p356) target = $region28
        $region27: #{tpu_custom_call.1} parent=11 // pred_region
          _
        $region28: #{tpu_custom_call.1} parent=11 // pred_fallthru
          _
      $region12: #{tpu_custom_call.1} parent=5 // pred_fallthru
        _
      %p359 = scmp.lt.s32.totalorder %s19, 2
      // Predicated region
      $region29: #{tpu_custom_call.1} parent=5 // pred_check
        %p360 = pneg %p359
      $region30: #{tpu_custom_call.1} parent=5 // pred_check_branch
        %362 = sbr.rel (%p360) target = $region32
      $region31: #{tpu_custom_call.1} parent=5 // pred_region
        // Predicated region
        $region33: #{tpu_custom_call.1} parent=31 // pred_check
          %p363 = pneg %p81
        $region34: #{tpu_custom_call.1} parent=31 // pred_check_branch
          %365 = sbr.rel (%p363) target = $region36
        $region35: #{tpu_custom_call.1} parent=31 // pred_region
          %p366 = scmp.lt.s32.totalorder %s19, 1
          %s367 = scalar_select %p366, %s19, 1
          %s368 = scalar_lea.vmem %s2, %s367
        $region36: #{tpu_custom_call.1} parent=31 // pred_fallthru
          _
        // Predicated region
        $region37: #{tpu_custom_call.1} parent=31 // pred_check
          %p369 = pneg %p107
        $region38: #{tpu_custom_call.1} parent=31 // pred_check_branch
          %371 = sbr.rel (%p369) target = $region40
        $region39: #{tpu_custom_call.1} parent=31 // pred_region
          %p372 = scmp.lt.s32.totalorder %s19, 1
          %s373 = scalar_select %p372, %s19, 1
          %s374 = smul.addr %s373, 64
          %s375 = smul.addr %s374, 4
          %s376 = scalar_lea.vmem %s3, %s375
        $region40: #{tpu_custom_call.1} parent=31 // pred_fallthru
          _
        // Predicated region
        $region41: #{tpu_custom_call.1} parent=31 // pred_check
          %p377 = pneg %p133
        $region42: #{tpu_custom_call.1} parent=31 // pred_check_branch
          %379 = sbr.rel (%p377) target = $region44
        $region43: #{tpu_custom_call.1} parent=31 // pred_region
          %p380 = scmp.lt.s32.totalorder %s19, 1
          %s381 = scalar_select %p380, %s19, 1
          %s382 = smul.addr %s381, 64
          %s383 = smul.addr %s382, 4
          %s384 = scalar_lea.vmem %s4, %s383
        $region44: #{tpu_custom_call.1} parent=31 // pred_fallthru
          _
        // Predicated region
        $region45: #{tpu_custom_call.1} parent=31 // pred_check
          %p385 = pneg %p159
        $region46: #{tpu_custom_call.1} parent=31 // pred_check_branch
          %387 = sbr.rel (%p385) target = $region48
        $region47: #{tpu_custom_call.1} parent=31 // pred_region
          %p388 = scmp.lt.s32.totalorder %s19, 1
          %s389 = scalar_select %p388, %s19, 1
          %s390 = smul.addr %s389, 64
          %s391 = smul.addr %s390, 4
          %s392 = scalar_lea.vmem %s5, %s391
        $region48: #{tpu_custom_call.1} parent=31 // pred_fallthru
          _
        // Predicated region
        $region49: #{tpu_custom_call.1} parent=31 // pred_check
          %p393 = pneg %p185
        $region50: #{tpu_custom_call.1} parent=31 // pred_check_branch
          %395 = sbr.rel (%p393) target = $region52
        $region51: #{tpu_custom_call.1} parent=31 // pred_region
          %p396 = scmp.lt.s32.totalorder %s19, 1
          %s397 = scalar_select %p396, %s19, 1
          %s398 = smul.addr %s397, 16
          %s399 = smul.addr %s398, 4
          %s400 = scalar_lea.vmem %s6, %s399
        $region52: #{tpu_custom_call.1} parent=31 // pred_fallthru
          _
        // Predicated region
        $region53: #{tpu_custom_call.1} parent=31 // pred_check
          %p401 = pneg %p211
        $region54: #{tpu_custom_call.1} parent=31 // pred_check_branch
          %403 = sbr.rel (%p401) target = $region56
        $region55: #{tpu_custom_call.1} parent=31 // pred_region
          %p404 = scmp.lt.s32.totalorder %s19, 1
          %s405 = scalar_select %p404, %s19, 1
          %s406 = scalar_lea.vmem %s7, %s405
        $region56: #{tpu_custom_call.1} parent=31 // pred_fallthru
          _
        // Predicated region
        $region57: #{tpu_custom_call.1} parent=31 // pred_check
          %p407 = pneg %p237
        $region58: #{tpu_custom_call.1} parent=31 // pred_check_branch
          %409 = sbr.rel (%p407) target = $region60
        $region59: #{tpu_custom_call.1} parent=31 // pred_region
          %p410 = scmp.lt.s32.totalorder %s19, 1
          %s411 = scalar_select %p410, %s19, 1
          %s412 = smul.addr %s411, 64
          %s413 = smul.addr %s412, 4
          %s414 = scalar_lea.vmem %s8, %s413
        $region60: #{tpu_custom_call.1} parent=31 // pred_fallthru
          _
        // Predicated region
        $region61: #{tpu_custom_call.1} parent=31 // pred_check
          %p415 = pneg %p263
        $region62: #{tpu_custom_call.1} parent=31 // pred_check_branch
          %417 = sbr.rel (%p415) target = $region64
        $region63: #{tpu_custom_call.1} parent=31 // pred_region
          %p418 = scmp.lt.s32.totalorder %s19, 1
          %s419 = scalar_select %p418, %s19, 1
          %s420 = smul.addr %s419, 64
          %s421 = smul.addr %s420, 4
          %s422 = scalar_lea.vmem %s9, %s421
        $region64: #{tpu_custom_call.1} parent=31 // pred_fallthru
          _
      $region32: #{tpu_custom_call.1} parent=5 // pred_fallthru
        _
      %p423 = scmp.le.s32.totalorder 1, %s19
      %p424 = scmp.lt.s32.totalorder %s19, 3
      %p425 = pnand %p423, %p424
      %p426 = pneg %p425
      // Predicated region
      $region65: #{tpu_custom_call.1} parent=5 // pred_check
        _
      $region66: #{tpu_custom_call.1} parent=5 // pred_check_branch
        %428 = sbr.rel (%p425) target = $region68
      $region67: #{tpu_custom_call.1} parent=5 // pred_region
        %s429 = ssub.s32 %s19, 1
        %p430 = pneg %p40
        %p431 = pneg %p37
        %p432 = pneg %p61
        %p433 = pneg %p58
        %p434 = scmp.lt.s32.totalorder %s24, 1
        %s435 = scalar_select %p434, %s24, 1
        %s436 = scalar_lea.vmem %s2, %s435
        %p437 = pneg %p87
        %p438 = pneg %p84
        %p439 = scmp.lt.s32.totalorder %s24, 1
        %s440 = scalar_select %p439, %s24, 1
        %s441 = smul.addr %s440, 64
        %s442 = smul.addr %s441, 4
        %s443 = scalar_lea.vmem %s3, %s442
        %p444 = pneg %p113
        %p445 = pneg %p110
        %p446 = scmp.lt.s32.totalorder %s24, 1
        %s447 = scalar_select %p446, %s24, 1
        %s448 = smul.addr %s447, 64
        %s449 = smul.addr %s448, 4
        %s450 = scalar_lea.vmem %s4, %s449
        %p451 = pneg %p139
        %p452 = pneg %p136
        %p453 = scmp.lt.s32.totalorder %s24, 1
        %s454 = scalar_select %p453, %s24, 1
        %s455 = smul.addr %s454, 64
        %s456 = smul.addr %s455, 4
        %s457 = scalar_lea.vmem %s5, %s456
        %p458 = pneg %p165
        %p459 = pneg %p162
        %p460 = scmp.lt.s32.totalorder %s24, 1
        %s461 = scalar_select %p460, %s24, 1
        %s462 = smul.addr %s461, 16
        %s463 = smul.addr %s462, 4
        %s464 = scalar_lea.vmem %s6, %s463
        %p465 = pneg %p191
        %p466 = pneg %p188
        %p467 = scmp.lt.s32.totalorder %s24, 1
        %s468 = scalar_select %p467, %s24, 1
        %s469 = scalar_lea.vmem %s7, %s468
        %p470 = pneg %p217
        %p471 = pneg %p214
        %p472 = scmp.lt.s32.totalorder %s24, 1
        %s473 = scalar_select %p472, %s24, 1
        %s474 = smul.addr %s473, 64
        %s475 = smul.addr %s474, 4
        %s476 = scalar_lea.vmem %s8, %s475
        %p477 = pneg %p243
        %p478 = pneg %p240
        %p479 = scmp.lt.s32.totalorder %s24, 1
        %s480 = scalar_select %p479, %s24, 1
        %s481 = smul.addr %s480, 64
        %s482 = smul.addr %s481, 4
        %s483 = scalar_lea.vmem %s9, %s482
        %p484 = pneg %p269
        %p485 = pneg %p266
        %p486 = pneg %p290
        %p487 = pneg %p287
        %p488 = pneg %p311
        %p489 = pneg %p308
        %p490 = pneg %p332
        %p491 = pneg %p329
        %p492 = scmp.lt.s32.totalorder %s24, 1
        %s493 = scalar_select %p492, %s24, 1
        %s494 = scalar_lea.vmem %s2, %s493
        %p495 = scmp.lt.s32.totalorder %s24, 1
        %s496 = scalar_select %p495, %s24, 1
        %s497 = smul.addr %s496, 64
        %s498 = smul.addr %s497, 4
        %s499 = scalar_lea.vmem %s3, %s498
        %p500 = scmp.lt.s32.totalorder %s24, 1
        %s501 = scalar_select %p500, %s24, 1
        %s502 = smul.addr %s501, 64
        %s503 = smul.addr %s502, 4
        %s504 = scalar_lea.vmem %s4, %s503
        %p505 = scmp.lt.s32.totalorder %s24, 1
        %s506 = scalar_select %p505, %s24, 1
        %s507 = smul.addr %s506, 64
        %s508 = smul.addr %s507, 4
        %s509 = scalar_lea.vmem %s5, %s508
        %p510 = scmp.lt.s32.totalorder %s24, 1
        %s511 = scalar_select %p510, %s24, 1
        %s512 = smul.addr %s511, 16
        %s513 = smul.addr %s512, 4
        %s514 = scalar_lea.vmem %s6, %s513
        %p515 = scmp.lt.s32.totalorder %s24, 1
        %s516 = scalar_select %p515, %s24, 1
        %s517 = scalar_lea.vmem %s7, %s516
        %p518 = scmp.lt.s32.totalorder %s24, 1
        %s519 = scalar_select %p518, %s24, 1
        %s520 = smul.addr %s519, 64
        %s521 = smul.addr %s520, 4
        %s522 = scalar_lea.vmem %s8, %s521
        %p523 = scmp.lt.s32.totalorder %s24, 1
        %s524 = scalar_select %p523, %s24, 1
        %s525 = smul.addr %s524, 64
        %s526 = smul.addr %s525, 4
        %s527 = scalar_lea.vmem %s9, %s526
        %p529 = scmp.eq.s32.totalorder %s24, 0
        // Predicated region
        $region69: #{tpu_custom_call.1} parent=67 // pred_check
          %p530 = pneg %p529
        $region70: #{tpu_custom_call.1} parent=67 // pred_check_branch
          %532 = sbr.rel (%p530) target = $region72
        $region71: #{tpu_custom_call.1} parent=67 // pred_region
          %v533 = vld [vmem:[%s0] sm:$0xff]
          %v534 = vld [vmem:[%s0 + $0x8] sm:$0xff]
          %v535 = vld [vmem:[%s0 + $0x10] sm:$0xff]
          %v536 = vld [vmem:[%s0 + $0x18] sm:$0xff]
          %v537 = vld [vmem:[%s0 + $0x20] sm:$0xff]
          %v538 = vld [vmem:[%s0 + $0x28] sm:$0xff]
          %v539 = vld [vmem:[%s0 + $0x30] sm:$0xff]
          %v540 = vld [vmem:[%s0 + $0x38] sm:$0xff]
          %v541 = vld [vmem:[%s0 + $0x40] sm:$0xff]
          %v542 = vld [vmem:[%s0 + $0x48] sm:$0xff]
          %v543 = vld [vmem:[%s0 + $0x50] sm:$0xff]
          %v544 = vld [vmem:[%s0 + $0x58] sm:$0xff]
          %v545 = vld [vmem:[%s0 + $0x60] sm:$0xff]
          %v546 = vld [vmem:[%s0 + $0x68] sm:$0xff]
          %v547 = vld [vmem:[%s0 + $0x70] sm:$0xff]
          %v548 = vld [vmem:[%s0 + $0x78] sm:$0xff]
          %549 = vst [vmem:[#allocation2] sm:$0xff] %v533
          %550 = vst [vmem:[#allocation2 + $0x8] sm:$0xff] %v534
          %551 = vst [vmem:[#allocation2 + $0x10] sm:$0xff] %v535
          %552 = vst [vmem:[#allocation2 + $0x18] sm:$0xff] %v536
          %553 = vst [vmem:[#allocation2 + $0x20] sm:$0xff] %v537
          %554 = vst [vmem:[#allocation2 + $0x28] sm:$0xff] %v538
          %555 = vst [vmem:[#allocation2 + $0x30] sm:$0xff] %v539
          %556 = vst [vmem:[#allocation2 + $0x38] sm:$0xff] %v540
          %557 = vst [vmem:[#allocation2 + $0x40] sm:$0xff] %v541
          %558 = vst [vmem:[#allocation2 + $0x48] sm:$0xff] %v542
          %559 = vst [vmem:[#allocation2 + $0x50] sm:$0xff] %v543
          %560 = vst [vmem:[#allocation2 + $0x58] sm:$0xff] %v544
          %561 = vst [vmem:[#allocation2 + $0x60] sm:$0xff] %v545
          %562 = vst [vmem:[#allocation2 + $0x68] sm:$0xff] %v546
          %563 = vst [vmem:[#allocation2 + $0x70] sm:$0xff] %v547
          %564 = vst [vmem:[#allocation2 + $0x78] sm:$0xff] %v548
        $region72: #{tpu_custom_call.1} parent=67 // pred_fallthru
          _
        %v565 = vld [vmem:[#allocation2] sm:$0xff]
        %v566 = vld [vmem:[#allocation2 + $0x8] sm:$0xff]
        %v567 = vld [vmem:[#allocation2 + $0x10] sm:$0xff]
        %v568 = vld [vmem:[#allocation2 + $0x18] sm:$0xff]
        %v569 = vld [vmem:[#allocation2 + $0x20] sm:$0xff]
        %v570 = vld [vmem:[#allocation2 + $0x28] sm:$0xff]
        %v571 = vld [vmem:[#allocation2 + $0x30] sm:$0xff]
        %v572 = vld [vmem:[#allocation2 + $0x38] sm:$0xff]
        %v573 = vld [vmem:[#allocation2 + $0x40] sm:$0xff]
        %v574 = vld [vmem:[#allocation2 + $0x48] sm:$0xff]
        %v575 = vld [vmem:[#allocation2 + $0x50] sm:$0xff]
        %v576 = vld [vmem:[#allocation2 + $0x58] sm:$0xff]
        %v577 = vld [vmem:[#allocation2 + $0x60] sm:$0xff]
        %v578 = vld [vmem:[#allocation2 + $0x68] sm:$0xff]
        %v579 = vld [vmem:[#allocation2 + $0x70] sm:$0xff]
        %v580 = vld [vmem:[#allocation2 + $0x78] sm:$0xff]
        %v581 = vld [vmem:[%s1] sm:$0xff]
        %v582 = vld [vmem:[%s1 + $0x8] sm:$0xff]
        %v583 = vld [vmem:[%s1 + $0x10] sm:$0xff]
        %v584 = vld [vmem:[%s1 + $0x18] sm:$0xff]
        %v585 = vld [vmem:[%s1 + $0x20] sm:$0xff]
        %v586 = vld [vmem:[%s1 + $0x28] sm:$0xff]
        %v587 = vld [vmem:[%s1 + $0x30] sm:$0xff]
        %v588 = vld [vmem:[%s1 + $0x38] sm:$0xff]
        %v589 = vld [vmem:[%s1 + $0x40] sm:$0xff]
        %v590 = vld [vmem:[%s1 + $0x48] sm:$0xff]
        %v591 = vld [vmem:[%s1 + $0x50] sm:$0xff]
        %v592 = vld [vmem:[%s1 + $0x58] sm:$0xff]
        %v593 = vld [vmem:[%s1 + $0x60] sm:$0xff]
        %v594 = vld [vmem:[%s1 + $0x68] sm:$0xff]
        %v595 = vld [vmem:[%s1 + $0x70] sm:$0xff]
        %v596 = vld [vmem:[%s1 + $0x78] sm:$0xff]
        %v597 = vld [vmem:[%s494] sm:$0x1]
        %v598 = vmul.f32 %v565, %v565
        %v599 = vmul.f32 %v566, %v566
        %v600 = vmul.f32 %v567, %v567
        %v601 = vmul.f32 %v568, %v568
        %v602 = vmul.f32 %v569, %v569
        %v603 = vmul.f32 %v570, %v570
        %v604 = vmul.f32 %v571, %v571
        %v605 = vmul.f32 %v572, %v572
        %v606 = vmul.f32 %v573, %v573
        %v607 = vmul.f32 %v574, %v574
        %v608 = vmul.f32 %v575, %v575
        %v609 = vmul.f32 %v576, %v576
        %v610 = vmul.f32 %v577, %v577
        %v611 = vmul.f32 %v578, %v578
        %v612 = vmul.f32 %v579, %v579
        %v613 = vmul.f32 %v580, %v580
        %614 = vadd.xlane.f32.xlu0 %v598
        %v615 = vpop.xlane.xlu0 %614
        %616 = vadd.xlane.f32.xlu0 %v599
        %v617 = vpop.xlane.xlu0 %616
        %618 = vadd.xlane.f32.xlu0 %v600
        %v619 = vpop.xlane.xlu0 %618
        %620 = vadd.xlane.f32.xlu0 %v601
        %v621 = vpop.xlane.xlu0 %620
        %622 = vadd.xlane.f32.xlu0 %v602
        %v623 = vpop.xlane.xlu0 %622
        %624 = vadd.xlane.f32.xlu0 %v603
        %v625 = vpop.xlane.xlu0 %624
        %626 = vadd.xlane.f32.xlu0 %v604
        %v627 = vpop.xlane.xlu0 %626
        %628 = vadd.xlane.f32.xlu0 %v605
        %v629 = vpop.xlane.xlu0 %628
        %630 = vadd.xlane.f32.xlu0 %v606
        %v631 = vpop.xlane.xlu0 %630
        %632 = vadd.xlane.f32.xlu0 %v607
        %v633 = vpop.xlane.xlu0 %632
        %634 = vadd.xlane.f32.xlu0 %v608
        %v635 = vpop.xlane.xlu0 %634
        %636 = vadd.xlane.f32.xlu0 %v609
        %v637 = vpop.xlane.xlu0 %636
        %638 = vadd.xlane.f32.xlu0 %v610
        %v639 = vpop.xlane.xlu0 %638
        %640 = vadd.xlane.f32.xlu0 %v611
        %v641 = vpop.xlane.xlu0 %640
        %642 = vadd.xlane.f32.xlu0 %v612
        %v643 = vpop.xlane.xlu0 %642
        %644 = vadd.xlane.f32.xlu0 %v613
        %v645 = vpop.xlane.xlu0 %644
        %v646 = vrcp.pop 128.0
        %v647 = vmul.f32 128.0, %v646
        %v648 = vsub.f32 1.0, %v647
        %v649 = vmul.f32 %v646, %v648
        %v650 = vadd.f32 %v646, %v649
        %vm651 = vweird.f32 %v646
        %v652 = vsel %vm651, %v646, %v650
        %v653 = vmul.f32 %v615, %v652
        %v654 = vmul.f32 %v617, %v652
        %v655 = vmul.f32 %v619, %v652
        %v656 = vmul.f32 %v621, %v652
        %v657 = vmul.f32 %v623, %v652
        %v658 = vmul.f32 %v625, %v652
        %v659 = vmul.f32 %v627, %v652
        %v660 = vmul.f32 %v629, %v652
        %v661 = vmul.f32 %v631, %v652
        %v662 = vmul.f32 %v633, %v652
        %v663 = vmul.f32 %v635, %v652
        %v664 = vmul.f32 %v637, %v652
        %v665 = vmul.f32 %v639, %v652
        %v666 = vmul.f32 %v641, %v652
        %v667 = vmul.f32 %v643, %v652
        %v668 = vmul.f32 %v645, %v652
        %v669 = vrsqrt.pop %v653
        %v670 = vmul.f32 %v669, %v653
        %v671 = vmul.f32 %v670, %v669
        %v672 = vmul.f32 0.5, %v671
        %v673 = vsub.f32 1.5, %v672
        %v674 = vmul.f32 %v669, %v673
        %v675 = vmul.f32 %v653, %v674
        %vm676 = vcmp.eq.f32.partialorder %v653, inf
        %v677 = vsel %vm676, %v653, %v675
        %vm678 = vcmp.eq.f32.partialorder %v653, 0.0
        %v679 = vand.u32 %v653, 2147483648
        %v680 = vsel %vm678, %v679, %v677
        %v681 = vrsqrt.pop %v654
        %v682 = vmul.f32 %v681, %v654
        %v683 = vmul.f32 %v682, %v681
        %v684 = vmul.f32 0.5, %v683
        %v685 = vsub.f32 1.5, %v684
        %v686 = vmul.f32 %v681, %v685
        %v687 = vmul.f32 %v654, %v686
        %vm688 = vcmp.eq.f32.partialorder %v654, inf
        %v689 = vsel %vm688, %v654, %v687
        %vm690 = vcmp.eq.f32.partialorder %v654, 0.0
        %v691 = vand.u32 %v654, 2147483648
        %v692 = vsel %vm690, %v691, %v689
        %v693 = vrsqrt.pop %v655
        %v694 = vmul.f32 %v693, %v655
        %v695 = vmul.f32 %v694, %v693
        %v696 = vmul.f32 0.5, %v695
        %v697 = vsub.f32 1.5, %v696
        %v698 = vmul.f32 %v693, %v697
        %v699 = vmul.f32 %v655, %v698
        %vm700 = vcmp.eq.f32.partialorder %v655, inf
        %v701 = vsel %vm700, %v655, %v699
        %vm702 = vcmp.eq.f32.partialorder %v655, 0.0
        %v703 = vand.u32 %v655, 2147483648
        %v704 = vsel %vm702, %v703, %v701
        %v705 = vrsqrt.pop %v656
        %v706 = vmul.f32 %v705, %v656
        %v707 = vmul.f32 %v706, %v705
        %v708 = vmul.f32 0.5, %v707
        %v709 = vsub.f32 1.5, %v708
        %v710 = vmul.f32 %v705, %v709
        %v711 = vmul.f32 %v656, %v710
        %vm712 = vcmp.eq.f32.partialorder %v656, inf
        %v713 = vsel %vm712, %v656, %v711
        %vm714 = vcmp.eq.f32.partialorder %v656, 0.0
        %v715 = vand.u32 %v656, 2147483648
        %v716 = vsel %vm714, %v715, %v713
        %v717 = vrsqrt.pop %v657
        %v718 = vmul.f32 %v717, %v657
        %v719 = vmul.f32 %v718, %v717
        %v720 = vmul.f32 0.5, %v719
        %v721 = vsub.f32 1.5, %v720
        %v722 = vmul.f32 %v717, %v721
        %v723 = vmul.f32 %v657, %v722
        %vm724 = vcmp.eq.f32.partialorder %v657, inf
        %v725 = vsel %vm724, %v657, %v723
        %vm726 = vcmp.eq.f32.partialorder %v657, 0.0
        %v727 = vand.u32 %v657, 2147483648
        %v728 = vsel %vm726, %v727, %v725
        %v729 = vrsqrt.pop %v658
        %v730 = vmul.f32 %v729, %v658
        %v731 = vmul.f32 %v730, %v729
        %v732 = vmul.f32 0.5, %v731
        %v733 = vsub.f32 1.5, %v732
        %v734 = vmul.f32 %v729, %v733
        %v735 = vmul.f32 %v658, %v734
        %vm736 = vcmp.eq.f32.partialorder %v658, inf
        %v737 = vsel %vm736, %v658, %v735
        %vm738 = vcmp.eq.f32.partialorder %v658, 0.0
        %v739 = vand.u32 %v658, 2147483648
        %v740 = vsel %vm738, %v739, %v737
        %v741 = vrsqrt.pop %v659
        %v742 = vmul.f32 %v741, %v659
        %v743 = vmul.f32 %v742, %v741
        %v744 = vmul.f32 0.5, %v743
        %v745 = vsub.f32 1.5, %v744
        %v746 = vmul.f32 %v741, %v745
        %v747 = vmul.f32 %v659, %v746
        %vm748 = vcmp.eq.f32.partialorder %v659, inf
        %v749 = vsel %vm748, %v659, %v747
        %vm750 = vcmp.eq.f32.partialorder %v659, 0.0
        %v751 = vand.u32 %v659, 2147483648
        %v752 = vsel %vm750, %v751, %v749
        %v753 = vrsqrt.pop %v660
        %v754 = vmul.f32 %v753, %v660
        %v755 = vmul.f32 %v754, %v753
        %v756 = vmul.f32 0.5, %v755
        %v757 = vsub.f32 1.5, %v756
        %v758 = vmul.f32 %v753, %v757
        %v759 = vmul.f32 %v660, %v758
        %vm760 = vcmp.eq.f32.partialorder %v660, inf
        %v761 = vsel %vm760, %v660, %v759
        %vm762 = vcmp.eq.f32.partialorder %v660, 0.0
        %v763 = vand.u32 %v660, 2147483648
        %v764 = vsel %vm762, %v763, %v761
        %v765 = vrsqrt.pop %v661
        %v766 = vmul.f32 %v765, %v661
        %v767 = vmul.f32 %v766, %v765
        %v768 = vmul.f32 0.5, %v767
        %v769 = vsub.f32 1.5, %v768
        %v770 = vmul.f32 %v765, %v769
        %v771 = vmul.f32 %v661, %v770
        %vm772 = vcmp.eq.f32.partialorder %v661, inf
        %v773 = vsel %vm772, %v661, %v771
        %vm774 = vcmp.eq.f32.partialorder %v661, 0.0
        %v775 = vand.u32 %v661, 2147483648
        %v776 = vsel %vm774, %v775, %v773
        %v777 = vrsqrt.pop %v662
        %v778 = vmul.f32 %v777, %v662
        %v779 = vmul.f32 %v778, %v777
        %v780 = vmul.f32 0.5, %v779
        %v781 = vsub.f32 1.5, %v780
        %v782 = vmul.f32 %v777, %v781
        %v783 = vmul.f32 %v662, %v782
        %vm784 = vcmp.eq.f32.partialorder %v662, inf
        %v785 = vsel %vm784, %v662, %v783
        %vm786 = vcmp.eq.f32.partialorder %v662, 0.0
        %v787 = vand.u32 %v662, 2147483648
        %v788 = vsel %vm786, %v787, %v785
        %v789 = vrsqrt.pop %v663
        %v790 = vmul.f32 %v789, %v663
        %v791 = vmul.f32 %v790, %v789
        %v792 = vmul.f32 0.5, %v791
        %v793 = vsub.f32 1.5, %v792
        %v794 = vmul.f32 %v789, %v793
        %v795 = vmul.f32 %v663, %v794
        %vm796 = vcmp.eq.f32.partialorder %v663, inf
        %v797 = vsel %vm796, %v663, %v795
        %vm798 = vcmp.eq.f32.partialorder %v663, 0.0
        %v799 = vand.u32 %v663, 2147483648
        %v800 = vsel %vm798, %v799, %v797
        %v801 = vrsqrt.pop %v664
        %v802 = vmul.f32 %v801, %v664
        %v803 = vmul.f32 %v802, %v801
        %v804 = vmul.f32 0.5, %v803
        %v805 = vsub.f32 1.5, %v804
        %v806 = vmul.f32 %v801, %v805
        %v807 = vmul.f32 %v664, %v806
        %vm808 = vcmp.eq.f32.partialorder %v664, inf
        %v809 = vsel %vm808, %v664, %v807
        %vm810 = vcmp.eq.f32.partialorder %v664, 0.0
        %v811 = vand.u32 %v664, 2147483648
        %v812 = vsel %vm810, %v811, %v809
        %v813 = vrsqrt.pop %v665
        %v814 = vmul.f32 %v813, %v665
        %v815 = vmul.f32 %v814, %v813
        %v816 = vmul.f32 0.5, %v815
        %v817 = vsub.f32 1.5, %v816
        %v818 = vmul.f32 %v813, %v817
        %v819 = vmul.f32 %v665, %v818
        %vm820 = vcmp.eq.f32.partialorder %v665, inf
        %v821 = vsel %vm820, %v665, %v819
        %vm822 = vcmp.eq.f32.partialorder %v665, 0.0
        %v823 = vand.u32 %v665, 2147483648
        %v824 = vsel %vm822, %v823, %v821
        %v825 = vrsqrt.pop %v666
        %v826 = vmul.f32 %v825, %v666
        %v827 = vmul.f32 %v826, %v825
        %v828 = vmul.f32 0.5, %v827
        %v829 = vsub.f32 1.5, %v828
        %v830 = vmul.f32 %v825, %v829
        %v831 = vmul.f32 %v666, %v830
        %vm832 = vcmp.eq.f32.partialorder %v666, inf
        %v833 = vsel %vm832, %v666, %v831
        %vm834 = vcmp.eq.f32.partialorder %v666, 0.0
        %v835 = vand.u32 %v666, 2147483648
        %v836 = vsel %vm834, %v835, %v833
        %v837 = vrsqrt.pop %v667
        %v838 = vmul.f32 %v837, %v667
        %v839 = vmul.f32 %v838, %v837
        %v840 = vmul.f32 0.5, %v839
        %v841 = vsub.f32 1.5, %v840
        %v842 = vmul.f32 %v837, %v841
        %v843 = vmul.f32 %v667, %v842
        %vm844 = vcmp.eq.f32.partialorder %v667, inf
        %v845 = vsel %vm844, %v667, %v843
        %vm846 = vcmp.eq.f32.partialorder %v667, 0.0
        %v847 = vand.u32 %v667, 2147483648
        %v848 = vsel %vm846, %v847, %v845
        %v849 = vrsqrt.pop %v668
        %v850 = vmul.f32 %v849, %v668
        %v851 = vmul.f32 %v850, %v849
        %v852 = vmul.f32 0.5, %v851
        %v853 = vsub.f32 1.5, %v852
        %v854 = vmul.f32 %v849, %v853
        %v855 = vmul.f32 %v668, %v854
        %vm856 = vcmp.eq.f32.partialorder %v668, inf
        %v857 = vsel %vm856, %v668, %v855
        %vm858 = vcmp.eq.f32.partialorder %v668, 0.0
        %v859 = vand.u32 %v668, 2147483648
        %v860 = vsel %vm858, %v859, %v857
        %v861 = vadd.f32 %v680, 1e-06
        %v862 = vadd.f32 %v692, 1e-06
        %v863 = vadd.f32 %v704, 1e-06
        %v864 = vadd.f32 %v716, 1e-06
        %v865 = vadd.f32 %v728, 1e-06
        %v866 = vadd.f32 %v740, 1e-06
        %v867 = vadd.f32 %v752, 1e-06
        %v868 = vadd.f32 %v764, 1e-06
        %v869 = vadd.f32 %v776, 1e-06
        %v870 = vadd.f32 %v788, 1e-06
        %v871 = vadd.f32 %v800, 1e-06
        %v872 = vadd.f32 %v812, 1e-06
        %v873 = vadd.f32 %v824, 1e-06
        %v874 = vadd.f32 %v836, 1e-06
        %v875 = vadd.f32 %v848, 1e-06
        %v876 = vadd.f32 %v860, 1e-06
        %v877 = vrcp.pop %v861
        %v878 = vrcp.pop %v862
        %v879 = vrcp.pop %v863
        %v880 = vrcp.pop %v864
        %v881 = vrcp.pop %v865
        %v882 = vrcp.pop %v866
        %v883 = vrcp.pop %v867
        %v884 = vrcp.pop %v868
        %v885 = vrcp.pop %v869
        %v886 = vrcp.pop %v870
        %v887 = vrcp.pop %v871
        %v888 = vrcp.pop %v872
        %v889 = vrcp.pop %v873
        %v890 = vrcp.pop %v874
        %v891 = vrcp.pop %v875
        %v892 = vrcp.pop %v876
        %v894 = vperm.slane %v597, 0
        %v896 = vmul.f32 %v894, %v565
        %v897 = vmul.f32 %v894, %v566
        %v898 = vmul.f32 %v894, %v567
        %v899 = vmul.f32 %v894, %v568
        %v900 = vmul.f32 %v894, %v569
        %v901 = vmul.f32 %v894, %v570
        %v902 = vmul.f32 %v894, %v571
        %v903 = vmul.f32 %v894, %v572
        %v904 = vmul.f32 %v894, %v573
        %v905 = vmul.f32 %v894, %v574
        %v906 = vmul.f32 %v894, %v575
        %v907 = vmul.f32 %v894, %v576
        %v908 = vmul.f32 %v894, %v577
        %v909 = vmul.f32 %v894, %v578
        %v910 = vmul.f32 %v894, %v579
        %v911 = vmul.f32 %v894, %v580
        %v912 = vmul.f32 %v896, %v877
        %v913 = vmul.f32 %v897, %v878
        %v914 = vmul.f32 %v898, %v879
        %v915 = vmul.f32 %v899, %v880
        %v916 = vmul.f32 %v900, %v881
        %v917 = vmul.f32 %v901, %v882
        %v918 = vmul.f32 %v902, %v883
        %v919 = vmul.f32 %v903, %v884
        %v920 = vmul.f32 %v904, %v885
        %v921 = vmul.f32 %v905, %v886
        %v922 = vmul.f32 %v906, %v887
        %v923 = vmul.f32 %v907, %v888
        %v924 = vmul.f32 %v908, %v889
        %v925 = vmul.f32 %v909, %v890
        %v926 = vmul.f32 %v910, %v891
        %v927 = vmul.f32 %v911, %v892
        %v928 = vpack.c.bf16 %v913, %v912
        %v929 = vpack.c.bf16 %v915, %v914
        %v930 = vpack.c.bf16 %v917, %v916
        %v931 = vpack.c.bf16 %v919, %v918
        %v932 = vpack.c.bf16 %v921, %v920
        %v933 = vpack.c.bf16 %v923, %v922
        %v934 = vpack.c.bf16 %v925, %v924
        %v935 = vpack.c.bf16 %v927, %v926
        %v936 = vld [vmem:[%s499] sm:$0xf]
        %v937 = vld [vmem:[%s499 + $0x4] sm:$0xf]
        %v938 = vld [vmem:[%s499 + $0x8] sm:$0xf]
        %v939 = vld [vmem:[%s499 + $0xc] sm:$0xf]
        %v940 = vld [vmem:[%s499 + $0x10] sm:$0xf]
        %v941 = vld [vmem:[%s499 + $0x14] sm:$0xf]
        %v942 = vld [vmem:[%s499 + $0x18] sm:$0xf]
        %v943 = vld [vmem:[%s499 + $0x1c] sm:$0xf]
        %v944 = vld [vmem:[%s499 + $0x20] sm:$0xf]
        %v945 = vld [vmem:[%s499 + $0x24] sm:$0xf]
        %v946 = vld [vmem:[%s499 + $0x28] sm:$0xf]
        %v947 = vld [vmem:[%s499 + $0x2c] sm:$0xf]
        %v948 = vld [vmem:[%s499 + $0x30] sm:$0xf]
        %v949 = vld [vmem:[%s499 + $0x34] sm:$0xf]
        %v950 = vld [vmem:[%s499 + $0x38] sm:$0xf]
        %v951 = vld [vmem:[%s499 + $0x3c] sm:$0xf]
        %v968 = vunpack.c.l.b16 %v936
        %v969 = vunpack.c.l.b16 %v937
        %v970 = vunpack.c.l.b16 %v938
        %v971 = vunpack.c.l.b16 %v939
        %v972 = vunpack.c.l.b16 %v940
        %v973 = vunpack.c.l.b16 %v941
        %v974 = vunpack.c.l.b16 %v942
        %v975 = vunpack.c.l.b16 %v943
        %v976 = vunpack.c.l.b16 %v944
        %v977 = vunpack.c.l.b16 %v945
        %v978 = vunpack.c.l.b16 %v946
        %v979 = vunpack.c.l.b16 %v947
        %v980 = vunpack.c.l.b16 %v948
        %v981 = vunpack.c.l.b16 %v949
        %v982 = vunpack.c.l.b16 %v950
        %v983 = vunpack.c.l.b16 %v951
        %v984 = vpack.c.b16 %v969, %v968
        %v985 = vpack.c.b16 %v971, %v970
        %v986 = vpack.c.b16 %v973, %v972
        %v987 = vpack.c.b16 %v975, %v974
        %v988 = vpack.c.b16 %v977, %v976
        %v989 = vpack.c.b16 %v979, %v978
        %v990 = vpack.c.b16 %v981, %v980
        %v991 = vpack.c.b16 %v983, %v982
        %1000 = vmatpush.bf16.msra.mxu0 %v991
        %1001 = vmatpush.bf16.msra.mxu0 %v990
        %1002 = vmatpush.bf16.msra.mxu0 %v989
        %1003 = vmatpush.bf16.msra.mxu0 %v988
        %1004 = vmatpush.bf16.msra.mxu0 %v987
        %1005 = vmatpush.bf16.msra.mxu0 %v986
        %1006 = vmatpush.bf16.msra.mxu0 %v985
        %1007 = vmatpush.bf16.msra.mxu0 %v984
        %1008 = vmatmul.bf16.gmra.mxu0 %v928
        %v1009 = vpop.f32.mrf.mxu0
        %v1010 = vadd.f32 0.0, %v1009
        %v1011 = vpop.f32.mrf.mxu0
        %v1012 = vadd.f32 0.0, %v1011
        %1013 = vmatmul.bf16.gmra.mxu0 %v929
        %v1014 = vpop.f32.mrf.mxu0
        %v1015 = vadd.f32 0.0, %v1014
        %v1016 = vpop.f32.mrf.mxu0
        %v1017 = vadd.f32 0.0, %v1016
        %1018 = vmatmul.bf16.gmra.mxu0 %v930
        %v1019 = vpop.f32.mrf.mxu0
        %v1020 = vadd.f32 0.0, %v1019
        %v1021 = vpop.f32.mrf.mxu0
        %v1022 = vadd.f32 0.0, %v1021
        %1023 = vmatmul.bf16.gmra.mxu0 %v931
        %v1024 = vpop.f32.mrf.mxu0
        %v1025 = vadd.f32 0.0, %v1024
        %v1026 = vpop.f32.mrf.mxu0
        %v1027 = vadd.f32 0.0, %v1026
        %1028 = vmatmul.bf16.gmra.mxu0 %v932
        %v1029 = vpop.f32.mrf.mxu0
        %v1030 = vadd.f32 0.0, %v1029
        %v1031 = vpop.f32.mrf.mxu0
        %v1032 = vadd.f32 0.0, %v1031
        %1033 = vmatmul.bf16.gmra.mxu0 %v933
        %v1034 = vpop.f32.mrf.mxu0
        %v1035 = vadd.f32 0.0, %v1034
        %v1036 = vpop.f32.mrf.mxu0
        %v1037 = vadd.f32 0.0, %v1036
        %1038 = vmatmul.bf16.gmra.mxu0 %v934
        %v1039 = vpop.f32.mrf.mxu0
        %v1040 = vadd.f32 0.0, %v1039
        %v1041 = vpop.f32.mrf.mxu0
        %v1042 = vadd.f32 0.0, %v1041
        %1043 = vmatmul.bf16.gmra.mxu0 %v935
        %v1044 = vpop.f32.mrf.mxu0
        %v1045 = vadd.f32 0.0, %v1044
        %v1046 = vpop.f32.mrf.mxu0
        %v1047 = vadd.f32 0.0, %v1046
        %1048 = vdwg.mxu0
        %v1049 = vld [vmem:[%s504] sm:$0xf]
        %v1050 = vld [vmem:[%s504 + $0x4] sm:$0xf]
        %v1051 = vld [vmem:[%s504 + $0x8] sm:$0xf]
        %v1052 = vld [vmem:[%s504 + $0xc] sm:$0xf]
        %v1053 = vld [vmem:[%s504 + $0x10] sm:$0xf]
        %v1054 = vld [vmem:[%s504 + $0x14] sm:$0xf]
        %v1055 = vld [vmem:[%s504 + $0x18] sm:$0xf]
        %v1056 = vld [vmem:[%s504 + $0x1c] sm:$0xf]
        %v1057 = vld [vmem:[%s504 + $0x20] sm:$0xf]
        %v1058 = vld [vmem:[%s504 + $0x24] sm:$0xf]
        %v1059 = vld [vmem:[%s504 + $0x28] sm:$0xf]
        %v1060 = vld [vmem:[%s504 + $0x2c] sm:$0xf]
        %v1061 = vld [vmem:[%s504 + $0x30] sm:$0xf]
        %v1062 = vld [vmem:[%s504 + $0x34] sm:$0xf]
        %v1063 = vld [vmem:[%s504 + $0x38] sm:$0xf]
        %v1064 = vld [vmem:[%s504 + $0x3c] sm:$0xf]
        %v1081 = vunpack.c.l.b16 %v1049
        %v1082 = vunpack.c.l.b16 %v1050
        %v1083 = vunpack.c.l.b16 %v1051
        %v1084 = vunpack.c.l.b16 %v1052
        %v1085 = vunpack.c.l.b16 %v1053
        %v1086 = vunpack.c.l.b16 %v1054
        %v1087 = vunpack.c.l.b16 %v1055
        %v1088 = vunpack.c.l.b16 %v1056
        %v1089 = vunpack.c.l.b16 %v1057
        %v1090 = vunpack.c.l.b16 %v1058
        %v1091 = vunpack.c.l.b16 %v1059
        %v1092 = vunpack.c.l.b16 %v1060
        %v1093 = vunpack.c.l.b16 %v1061
        %v1094 = vunpack.c.l.b16 %v1062
        %v1095 = vunpack.c.l.b16 %v1063
        %v1096 = vunpack.c.l.b16 %v1064
        %v1097 = vpack.c.b16 %v1082, %v1081
        %v1098 = vpack.c.b16 %v1084, %v1083
        %v1099 = vpack.c.b16 %v1086, %v1085
        %v1100 = vpack.c.b16 %v1088, %v1087
        %v1101 = vpack.c.b16 %v1090, %v1089
        %v1102 = vpack.c.b16 %v1092, %v1091
        %v1103 = vpack.c.b16 %v1094, %v1093
        %v1104 = vpack.c.b16 %v1096, %v1095
        %1113 = vmatpush.bf16.msra.mxu0 %v1104
        %1114 = vmatpush.bf16.msra.mxu0 %v1103
        %1115 = vmatpush.bf16.msra.mxu0 %v1102
        %1116 = vmatpush.bf16.msra.mxu0 %v1101
        %1117 = vmatpush.bf16.msra.mxu0 %v1100
        %1118 = vmatpush.bf16.msra.mxu0 %v1099
        %1119 = vmatpush.bf16.msra.mxu0 %v1098
        %1120 = vmatpush.bf16.msra.mxu0 %v1097
        %1121 = vmatmul.bf16.gmra.mxu0 %v928
        %v1122 = vpop.f32.mrf.mxu0
        %v1123 = vadd.f32 0.0, %v1122
        %v1124 = vpop.f32.mrf.mxu0
        %v1125 = vadd.f32 0.0, %v1124
        %1126 = vmatmul.bf16.gmra.mxu0 %v929
        %v1127 = vpop.f32.mrf.mxu0
        %v1128 = vadd.f32 0.0, %v1127
        %v1129 = vpop.f32.mrf.mxu0
        %v1130 = vadd.f32 0.0, %v1129
        %1131 = vmatmul.bf16.gmra.mxu0 %v930
        %v1132 = vpop.f32.mrf.mxu0
        %v1133 = vadd.f32 0.0, %v1132
        %v1134 = vpop.f32.mrf.mxu0
        %v1135 = vadd.f32 0.0, %v1134
        %1136 = vmatmul.bf16.gmra.mxu0 %v931
        %v1137 = vpop.f32.mrf.mxu0
        %v1138 = vadd.f32 0.0, %v1137
        %v1139 = vpop.f32.mrf.mxu0
        %v1140 = vadd.f32 0.0, %v1139
        %1141 = vmatmul.bf16.gmra.mxu0 %v932
        %v1142 = vpop.f32.mrf.mxu0
        %v1143 = vadd.f32 0.0, %v1142
        %v1144 = vpop.f32.mrf.mxu0
        %v1145 = vadd.f32 0.0, %v1144
        %1146 = vmatmul.bf16.gmra.mxu0 %v933
        %v1147 = vpop.f32.mrf.mxu0
        %v1148 = vadd.f32 0.0, %v1147
        %v1149 = vpop.f32.mrf.mxu0
        %v1150 = vadd.f32 0.0, %v1149
        %1151 = vmatmul.bf16.gmra.mxu0 %v934
        %v1152 = vpop.f32.mrf.mxu0
        %v1153 = vadd.f32 0.0, %v1152
        %v1154 = vpop.f32.mrf.mxu0
        %v1155 = vadd.f32 0.0, %v1154
        %1156 = vmatmul.bf16.gmra.mxu0 %v935
        %v1157 = vpop.f32.mrf.mxu0
        %v1158 = vadd.f32 0.0, %v1157
        %v1159 = vpop.f32.mrf.mxu0
        %v1160 = vadd.f32 0.0, %v1159
        %1161 = vdwg.mxu0
        %v1162 = vld [vmem:[%s509] sm:$0xf]
        %v1163 = vld [vmem:[%s509 + $0x4] sm:$0xf]
        %v1164 = vld [vmem:[%s509 + $0x8] sm:$0xf]
        %v1165 = vld [vmem:[%s509 + $0xc] sm:$0xf]
        %v1166 = vld [vmem:[%s509 + $0x10] sm:$0xf]
        %v1167 = vld [vmem:[%s509 + $0x14] sm:$0xf]
        %v1168 = vld [vmem:[%s509 + $0x18] sm:$0xf]
        %v1169 = vld [vmem:[%s509 + $0x1c] sm:$0xf]
        %v1170 = vld [vmem:[%s509 + $0x20] sm:$0xf]
        %v1171 = vld [vmem:[%s509 + $0x24] sm:$0xf]
        %v1172 = vld [vmem:[%s509 + $0x28] sm:$0xf]
        %v1173 = vld [vmem:[%s509 + $0x2c] sm:$0xf]
        %v1174 = vld [vmem:[%s509 + $0x30] sm:$0xf]
        %v1175 = vld [vmem:[%s509 + $0x34] sm:$0xf]
        %v1176 = vld [vmem:[%s509 + $0x38] sm:$0xf]
        %v1177 = vld [vmem:[%s509 + $0x3c] sm:$0xf]
        %v1194 = vunpack.c.l.b16 %v1162
        %v1195 = vunpack.c.l.b16 %v1163
        %v1196 = vunpack.c.l.b16 %v1164
        %v1197 = vunpack.c.l.b16 %v1165
        %v1198 = vunpack.c.l.b16 %v1166
        %v1199 = vunpack.c.l.b16 %v1167
        %v1200 = vunpack.c.l.b16 %v1168
        %v1201 = vunpack.c.l.b16 %v1169
        %v1202 = vunpack.c.l.b16 %v1170
        %v1203 = vunpack.c.l.b16 %v1171
        %v1204 = vunpack.c.l.b16 %v1172
        %v1205 = vunpack.c.l.b16 %v1173
        %v1206 = vunpack.c.l.b16 %v1174
        %v1207 = vunpack.c.l.b16 %v1175
        %v1208 = vunpack.c.l.b16 %v1176
        %v1209 = vunpack.c.l.b16 %v1177
        %v1210 = vpack.c.b16 %v1195, %v1194
        %v1211 = vpack.c.b16 %v1197, %v1196
        %v1212 = vpack.c.b16 %v1199, %v1198
        %v1213 = vpack.c.b16 %v1201, %v1200
        %v1214 = vpack.c.b16 %v1203, %v1202
        %v1215 = vpack.c.b16 %v1205, %v1204
        %v1216 = vpack.c.b16 %v1207, %v1206
        %v1217 = vpack.c.b16 %v1209, %v1208
        %1226 = vmatpush.bf16.msra.mxu0 %v1217
        %1227 = vmatpush.bf16.msra.mxu0 %v1216
        %1228 = vmatpush.bf16.msra.mxu0 %v1215
        %1229 = vmatpush.bf16.msra.mxu0 %v1214
        %1230 = vmatpush.bf16.msra.mxu0 %v1213
        %1231 = vmatpush.bf16.msra.mxu0 %v1212
        %1232 = vmatpush.bf16.msra.mxu0 %v1211
        %1233 = vmatpush.bf16.msra.mxu0 %v1210
        %1234 = vmatmul.bf16.gmra.mxu0 %v928
        %v1235 = vpop.f32.mrf.mxu0
        %v1236 = vadd.f32 0.0, %v1235
        %v1237 = vpop.f32.mrf.mxu0
        %v1238 = vadd.f32 0.0, %v1237
        %1239 = vmatmul.bf16.gmra.mxu0 %v929
        %v1240 = vpop.f32.mrf.mxu0
        %v1241 = vadd.f32 0.0, %v1240
        %v1242 = vpop.f32.mrf.mxu0
        %v1243 = vadd.f32 0.0, %v1242
        %1244 = vmatmul.bf16.gmra.mxu0 %v930
        %v1245 = vpop.f32.mrf.mxu0
        %v1246 = vadd.f32 0.0, %v1245
        %v1247 = vpop.f32.mrf.mxu0
        %v1248 = vadd.f32 0.0, %v1247
        %1249 = vmatmul.bf16.gmra.mxu0 %v931
        %v1250 = vpop.f32.mrf.mxu0
        %v1251 = vadd.f32 0.0, %v1250
        %v1252 = vpop.f32.mrf.mxu0
        %v1253 = vadd.f32 0.0, %v1252
        %1254 = vmatmul.bf16.gmra.mxu0 %v932
        %v1255 = vpop.f32.mrf.mxu0
        %v1256 = vadd.f32 0.0, %v1255
        %v1257 = vpop.f32.mrf.mxu0
        %v1258 = vadd.f32 0.0, %v1257
        %1259 = vmatmul.bf16.gmra.mxu0 %v933
        %v1260 = vpop.f32.mrf.mxu0
        %v1261 = vadd.f32 0.0, %v1260
        %v1262 = vpop.f32.mrf.mxu0
        %v1263 = vadd.f32 0.0, %v1262
        %1264 = vmatmul.bf16.gmra.mxu0 %v934
        %v1265 = vpop.f32.mrf.mxu0
        %v1266 = vadd.f32 0.0, %v1265
        %v1267 = vpop.f32.mrf.mxu0
        %v1268 = vadd.f32 0.0, %v1267
        %1269 = vmatmul.bf16.gmra.mxu0 %v935
        %v1270 = vpop.f32.mrf.mxu0
        %v1271 = vadd.f32 0.0, %v1270
        %v1272 = vpop.f32.mrf.mxu0
        %v1273 = vadd.f32 0.0, %v1272
        %1274 = vdwg.mxu0
        %vm1275 = vcmask 261120
        %v1277 = vsel %vm1275, %v1010, 0
        %v1280 = vsel %vm1275, %v1012, 0
        %v1283 = vsel %vm1275, %v1015, 0
        %v1286 = vsel %vm1275, %v1017, 0
        %v1289 = vsel %vm1275, %v1020, 0
        %v1292 = vsel %vm1275, %v1022, 0
        %v1295 = vsel %vm1275, %v1025, 0
        %v1298 = vsel %vm1275, %v1027, 0
        %v1301 = vsel %vm1275, %v1030, 0
        %v1304 = vsel %vm1275, %v1032, 0
        %v1307 = vsel %vm1275, %v1035, 0
        %v1310 = vsel %vm1275, %v1037, 0
        %v1313 = vsel %vm1275, %v1040, 0
        %v1316 = vsel %vm1275, %v1042, 0
        %v1319 = vsel %vm1275, %v1045, 0
        %v1322 = vsel %vm1275, %v1047, 0
        %v1325 = vsel %vm1275, %v1123, 0
        %v1328 = vsel %vm1275, %v1125, 0
        %v1331 = vsel %vm1275, %v1128, 0
        %v1334 = vsel %vm1275, %v1130, 0
        %v1337 = vsel %vm1275, %v1133, 0
        %v1340 = vsel %vm1275, %v1135, 0
        %v1343 = vsel %vm1275, %v1138, 0
        %v1346 = vsel %vm1275, %v1140, 0
        %v1349 = vsel %vm1275, %v1143, 0
        %v1352 = vsel %vm1275, %v1145, 0
        %v1355 = vsel %vm1275, %v1148, 0
        %v1358 = vsel %vm1275, %v1150, 0
        %v1361 = vsel %vm1275, %v1153, 0
        %v1364 = vsel %vm1275, %v1155, 0
        %v1367 = vsel %vm1275, %v1158, 0
        %v1370 = vsel %vm1275, %v1160, 0
        %1372 = vmatpush.xpose.msra.mxu0 %v1370
        %1373 = vmatpush.xpose.msra.mxu0 %v1367
        %1374 = vmatpush.xpose.msra.mxu0 %v1364
        %1375 = vmatpush.xpose.msra.mxu0 %v1361
        %1376 = vmatpush.xpose.msra.mxu0 %v1358
        %1377 = vmatpush.xpose.msra.mxu0 %v1355
        %1378 = vmatpush.xpose.msra.mxu0 %v1352
        %1379 = vmatpush.xpose.msra.mxu0 %v1349
        %1380 = vmatpush.xpose.msra.mxu0 %v1346
        %1381 = vmatpush.xpose.msra.mxu0 %v1343
        %1382 = vmatpush.xpose.msra.mxu0 %v1340
        %1383 = vmatpush.xpose.msra.mxu0 %v1337
        %1384 = vmatpush.xpose.msra.mxu0 %v1334
        %1385 = vmatpush.xpose.msra.mxu0 %v1331
        %1386 = vmatpush.xpose.msra.mxu0 %v1328
        %1387 = vmatpush.xpose.msra.mxu0 %v1325
        %1388 = vmatmul.f32.gmra.mxu0 %v1277
        %v1389 = vpop.f32.mrf.mxu0
        %v1390 = vadd.f32 %v581, %v1389
        %1391 = vmatmul.f32.gmra.mxu0 %v1280
        %v1392 = vpop.f32.mrf.mxu0
        %v1393 = vadd.f32 %v582, %v1392
        %1394 = vmatmul.f32.gmra.mxu0 %v1283
        %v1395 = vpop.f32.mrf.mxu0
        %v1396 = vadd.f32 %v583, %v1395
        %1397 = vmatmul.f32.gmra.mxu0 %v1286
        %v1398 = vpop.f32.mrf.mxu0
        %v1399 = vadd.f32 %v584, %v1398
        %1400 = vmatmul.f32.gmra.mxu0 %v1289
        %v1401 = vpop.f32.mrf.mxu0
        %v1402 = vadd.f32 %v585, %v1401
        %1403 = vmatmul.f32.gmra.mxu0 %v1292
        %v1404 = vpop.f32.mrf.mxu0
        %v1405 = vadd.f32 %v586, %v1404
        %1406 = vmatmul.f32.gmra.mxu0 %v1295
        %v1407 = vpop.f32.mrf.mxu0
        %v1408 = vadd.f32 %v587, %v1407
        %1409 = vmatmul.f32.gmra.mxu0 %v1298
        %v1410 = vpop.f32.mrf.mxu0
        %v1411 = vadd.f32 %v588, %v1410
        %1412 = vmatmul.f32.gmra.mxu0 %v1301
        %v1413 = vpop.f32.mrf.mxu0
        %v1414 = vadd.f32 %v589, %v1413
        %1415 = vmatmul.f32.gmra.mxu0 %v1304
        %v1416 = vpop.f32.mrf.mxu0
        %v1417 = vadd.f32 %v590, %v1416
        %1418 = vmatmul.f32.gmra.mxu0 %v1307
        %v1419 = vpop.f32.mrf.mxu0
        %v1420 = vadd.f32 %v591, %v1419
        %1421 = vmatmul.f32.gmra.mxu0 %v1310
        %v1422 = vpop.f32.mrf.mxu0
        %v1423 = vadd.f32 %v592, %v1422
        %1424 = vmatmul.f32.gmra.mxu0 %v1313
        %v1425 = vpop.f32.mrf.mxu0
        %v1426 = vadd.f32 %v593, %v1425
        %1427 = vmatmul.f32.gmra.mxu0 %v1316
        %v1428 = vpop.f32.mrf.mxu0
        %v1429 = vadd.f32 %v594, %v1428
        %1430 = vmatmul.f32.gmra.mxu0 %v1319
        %v1431 = vpop.f32.mrf.mxu0
        %v1432 = vadd.f32 %v595, %v1431
        %1433 = vmatmul.f32.gmra.mxu0 %v1322
        %v1434 = vpop.f32.mrf.mxu0
        %v1435 = vadd.f32 %v596, %v1434
        %1436 = vdwg.mxu0
        %1437 = vmax.xlane.f32.xlu0 %v1390
        %v1438 = vpop.xlane.xlu0 %1437
        %1439 = vmax.xlane.f32.xlu0 %v1393
        %v1440 = vpop.xlane.xlu0 %1439
        %1441 = vmax.xlane.f32.xlu0 %v1396
        %v1442 = vpop.xlane.xlu0 %1441
        %1443 = vmax.xlane.f32.xlu0 %v1399
        %v1444 = vpop.xlane.xlu0 %1443
        %1445 = vmax.xlane.f32.xlu0 %v1402
        %v1446 = vpop.xlane.xlu0 %1445
        %1447 = vmax.xlane.f32.xlu0 %v1405
        %v1448 = vpop.xlane.xlu0 %1447
        %1449 = vmax.xlane.f32.xlu0 %v1408
        %v1450 = vpop.xlane.xlu0 %1449
        %1451 = vmax.xlane.f32.xlu0 %v1411
        %v1452 = vpop.xlane.xlu0 %1451
        %1453 = vmax.xlane.f32.xlu0 %v1414
        %v1454 = vpop.xlane.xlu0 %1453
        %1455 = vmax.xlane.f32.xlu0 %v1417
        %v1456 = vpop.xlane.xlu0 %1455
        %1457 = vmax.xlane.f32.xlu0 %v1420
        %v1458 = vpop.xlane.xlu0 %1457
        %1459 = vmax.xlane.f32.xlu0 %v1423
        %v1460 = vpop.xlane.xlu0 %1459
        %1461 = vmax.xlane.f32.xlu0 %v1426
        %v1462 = vpop.xlane.xlu0 %1461
        %1463 = vmax.xlane.f32.xlu0 %v1429
        %v1464 = vpop.xlane.xlu0 %1463
        %1465 = vmax.xlane.f32.xlu0 %v1432
        %v1466 = vpop.xlane.xlu0 %1465
        %1467 = vmax.xlane.f32.xlu0 %v1435
        %v1468 = vpop.xlane.xlu0 %1467
        %v1469 = vsub.f32 %v1390, %v1438
        %v1470 = vsub.f32 %v1393, %v1440
        %v1471 = vsub.f32 %v1396, %v1442
        %v1472 = vsub.f32 %v1399, %v1444
        %v1473 = vsub.f32 %v1402, %v1446
        %v1474 = vsub.f32 %v1405, %v1448
        %v1475 = vsub.f32 %v1408, %v1450
        %v1476 = vsub.f32 %v1411, %v1452
        %v1477 = vsub.f32 %v1414, %v1454
        %v1478 = vsub.f32 %v1417, %v1456
        %v1479 = vsub.f32 %v1420, %v1458
        %v1480 = vsub.f32 %v1423, %v1460
        %v1481 = vsub.f32 %v1426, %v1462
        %v1482 = vsub.f32 %v1429, %v1464
        %v1483 = vsub.f32 %v1432, %v1466
        %v1484 = vsub.f32 %v1435, %v1468
        %v1485 = vmul.f32 %v1469, 1.442695
        %v1486 = vpow.pop %v1485
        %v1487 = vmul.f32 %v1470, 1.442695
        %v1488 = vpow.pop %v1487
        %v1489 = vmul.f32 %v1471, 1.442695
        %v1490 = vpow.pop %v1489
        %v1491 = vmul.f32 %v1472, 1.442695
        %v1492 = vpow.pop %v1491
        %v1493 = vmul.f32 %v1473, 1.442695
        %v1494 = vpow.pop %v1493
        %v1495 = vmul.f32 %v1474, 1.442695
        %v1496 = vpow.pop %v1495
        %v1497 = vmul.f32 %v1475, 1.442695
        %v1498 = vpow.pop %v1497
        %v1499 = vmul.f32 %v1476, 1.442695
        %v1500 = vpow.pop %v1499
        %v1501 = vmul.f32 %v1477, 1.442695
        %v1502 = vpow.pop %v1501
        %v1503 = vmul.f32 %v1478, 1.442695
        %v1504 = vpow.pop %v1503
        %v1505 = vmul.f32 %v1479, 1.442695
        %v1506 = vpow.pop %v1505
        %v1507 = vmul.f32 %v1480, 1.442695
        %v1508 = vpow.pop %v1507
        %v1509 = vmul.f32 %v1481, 1.442695
        %v1510 = vpow.pop %v1509
        %v1511 = vmul.f32 %v1482, 1.442695
        %v1512 = vpow.pop %v1511
        %v1513 = vmul.f32 %v1483, 1.442695
        %v1514 = vpow.pop %v1513
        %v1515 = vmul.f32 %v1484, 1.442695
        %v1516 = vpow.pop %v1515
        %1517 = vadd.xlane.f32.xlu0 %v1486
        %v1518 = vpop.xlane.xlu0 %1517
        %1519 = vadd.xlane.f32.xlu0 %v1488
        %v1520 = vpop.xlane.xlu0 %1519
        %1521 = vadd.xlane.f32.xlu0 %v1490
        %v1522 = vpop.xlane.xlu0 %1521
        %1523 = vadd.xlane.f32.xlu0 %v1492
        %v1524 = vpop.xlane.xlu0 %1523
        %1525 = vadd.xlane.f32.xlu0 %v1494
        %v1526 = vpop.xlane.xlu0 %1525
        %1527 = vadd.xlane.f32.xlu0 %v1496
        %v1528 = vpop.xlane.xlu0 %1527
        %1529 = vadd.xlane.f32.xlu0 %v1498
        %v1530 = vpop.xlane.xlu0 %1529
        %1531 = vadd.xlane.f32.xlu0 %v1500
        %v1532 = vpop.xlane.xlu0 %1531
        %1533 = vadd.xlane.f32.xlu0 %v1502
        %v1534 = vpop.xlane.xlu0 %1533
        %1535 = vadd.xlane.f32.xlu0 %v1504
        %v1536 = vpop.xlane.xlu0 %1535
        %1537 = vadd.xlane.f32.xlu0 %v1506
        %v1538 = vpop.xlane.xlu0 %1537
        %1539 = vadd.xlane.f32.xlu0 %v1508
        %v1540 = vpop.xlane.xlu0 %1539
        %1541 = vadd.xlane.f32.xlu0 %v1510
        %v1542 = vpop.xlane.xlu0 %1541
        %1543 = vadd.xlane.f32.xlu0 %v1512
        %v1544 = vpop.xlane.xlu0 %1543
        %1545 = vadd.xlane.f32.xlu0 %v1514
        %v1546 = vpop.xlane.xlu0 %1545
        %1547 = vadd.xlane.f32.xlu0 %v1516
        %v1548 = vpop.xlane.xlu0 %1547
        %v1549 = vrcp.pop %v1518
        %v1550 = vrcp.pop %v1520
        %v1551 = vrcp.pop %v1522
        %v1552 = vrcp.pop %v1524
        %v1553 = vrcp.pop %v1526
        %v1554 = vrcp.pop %v1528
        %v1555 = vrcp.pop %v1530
        %v1556 = vrcp.pop %v1532
        %v1557 = vrcp.pop %v1534
        %v1558 = vrcp.pop %v1536
        %v1559 = vrcp.pop %v1538
        %v1560 = vrcp.pop %v1540
        %v1561 = vrcp.pop %v1542
        %v1562 = vrcp.pop %v1544
        %v1563 = vrcp.pop %v1546
        %v1564 = vrcp.pop %v1548
        %v1565 = vmul.f32 %v1486, %v1549
        %v1566 = vmul.f32 %v1488, %v1550
        %v1567 = vmul.f32 %v1490, %v1551
        %v1568 = vmul.f32 %v1492, %v1552
        %v1569 = vmul.f32 %v1494, %v1553
        %v1570 = vmul.f32 %v1496, %v1554
        %v1571 = vmul.f32 %v1498, %v1555
        %v1572 = vmul.f32 %v1500, %v1556
        %v1573 = vmul.f32 %v1502, %v1557
        %v1574 = vmul.f32 %v1504, %v1558
        %v1575 = vmul.f32 %v1506, %v1559
        %v1576 = vmul.f32 %v1508, %v1560
        %v1577 = vmul.f32 %v1510, %v1561
        %v1578 = vmul.f32 %v1512, %v1562
        %v1579 = vmul.f32 %v1514, %v1563
        %v1580 = vmul.f32 %v1516, %v1564
        %1581 = vmatpush.msra.mxu0 %v1273
        %1582 = vmatpush.msra.mxu0 %v1271
        %1583 = vmatpush.msra.mxu0 %v1268
        %1584 = vmatpush.msra.mxu0 %v1266
        %1585 = vmatpush.msra.mxu0 %v1263
        %1586 = vmatpush.msra.mxu0 %v1261
        %1587 = vmatpush.msra.mxu0 %v1258
        %1588 = vmatpush.msra.mxu0 %v1256
        %1589 = vmatpush.msra.mxu0 %v1253
        %1590 = vmatpush.msra.mxu0 %v1251
        %1591 = vmatpush.msra.mxu0 %v1248
        %1592 = vmatpush.msra.mxu0 %v1246
        %1593 = vmatpush.msra.mxu0 %v1243
        %1594 = vmatpush.msra.mxu0 %v1241
        %1595 = vmatpush.msra.mxu0 %v1238
        %1596 = vmatpush.msra.mxu0 %v1236
        %1597 = vmatmul.f32.gmra.mxu0 %v1565
        %v1598 = vpop.f32.mrf.mxu0
        %v1599 = vadd.f32 0.0, %v1598
        %1600 = vmatmul.f32.gmra.mxu0 %v1566
        %v1601 = vpop.f32.mrf.mxu0
        %v1602 = vadd.f32 0.0, %v1601
        %1603 = vmatmul.f32.gmra.mxu0 %v1567
        %v1604 = vpop.f32.mrf.mxu0
        %v1605 = vadd.f32 0.0, %v1604
        %1606 = vmatmul.f32.gmra.mxu0 %v1568
        %v1607 = vpop.f32.mrf.mxu0
        %v1608 = vadd.f32 0.0, %v1607
        %1609 = vmatmul.f32.gmra.mxu0 %v1569
        %v1610 = vpop.f32.mrf.mxu0
        %v1611 = vadd.f32 0.0, %v1610
        %1612 = vmatmul.f32.gmra.mxu0 %v1570
        %v1613 = vpop.f32.mrf.mxu0
        %v1614 = vadd.f32 0.0, %v1613
        %1615 = vmatmul.f32.gmra.mxu0 %v1571
        %v1616 = vpop.f32.mrf.mxu0
        %v1617 = vadd.f32 0.0, %v1616
        %1618 = vmatmul.f32.gmra.mxu0 %v1572
        %v1619 = vpop.f32.mrf.mxu0
        %v1620 = vadd.f32 0.0, %v1619
        %1621 = vmatmul.f32.gmra.mxu0 %v1573
        %v1622 = vpop.f32.mrf.mxu0
        %v1623 = vadd.f32 0.0, %v1622
        %1624 = vmatmul.f32.gmra.mxu0 %v1574
        %v1625 = vpop.f32.mrf.mxu0
        %v1626 = vadd.f32 0.0, %v1625
        %1627 = vmatmul.f32.gmra.mxu0 %v1575
        %v1628 = vpop.f32.mrf.mxu0
        %v1629 = vadd.f32 0.0, %v1628
        %1630 = vmatmul.f32.gmra.mxu0 %v1576
        %v1631 = vpop.f32.mrf.mxu0
        %v1632 = vadd.f32 0.0, %v1631
        %1633 = vmatmul.f32.gmra.mxu0 %v1577
        %v1634 = vpop.f32.mrf.mxu0
        %v1635 = vadd.f32 0.0, %v1634
        %1636 = vmatmul.f32.gmra.mxu0 %v1578
        %v1637 = vpop.f32.mrf.mxu0
        %v1638 = vadd.f32 0.0, %v1637
        %1639 = vmatmul.f32.gmra.mxu0 %v1579
        %v1640 = vpop.f32.mrf.mxu0
        %v1641 = vadd.f32 0.0, %v1640
        %1642 = vmatmul.f32.gmra.mxu0 %v1580
        %v1643 = vpop.f32.mrf.mxu0
        %v1644 = vadd.f32 0.0, %v1643
        %1645 = vdwg.mxu0
        %v1646 = vpack.c.bf16 %v1602, %v1599
        %v1647 = vpack.c.bf16 %v1608, %v1605
        %v1648 = vpack.c.bf16 %v1614, %v1611
        %v1649 = vpack.c.bf16 %v1620, %v1617
        %v1650 = vpack.c.bf16 %v1626, %v1623
        %v1651 = vpack.c.bf16 %v1632, %v1629
        %v1652 = vpack.c.bf16 %v1638, %v1635
        %v1653 = vpack.c.bf16 %v1644, %v1641
        %v1654 = vld [vmem:[%s514] sm:$0xf]
        %v1655 = vld [vmem:[%s514 + $0x4] sm:$0xf]
        %v1656 = vld [vmem:[%s514 + $0x8] sm:$0xf]
        %v1657 = vld [vmem:[%s514 + $0xc] sm:$0xf]
        %s1658 = scalar_lea.vmem %s499, 64
        %v1659 = vld [vmem:[%s1658] sm:$0xf]
        %v1660 = vld [vmem:[%s1658 + $0x4] sm:$0xf]
        %v1661 = vld [vmem:[%s1658 + $0x8] sm:$0xf]
        %v1662 = vld [vmem:[%s1658 + $0xc] sm:$0xf]
        %v1663 = vld [vmem:[%s1658 + $0x10] sm:$0xf]
        %v1664 = vld [vmem:[%s1658 + $0x14] sm:$0xf]
        %v1665 = vld [vmem:[%s1658 + $0x18] sm:$0xf]
        %v1666 = vld [vmem:[%s1658 + $0x1c] sm:$0xf]
        %v1667 = vld [vmem:[%s1658 + $0x20] sm:$0xf]
        %v1668 = vld [vmem:[%s1658 + $0x24] sm:$0xf]
        %v1669 = vld [vmem:[%s1658 + $0x28] sm:$0xf]
        %v1670 = vld [vmem:[%s1658 + $0x2c] sm:$0xf]
        %v1671 = vld [vmem:[%s1658 + $0x30] sm:$0xf]
        %v1672 = vld [vmem:[%s1658 + $0x34] sm:$0xf]
        %v1673 = vld [vmem:[%s1658 + $0x38] sm:$0xf]
        %v1674 = vld [vmem:[%s1658 + $0x3c] sm:$0xf]
        %v1691 = vunpack.c.l.b16 %v1659
        %v1692 = vunpack.c.l.b16 %v1660
        %v1693 = vunpack.c.l.b16 %v1661
        %v1694 = vunpack.c.l.b16 %v1662
        %v1695 = vunpack.c.l.b16 %v1663
        %v1696 = vunpack.c.l.b16 %v1664
        %v1697 = vunpack.c.l.b16 %v1665
        %v1698 = vunpack.c.l.b16 %v1666
        %v1699 = vunpack.c.l.b16 %v1667
        %v1700 = vunpack.c.l.b16 %v1668
        %v1701 = vunpack.c.l.b16 %v1669
        %v1702 = vunpack.c.l.b16 %v1670
        %v1703 = vunpack.c.l.b16 %v1671
        %v1704 = vunpack.c.l.b16 %v1672
        %v1705 = vunpack.c.l.b16 %v1673
        %v1706 = vunpack.c.l.b16 %v1674
        %v1707 = vpack.c.b16 %v1692, %v1691
        %v1708 = vpack.c.b16 %v1694, %v1693
        %v1709 = vpack.c.b16 %v1696, %v1695
        %v1710 = vpack.c.b16 %v1698, %v1697
        %v1711 = vpack.c.b16 %v1700, %v1699
        %v1712 = vpack.c.b16 %v1702, %v1701
        %v1713 = vpack.c.b16 %v1704, %v1703
        %v1714 = vpack.c.b16 %v1706, %v1705
        %1723 = vmatpush.bf16.msra.mxu0 %v1714
        %1724 = vmatpush.bf16.msra.mxu0 %v1713
        %1725 = vmatpush.bf16.msra.mxu0 %v1712
        %1726 = vmatpush.bf16.msra.mxu0 %v1711
        %1727 = vmatpush.bf16.msra.mxu0 %v1710
        %1728 = vmatpush.bf16.msra.mxu0 %v1709
        %1729 = vmatpush.bf16.msra.mxu0 %v1708
        %1730 = vmatpush.bf16.msra.mxu0 %v1707
        %1731 = vmatmul.bf16.gmra.mxu0 %v928
        %v1732 = vpop.f32.mrf.mxu0
        %v1733 = vadd.f32 0.0, %v1732
        %v1734 = vpop.f32.mrf.mxu0
        %v1735 = vadd.f32 0.0, %v1734
        %1736 = vmatmul.bf16.gmra.mxu0 %v929
        %v1737 = vpop.f32.mrf.mxu0
        %v1738 = vadd.f32 0.0, %v1737
        %v1739 = vpop.f32.mrf.mxu0
        %v1740 = vadd.f32 0.0, %v1739
        %1741 = vmatmul.bf16.gmra.mxu0 %v930
        %v1742 = vpop.f32.mrf.mxu0
        %v1743 = vadd.f32 0.0, %v1742
        %v1744 = vpop.f32.mrf.mxu0
        %v1745 = vadd.f32 0.0, %v1744
        %1746 = vmatmul.bf16.gmra.mxu0 %v931
        %v1747 = vpop.f32.mrf.mxu0
        %v1748 = vadd.f32 0.0, %v1747
        %v1749 = vpop.f32.mrf.mxu0
        %v1750 = vadd.f32 0.0, %v1749
        %1751 = vmatmul.bf16.gmra.mxu0 %v932
        %v1752 = vpop.f32.mrf.mxu0
        %v1753 = vadd.f32 0.0, %v1752
        %v1754 = vpop.f32.mrf.mxu0
        %v1755 = vadd.f32 0.0, %v1754
        %1756 = vmatmul.bf16.gmra.mxu0 %v933
        %v1757 = vpop.f32.mrf.mxu0
        %v1758 = vadd.f32 0.0, %v1757
        %v1759 = vpop.f32.mrf.mxu0
        %v1760 = vadd.f32 0.0, %v1759
        %1761 = vmatmul.bf16.gmra.mxu0 %v934
        %v1762 = vpop.f32.mrf.mxu0
        %v1763 = vadd.f32 0.0, %v1762
        %v1764 = vpop.f32.mrf.mxu0
        %v1765 = vadd.f32 0.0, %v1764
        %1766 = vmatmul.bf16.gmra.mxu0 %v935
        %v1767 = vpop.f32.mrf.mxu0
        %v1768 = vadd.f32 0.0, %v1767
        %v1769 = vpop.f32.mrf.mxu0
        %v1770 = vadd.f32 0.0, %v1769
        %1771 = vdwg.mxu0
        %s1772 = scalar_lea.vmem %s504, 64
        %v1773 = vld [vmem:[%s1772] sm:$0xf]
        %v1774 = vld [vmem:[%s1772 + $0x4] sm:$0xf]
        %v1775 = vld [vmem:[%s1772 + $0x8] sm:$0xf]
        %v1776 = vld [vmem:[%s1772 + $0xc] sm:$0xf]
        %v1777 = vld [vmem:[%s1772 + $0x10] sm:$0xf]
        %v1778 = vld [vmem:[%s1772 + $0x14] sm:$0xf]
        %v1779 = vld [vmem:[%s1772 + $0x18] sm:$0xf]
        %v1780 = vld [vmem:[%s1772 + $0x1c] sm:$0xf]
        %v1781 = vld [vmem:[%s1772 + $0x20] sm:$0xf]
        %v1782 = vld [vmem:[%s1772 + $0x24] sm:$0xf]
        %v1783 = vld [vmem:[%s1772 + $0x28] sm:$0xf]
        %v1784 = vld [vmem:[%s1772 + $0x2c] sm:$0xf]
        %v1785 = vld [vmem:[%s1772 + $0x30] sm:$0xf]
        %v1786 = vld [vmem:[%s1772 + $0x34] sm:$0xf]
        %v1787 = vld [vmem:[%s1772 + $0x38] sm:$0xf]
        %v1788 = vld [vmem:[%s1772 + $0x3c] sm:$0xf]
        %v1805 = vunpack.c.l.b16 %v1773
        %v1806 = vunpack.c.l.b16 %v1774
        %v1807 = vunpack.c.l.b16 %v1775
        %v1808 = vunpack.c.l.b16 %v1776
        %v1809 = vunpack.c.l.b16 %v1777
        %v1810 = vunpack.c.l.b16 %v1778
        %v1811 = vunpack.c.l.b16 %v1779
        %v1812 = vunpack.c.l.b16 %v1780
        %v1813 = vunpack.c.l.b16 %v1781
        %v1814 = vunpack.c.l.b16 %v1782
        %v1815 = vunpack.c.l.b16 %v1783
        %v1816 = vunpack.c.l.b16 %v1784
        %v1817 = vunpack.c.l.b16 %v1785
        %v1818 = vunpack.c.l.b16 %v1786
        %v1819 = vunpack.c.l.b16 %v1787
        %v1820 = vunpack.c.l.b16 %v1788
        %v1821 = vpack.c.b16 %v1806, %v1805
        %v1822 = vpack.c.b16 %v1808, %v1807
        %v1823 = vpack.c.b16 %v1810, %v1809
        %v1824 = vpack.c.b16 %v1812, %v1811
        %v1825 = vpack.c.b16 %v1814, %v1813
        %v1826 = vpack.c.b16 %v1816, %v1815
        %v1827 = vpack.c.b16 %v1818, %v1817
        %v1828 = vpack.c.b16 %v1820, %v1819
        %1837 = vmatpush.bf16.msra.mxu0 %v1828
        %1838 = vmatpush.bf16.msra.mxu0 %v1827
        %1839 = vmatpush.bf16.msra.mxu0 %v1826
        %1840 = vmatpush.bf16.msra.mxu0 %v1825
        %1841 = vmatpush.bf16.msra.mxu0 %v1824
        %1842 = vmatpush.bf16.msra.mxu0 %v1823
        %1843 = vmatpush.bf16.msra.mxu0 %v1822
        %1844 = vmatpush.bf16.msra.mxu0 %v1821
        %1845 = vmatmul.bf16.gmra.mxu0 %v928
        %v1846 = vpop.f32.mrf.mxu0
        %v1847 = vadd.f32 0.0, %v1846
        %v1848 = vpop.f32.mrf.mxu0
        %v1849 = vadd.f32 0.0, %v1848
        %1850 = vmatmul.bf16.gmra.mxu0 %v929
        %v1851 = vpop.f32.mrf.mxu0
        %v1852 = vadd.f32 0.0, %v1851
        %v1853 = vpop.f32.mrf.mxu0
        %v1854 = vadd.f32 0.0, %v1853
        %1855 = vmatmul.bf16.gmra.mxu0 %v930
        %v1856 = vpop.f32.mrf.mxu0
        %v1857 = vadd.f32 0.0, %v1856
        %v1858 = vpop.f32.mrf.mxu0
        %v1859 = vadd.f32 0.0, %v1858
        %1860 = vmatmul.bf16.gmra.mxu0 %v931
        %v1861 = vpop.f32.mrf.mxu0
        %v1862 = vadd.f32 0.0, %v1861
        %v1863 = vpop.f32.mrf.mxu0
        %v1864 = vadd.f32 0.0, %v1863
        %1865 = vmatmul.bf16.gmra.mxu0 %v932
        %v1866 = vpop.f32.mrf.mxu0
        %v1867 = vadd.f32 0.0, %v1866
        %v1868 = vpop.f32.mrf.mxu0
        %v1869 = vadd.f32 0.0, %v1868
        %1870 = vmatmul.bf16.gmra.mxu0 %v933
        %v1871 = vpop.f32.mrf.mxu0
        %v1872 = vadd.f32 0.0, %v1871
        %v1873 = vpop.f32.mrf.mxu0
        %v1874 = vadd.f32 0.0, %v1873
        %1875 = vmatmul.bf16.gmra.mxu0 %v934
        %v1876 = vpop.f32.mrf.mxu0
        %v1877 = vadd.f32 0.0, %v1876
        %v1878 = vpop.f32.mrf.mxu0
        %v1879 = vadd.f32 0.0, %v1878
        %1880 = vmatmul.bf16.gmra.mxu0 %v935
        %v1881 = vpop.f32.mrf.mxu0
        %v1882 = vadd.f32 0.0, %v1881
        %v1883 = vpop.f32.mrf.mxu0
        %v1884 = vadd.f32 0.0, %v1883
        %1885 = vdwg.mxu0
        %s1886 = scalar_lea.vmem %s509, 64
        %v1887 = vld [vmem:[%s1886] sm:$0xf]
        %v1888 = vld [vmem:[%s1886 + $0x4] sm:$0xf]
        %v1889 = vld [vmem:[%s1886 + $0x8] sm:$0xf]
        %v1890 = vld [vmem:[%s1886 + $0xc] sm:$0xf]
        %v1891 = vld [vmem:[%s1886 + $0x10] sm:$0xf]
        %v1892 = vld [vmem:[%s1886 + $0x14] sm:$0xf]
        %v1893 = vld [vmem:[%s1886 + $0x18] sm:$0xf]
        %v1894 = vld [vmem:[%s1886 + $0x1c] sm:$0xf]
        %v1895 = vld [vmem:[%s1886 + $0x20] sm:$0xf]
        %v1896 = vld [vmem:[%s1886 + $0x24] sm:$0xf]
        %v1897 = vld [vmem:[%s1886 + $0x28] sm:$0xf]
        %v1898 = vld [vmem:[%s1886 + $0x2c] sm:$0xf]
        %v1899 = vld [vmem:[%s1886 + $0x30] sm:$0xf]
        %v1900 = vld [vmem:[%s1886 + $0x34] sm:$0xf]
        %v1901 = vld [vmem:[%s1886 + $0x38] sm:$0xf]
        %v1902 = vld [vmem:[%s1886 + $0x3c] sm:$0xf]
        %v1919 = vunpack.c.l.b16 %v1887
        %v1920 = vunpack.c.l.b16 %v1888
        %v1921 = vunpack.c.l.b16 %v1889
        %v1922 = vunpack.c.l.b16 %v1890
        %v1923 = vunpack.c.l.b16 %v1891
        %v1924 = vunpack.c.l.b16 %v1892
        %v1925 = vunpack.c.l.b16 %v1893
        %v1926 = vunpack.c.l.b16 %v1894
        %v1927 = vunpack.c.l.b16 %v1895
        %v1928 = vunpack.c.l.b16 %v1896
        %v1929 = vunpack.c.l.b16 %v1897
        %v1930 = vunpack.c.l.b16 %v1898
        %v1931 = vunpack.c.l.b16 %v1899
        %v1932 = vunpack.c.l.b16 %v1900
        %v1933 = vunpack.c.l.b16 %v1901
        %v1934 = vunpack.c.l.b16 %v1902
        %v1935 = vpack.c.b16 %v1920, %v1919
        %v1936 = vpack.c.b16 %v1922, %v1921
        %v1937 = vpack.c.b16 %v1924, %v1923
        %v1938 = vpack.c.b16 %v1926, %v1925
        %v1939 = vpack.c.b16 %v1928, %v1927
        %v1940 = vpack.c.b16 %v1930, %v1929
        %v1941 = vpack.c.b16 %v1932, %v1931
        %v1942 = vpack.c.b16 %v1934, %v1933
        %1951 = vmatpush.bf16.msra.mxu0 %v1942
        %1952 = vmatpush.bf16.msra.mxu0 %v1941
        %1953 = vmatpush.bf16.msra.mxu0 %v1940
        %1954 = vmatpush.bf16.msra.mxu0 %v1939
        %1955 = vmatpush.bf16.msra.mxu0 %v1938
        %1956 = vmatpush.bf16.msra.mxu0 %v1937
        %1957 = vmatpush.bf16.msra.mxu0 %v1936
        %1958 = vmatpush.bf16.msra.mxu0 %v1935
        %1959 = vmatmul.bf16.gmra.mxu0 %v928
        %v1960 = vpop.f32.mrf.mxu0
        %v1961 = vadd.f32 0.0, %v1960
        %v1962 = vpop.f32.mrf.mxu0
        %v1963 = vadd.f32 0.0, %v1962
        %1964 = vmatmul.bf16.gmra.mxu0 %v929
        %v1965 = vpop.f32.mrf.mxu0
        %v1966 = vadd.f32 0.0, %v1965
        %v1967 = vpop.f32.mrf.mxu0
        %v1968 = vadd.f32 0.0, %v1967
        %1969 = vmatmul.bf16.gmra.mxu0 %v930
        %v1970 = vpop.f32.mrf.mxu0
        %v1971 = vadd.f32 0.0, %v1970
        %v1972 = vpop.f32.mrf.mxu0
        %v1973 = vadd.f32 0.0, %v1972
        %1974 = vmatmul.bf16.gmra.mxu0 %v931
        %v1975 = vpop.f32.mrf.mxu0
        %v1976 = vadd.f32 0.0, %v1975
        %v1977 = vpop.f32.mrf.mxu0
        %v1978 = vadd.f32 0.0, %v1977
        %1979 = vmatmul.bf16.gmra.mxu0 %v932
        %v1980 = vpop.f32.mrf.mxu0
        %v1981 = vadd.f32 0.0, %v1980
        %v1982 = vpop.f32.mrf.mxu0
        %v1983 = vadd.f32 0.0, %v1982
        %1984 = vmatmul.bf16.gmra.mxu0 %v933
        %v1985 = vpop.f32.mrf.mxu0
        %v1986 = vadd.f32 0.0, %v1985
        %v1987 = vpop.f32.mrf.mxu0
        %v1988 = vadd.f32 0.0, %v1987
        %1989 = vmatmul.bf16.gmra.mxu0 %v934
        %v1990 = vpop.f32.mrf.mxu0
        %v1991 = vadd.f32 0.0, %v1990
        %v1992 = vpop.f32.mrf.mxu0
        %v1993 = vadd.f32 0.0, %v1992
        %1994 = vmatmul.bf16.gmra.mxu0 %v935
        %v1995 = vpop.f32.mrf.mxu0
        %v1996 = vadd.f32 0.0, %v1995
        %v1997 = vpop.f32.mrf.mxu0
        %v1998 = vadd.f32 0.0, %v1997
        %1999 = vdwg.mxu0
        %v2001 = vsel %vm1275, %v1733, 0
        %v2004 = vsel %vm1275, %v1735, 0
        %v2007 = vsel %vm1275, %v1738, 0
        %v2010 = vsel %vm1275, %v1740, 0
        %v2013 = vsel %vm1275, %v1743, 0
        %v2016 = vsel %vm1275, %v1745, 0
        %v2019 = vsel %vm1275, %v1748, 0
        %v2022 = vsel %vm1275, %v1750, 0
        %v2025 = vsel %vm1275, %v1753, 0
        %v2028 = vsel %vm1275, %v1755, 0
        %v2031 = vsel %vm1275, %v1758, 0
        %v2034 = vsel %vm1275, %v1760, 0
        %v2037 = vsel %vm1275, %v1763, 0
        %v2040 = vsel %vm1275, %v1765, 0
        %v2043 = vsel %vm1275, %v1768, 0
        %v2046 = vsel %vm1275, %v1770, 0
        %v2049 = vsel %vm1275, %v1847, 0
        %v2052 = vsel %vm1275, %v1849, 0
        %v2055 = vsel %vm1275, %v1852, 0
        %v2058 = vsel %vm1275, %v1854, 0
        %v2061 = vsel %vm1275, %v1857, 0
        %v2064 = vsel %vm1275, %v1859, 0
        %v2067 = vsel %vm1275, %v1862, 0
        %v2070 = vsel %vm1275, %v1864, 0
        %v2073 = vsel %vm1275, %v1867, 0
        %v2076 = vsel %vm1275, %v1869, 0
        %v2079 = vsel %vm1275, %v1872, 0
        %v2082 = vsel %vm1275, %v1874, 0
        %v2085 = vsel %vm1275, %v1877, 0
        %v2088 = vsel %vm1275, %v1879, 0
        %v2091 = vsel %vm1275, %v1882, 0
        %v2094 = vsel %vm1275, %v1884, 0
        %2096 = vmatpush.xpose.msra.mxu0 %v2094
        %2097 = vmatpush.xpose.msra.mxu0 %v2091
        %2098 = vmatpush.xpose.msra.mxu0 %v2088
        %2099 = vmatpush.xpose.msra.mxu0 %v2085
        %2100 = vmatpush.xpose.msra.mxu0 %v2082
        %2101 = vmatpush.xpose.msra.mxu0 %v2079
        %2102 = vmatpush.xpose.msra.mxu0 %v2076
        %2103 = vmatpush.xpose.msra.mxu0 %v2073
        %2104 = vmatpush.xpose.msra.mxu0 %v2070
        %2105 = vmatpush.xpose.msra.mxu0 %v2067
        %2106 = vmatpush.xpose.msra.mxu0 %v2064
        %2107 = vmatpush.xpose.msra.mxu0 %v2061
        %2108 = vmatpush.xpose.msra.mxu0 %v2058
        %2109 = vmatpush.xpose.msra.mxu0 %v2055
        %2110 = vmatpush.xpose.msra.mxu0 %v2052
        %2111 = vmatpush.xpose.msra.mxu0 %v2049
        %2112 = vmatmul.f32.gmra.mxu0 %v2001
        %v2113 = vpop.f32.mrf.mxu0
        %v2114 = vadd.f32 %v581, %v2113
        %2115 = vmatmul.f32.gmra.mxu0 %v2004
        %v2116 = vpop.f32.mrf.mxu0
        %v2117 = vadd.f32 %v582, %v2116
        %2118 = vmatmul.f32.gmra.mxu0 %v2007
        %v2119 = vpop.f32.mrf.mxu0
        %v2120 = vadd.f32 %v583, %v2119
        %2121 = vmatmul.f32.gmra.mxu0 %v2010
        %v2122 = vpop.f32.mrf.mxu0
        %v2123 = vadd.f32 %v584, %v2122
        %2124 = vmatmul.f32.gmra.mxu0 %v2013
        %v2125 = vpop.f32.mrf.mxu0
        %v2126 = vadd.f32 %v585, %v2125
        %2127 = vmatmul.f32.gmra.mxu0 %v2016
        %v2128 = vpop.f32.mrf.mxu0
        %v2129 = vadd.f32 %v586, %v2128
        %2130 = vmatmul.f32.gmra.mxu0 %v2019
        %v2131 = vpop.f32.mrf.mxu0
        %v2132 = vadd.f32 %v587, %v2131
        %2133 = vmatmul.f32.gmra.mxu0 %v2022
        %v2134 = vpop.f32.mrf.mxu0
        %v2135 = vadd.f32 %v588, %v2134
        %2136 = vmatmul.f32.gmra.mxu0 %v2025
        %v2137 = vpop.f32.mrf.mxu0
        %v2138 = vadd.f32 %v589, %v2137
        %2139 = vmatmul.f32.gmra.mxu0 %v2028
        %v2140 = vpop.f32.mrf.mxu0
        %v2141 = vadd.f32 %v590, %v2140
        %2142 = vmatmul.f32.gmra.mxu0 %v2031
        %v2143 = vpop.f32.mrf.mxu0
        %v2144 = vadd.f32 %v591, %v2143
        %2145 = vmatmul.f32.gmra.mxu0 %v2034
        %v2146 = vpop.f32.mrf.mxu0
        %v2147 = vadd.f32 %v592, %v2146
        %2148 = vmatmul.f32.gmra.mxu0 %v2037
        %v2149 = vpop.f32.mrf.mxu0
        %v2150 = vadd.f32 %v593, %v2149
        %2151 = vmatmul.f32.gmra.mxu0 %v2040
        %v2152 = vpop.f32.mrf.mxu0
        %v2153 = vadd.f32 %v594, %v2152
        %2154 = vmatmul.f32.gmra.mxu0 %v2043
        %v2155 = vpop.f32.mrf.mxu0
        %v2156 = vadd.f32 %v595, %v2155
        %2157 = vmatmul.f32.gmra.mxu0 %v2046
        %v2158 = vpop.f32.mrf.mxu0
        %v2159 = vadd.f32 %v596, %v2158
        %2160 = vdwg.mxu0
        %2161 = vmax.xlane.f32.xlu0 %v2114
        %v2162 = vpop.xlane.xlu0 %2161
        %2163 = vmax.xlane.f32.xlu0 %v2117
        %v2164 = vpop.xlane.xlu0 %2163
        %2165 = vmax.xlane.f32.xlu0 %v2120
        %v2166 = vpop.xlane.xlu0 %2165
        %2167 = vmax.xlane.f32.xlu0 %v2123
        %v2168 = vpop.xlane.xlu0 %2167
        %2169 = vmax.xlane.f32.xlu0 %v2126
        %v2170 = vpop.xlane.xlu0 %2169
        %2171 = vmax.xlane.f32.xlu0 %v2129
        %v2172 = vpop.xlane.xlu0 %2171
        %2173 = vmax.xlane.f32.xlu0 %v2132
        %v2174 = vpop.xlane.xlu0 %2173
        %2175 = vmax.xlane.f32.xlu0 %v2135
        %v2176 = vpop.xlane.xlu0 %2175
        %2177 = vmax.xlane.f32.xlu0 %v2138
        %v2178 = vpop.xlane.xlu0 %2177
        %2179 = vmax.xlane.f32.xlu0 %v2141
        %v2180 = vpop.xlane.xlu0 %2179
        %2181 = vmax.xlane.f32.xlu0 %v2144
        %v2182 = vpop.xlane.xlu0 %2181
        %2183 = vmax.xlane.f32.xlu0 %v2147
        %v2184 = vpop.xlane.xlu0 %2183
        %2185 = vmax.xlane.f32.xlu0 %v2150
        %v2186 = vpop.xlane.xlu0 %2185
        %2187 = vmax.xlane.f32.xlu0 %v2153
        %v2188 = vpop.xlane.xlu0 %2187
        %2189 = vmax.xlane.f32.xlu0 %v2156
        %v2190 = vpop.xlane.xlu0 %2189
        %2191 = vmax.xlane.f32.xlu0 %v2159
        %v2192 = vpop.xlane.xlu0 %2191
        %v2193 = vsub.f32 %v2114, %v2162
        %v2194 = vsub.f32 %v2117, %v2164
        %v2195 = vsub.f32 %v2120, %v2166
        %v2196 = vsub.f32 %v2123, %v2168
        %v2197 = vsub.f32 %v2126, %v2170
        %v2198 = vsub.f32 %v2129, %v2172
        %v2199 = vsub.f32 %v2132, %v2174
        %v2200 = vsub.f32 %v2135, %v2176
        %v2201 = vsub.f32 %v2138, %v2178
        %v2202 = vsub.f32 %v2141, %v2180
        %v2203 = vsub.f32 %v2144, %v2182
        %v2204 = vsub.f32 %v2147, %v2184
        %v2205 = vsub.f32 %v2150, %v2186
        %v2206 = vsub.f32 %v2153, %v2188
        %v2207 = vsub.f32 %v2156, %v2190
        %v2208 = vsub.f32 %v2159, %v2192
        %v2209 = vmul.f32 %v2193, 1.442695
        %v2210 = vpow.pop %v2209
        %v2211 = vmul.f32 %v2194, 1.442695
        %v2212 = vpow.pop %v2211
        %v2213 = vmul.f32 %v2195, 1.442695
        %v2214 = vpow.pop %v2213
        %v2215 = vmul.f32 %v2196, 1.442695
        %v2216 = vpow.pop %v2215
        %v2217 = vmul.f32 %v2197, 1.442695
        %v2218 = vpow.pop %v2217
        %v2219 = vmul.f32 %v2198, 1.442695
        %v2220 = vpow.pop %v2219
        %v2221 = vmul.f32 %v2199, 1.442695
        %v2222 = vpow.pop %v2221
        %v2223 = vmul.f32 %v2200, 1.442695
        %v2224 = vpow.pop %v2223
        %v2225 = vmul.f32 %v2201, 1.442695
        %v2226 = vpow.pop %v2225
        %v2227 = vmul.f32 %v2202, 1.442695
        %v2228 = vpow.pop %v2227
        %v2229 = vmul.f32 %v2203, 1.442695
        %v2230 = vpow.pop %v2229
        %v2231 = vmul.f32 %v2204, 1.442695
        %v2232 = vpow.pop %v2231
        %v2233 = vmul.f32 %v2205, 1.442695
        %v2234 = vpow.pop %v2233
        %v2235 = vmul.f32 %v2206, 1.442695
        %v2236 = vpow.pop %v2235
        %v2237 = vmul.f32 %v2207, 1.442695
        %v2238 = vpow.pop %v2237
        %v2239 = vmul.f32 %v2208, 1.442695
        %v2240 = vpow.pop %v2239
        %2241 = vadd.xlane.f32.xlu0 %v2210
        %v2242 = vpop.xlane.xlu0 %2241
        %2243 = vadd.xlane.f32.xlu0 %v2212
        %v2244 = vpop.xlane.xlu0 %2243
        %2245 = vadd.xlane.f32.xlu0 %v2214
        %v2246 = vpop.xlane.xlu0 %2245
        %2247 = vadd.xlane.f32.xlu0 %v2216
        %v2248 = vpop.xlane.xlu0 %2247
        %2249 = vadd.xlane.f32.xlu0 %v2218
        %v2250 = vpop.xlane.xlu0 %2249
        %2251 = vadd.xlane.f32.xlu0 %v2220
        %v2252 = vpop.xlane.xlu0 %2251
        %2253 = vadd.xlane.f32.xlu0 %v2222
        %v2254 = vpop.xlane.xlu0 %2253
        %2255 = vadd.xlane.f32.xlu0 %v2224
        %v2256 = vpop.xlane.xlu0 %2255
        %2257 = vadd.xlane.f32.xlu0 %v2226
        %v2258 = vpop.xlane.xlu0 %2257
        %2259 = vadd.xlane.f32.xlu0 %v2228
        %v2260 = vpop.xlane.xlu0 %2259
        %2261 = vadd.xlane.f32.xlu0 %v2230
        %v2262 = vpop.xlane.xlu0 %2261
        %2263 = vadd.xlane.f32.xlu0 %v2232
        %v2264 = vpop.xlane.xlu0 %2263
        %2265 = vadd.xlane.f32.xlu0 %v2234
        %v2266 = vpop.xlane.xlu0 %2265
        %2267 = vadd.xlane.f32.xlu0 %v2236
        %v2268 = vpop.xlane.xlu0 %2267
        %2269 = vadd.xlane.f32.xlu0 %v2238
        %v2270 = vpop.xlane.xlu0 %2269
        %2271 = vadd.xlane.f32.xlu0 %v2240
        %v2272 = vpop.xlane.xlu0 %2271
        %v2273 = vrcp.pop %v2242
        %v2274 = vrcp.pop %v2244
        %v2275 = vrcp.pop %v2246
        %v2276 = vrcp.pop %v2248
        %v2277 = vrcp.pop %v2250
        %v2278 = vrcp.pop %v2252
        %v2279 = vrcp.pop %v2254
        %v2280 = vrcp.pop %v2256
        %v2281 = vrcp.pop %v2258
        %v2282 = vrcp.pop %v2260
        %v2283 = vrcp.pop %v2262
        %v2284 = vrcp.pop %v2264
        %v2285 = vrcp.pop %v2266
        %v2286 = vrcp.pop %v2268
        %v2287 = vrcp.pop %v2270
        %v2288 = vrcp.pop %v2272
        %v2289 = vmul.f32 %v2210, %v2273
        %v2290 = vmul.f32 %v2212, %v2274
        %v2291 = vmul.f32 %v2214, %v2275
        %v2292 = vmul.f32 %v2216, %v2276
        %v2293 = vmul.f32 %v2218, %v2277
        %v2294 = vmul.f32 %v2220, %v2278
        %v2295 = vmul.f32 %v2222, %v2279
        %v2296 = vmul.f32 %v2224, %v2280
        %v2297 = vmul.f32 %v2226, %v2281
        %v2298 = vmul.f32 %v2228, %v2282
        %v2299 = vmul.f32 %v2230, %v2283
        %v2300 = vmul.f32 %v2232, %v2284
        %v2301 = vmul.f32 %v2234, %v2285
        %v2302 = vmul.f32 %v2236, %v2286
        %v2303 = vmul.f32 %v2238, %v2287
        %v2304 = vmul.f32 %v2240, %v2288
        %2305 = vmatpush.msra.mxu0 %v1998
        %2306 = vmatpush.msra.mxu0 %v1996
        %2307 = vmatpush.msra.mxu0 %v1993
        %2308 = vmatpush.msra.mxu0 %v1991
        %2309 = vmatpush.msra.mxu0 %v1988
        %2310 = vmatpush.msra.mxu0 %v1986
        %2311 = vmatpush.msra.mxu0 %v1983
        %2312 = vmatpush.msra.mxu0 %v1981
        %2313 = vmatpush.msra.mxu0 %v1978
        %2314 = vmatpush.msra.mxu0 %v1976
        %2315 = vmatpush.msra.mxu0 %v1973
        %2316 = vmatpush.msra.mxu0 %v1971
        %2317 = vmatpush.msra.mxu0 %v1968
        %2318 = vmatpush.msra.mxu0 %v1966
        %2319 = vmatpush.msra.mxu0 %v1963
        %2320 = vmatpush.msra.mxu0 %v1961
        %2321 = vmatmul.f32.gmra.mxu0 %v2289
        %v2322 = vpop.f32.mrf.mxu0
        %v2323 = vadd.f32 0.0, %v2322
        %2324 = vmatmul.f32.gmra.mxu0 %v2290
        %v2325 = vpop.f32.mrf.mxu0
        %v2326 = vadd.f32 0.0, %v2325
        %2327 = vmatmul.f32.gmra.mxu0 %v2291
        %v2328 = vpop.f32.mrf.mxu0
        %v2329 = vadd.f32 0.0, %v2328
        %2330 = vmatmul.f32.gmra.mxu0 %v2292
        %v2331 = vpop.f32.mrf.mxu0
        %v2332 = vadd.f32 0.0, %v2331
        %2333 = vmatmul.f32.gmra.mxu0 %v2293
        %v2334 = vpop.f32.mrf.mxu0
        %v2335 = vadd.f32 0.0, %v2334
        %2336 = vmatmul.f32.gmra.mxu0 %v2294
        %v2337 = vpop.f32.mrf.mxu0
        %v2338 = vadd.f32 0.0, %v2337
        %2339 = vmatmul.f32.gmra.mxu0 %v2295
        %v2340 = vpop.f32.mrf.mxu0
        %v2341 = vadd.f32 0.0, %v2340
        %2342 = vmatmul.f32.gmra.mxu0 %v2296
        %v2343 = vpop.f32.mrf.mxu0
        %v2344 = vadd.f32 0.0, %v2343
        %2345 = vmatmul.f32.gmra.mxu0 %v2297
        %v2346 = vpop.f32.mrf.mxu0
        %v2347 = vadd.f32 0.0, %v2346
        %2348 = vmatmul.f32.gmra.mxu0 %v2298
        %v2349 = vpop.f32.mrf.mxu0
        %v2350 = vadd.f32 0.0, %v2349
        %2351 = vmatmul.f32.gmra.mxu0 %v2299
        %v2352 = vpop.f32.mrf.mxu0
        %v2353 = vadd.f32 0.0, %v2352
        %2354 = vmatmul.f32.gmra.mxu0 %v2300
        %v2355 = vpop.f32.mrf.mxu0
        %v2356 = vadd.f32 0.0, %v2355
        %2357 = vmatmul.f32.gmra.mxu0 %v2301
        %v2358 = vpop.f32.mrf.mxu0
        %v2359 = vadd.f32 0.0, %v2358
        %2360 = vmatmul.f32.gmra.mxu0 %v2302
        %v2361 = vpop.f32.mrf.mxu0
        %v2362 = vadd.f32 0.0, %v2361
        %2363 = vmatmul.f32.gmra.mxu0 %v2303
        %v2364 = vpop.f32.mrf.mxu0
        %v2365 = vadd.f32 0.0, %v2364
        %2366 = vmatmul.f32.gmra.mxu0 %v2304
        %v2367 = vpop.f32.mrf.mxu0
        %v2368 = vadd.f32 0.0, %v2367
        %2369 = vdwg.mxu0
        %v2370 = vpack.c.bf16 %v2326, %v2323
        %v2371 = vpack.c.bf16 %v2332, %v2329
        %v2372 = vpack.c.bf16 %v2338, %v2335
        %v2373 = vpack.c.bf16 %v2344, %v2341
        %v2374 = vpack.c.bf16 %v2350, %v2347
        %v2375 = vpack.c.bf16 %v2356, %v2353
        %v2376 = vpack.c.bf16 %v2362, %v2359
        %v2377 = vpack.c.bf16 %v2368, %v2365
        %s2378 = scalar_lea.vmem %s514, 16
        %v2379 = vld [vmem:[%s2378] sm:$0xf]
        %v2380 = vld [vmem:[%s2378 + $0x4] sm:$0xf]
        %v2381 = vld [vmem:[%s2378 + $0x8] sm:$0xf]
        %v2382 = vld [vmem:[%s2378 + $0xc] sm:$0xf]
        %v2387 = vunpack.c.l.b16 %v2379
        %v2388 = vunpack.c.l.b16 %v2380
        %v2389 = vunpack.c.l.b16 %v2381
        %v2390 = vunpack.c.l.b16 %v2382
        %v2391 = vpack.c.b16 %v2388, %v2387
        %v2392 = vpack.c.b16 %v2390, %v2389
        %v2396 = vsel %vm1275, %v2370, 0
        %v2399 = vsel %vm1275, %v2371, 0
        %v2402 = vsel %vm1275, %v2372, 0
        %v2405 = vsel %vm1275, %v2373, 0
        %v2408 = vsel %vm1275, %v2374, 0
        %v2411 = vsel %vm1275, %v2375, 0
        %v2414 = vsel %vm1275, %v2376, 0
        %v2417 = vsel %vm1275, %v2377, 0
        %2419 = vmatpush.bf16.msra.mxu0 0
        %2420 = vmatpush.bf16.msra.mxu0 0
        %2421 = vmatpush.bf16.msra.mxu0 0
        %2422 = vmatpush.bf16.msra.mxu0 0
        %2423 = vmatpush.bf16.msra.mxu0 0
        %2424 = vmatpush.bf16.msra.mxu0 0
        %2425 = vmatpush.bf16.msra.mxu0 %v2392
        %2426 = vmatpush.bf16.msra.mxu0 %v2391
        %2427 = vmatmul.bf16.gmra.mxu0 %v2396
        %v2428 = vpop.f32.mrf.mxu0
        %v2429 = vadd.f32 0.0, %v2428
        %v2430 = vpop.f32.mrf.mxu0
        %v2431 = vadd.f32 0.0, %v2430
        %2432 = vmatmul.bf16.gmra.mxu0 %v2399
        %v2433 = vpop.f32.mrf.mxu0
        %v2434 = vadd.f32 0.0, %v2433
        %v2435 = vpop.f32.mrf.mxu0
        %v2436 = vadd.f32 0.0, %v2435
        %2437 = vmatmul.bf16.gmra.mxu0 %v2402
        %v2438 = vpop.f32.mrf.mxu0
        %v2439 = vadd.f32 0.0, %v2438
        %v2440 = vpop.f32.mrf.mxu0
        %v2441 = vadd.f32 0.0, %v2440
        %2442 = vmatmul.bf16.gmra.mxu0 %v2405
        %v2443 = vpop.f32.mrf.mxu0
        %v2444 = vadd.f32 0.0, %v2443
        %v2445 = vpop.f32.mrf.mxu0
        %v2446 = vadd.f32 0.0, %v2445
        %2447 = vmatmul.bf16.gmra.mxu0 %v2408
        %v2448 = vpop.f32.mrf.mxu0
        %v2449 = vadd.f32 0.0, %v2448
        %v2450 = vpop.f32.mrf.mxu0
        %v2451 = vadd.f32 0.0, %v2450
        %2452 = vmatmul.bf16.gmra.mxu0 %v2411
        %v2453 = vpop.f32.mrf.mxu0
        %v2454 = vadd.f32 0.0, %v2453
        %v2455 = vpop.f32.mrf.mxu0
        %v2456 = vadd.f32 0.0, %v2455
        %2457 = vmatmul.bf16.gmra.mxu0 %v2414
        %v2458 = vpop.f32.mrf.mxu0
        %v2459 = vadd.f32 0.0, %v2458
        %v2460 = vpop.f32.mrf.mxu0
        %v2461 = vadd.f32 0.0, %v2460
        %2462 = vmatmul.bf16.gmra.mxu0 %v2417
        %v2463 = vpop.f32.mrf.mxu0
        %v2464 = vadd.f32 0.0, %v2463
        %v2465 = vpop.f32.mrf.mxu0
        %v2466 = vadd.f32 0.0, %v2465
        %2467 = vdwg.mxu0
        %v2472 = vunpack.c.l.b16 %v1654
        %v2473 = vunpack.c.l.b16 %v1655
        %v2474 = vunpack.c.l.b16 %v1656
        %v2475 = vunpack.c.l.b16 %v1657
        %v2476 = vpack.c.b16 %v2473, %v2472
        %v2477 = vpack.c.b16 %v2475, %v2474
        %v2481 = vsel %vm1275, %v1646, 0
        %v2484 = vsel %vm1275, %v1647, 0
        %v2487 = vsel %vm1275, %v1648, 0
        %v2490 = vsel %vm1275, %v1649, 0
        %v2493 = vsel %vm1275, %v1650, 0
        %v2496 = vsel %vm1275, %v1651, 0
        %v2499 = vsel %vm1275, %v1652, 0
        %v2502 = vsel %vm1275, %v1653, 0
        %2504 = vmatpush.bf16.msra.mxu0 0
        %2505 = vmatpush.bf16.msra.mxu0 0
        %2506 = vmatpush.bf16.msra.mxu0 0
        %2507 = vmatpush.bf16.msra.mxu0 0
        %2508 = vmatpush.bf16.msra.mxu0 0
        %2509 = vmatpush.bf16.msra.mxu0 0
        %2510 = vmatpush.bf16.msra.mxu0 %v2477
        %2511 = vmatpush.bf16.msra.mxu0 %v2476
        %2512 = vmatmul.bf16.gmra.mxu0 %v2481
        %v2513 = vpop.f32.mrf.mxu0
        %v2514 = vadd.f32 %v2429, %v2513
        %v2515 = vpop.f32.mrf.mxu0
        %v2516 = vadd.f32 %v2431, %v2515
        %2517 = vmatmul.bf16.gmra.mxu0 %v2484
        %v2518 = vpop.f32.mrf.mxu0
        %v2519 = vadd.f32 %v2434, %v2518
        %v2520 = vpop.f32.mrf.mxu0
        %v2521 = vadd.f32 %v2436, %v2520
        %2522 = vmatmul.bf16.gmra.mxu0 %v2487
        %v2523 = vpop.f32.mrf.mxu0
        %v2524 = vadd.f32 %v2439, %v2523
        %v2525 = vpop.f32.mrf.mxu0
        %v2526 = vadd.f32 %v2441, %v2525
        %2527 = vmatmul.bf16.gmra.mxu0 %v2490
        %v2528 = vpop.f32.mrf.mxu0
        %v2529 = vadd.f32 %v2444, %v2528
        %v2530 = vpop.f32.mrf.mxu0
        %v2531 = vadd.f32 %v2446, %v2530
        %2532 = vmatmul.bf16.gmra.mxu0 %v2493
        %v2533 = vpop.f32.mrf.mxu0
        %v2534 = vadd.f32 %v2449, %v2533
        %v2535 = vpop.f32.mrf.mxu0
        %v2536 = vadd.f32 %v2451, %v2535
        %2537 = vmatmul.bf16.gmra.mxu0 %v2496
        %v2538 = vpop.f32.mrf.mxu0
        %v2539 = vadd.f32 %v2454, %v2538
        %v2540 = vpop.f32.mrf.mxu0
        %v2541 = vadd.f32 %v2456, %v2540
        %2542 = vmatmul.bf16.gmra.mxu0 %v2499
        %v2543 = vpop.f32.mrf.mxu0
        %v2544 = vadd.f32 %v2459, %v2543
        %v2545 = vpop.f32.mrf.mxu0
        %v2546 = vadd.f32 %v2461, %v2545
        %2547 = vmatmul.bf16.gmra.mxu0 %v2502
        %v2548 = vpop.f32.mrf.mxu0
        %v2549 = vadd.f32 %v2464, %v2548
        %v2550 = vpop.f32.mrf.mxu0
        %v2551 = vadd.f32 %v2466, %v2550
        %2552 = vdwg.mxu0
        %s2553 = scalar_lea.vmem %s499, 128
        %v2554 = vld [vmem:[%s2553] sm:$0xf]
        %v2555 = vld [vmem:[%s2553 + $0x4] sm:$0xf]
        %v2556 = vld [vmem:[%s2553 + $0x8] sm:$0xf]
        %v2557 = vld [vmem:[%s2553 + $0xc] sm:$0xf]
        %v2558 = vld [vmem:[%s2553 + $0x10] sm:$0xf]
        %v2559 = vld [vmem:[%s2553 + $0x14] sm:$0xf]
        %v2560 = vld [vmem:[%s2553 + $0x18] sm:$0xf]
        %v2561 = vld [vmem:[%s2553 + $0x1c] sm:$0xf]
        %v2562 = vld [vmem:[%s2553 + $0x20] sm:$0xf]
        %v2563 = vld [vmem:[%s2553 + $0x24] sm:$0xf]
        %v2564 = vld [vmem:[%s2553 + $0x28] sm:$0xf]
        %v2565 = vld [vmem:[%s2553 + $0x2c] sm:$0xf]
        %v2566 = vld [vmem:[%s2553 + $0x30] sm:$0xf]
        %v2567 = vld [vmem:[%s2553 + $0x34] sm:$0xf]
        %v2568 = vld [vmem:[%s2553 + $0x38] sm:$0xf]
        %v2569 = vld [vmem:[%s2553 + $0x3c] sm:$0xf]
        %v2586 = vunpack.c.l.b16 %v2554
        %v2587 = vunpack.c.l.b16 %v2555
        %v2588 = vunpack.c.l.b16 %v2556
        %v2589 = vunpack.c.l.b16 %v2557
        %v2590 = vunpack.c.l.b16 %v2558
        %v2591 = vunpack.c.l.b16 %v2559
        %v2592 = vunpack.c.l.b16 %v2560
        %v2593 = vunpack.c.l.b16 %v2561
        %v2594 = vunpack.c.l.b16 %v2562
        %v2595 = vunpack.c.l.b16 %v2563
        %v2596 = vunpack.c.l.b16 %v2564
        %v2597 = vunpack.c.l.b16 %v2565
        %v2598 = vunpack.c.l.b16 %v2566
        %v2599 = vunpack.c.l.b16 %v2567
        %v2600 = vunpack.c.l.b16 %v2568
        %v2601 = vunpack.c.l.b16 %v2569
        %v2602 = vpack.c.b16 %v2587, %v2586
        %v2603 = vpack.c.b16 %v2589, %v2588
        %v2604 = vpack.c.b16 %v2591, %v2590
        %v2605 = vpack.c.b16 %v2593, %v2592
        %v2606 = vpack.c.b16 %v2595, %v2594
        %v2607 = vpack.c.b16 %v2597, %v2596
        %v2608 = vpack.c.b16 %v2599, %v2598
        %v2609 = vpack.c.b16 %v2601, %v2600
        %2618 = vmatpush.bf16.msra.mxu0 %v2609
        %2619 = vmatpush.bf16.msra.mxu0 %v2608
        %2620 = vmatpush.bf16.msra.mxu0 %v2607
        %2621 = vmatpush.bf16.msra.mxu0 %v2606
        %2622 = vmatpush.bf16.msra.mxu0 %v2605
        %2623 = vmatpush.bf16.msra.mxu0 %v2604
        %2624 = vmatpush.bf16.msra.mxu0 %v2603
        %2625 = vmatpush.bf16.msra.mxu0 %v2602
        %2626 = vmatmul.bf16.gmra.mxu0 %v928
        %v2627 = vpop.f32.mrf.mxu0
        %v2628 = vadd.f32 0.0, %v2627
        %v2629 = vpop.f32.mrf.mxu0
        %v2630 = vadd.f32 0.0, %v2629
        %2631 = vmatmul.bf16.gmra.mxu0 %v929
        %v2632 = vpop.f32.mrf.mxu0
        %v2633 = vadd.f32 0.0, %v2632
        %v2634 = vpop.f32.mrf.mxu0
        %v2635 = vadd.f32 0.0, %v2634
        %2636 = vmatmul.bf16.gmra.mxu0 %v930
        %v2637 = vpop.f32.mrf.mxu0
        %v2638 = vadd.f32 0.0, %v2637
        %v2639 = vpop.f32.mrf.mxu0
        %v2640 = vadd.f32 0.0, %v2639
        %2641 = vmatmul.bf16.gmra.mxu0 %v931
        %v2642 = vpop.f32.mrf.mxu0
        %v2643 = vadd.f32 0.0, %v2642
        %v2644 = vpop.f32.mrf.mxu0
        %v2645 = vadd.f32 0.0, %v2644
        %2646 = vmatmul.bf16.gmra.mxu0 %v932
        %v2647 = vpop.f32.mrf.mxu0
        %v2648 = vadd.f32 0.0, %v2647
        %v2649 = vpop.f32.mrf.mxu0
        %v2650 = vadd.f32 0.0, %v2649
        %2651 = vmatmul.bf16.gmra.mxu0 %v933
        %v2652 = vpop.f32.mrf.mxu0
        %v2653 = vadd.f32 0.0, %v2652
        %v2654 = vpop.f32.mrf.mxu0
        %v2655 = vadd.f32 0.0, %v2654
        %2656 = vmatmul.bf16.gmra.mxu0 %v934
        %v2657 = vpop.f32.mrf.mxu0
        %v2658 = vadd.f32 0.0, %v2657
        %v2659 = vpop.f32.mrf.mxu0
        %v2660 = vadd.f32 0.0, %v2659
        %2661 = vmatmul.bf16.gmra.mxu0 %v935
        %v2662 = vpop.f32.mrf.mxu0
        %v2663 = vadd.f32 0.0, %v2662
        %v2664 = vpop.f32.mrf.mxu0
        %v2665 = vadd.f32 0.0, %v2664
        %2666 = vdwg.mxu0
        %s2667 = scalar_lea.vmem %s504, 128
        %v2668 = vld [vmem:[%s2667] sm:$0xf]
        %v2669 = vld [vmem:[%s2667 + $0x4] sm:$0xf]
        %v2670 = vld [vmem:[%s2667 + $0x8] sm:$0xf]
        %v2671 = vld [vmem:[%s2667 + $0xc] sm:$0xf]
        %v2672 = vld [vmem:[%s2667 + $0x10] sm:$0xf]
        %v2673 = vld [vmem:[%s2667 + $0x14] sm:$0xf]
        %v2674 = vld [vmem:[%s2667 + $0x18] sm:$0xf]
        %v2675 = vld [vmem:[%s2667 + $0x1c] sm:$0xf]
        %v2676 = vld [vmem:[%s2667 + $0x20] sm:$0xf]
        %v2677 = vld [vmem:[%s2667 + $0x24] sm:$0xf]
        %v2678 = vld [vmem:[%s2667 + $0x28] sm:$0xf]
        %v2679 = vld [vmem:[%s2667 + $0x2c] sm:$0xf]
        %v2680 = vld [vmem:[%s2667 + $0x30] sm:$0xf]
        %v2681 = vld [vmem:[%s2667 + $0x34] sm:$0xf]
        %v2682 = vld [vmem:[%s2667 + $0x38] sm:$0xf]
        %v2683 = vld [vmem:[%s2667 + $0x3c] sm:$0xf]
        %v2700 = vunpack.c.l.b16 %v2668
        %v2701 = vunpack.c.l.b16 %v2669
        %v2702 = vunpack.c.l.b16 %v2670
        %v2703 = vunpack.c.l.b16 %v2671
        %v2704 = vunpack.c.l.b16 %v2672
        %v2705 = vunpack.c.l.b16 %v2673
        %v2706 = vunpack.c.l.b16 %v2674
        %v2707 = vunpack.c.l.b16 %v2675
        %v2708 = vunpack.c.l.b16 %v2676
        %v2709 = vunpack.c.l.b16 %v2677
        %v2710 = vunpack.c.l.b16 %v2678
        %v2711 = vunpack.c.l.b16 %v2679
        %v2712 = vunpack.c.l.b16 %v2680
        %v2713 = vunpack.c.l.b16 %v2681
        %v2714 = vunpack.c.l.b16 %v2682
        %v2715 = vunpack.c.l.b16 %v2683
        %v2716 = vpack.c.b16 %v2701, %v2700
        %v2717 = vpack.c.b16 %v2703, %v2702
        %v2718 = vpack.c.b16 %v2705, %v2704
        %v2719 = vpack.c.b16 %v2707, %v2706
        %v2720 = vpack.c.b16 %v2709, %v2708
        %v2721 = vpack.c.b16 %v2711, %v2710
        %v2722 = vpack.c.b16 %v2713, %v2712
        %v2723 = vpack.c.b16 %v2715, %v2714
        %2732 = vmatpush.bf16.msra.mxu0 %v2723
        %2733 = vmatpush.bf16.msra.mxu0 %v2722
        %2734 = vmatpush.bf16.msra.mxu0 %v2721
        %2735 = vmatpush.bf16.msra.mxu0 %v2720
        %2736 = vmatpush.bf16.msra.mxu0 %v2719
        %2737 = vmatpush.bf16.msra.mxu0 %v2718
        %2738 = vmatpush.bf16.msra.mxu0 %v2717
        %2739 = vmatpush.bf16.msra.mxu0 %v2716
        %2740 = vmatmul.bf16.gmra.mxu0 %v928
        %v2741 = vpop.f32.mrf.mxu0
        %v2742 = vadd.f32 0.0, %v2741
        %v2743 = vpop.f32.mrf.mxu0
        %v2744 = vadd.f32 0.0, %v2743
        %2745 = vmatmul.bf16.gmra.mxu0 %v929
        %v2746 = vpop.f32.mrf.mxu0
        %v2747 = vadd.f32 0.0, %v2746
        %v2748 = vpop.f32.mrf.mxu0
        %v2749 = vadd.f32 0.0, %v2748
        %2750 = vmatmul.bf16.gmra.mxu0 %v930
        %v2751 = vpop.f32.mrf.mxu0
        %v2752 = vadd.f32 0.0, %v2751
        %v2753 = vpop.f32.mrf.mxu0
        %v2754 = vadd.f32 0.0, %v2753
        %2755 = vmatmul.bf16.gmra.mxu0 %v931
        %v2756 = vpop.f32.mrf.mxu0
        %v2757 = vadd.f32 0.0, %v2756
        %v2758 = vpop.f32.mrf.mxu0
        %v2759 = vadd.f32 0.0, %v2758
        %2760 = vmatmul.bf16.gmra.mxu0 %v932
        %v2761 = vpop.f32.mrf.mxu0
        %v2762 = vadd.f32 0.0, %v2761
        %v2763 = vpop.f32.mrf.mxu0
        %v2764 = vadd.f32 0.0, %v2763
        %2765 = vmatmul.bf16.gmra.mxu0 %v933
        %v2766 = vpop.f32.mrf.mxu0
        %v2767 = vadd.f32 0.0, %v2766
        %v2768 = vpop.f32.mrf.mxu0
        %v2769 = vadd.f32 0.0, %v2768
        %2770 = vmatmul.bf16.gmra.mxu0 %v934
        %v2771 = vpop.f32.mrf.mxu0
        %v2772 = vadd.f32 0.0, %v2771
        %v2773 = vpop.f32.mrf.mxu0
        %v2774 = vadd.f32 0.0, %v2773
        %2775 = vmatmul.bf16.gmra.mxu0 %v935
        %v2776 = vpop.f32.mrf.mxu0
        %v2777 = vadd.f32 0.0, %v2776
        %v2778 = vpop.f32.mrf.mxu0
        %v2779 = vadd.f32 0.0, %v2778
        %2780 = vdwg.mxu0
        %s2781 = scalar_lea.vmem %s509, 128
        %v2782 = vld [vmem:[%s2781] sm:$0xf]
        %v2783 = vld [vmem:[%s2781 + $0x4] sm:$0xf]
        %v2784 = vld [vmem:[%s2781 + $0x8] sm:$0xf]
        %v2785 = vld [vmem:[%s2781 + $0xc] sm:$0xf]
        %v2786 = vld [vmem:[%s2781 + $0x10] sm:$0xf]
        %v2787 = vld [vmem:[%s2781 + $0x14] sm:$0xf]
        %v2788 = vld [vmem:[%s2781 + $0x18] sm:$0xf]
        %v2789 = vld [vmem:[%s2781 + $0x1c] sm:$0xf]
        %v2790 = vld [vmem:[%s2781 + $0x20] sm:$0xf]
        %v2791 = vld [vmem:[%s2781 + $0x24] sm:$0xf]
        %v2792 = vld [vmem:[%s2781 + $0x28] sm:$0xf]
        %v2793 = vld [vmem:[%s2781 + $0x2c] sm:$0xf]
        %v2794 = vld [vmem:[%s2781 + $0x30] sm:$0xf]
        %v2795 = vld [vmem:[%s2781 + $0x34] sm:$0xf]
        %v2796 = vld [vmem:[%s2781 + $0x38] sm:$0xf]
        %v2797 = vld [vmem:[%s2781 + $0x3c] sm:$0xf]
        %v2814 = vunpack.c.l.b16 %v2782
        %v2815 = vunpack.c.l.b16 %v2783
        %v2816 = vunpack.c.l.b16 %v2784
        %v2817 = vunpack.c.l.b16 %v2785
        %v2818 = vunpack.c.l.b16 %v2786
        %v2819 = vunpack.c.l.b16 %v2787
        %v2820 = vunpack.c.l.b16 %v2788
        %v2821 = vunpack.c.l.b16 %v2789
        %v2822 = vunpack.c.l.b16 %v2790
        %v2823 = vunpack.c.l.b16 %v2791
        %v2824 = vunpack.c.l.b16 %v2792
        %v2825 = vunpack.c.l.b16 %v2793
        %v2826 = vunpack.c.l.b16 %v2794
        %v2827 = vunpack.c.l.b16 %v2795
        %v2828 = vunpack.c.l.b16 %v2796
        %v2829 = vunpack.c.l.b16 %v2797
        %v2830 = vpack.c.b16 %v2815, %v2814
        %v2831 = vpack.c.b16 %v2817, %v2816
        %v2832 = vpack.c.b16 %v2819, %v2818
        %v2833 = vpack.c.b16 %v2821, %v2820
        %v2834 = vpack.c.b16 %v2823, %v2822
        %v2835 = vpack.c.b16 %v2825, %v2824
        %v2836 = vpack.c.b16 %v2827, %v2826
        %v2837 = vpack.c.b16 %v2829, %v2828
        %2846 = vmatpush.bf16.msra.mxu0 %v2837
        %2847 = vmatpush.bf16.msra.mxu0 %v2836
        %2848 = vmatpush.bf16.msra.mxu0 %v2835
        %2849 = vmatpush.bf16.msra.mxu0 %v2834
        %2850 = vmatpush.bf16.msra.mxu0 %v2833
        %2851 = vmatpush.bf16.msra.mxu0 %v2832
        %2852 = vmatpush.bf16.msra.mxu0 %v2831
        %2853 = vmatpush.bf16.msra.mxu0 %v2830
        %2854 = vmatmul.bf16.gmra.mxu0 %v928
        %v2855 = vpop.f32.mrf.mxu0
        %v2856 = vadd.f32 0.0, %v2855
        %v2857 = vpop.f32.mrf.mxu0
        %v2858 = vadd.f32 0.0, %v2857
        %2859 = vmatmul.bf16.gmra.mxu0 %v929
        %v2860 = vpop.f32.mrf.mxu0
        %v2861 = vadd.f32 0.0, %v2860
        %v2862 = vpop.f32.mrf.mxu0
        %v2863 = vadd.f32 0.0, %v2862
        %2864 = vmatmul.bf16.gmra.mxu0 %v930
        %v2865 = vpop.f32.mrf.mxu0
        %v2866 = vadd.f32 0.0, %v2865
        %v2867 = vpop.f32.mrf.mxu0
        %v2868 = vadd.f32 0.0, %v2867
        %2869 = vmatmul.bf16.gmra.mxu0 %v931
        %v2870 = vpop.f32.mrf.mxu0
        %v2871 = vadd.f32 0.0, %v2870
        %v2872 = vpop.f32.mrf.mxu0
        %v2873 = vadd.f32 0.0, %v2872
        %2874 = vmatmul.bf16.gmra.mxu0 %v932
        %v2875 = vpop.f32.mrf.mxu0
        %v2876 = vadd.f32 0.0, %v2875
        %v2877 = vpop.f32.mrf.mxu0
        %v2878 = vadd.f32 0.0, %v2877
        %2879 = vmatmul.bf16.gmra.mxu0 %v933
        %v2880 = vpop.f32.mrf.mxu0
        %v2881 = vadd.f32 0.0, %v2880
        %v2882 = vpop.f32.mrf.mxu0
        %v2883 = vadd.f32 0.0, %v2882
        %2884 = vmatmul.bf16.gmra.mxu0 %v934
        %v2885 = vpop.f32.mrf.mxu0
        %v2886 = vadd.f32 0.0, %v2885
        %v2887 = vpop.f32.mrf.mxu0
        %v2888 = vadd.f32 0.0, %v2887
        %2889 = vmatmul.bf16.gmra.mxu0 %v935
        %v2890 = vpop.f32.mrf.mxu0
        %v2891 = vadd.f32 0.0, %v2890
        %v2892 = vpop.f32.mrf.mxu0
        %v2893 = vadd.f32 0.0, %v2892
        %2894 = vdwg.mxu0
        %v2896 = vsel %vm1275, %v2628, 0
        %v2899 = vsel %vm1275, %v2630, 0
        %v2902 = vsel %vm1275, %v2633, 0
        %v2905 = vsel %vm1275, %v2635, 0
        %v2908 = vsel %vm1275, %v2638, 0
        %v2911 = vsel %vm1275, %v2640, 0
        %v2914 = vsel %vm1275, %v2643, 0
        %v2917 = vsel %vm1275, %v2645, 0
        %v2920 = vsel %vm1275, %v2648, 0
        %v2923 = vsel %vm1275, %v2650, 0
        %v2926 = vsel %vm1275, %v2653, 0
        %v2929 = vsel %vm1275, %v2655, 0
        %v2932 = vsel %vm1275, %v2658, 0
        %v2935 = vsel %vm1275, %v2660, 0
        %v2938 = vsel %vm1275, %v2663, 0
        %v2941 = vsel %vm1275, %v2665, 0
        %v2944 = vsel %vm1275, %v2742, 0
        %v2947 = vsel %vm1275, %v2744, 0
        %v2950 = vsel %vm1275, %v2747, 0
        %v2953 = vsel %vm1275, %v2749, 0
        %v2956 = vsel %vm1275, %v2752, 0
        %v2959 = vsel %vm1275, %v2754, 0
        %v2962 = vsel %vm1275, %v2757, 0
        %v2965 = vsel %vm1275, %v2759, 0
        %v2968 = vsel %vm1275, %v2762, 0
        %v2971 = vsel %vm1275, %v2764, 0
        %v2974 = vsel %vm1275, %v2767, 0
        %v2977 = vsel %vm1275, %v2769, 0
        %v2980 = vsel %vm1275, %v2772, 0
        %v2983 = vsel %vm1275, %v2774, 0
        %v2986 = vsel %vm1275, %v2777, 0
        %v2989 = vsel %vm1275, %v2779, 0
        %2991 = vmatpush.xpose.msra.mxu0 %v2989
        %2992 = vmatpush.xpose.msra.mxu0 %v2986
        %2993 = vmatpush.xpose.msra.mxu0 %v2983
        %2994 = vmatpush.xpose.msra.mxu0 %v2980
        %2995 = vmatpush.xpose.msra.mxu0 %v2977
        %2996 = vmatpush.xpose.msra.mxu0 %v2974
        %2997 = vmatpush.xpose.msra.mxu0 %v2971
        %2998 = vmatpush.xpose.msra.mxu0 %v2968
        %2999 = vmatpush.xpose.msra.mxu0 %v2965
        %3000 = vmatpush.xpose.msra.mxu0 %v2962
        %3001 = vmatpush.xpose.msra.mxu0 %v2959
        %3002 = vmatpush.xpose.msra.mxu0 %v2956
        %3003 = vmatpush.xpose.msra.mxu0 %v2953
        %3004 = vmatpush.xpose.msra.mxu0 %v2950
        %3005 = vmatpush.xpose.msra.mxu0 %v2947
        %3006 = vmatpush.xpose.msra.mxu0 %v2944
        %3007 = vmatmul.f32.gmra.mxu0 %v2896
        %v3008 = vpop.f32.mrf.mxu0
        %v3009 = vadd.f32 %v581, %v3008
        %3010 = vmatmul.f32.gmra.mxu0 %v2899
        %v3011 = vpop.f32.mrf.mxu0
        %v3012 = vadd.f32 %v582, %v3011
        %3013 = vmatmul.f32.gmra.mxu0 %v2902
        %v3014 = vpop.f32.mrf.mxu0
        %v3015 = vadd.f32 %v583, %v3014
        %3016 = vmatmul.f32.gmra.mxu0 %v2905
        %v3017 = vpop.f32.mrf.mxu0
        %v3018 = vadd.f32 %v584, %v3017
        %3019 = vmatmul.f32.gmra.mxu0 %v2908
        %v3020 = vpop.f32.mrf.mxu0
        %v3021 = vadd.f32 %v585, %v3020
        %3022 = vmatmul.f32.gmra.mxu0 %v2911
        %v3023 = vpop.f32.mrf.mxu0
        %v3024 = vadd.f32 %v586, %v3023
        %3025 = vmatmul.f32.gmra.mxu0 %v2914
        %v3026 = vpop.f32.mrf.mxu0
        %v3027 = vadd.f32 %v587, %v3026
        %3028 = vmatmul.f32.gmra.mxu0 %v2917
        %v3029 = vpop.f32.mrf.mxu0
        %v3030 = vadd.f32 %v588, %v3029
        %3031 = vmatmul.f32.gmra.mxu0 %v2920
        %v3032 = vpop.f32.mrf.mxu0
        %v3033 = vadd.f32 %v589, %v3032
        %3034 = vmatmul.f32.gmra.mxu0 %v2923
        %v3035 = vpop.f32.mrf.mxu0
        %v3036 = vadd.f32 %v590, %v3035
        %3037 = vmatmul.f32.gmra.mxu0 %v2926
        %v3038 = vpop.f32.mrf.mxu0
        %v3039 = vadd.f32 %v591, %v3038
        %3040 = vmatmul.f32.gmra.mxu0 %v2929
        %v3041 = vpop.f32.mrf.mxu0
        %v3042 = vadd.f32 %v592, %v3041
        %3043 = vmatmul.f32.gmra.mxu0 %v2932
        %v3044 = vpop.f32.mrf.mxu0
        %v3045 = vadd.f32 %v593, %v3044
        %3046 = vmatmul.f32.gmra.mxu0 %v2935
        %v3047 = vpop.f32.mrf.mxu0
        %v3048 = vadd.f32 %v594, %v3047
        %3049 = vmatmul.f32.gmra.mxu0 %v2938
        %v3050 = vpop.f32.mrf.mxu0
        %v3051 = vadd.f32 %v595, %v3050
        %3052 = vmatmul.f32.gmra.mxu0 %v2941
        %v3053 = vpop.f32.mrf.mxu0
        %v3054 = vadd.f32 %v596, %v3053
        %3055 = vdwg.mxu0
        %3056 = vmax.xlane.f32.xlu0 %v3009
        %v3057 = vpop.xlane.xlu0 %3056
        %3058 = vmax.xlane.f32.xlu0 %v3012
        %v3059 = vpop.xlane.xlu0 %3058
        %3060 = vmax.xlane.f32.xlu0 %v3015
        %v3061 = vpop.xlane.xlu0 %3060
        %3062 = vmax.xlane.f32.xlu0 %v3018
        %v3063 = vpop.xlane.xlu0 %3062
        %3064 = vmax.xlane.f32.xlu0 %v3021
        %v3065 = vpop.xlane.xlu0 %3064
        %3066 = vmax.xlane.f32.xlu0 %v3024
        %v3067 = vpop.xlane.xlu0 %3066
        %3068 = vmax.xlane.f32.xlu0 %v3027
        %v3069 = vpop.xlane.xlu0 %3068
        %3070 = vmax.xlane.f32.xlu0 %v3030
        %v3071 = vpop.xlane.xlu0 %3070
        %3072 = vmax.xlane.f32.xlu0 %v3033
        %v3073 = vpop.xlane.xlu0 %3072
        %3074 = vmax.xlane.f32.xlu0 %v3036
        %v3075 = vpop.xlane.xlu0 %3074
        %3076 = vmax.xlane.f32.xlu0 %v3039
        %v3077 = vpop.xlane.xlu0 %3076
        %3078 = vmax.xlane.f32.xlu0 %v3042
        %v3079 = vpop.xlane.xlu0 %3078
        %3080 = vmax.xlane.f32.xlu0 %v3045
        %v3081 = vpop.xlane.xlu0 %3080
        %3082 = vmax.xlane.f32.xlu0 %v3048
        %v3083 = vpop.xlane.xlu0 %3082
        %3084 = vmax.xlane.f32.xlu0 %v3051
        %v3085 = vpop.xlane.xlu0 %3084
        %3086 = vmax.xlane.f32.xlu0 %v3054
        %v3087 = vpop.xlane.xlu0 %3086
        %v3088 = vsub.f32 %v3009, %v3057
        %v3089 = vsub.f32 %v3012, %v3059
        %v3090 = vsub.f32 %v3015, %v3061
        %v3091 = vsub.f32 %v3018, %v3063
        %v3092 = vsub.f32 %v3021, %v3065
        %v3093 = vsub.f32 %v3024, %v3067
        %v3094 = vsub.f32 %v3027, %v3069
        %v3095 = vsub.f32 %v3030, %v3071
        %v3096 = vsub.f32 %v3033, %v3073
        %v3097 = vsub.f32 %v3036, %v3075
        %v3098 = vsub.f32 %v3039, %v3077
        %v3099 = vsub.f32 %v3042, %v3079
        %v3100 = vsub.f32 %v3045, %v3081
        %v3101 = vsub.f32 %v3048, %v3083
        %v3102 = vsub.f32 %v3051, %v3085
        %v3103 = vsub.f32 %v3054, %v3087
        %v3104 = vmul.f32 %v3088, 1.442695
        %v3105 = vpow.pop %v3104
        %v3106 = vmul.f32 %v3089, 1.442695
        %v3107 = vpow.pop %v3106
        %v3108 = vmul.f32 %v3090, 1.442695
        %v3109 = vpow.pop %v3108
        %v3110 = vmul.f32 %v3091, 1.442695
        %v3111 = vpow.pop %v3110
        %v3112 = vmul.f32 %v3092, 1.442695
        %v3113 = vpow.pop %v3112
        %v3114 = vmul.f32 %v3093, 1.442695
        %v3115 = vpow.pop %v3114
        %v3116 = vmul.f32 %v3094, 1.442695
        %v3117 = vpow.pop %v3116
        %v3118 = vmul.f32 %v3095, 1.442695
        %v3119 = vpow.pop %v3118
        %v3120 = vmul.f32 %v3096, 1.442695
        %v3121 = vpow.pop %v3120
        %v3122 = vmul.f32 %v3097, 1.442695
        %v3123 = vpow.pop %v3122
        %v3124 = vmul.f32 %v3098, 1.442695
        %v3125 = vpow.pop %v3124
        %v3126 = vmul.f32 %v3099, 1.442695
        %v3127 = vpow.pop %v3126
        %v3128 = vmul.f32 %v3100, 1.442695
        %v3129 = vpow.pop %v3128
        %v3130 = vmul.f32 %v3101, 1.442695
        %v3131 = vpow.pop %v3130
        %v3132 = vmul.f32 %v3102, 1.442695
        %v3133 = vpow.pop %v3132
        %v3134 = vmul.f32 %v3103, 1.442695
        %v3135 = vpow.pop %v3134
        %3136 = vadd.xlane.f32.xlu0 %v3105
        %v3137 = vpop.xlane.xlu0 %3136
        %3138 = vadd.xlane.f32.xlu0 %v3107
        %v3139 = vpop.xlane.xlu0 %3138
        %3140 = vadd.xlane.f32.xlu0 %v3109
        %v3141 = vpop.xlane.xlu0 %3140
        %3142 = vadd.xlane.f32.xlu0 %v3111
        %v3143 = vpop.xlane.xlu0 %3142
        %3144 = vadd.xlane.f32.xlu0 %v3113
        %v3145 = vpop.xlane.xlu0 %3144
        %3146 = vadd.xlane.f32.xlu0 %v3115
        %v3147 = vpop.xlane.xlu0 %3146
        %3148 = vadd.xlane.f32.xlu0 %v3117
        %v3149 = vpop.xlane.xlu0 %3148
        %3150 = vadd.xlane.f32.xlu0 %v3119
        %v3151 = vpop.xlane.xlu0 %3150
        %3152 = vadd.xlane.f32.xlu0 %v3121
        %v3153 = vpop.xlane.xlu0 %3152
        %3154 = vadd.xlane.f32.xlu0 %v3123
        %v3155 = vpop.xlane.xlu0 %3154
        %3156 = vadd.xlane.f32.xlu0 %v3125
        %v3157 = vpop.xlane.xlu0 %3156
        %3158 = vadd.xlane.f32.xlu0 %v3127
        %v3159 = vpop.xlane.xlu0 %3158
        %3160 = vadd.xlane.f32.xlu0 %v3129
        %v3161 = vpop.xlane.xlu0 %3160
        %3162 = vadd.xlane.f32.xlu0 %v3131
        %v3163 = vpop.xlane.xlu0 %3162
        %3164 = vadd.xlane.f32.xlu0 %v3133
        %v3165 = vpop.xlane.xlu0 %3164
        %3166 = vadd.xlane.f32.xlu0 %v3135
        %v3167 = vpop.xlane.xlu0 %3166
        %v3168 = vrcp.pop %v3137
        %v3169 = vrcp.pop %v3139
        %v3170 = vrcp.pop %v3141
        %v3171 = vrcp.pop %v3143
        %v3172 = vrcp.pop %v3145
        %v3173 = vrcp.pop %v3147
        %v3174 = vrcp.pop %v3149
        %v3175 = vrcp.pop %v3151
        %v3176 = vrcp.pop %v3153
        %v3177 = vrcp.pop %v3155
        %v3178 = vrcp.pop %v3157
        %v3179 = vrcp.pop %v3159
        %v3180 = vrcp.pop %v3161
        %v3181 = vrcp.pop %v3163
        %v3182 = vrcp.pop %v3165
        %v3183 = vrcp.pop %v3167
        %v3184 = vmul.f32 %v3105, %v3168
        %v3185 = vmul.f32 %v3107, %v3169
        %v3186 = vmul.f32 %v3109, %v3170
        %v3187 = vmul.f32 %v3111, %v3171
        %v3188 = vmul.f32 %v3113, %v3172
        %v3189 = vmul.f32 %v3115, %v3173
        %v3190 = vmul.f32 %v3117, %v3174
        %v3191 = vmul.f32 %v3119, %v3175
        %v3192 = vmul.f32 %v3121, %v3176
        %v3193 = vmul.f32 %v3123, %v3177
        %v3194 = vmul.f32 %v3125, %v3178
        %v3195 = vmul.f32 %v3127, %v3179
        %v3196 = vmul.f32 %v3129, %v3180
        %v3197 = vmul.f32 %v3131, %v3181
        %v3198 = vmul.f32 %v3133, %v3182
        %v3199 = vmul.f32 %v3135, %v3183
        %3200 = vmatpush.msra.mxu0 %v2893
        %3201 = vmatpush.msra.mxu0 %v2891
        %3202 = vmatpush.msra.mxu0 %v2888
        %3203 = vmatpush.msra.mxu0 %v2886
        %3204 = vmatpush.msra.mxu0 %v2883
        %3205 = vmatpush.msra.mxu0 %v2881
        %3206 = vmatpush.msra.mxu0 %v2878
        %3207 = vmatpush.msra.mxu0 %v2876
        %3208 = vmatpush.msra.mxu0 %v2873
        %3209 = vmatpush.msra.mxu0 %v2871
        %3210 = vmatpush.msra.mxu0 %v2868
        %3211 = vmatpush.msra.mxu0 %v2866
        %3212 = vmatpush.msra.mxu0 %v2863
        %3213 = vmatpush.msra.mxu0 %v2861
        %3214 = vmatpush.msra.mxu0 %v2858
        %3215 = vmatpush.msra.mxu0 %v2856
        %3216 = vmatmul.f32.gmra.mxu0 %v3184
        %v3217 = vpop.f32.mrf.mxu0
        %v3218 = vadd.f32 0.0, %v3217
        %3219 = vmatmul.f32.gmra.mxu0 %v3185
        %v3220 = vpop.f32.mrf.mxu0
        %v3221 = vadd.f32 0.0, %v3220
        %3222 = vmatmul.f32.gmra.mxu0 %v3186
        %v3223 = vpop.f32.mrf.mxu0
        %v3224 = vadd.f32 0.0, %v3223
        %3225 = vmatmul.f32.gmra.mxu0 %v3187
        %v3226 = vpop.f32.mrf.mxu0
        %v3227 = vadd.f32 0.0, %v3226
        %3228 = vmatmul.f32.gmra.mxu0 %v3188
        %v3229 = vpop.f32.mrf.mxu0
        %v3230 = vadd.f32 0.0, %v3229
        %3231 = vmatmul.f32.gmra.mxu0 %v3189
        %v3232 = vpop.f32.mrf.mxu0
        %v3233 = vadd.f32 0.0, %v3232
        %3234 = vmatmul.f32.gmra.mxu0 %v3190
        %v3235 = vpop.f32.mrf.mxu0
        %v3236 = vadd.f32 0.0, %v3235
        %3237 = vmatmul.f32.gmra.mxu0 %v3191
        %v3238 = vpop.f32.mrf.mxu0
        %v3239 = vadd.f32 0.0, %v3238
        %3240 = vmatmul.f32.gmra.mxu0 %v3192
        %v3241 = vpop.f32.mrf.mxu0
        %v3242 = vadd.f32 0.0, %v3241
        %3243 = vmatmul.f32.gmra.mxu0 %v3193
        %v3244 = vpop.f32.mrf.mxu0
        %v3245 = vadd.f32 0.0, %v3244
        %3246 = vmatmul.f32.gmra.mxu0 %v3194
        %v3247 = vpop.f32.mrf.mxu0
        %v3248 = vadd.f32 0.0, %v3247
        %3249 = vmatmul.f32.gmra.mxu0 %v3195
        %v3250 = vpop.f32.mrf.mxu0
        %v3251 = vadd.f32 0.0, %v3250
        %3252 = vmatmul.f32.gmra.mxu0 %v3196
        %v3253 = vpop.f32.mrf.mxu0
        %v3254 = vadd.f32 0.0, %v3253
        %3255 = vmatmul.f32.gmra.mxu0 %v3197
        %v3256 = vpop.f32.mrf.mxu0
        %v3257 = vadd.f32 0.0, %v3256
        %3258 = vmatmul.f32.gmra.mxu0 %v3198
        %v3259 = vpop.f32.mrf.mxu0
        %v3260 = vadd.f32 0.0, %v3259
        %3261 = vmatmul.f32.gmra.mxu0 %v3199
        %v3262 = vpop.f32.mrf.mxu0
        %v3263 = vadd.f32 0.0, %v3262
        %3264 = vdwg.mxu0
        %v3265 = vpack.c.bf16 %v3221, %v3218
        %v3266 = vpack.c.bf16 %v3227, %v3224
        %v3267 = vpack.c.bf16 %v3233, %v3230
        %v3268 = vpack.c.bf16 %v3239, %v3236
        %v3269 = vpack.c.bf16 %v3245, %v3242
        %v3270 = vpack.c.bf16 %v3251, %v3248
        %v3271 = vpack.c.bf16 %v3257, %v3254
        %v3272 = vpack.c.bf16 %v3263, %v3260
        %s3273 = scalar_lea.vmem %s514, 32
        %v3274 = vld [vmem:[%s3273] sm:$0xf]
        %v3275 = vld [vmem:[%s3273 + $0x4] sm:$0xf]
        %v3276 = vld [vmem:[%s3273 + $0x8] sm:$0xf]
        %v3277 = vld [vmem:[%s3273 + $0xc] sm:$0xf]
        %v3282 = vunpack.c.l.b16 %v3274
        %v3283 = vunpack.c.l.b16 %v3275
        %v3284 = vunpack.c.l.b16 %v3276
        %v3285 = vunpack.c.l.b16 %v3277
        %v3286 = vpack.c.b16 %v3283, %v3282
        %v3287 = vpack.c.b16 %v3285, %v3284
        %v3291 = vsel %vm1275, %v3265, 0
        %v3294 = vsel %vm1275, %v3266, 0
        %v3297 = vsel %vm1275, %v3267, 0
        %v3300 = vsel %vm1275, %v3268, 0
        %v3303 = vsel %vm1275, %v3269, 0
        %v3306 = vsel %vm1275, %v3270, 0
        %v3309 = vsel %vm1275, %v3271, 0
        %v3312 = vsel %vm1275, %v3272, 0
        %3314 = vmatpush.bf16.msra.mxu0 0
        %3315 = vmatpush.bf16.msra.mxu0 0
        %3316 = vmatpush.bf16.msra.mxu0 0
        %3317 = vmatpush.bf16.msra.mxu0 0
        %3318 = vmatpush.bf16.msra.mxu0 0
        %3319 = vmatpush.bf16.msra.mxu0 0
        %3320 = vmatpush.bf16.msra.mxu0 %v3287
        %3321 = vmatpush.bf16.msra.mxu0 %v3286
        %3322 = vmatmul.bf16.gmra.mxu0 %v3291
        %v3323 = vpop.f32.mrf.mxu0
        %v3324 = vadd.f32 0.0, %v3323
        %v3325 = vpop.f32.mrf.mxu0
        %v3326 = vadd.f32 0.0, %v3325
        %3327 = vmatmul.bf16.gmra.mxu0 %v3294
        %v3328 = vpop.f32.mrf.mxu0
        %v3329 = vadd.f32 0.0, %v3328
        %v3330 = vpop.f32.mrf.mxu0
        %v3331 = vadd.f32 0.0, %v3330
        %3332 = vmatmul.bf16.gmra.mxu0 %v3297
        %v3333 = vpop.f32.mrf.mxu0
        %v3334 = vadd.f32 0.0, %v3333
        %v3335 = vpop.f32.mrf.mxu0
        %v3336 = vadd.f32 0.0, %v3335
        %3337 = vmatmul.bf16.gmra.mxu0 %v3300
        %v3338 = vpop.f32.mrf.mxu0
        %v3339 = vadd.f32 0.0, %v3338
        %v3340 = vpop.f32.mrf.mxu0
        %v3341 = vadd.f32 0.0, %v3340
        %3342 = vmatmul.bf16.gmra.mxu0 %v3303
        %v3343 = vpop.f32.mrf.mxu0
        %v3344 = vadd.f32 0.0, %v3343
        %v3345 = vpop.f32.mrf.mxu0
        %v3346 = vadd.f32 0.0, %v3345
        %3347 = vmatmul.bf16.gmra.mxu0 %v3306
        %v3348 = vpop.f32.mrf.mxu0
        %v3349 = vadd.f32 0.0, %v3348
        %v3350 = vpop.f32.mrf.mxu0
        %v3351 = vadd.f32 0.0, %v3350
        %3352 = vmatmul.bf16.gmra.mxu0 %v3309
        %v3353 = vpop.f32.mrf.mxu0
        %v3354 = vadd.f32 0.0, %v3353
        %v3355 = vpop.f32.mrf.mxu0
        %v3356 = vadd.f32 0.0, %v3355
        %3357 = vmatmul.bf16.gmra.mxu0 %v3312
        %v3358 = vpop.f32.mrf.mxu0
        %v3359 = vadd.f32 0.0, %v3358
        %v3360 = vpop.f32.mrf.mxu0
        %v3361 = vadd.f32 0.0, %v3360
        %3362 = vdwg.mxu0
        %v3363 = vadd.f32 %v2514, %v3324
        %v3364 = vadd.f32 %v2516, %v3326
        %v3365 = vadd.f32 %v2519, %v3329
        %v3366 = vadd.f32 %v2521, %v3331
        %v3367 = vadd.f32 %v2524, %v3334
        %v3368 = vadd.f32 %v2526, %v3336
        %v3369 = vadd.f32 %v2529, %v3339
        %v3370 = vadd.f32 %v2531, %v3341
        %v3371 = vadd.f32 %v2534, %v3344
        %v3372 = vadd.f32 %v2536, %v3346
        %v3373 = vadd.f32 %v2539, %v3349
        %v3374 = vadd.f32 %v2541, %v3351
        %v3375 = vadd.f32 %v2544, %v3354
        %v3376 = vadd.f32 %v2546, %v3356
        %v3377 = vadd.f32 %v2549, %v3359
        %v3378 = vadd.f32 %v2551, %v3361
        %s3379 = scalar_lea.vmem %s499, 192
        %v3380 = vld [vmem:[%s3379] sm:$0xf]
        %v3381 = vld [vmem:[%s3379 + $0x4] sm:$0xf]
        %v3382 = vld [vmem:[%s3379 + $0x8] sm:$0xf]
        %v3383 = vld [vmem:[%s3379 + $0xc] sm:$0xf]
        %v3384 = vld [vmem:[%s3379 + $0x10] sm:$0xf]
        %v3385 = vld [vmem:[%s3379 + $0x14] sm:$0xf]
        %v3386 = vld [vmem:[%s3379 + $0x18] sm:$0xf]
        %v3387 = vld [vmem:[%s3379 + $0x1c] sm:$0xf]
        %v3388 = vld [vmem:[%s3379 + $0x20] sm:$0xf]
        %v3389 = vld [vmem:[%s3379 + $0x24] sm:$0xf]
        %v3390 = vld [vmem:[%s3379 + $0x28] sm:$0xf]
        %v3391 = vld [vmem:[%s3379 + $0x2c] sm:$0xf]
        %v3392 = vld [vmem:[%s3379 + $0x30] sm:$0xf]
        %v3393 = vld [vmem:[%s3379 + $0x34] sm:$0xf]
        %v3394 = vld [vmem:[%s3379 + $0x38] sm:$0xf]
        %v3395 = vld [vmem:[%s3379 + $0x3c] sm:$0xf]
        %v3412 = vunpack.c.l.b16 %v3380
        %v3413 = vunpack.c.l.b16 %v3381
        %v3414 = vunpack.c.l.b16 %v3382
        %v3415 = vunpack.c.l.b16 %v3383
        %v3416 = vunpack.c.l.b16 %v3384
        %v3417 = vunpack.c.l.b16 %v3385
        %v3418 = vunpack.c.l.b16 %v3386
        %v3419 = vunpack.c.l.b16 %v3387
        %v3420 = vunpack.c.l.b16 %v3388
        %v3421 = vunpack.c.l.b16 %v3389
        %v3422 = vunpack.c.l.b16 %v3390
        %v3423 = vunpack.c.l.b16 %v3391
        %v3424 = vunpack.c.l.b16 %v3392
        %v3425 = vunpack.c.l.b16 %v3393
        %v3426 = vunpack.c.l.b16 %v3394
        %v3427 = vunpack.c.l.b16 %v3395
        %v3428 = vpack.c.b16 %v3413, %v3412
        %v3429 = vpack.c.b16 %v3415, %v3414
        %v3430 = vpack.c.b16 %v3417, %v3416
        %v3431 = vpack.c.b16 %v3419, %v3418
        %v3432 = vpack.c.b16 %v3421, %v3420
        %v3433 = vpack.c.b16 %v3423, %v3422
        %v3434 = vpack.c.b16 %v3425, %v3424
        %v3435 = vpack.c.b16 %v3427, %v3426
        %3444 = vmatpush.bf16.msra.mxu0 %v3435
        %3445 = vmatpush.bf16.msra.mxu0 %v3434
        %3446 = vmatpush.bf16.msra.mxu0 %v3433
        %3447 = vmatpush.bf16.msra.mxu0 %v3432
        %3448 = vmatpush.bf16.msra.mxu0 %v3431
        %3449 = vmatpush.bf16.msra.mxu0 %v3430
        %3450 = vmatpush.bf16.msra.mxu0 %v3429
        %3451 = vmatpush.bf16.msra.mxu0 %v3428
        %3452 = vmatmul.bf16.gmra.mxu0 %v928
        %v3453 = vpop.f32.mrf.mxu0
        %v3454 = vadd.f32 0.0, %v3453
        %v3455 = vpop.f32.mrf.mxu0
        %v3456 = vadd.f32 0.0, %v3455
        %3457 = vmatmul.bf16.gmra.mxu0 %v929
        %v3458 = vpop.f32.mrf.mxu0
        %v3459 = vadd.f32 0.0, %v3458
        %v3460 = vpop.f32.mrf.mxu0
        %v3461 = vadd.f32 0.0, %v3460
        %3462 = vmatmul.bf16.gmra.mxu0 %v930
        %v3463 = vpop.f32.mrf.mxu0
        %v3464 = vadd.f32 0.0, %v3463
        %v3465 = vpop.f32.mrf.mxu0
        %v3466 = vadd.f32 0.0, %v3465
        %3467 = vmatmul.bf16.gmra.mxu0 %v931
        %v3468 = vpop.f32.mrf.mxu0
        %v3469 = vadd.f32 0.0, %v3468
        %v3470 = vpop.f32.mrf.mxu0
        %v3471 = vadd.f32 0.0, %v3470
        %3472 = vmatmul.bf16.gmra.mxu0 %v932
        %v3473 = vpop.f32.mrf.mxu0
        %v3474 = vadd.f32 0.0, %v3473
        %v3475 = vpop.f32.mrf.mxu0
        %v3476 = vadd.f32 0.0, %v3475
        %3477 = vmatmul.bf16.gmra.mxu0 %v933
        %v3478 = vpop.f32.mrf.mxu0
        %v3479 = vadd.f32 0.0, %v3478
        %v3480 = vpop.f32.mrf.mxu0
        %v3481 = vadd.f32 0.0, %v3480
        %3482 = vmatmul.bf16.gmra.mxu0 %v934
        %v3483 = vpop.f32.mrf.mxu0
        %v3484 = vadd.f32 0.0, %v3483
        %v3485 = vpop.f32.mrf.mxu0
        %v3486 = vadd.f32 0.0, %v3485
        %3487 = vmatmul.bf16.gmra.mxu0 %v935
        %v3488 = vpop.f32.mrf.mxu0
        %v3489 = vadd.f32 0.0, %v3488
        %v3490 = vpop.f32.mrf.mxu0
        %v3491 = vadd.f32 0.0, %v3490
        %3492 = vdwg.mxu0
        %s3493 = scalar_lea.vmem %s504, 192
        %v3494 = vld [vmem:[%s3493] sm:$0xf]
        %v3495 = vld [vmem:[%s3493 + $0x4] sm:$0xf]
        %v3496 = vld [vmem:[%s3493 + $0x8] sm:$0xf]
        %v3497 = vld [vmem:[%s3493 + $0xc] sm:$0xf]
        %v3498 = vld [vmem:[%s3493 + $0x10] sm:$0xf]
        %v3499 = vld [vmem:[%s3493 + $0x14] sm:$0xf]
        %v3500 = vld [vmem:[%s3493 + $0x18] sm:$0xf]
        %v3501 = vld [vmem:[%s3493 + $0x1c] sm:$0xf]
        %v3502 = vld [vmem:[%s3493 + $0x20] sm:$0xf]
        %v3503 = vld [vmem:[%s3493 + $0x24] sm:$0xf]
        %v3504 = vld [vmem:[%s3493 + $0x28] sm:$0xf]
        %v3505 = vld [vmem:[%s3493 + $0x2c] sm:$0xf]
        %v3506 = vld [vmem:[%s3493 + $0x30] sm:$0xf]
        %v3507 = vld [vmem:[%s3493 + $0x34] sm:$0xf]
        %v3508 = vld [vmem:[%s3493 + $0x38] sm:$0xf]
        %v3509 = vld [vmem:[%s3493 + $0x3c] sm:$0xf]
        %v3526 = vunpack.c.l.b16 %v3494
        %v3527 = vunpack.c.l.b16 %v3495
        %v3528 = vunpack.c.l.b16 %v3496
        %v3529 = vunpack.c.l.b16 %v3497
        %v3530 = vunpack.c.l.b16 %v3498
        %v3531 = vunpack.c.l.b16 %v3499
        %v3532 = vunpack.c.l.b16 %v3500
        %v3533 = vunpack.c.l.b16 %v3501
        %v3534 = vunpack.c.l.b16 %v3502
        %v3535 = vunpack.c.l.b16 %v3503
        %v3536 = vunpack.c.l.b16 %v3504
        %v3537 = vunpack.c.l.b16 %v3505
        %v3538 = vunpack.c.l.b16 %v3506
        %v3539 = vunpack.c.l.b16 %v3507
        %v3540 = vunpack.c.l.b16 %v3508
        %v3541 = vunpack.c.l.b16 %v3509
        %v3542 = vpack.c.b16 %v3527, %v3526
        %v3543 = vpack.c.b16 %v3529, %v3528
        %v3544 = vpack.c.b16 %v3531, %v3530
        %v3545 = vpack.c.b16 %v3533, %v3532
        %v3546 = vpack.c.b16 %v3535, %v3534
        %v3547 = vpack.c.b16 %v3537, %v3536
        %v3548 = vpack.c.b16 %v3539, %v3538
        %v3549 = vpack.c.b16 %v3541, %v3540
        %3558 = vmatpush.bf16.msra.mxu0 %v3549
        %3559 = vmatpush.bf16.msra.mxu0 %v3548
        %3560 = vmatpush.bf16.msra.mxu0 %v3547
        %3561 = vmatpush.bf16.msra.mxu0 %v3546
        %3562 = vmatpush.bf16.msra.mxu0 %v3545
        %3563 = vmatpush.bf16.msra.mxu0 %v3544
        %3564 = vmatpush.bf16.msra.mxu0 %v3543
        %3565 = vmatpush.bf16.msra.mxu0 %v3542
        %3566 = vmatmul.bf16.gmra.mxu0 %v928
        %v3567 = vpop.f32.mrf.mxu0
        %v3568 = vadd.f32 0.0, %v3567
        %v3569 = vpop.f32.mrf.mxu0
        %v3570 = vadd.f32 0.0, %v3569
        %3571 = vmatmul.bf16.gmra.mxu0 %v929
        %v3572 = vpop.f32.mrf.mxu0
        %v3573 = vadd.f32 0.0, %v3572
        %v3574 = vpop.f32.mrf.mxu0
        %v3575 = vadd.f32 0.0, %v3574
        %3576 = vmatmul.bf16.gmra.mxu0 %v930
        %v3577 = vpop.f32.mrf.mxu0
        %v3578 = vadd.f32 0.0, %v3577
        %v3579 = vpop.f32.mrf.mxu0
        %v3580 = vadd.f32 0.0, %v3579
        %3581 = vmatmul.bf16.gmra.mxu0 %v931
        %v3582 = vpop.f32.mrf.mxu0
        %v3583 = vadd.f32 0.0, %v3582
        %v3584 = vpop.f32.mrf.mxu0
        %v3585 = vadd.f32 0.0, %v3584
        %3586 = vmatmul.bf16.gmra.mxu0 %v932
        %v3587 = vpop.f32.mrf.mxu0
        %v3588 = vadd.f32 0.0, %v3587
        %v3589 = vpop.f32.mrf.mxu0
        %v3590 = vadd.f32 0.0, %v3589
        %3591 = vmatmul.bf16.gmra.mxu0 %v933
        %v3592 = vpop.f32.mrf.mxu0
        %v3593 = vadd.f32 0.0, %v3592
        %v3594 = vpop.f32.mrf.mxu0
        %v3595 = vadd.f32 0.0, %v3594
        %3596 = vmatmul.bf16.gmra.mxu0 %v934
        %v3597 = vpop.f32.mrf.mxu0
        %v3598 = vadd.f32 0.0, %v3597
        %v3599 = vpop.f32.mrf.mxu0
        %v3600 = vadd.f32 0.0, %v3599
        %3601 = vmatmul.bf16.gmra.mxu0 %v935
        %v3602 = vpop.f32.mrf.mxu0
        %v3603 = vadd.f32 0.0, %v3602
        %v3604 = vpop.f32.mrf.mxu0
        %v3605 = vadd.f32 0.0, %v3604
        %3606 = vdwg.mxu0
        %s3607 = scalar_lea.vmem %s509, 192
        %v3608 = vld [vmem:[%s3607] sm:$0xf]
        %v3609 = vld [vmem:[%s3607 + $0x4] sm:$0xf]
        %v3610 = vld [vmem:[%s3607 + $0x8] sm:$0xf]
        %v3611 = vld [vmem:[%s3607 + $0xc] sm:$0xf]
        %v3612 = vld [vmem:[%s3607 + $0x10] sm:$0xf]
        %v3613 = vld [vmem:[%s3607 + $0x14] sm:$0xf]
        %v3614 = vld [vmem:[%s3607 + $0x18] sm:$0xf]
        %v3615 = vld [vmem:[%s3607 + $0x1c] sm:$0xf]
        %v3616 = vld [vmem:[%s3607 + $0x20] sm:$0xf]
        %v3617 = vld [vmem:[%s3607 + $0x24] sm:$0xf]
        %v3618 = vld [vmem:[%s3607 + $0x28] sm:$0xf]
        %v3619 = vld [vmem:[%s3607 + $0x2c] sm:$0xf]
        %v3620 = vld [vmem:[%s3607 + $0x30] sm:$0xf]
        %v3621 = vld [vmem:[%s3607 + $0x34] sm:$0xf]
        %v3622 = vld [vmem:[%s3607 + $0x38] sm:$0xf]
        %v3623 = vld [vmem:[%s3607 + $0x3c] sm:$0xf]
        %v3640 = vunpack.c.l.b16 %v3608
        %v3641 = vunpack.c.l.b16 %v3609
        %v3642 = vunpack.c.l.b16 %v3610
        %v3643 = vunpack.c.l.b16 %v3611
        %v3644 = vunpack.c.l.b16 %v3612
        %v3645 = vunpack.c.l.b16 %v3613
        %v3646 = vunpack.c.l.b16 %v3614
        %v3647 = vunpack.c.l.b16 %v3615
        %v3648 = vunpack.c.l.b16 %v3616
        %v3649 = vunpack.c.l.b16 %v3617
        %v3650 = vunpack.c.l.b16 %v3618
        %v3651 = vunpack.c.l.b16 %v3619
        %v3652 = vunpack.c.l.b16 %v3620
        %v3653 = vunpack.c.l.b16 %v3621
        %v3654 = vunpack.c.l.b16 %v3622
        %v3655 = vunpack.c.l.b16 %v3623
        %v3656 = vpack.c.b16 %v3641, %v3640
        %v3657 = vpack.c.b16 %v3643, %v3642
        %v3658 = vpack.c.b16 %v3645, %v3644
        %v3659 = vpack.c.b16 %v3647, %v3646
        %v3660 = vpack.c.b16 %v3649, %v3648
        %v3661 = vpack.c.b16 %v3651, %v3650
        %v3662 = vpack.c.b16 %v3653, %v3652
        %v3663 = vpack.c.b16 %v3655, %v3654
        %3672 = vmatpush.bf16.msra.mxu0 %v3663
        %3673 = vmatpush.bf16.msra.mxu0 %v3662
        %3674 = vmatpush.bf16.msra.mxu0 %v3661
        %3675 = vmatpush.bf16.msra.mxu0 %v3660
        %3676 = vmatpush.bf16.msra.mxu0 %v3659
        %3677 = vmatpush.bf16.msra.mxu0 %v3658
        %3678 = vmatpush.bf16.msra.mxu0 %v3657
        %3679 = vmatpush.bf16.msra.mxu0 %v3656
        %3680 = vmatmul.bf16.gmra.mxu0 %v928
        %v3681 = vpop.f32.mrf.mxu0
        %v3682 = vadd.f32 0.0, %v3681
        %v3683 = vpop.f32.mrf.mxu0
        %v3684 = vadd.f32 0.0, %v3683
        %3685 = vmatmul.bf16.gmra.mxu0 %v929
        %v3686 = vpop.f32.mrf.mxu0
        %v3687 = vadd.f32 0.0, %v3686
        %v3688 = vpop.f32.mrf.mxu0
        %v3689 = vadd.f32 0.0, %v3688
        %3690 = vmatmul.bf16.gmra.mxu0 %v930
        %v3691 = vpop.f32.mrf.mxu0
        %v3692 = vadd.f32 0.0, %v3691
        %v3693 = vpop.f32.mrf.mxu0
        %v3694 = vadd.f32 0.0, %v3693
        %3695 = vmatmul.bf16.gmra.mxu0 %v931
        %v3696 = vpop.f32.mrf.mxu0
        %v3697 = vadd.f32 0.0, %v3696
        %v3698 = vpop.f32.mrf.mxu0
        %v3699 = vadd.f32 0.0, %v3698
        %3700 = vmatmul.bf16.gmra.mxu0 %v932
        %v3701 = vpop.f32.mrf.mxu0
        %v3702 = vadd.f32 0.0, %v3701
        %v3703 = vpop.f32.mrf.mxu0
        %v3704 = vadd.f32 0.0, %v3703
        %3705 = vmatmul.bf16.gmra.mxu0 %v933
        %v3706 = vpop.f32.mrf.mxu0
        %v3707 = vadd.f32 0.0, %v3706
        %v3708 = vpop.f32.mrf.mxu0
        %v3709 = vadd.f32 0.0, %v3708
        %3710 = vmatmul.bf16.gmra.mxu0 %v934
        %v3711 = vpop.f32.mrf.mxu0
        %v3712 = vadd.f32 0.0, %v3711
        %v3713 = vpop.f32.mrf.mxu0
        %v3714 = vadd.f32 0.0, %v3713
        %3715 = vmatmul.bf16.gmra.mxu0 %v935
        %v3716 = vpop.f32.mrf.mxu0
        %v3717 = vadd.f32 0.0, %v3716
        %v3718 = vpop.f32.mrf.mxu0
        %v3719 = vadd.f32 0.0, %v3718
        %3720 = vdwg.mxu0
        %v3722 = vsel %vm1275, %v3454, 0
        %v3725 = vsel %vm1275, %v3456, 0
        %v3728 = vsel %vm1275, %v3459, 0
        %v3731 = vsel %vm1275, %v3461, 0
        %v3734 = vsel %vm1275, %v3464, 0
        %v3737 = vsel %vm1275, %v3466, 0
        %v3740 = vsel %vm1275, %v3469, 0
        %v3743 = vsel %vm1275, %v3471, 0
        %v3746 = vsel %vm1275, %v3474, 0
        %v3749 = vsel %vm1275, %v3476, 0
        %v3752 = vsel %vm1275, %v3479, 0
        %v3755 = vsel %vm1275, %v3481, 0
        %v3758 = vsel %vm1275, %v3484, 0
        %v3761 = vsel %vm1275, %v3486, 0
        %v3764 = vsel %vm1275, %v3489, 0
        %v3767 = vsel %vm1275, %v3491, 0
        %v3770 = vsel %vm1275, %v3568, 0
        %v3773 = vsel %vm1275, %v3570, 0
        %v3776 = vsel %vm1275, %v3573, 0
        %v3779 = vsel %vm1275, %v3575, 0
        %v3782 = vsel %vm1275, %v3578, 0
        %v3785 = vsel %vm1275, %v3580, 0
        %v3788 = vsel %vm1275, %v3583, 0
        %v3791 = vsel %vm1275, %v3585, 0
        %v3794 = vsel %vm1275, %v3588, 0
        %v3797 = vsel %vm1275, %v3590, 0
        %v3800 = vsel %vm1275, %v3593, 0
        %v3803 = vsel %vm1275, %v3595, 0
        %v3806 = vsel %vm1275, %v3598, 0
        %v3809 = vsel %vm1275, %v3600, 0
        %v3812 = vsel %vm1275, %v3603, 0
        %v3815 = vsel %vm1275, %v3605, 0
        %3817 = vmatpush.xpose.msra.mxu0 %v3815
        %3818 = vmatpush.xpose.msra.mxu0 %v3812
        %3819 = vmatpush.xpose.msra.mxu0 %v3809
        %3820 = vmatpush.xpose.msra.mxu0 %v3806
        %3821 = vmatpush.xpose.msra.mxu0 %v3803
        %3822 = vmatpush.xpose.msra.mxu0 %v3800
        %3823 = vmatpush.xpose.msra.mxu0 %v3797
        %3824 = vmatpush.xpose.msra.mxu0 %v3794
        %3825 = vmatpush.xpose.msra.mxu0 %v3791
        %3826 = vmatpush.xpose.msra.mxu0 %v3788
        %3827 = vmatpush.xpose.msra.mxu0 %v3785
        %3828 = vmatpush.xpose.msra.mxu0 %v3782
        %3829 = vmatpush.xpose.msra.mxu0 %v3779
        %3830 = vmatpush.xpose.msra.mxu0 %v3776
        %3831 = vmatpush.xpose.msra.mxu0 %v3773
        %3832 = vmatpush.xpose.msra.mxu0 %v3770
        %3833 = vmatmul.f32.gmra.mxu0 %v3722
        %v3834 = vpop.f32.mrf.mxu0
        %v3835 = vadd.f32 %v581, %v3834
        %3836 = vmatmul.f32.gmra.mxu0 %v3725
        %v3837 = vpop.f32.mrf.mxu0
        %v3838 = vadd.f32 %v582, %v3837
        %3839 = vmatmul.f32.gmra.mxu0 %v3728
        %v3840 = vpop.f32.mrf.mxu0
        %v3841 = vadd.f32 %v583, %v3840
        %3842 = vmatmul.f32.gmra.mxu0 %v3731
        %v3843 = vpop.f32.mrf.mxu0
        %v3844 = vadd.f32 %v584, %v3843
        %3845 = vmatmul.f32.gmra.mxu0 %v3734
        %v3846 = vpop.f32.mrf.mxu0
        %v3847 = vadd.f32 %v585, %v3846
        %3848 = vmatmul.f32.gmra.mxu0 %v3737
        %v3849 = vpop.f32.mrf.mxu0
        %v3850 = vadd.f32 %v586, %v3849
        %3851 = vmatmul.f32.gmra.mxu0 %v3740
        %v3852 = vpop.f32.mrf.mxu0
        %v3853 = vadd.f32 %v587, %v3852
        %3854 = vmatmul.f32.gmra.mxu0 %v3743
        %v3855 = vpop.f32.mrf.mxu0
        %v3856 = vadd.f32 %v588, %v3855
        %3857 = vmatmul.f32.gmra.mxu0 %v3746
        %v3858 = vpop.f32.mrf.mxu0
        %v3859 = vadd.f32 %v589, %v3858
        %3860 = vmatmul.f32.gmra.mxu0 %v3749
        %v3861 = vpop.f32.mrf.mxu0
        %v3862 = vadd.f32 %v590, %v3861
        %3863 = vmatmul.f32.gmra.mxu0 %v3752
        %v3864 = vpop.f32.mrf.mxu0
        %v3865 = vadd.f32 %v591, %v3864
        %3866 = vmatmul.f32.gmra.mxu0 %v3755
        %v3867 = vpop.f32.mrf.mxu0
        %v3868 = vadd.f32 %v592, %v3867
        %3869 = vmatmul.f32.gmra.mxu0 %v3758
        %v3870 = vpop.f32.mrf.mxu0
        %v3871 = vadd.f32 %v593, %v3870
        %3872 = vmatmul.f32.gmra.mxu0 %v3761
        %v3873 = vpop.f32.mrf.mxu0
        %v3874 = vadd.f32 %v594, %v3873
        %3875 = vmatmul.f32.gmra.mxu0 %v3764
        %v3876 = vpop.f32.mrf.mxu0
        %v3877 = vadd.f32 %v595, %v3876
        %3878 = vmatmul.f32.gmra.mxu0 %v3767
        %v3879 = vpop.f32.mrf.mxu0
        %v3880 = vadd.f32 %v596, %v3879
        %3881 = vdwg.mxu0
        %3882 = vmax.xlane.f32.xlu0 %v3835
        %v3883 = vpop.xlane.xlu0 %3882
        %3884 = vmax.xlane.f32.xlu0 %v3838
        %v3885 = vpop.xlane.xlu0 %3884
        %3886 = vmax.xlane.f32.xlu0 %v3841
        %v3887 = vpop.xlane.xlu0 %3886
        %3888 = vmax.xlane.f32.xlu0 %v3844
        %v3889 = vpop.xlane.xlu0 %3888
        %3890 = vmax.xlane.f32.xlu0 %v3847
        %v3891 = vpop.xlane.xlu0 %3890
        %3892 = vmax.xlane.f32.xlu0 %v3850
        %v3893 = vpop.xlane.xlu0 %3892
        %3894 = vmax.xlane.f32.xlu0 %v3853
        %v3895 = vpop.xlane.xlu0 %3894
        %3896 = vmax.xlane.f32.xlu0 %v3856
        %v3897 = vpop.xlane.xlu0 %3896
        %3898 = vmax.xlane.f32.xlu0 %v3859
        %v3899 = vpop.xlane.xlu0 %3898
        %3900 = vmax.xlane.f32.xlu0 %v3862
        %v3901 = vpop.xlane.xlu0 %3900
        %3902 = vmax.xlane.f32.xlu0 %v3865
        %v3903 = vpop.xlane.xlu0 %3902
        %3904 = vmax.xlane.f32.xlu0 %v3868
        %v3905 = vpop.xlane.xlu0 %3904
        %3906 = vmax.xlane.f32.xlu0 %v3871
        %v3907 = vpop.xlane.xlu0 %3906
        %3908 = vmax.xlane.f32.xlu0 %v3874
        %v3909 = vpop.xlane.xlu0 %3908
        %3910 = vmax.xlane.f32.xlu0 %v3877
        %v3911 = vpop.xlane.xlu0 %3910
        %3912 = vmax.xlane.f32.xlu0 %v3880
        %v3913 = vpop.xlane.xlu0 %3912
        %v3914 = vsub.f32 %v3835, %v3883
        %v3915 = vsub.f32 %v3838, %v3885
        %v3916 = vsub.f32 %v3841, %v3887
        %v3917 = vsub.f32 %v3844, %v3889
        %v3918 = vsub.f32 %v3847, %v3891
        %v3919 = vsub.f32 %v3850, %v3893
        %v3920 = vsub.f32 %v3853, %v3895
        %v3921 = vsub.f32 %v3856, %v3897
        %v3922 = vsub.f32 %v3859, %v3899
        %v3923 = vsub.f32 %v3862, %v3901
        %v3924 = vsub.f32 %v3865, %v3903
        %v3925 = vsub.f32 %v3868, %v3905
        %v3926 = vsub.f32 %v3871, %v3907
        %v3927 = vsub.f32 %v3874, %v3909
        %v3928 = vsub.f32 %v3877, %v3911
        %v3929 = vsub.f32 %v3880, %v3913
        %v3930 = vmul.f32 %v3914, 1.442695
        %v3931 = vpow.pop %v3930
        %v3932 = vmul.f32 %v3915, 1.442695
        %v3933 = vpow.pop %v3932
        %v3934 = vmul.f32 %v3916, 1.442695
        %v3935 = vpow.pop %v3934
        %v3936 = vmul.f32 %v3917, 1.442695
        %v3937 = vpow.pop %v3936
        %v3938 = vmul.f32 %v3918, 1.442695
        %v3939 = vpow.pop %v3938
        %v3940 = vmul.f32 %v3919, 1.442695
        %v3941 = vpow.pop %v3940
        %v3942 = vmul.f32 %v3920, 1.442695
        %v3943 = vpow.pop %v3942
        %v3944 = vmul.f32 %v3921, 1.442695
        %v3945 = vpow.pop %v3944
        %v3946 = vmul.f32 %v3922, 1.442695
        %v3947 = vpow.pop %v3946
        %v3948 = vmul.f32 %v3923, 1.442695
        %v3949 = vpow.pop %v3948
        %v3950 = vmul.f32 %v3924, 1.442695
        %v3951 = vpow.pop %v3950
        %v3952 = vmul.f32 %v3925, 1.442695
        %v3953 = vpow.pop %v3952
        %v3954 = vmul.f32 %v3926, 1.442695
        %v3955 = vpow.pop %v3954
        %v3956 = vmul.f32 %v3927, 1.442695
        %v3957 = vpow.pop %v3956
        %v3958 = vmul.f32 %v3928, 1.442695
        %v3959 = vpow.pop %v3958
        %v3960 = vmul.f32 %v3929, 1.442695
        %v3961 = vpow.pop %v3960
        %3962 = vadd.xlane.f32.xlu0 %v3931
        %v3963 = vpop.xlane.xlu0 %3962
        %3964 = vadd.xlane.f32.xlu0 %v3933
        %v3965 = vpop.xlane.xlu0 %3964
        %3966 = vadd.xlane.f32.xlu0 %v3935
        %v3967 = vpop.xlane.xlu0 %3966
        %3968 = vadd.xlane.f32.xlu0 %v3937
        %v3969 = vpop.xlane.xlu0 %3968
        %3970 = vadd.xlane.f32.xlu0 %v3939
        %v3971 = vpop.xlane.xlu0 %3970
        %3972 = vadd.xlane.f32.xlu0 %v3941
        %v3973 = vpop.xlane.xlu0 %3972
        %3974 = vadd.xlane.f32.xlu0 %v3943
        %v3975 = vpop.xlane.xlu0 %3974
        %3976 = vadd.xlane.f32.xlu0 %v3945
        %v3977 = vpop.xlane.xlu0 %3976
        %3978 = vadd.xlane.f32.xlu0 %v3947
        %v3979 = vpop.xlane.xlu0 %3978
        %3980 = vadd.xlane.f32.xlu0 %v3949
        %v3981 = vpop.xlane.xlu0 %3980
        %3982 = vadd.xlane.f32.xlu0 %v3951
        %v3983 = vpop.xlane.xlu0 %3982
        %3984 = vadd.xlane.f32.xlu0 %v3953
        %v3985 = vpop.xlane.xlu0 %3984
        %3986 = vadd.xlane.f32.xlu0 %v3955
        %v3987 = vpop.xlane.xlu0 %3986
        %3988 = vadd.xlane.f32.xlu0 %v3957
        %v3989 = vpop.xlane.xlu0 %3988
        %3990 = vadd.xlane.f32.xlu0 %v3959
        %v3991 = vpop.xlane.xlu0 %3990
        %3992 = vadd.xlane.f32.xlu0 %v3961
        %v3993 = vpop.xlane.xlu0 %3992
        %v3994 = vrcp.pop %v3963
        %v3995 = vrcp.pop %v3965
        %v3996 = vrcp.pop %v3967
        %v3997 = vrcp.pop %v3969
        %v3998 = vrcp.pop %v3971
        %v3999 = vrcp.pop %v3973
        %v4000 = vrcp.pop %v3975
        %v4001 = vrcp.pop %v3977
        %v4002 = vrcp.pop %v3979
        %v4003 = vrcp.pop %v3981
        %v4004 = vrcp.pop %v3983
        %v4005 = vrcp.pop %v3985
        %v4006 = vrcp.pop %v3987
        %v4007 = vrcp.pop %v3989
        %v4008 = vrcp.pop %v3991
        %v4009 = vrcp.pop %v3993
        %v4010 = vmul.f32 %v3931, %v3994
        %v4011 = vmul.f32 %v3933, %v3995
        %v4012 = vmul.f32 %v3935, %v3996
        %v4013 = vmul.f32 %v3937, %v3997
        %v4014 = vmul.f32 %v3939, %v3998
        %v4015 = vmul.f32 %v3941, %v3999
        %v4016 = vmul.f32 %v3943, %v4000
        %v4017 = vmul.f32 %v3945, %v4001
        %v4018 = vmul.f32 %v3947, %v4002
        %v4019 = vmul.f32 %v3949, %v4003
        %v4020 = vmul.f32 %v3951, %v4004
        %v4021 = vmul.f32 %v3953, %v4005
        %v4022 = vmul.f32 %v3955, %v4006
        %v4023 = vmul.f32 %v3957, %v4007
        %v4024 = vmul.f32 %v3959, %v4008
        %v4025 = vmul.f32 %v3961, %v4009
        %4026 = vmatpush.msra.mxu0 %v3719
        %4027 = vmatpush.msra.mxu0 %v3717
        %4028 = vmatpush.msra.mxu0 %v3714
        %4029 = vmatpush.msra.mxu0 %v3712
        %4030 = vmatpush.msra.mxu0 %v3709
        %4031 = vmatpush.msra.mxu0 %v3707
        %4032 = vmatpush.msra.mxu0 %v3704
        %4033 = vmatpush.msra.mxu0 %v3702
        %4034 = vmatpush.msra.mxu0 %v3699
        %4035 = vmatpush.msra.mxu0 %v3697
        %4036 = vmatpush.msra.mxu0 %v3694
        %4037 = vmatpush.msra.mxu0 %v3692
        %4038 = vmatpush.msra.mxu0 %v3689
        %4039 = vmatpush.msra.mxu0 %v3687
        %4040 = vmatpush.msra.mxu0 %v3684
        %4041 = vmatpush.msra.mxu0 %v3682
        %4042 = vmatmul.f32.gmra.mxu0 %v4010
        %v4043 = vpop.f32.mrf.mxu0
        %v4044 = vadd.f32 0.0, %v4043
        %4045 = vmatmul.f32.gmra.mxu0 %v4011
        %v4046 = vpop.f32.mrf.mxu0
        %v4047 = vadd.f32 0.0, %v4046
        %4048 = vmatmul.f32.gmra.mxu0 %v4012
        %v4049 = vpop.f32.mrf.mxu0
        %v4050 = vadd.f32 0.0, %v4049
        %4051 = vmatmul.f32.gmra.mxu0 %v4013
        %v4052 = vpop.f32.mrf.mxu0
        %v4053 = vadd.f32 0.0, %v4052
        %4054 = vmatmul.f32.gmra.mxu0 %v4014
        %v4055 = vpop.f32.mrf.mxu0
        %v4056 = vadd.f32 0.0, %v4055
        %4057 = vmatmul.f32.gmra.mxu0 %v4015
        %v4058 = vpop.f32.mrf.mxu0
        %v4059 = vadd.f32 0.0, %v4058
        %4060 = vmatmul.f32.gmra.mxu0 %v4016
        %v4061 = vpop.f32.mrf.mxu0
        %v4062 = vadd.f32 0.0, %v4061
        %4063 = vmatmul.f32.gmra.mxu0 %v4017
        %v4064 = vpop.f32.mrf.mxu0
        %v4065 = vadd.f32 0.0, %v4064
        %4066 = vmatmul.f32.gmra.mxu0 %v4018
        %v4067 = vpop.f32.mrf.mxu0
        %v4068 = vadd.f32 0.0, %v4067
        %4069 = vmatmul.f32.gmra.mxu0 %v4019
        %v4070 = vpop.f32.mrf.mxu0
        %v4071 = vadd.f32 0.0, %v4070
        %4072 = vmatmul.f32.gmra.mxu0 %v4020
        %v4073 = vpop.f32.mrf.mxu0
        %v4074 = vadd.f32 0.0, %v4073
        %4075 = vmatmul.f32.gmra.mxu0 %v4021
        %v4076 = vpop.f32.mrf.mxu0
        %v4077 = vadd.f32 0.0, %v4076
        %4078 = vmatmul.f32.gmra.mxu0 %v4022
        %v4079 = vpop.f32.mrf.mxu0
        %v4080 = vadd.f32 0.0, %v4079
        %4081 = vmatmul.f32.gmra.mxu0 %v4023
        %v4082 = vpop.f32.mrf.mxu0
        %v4083 = vadd.f32 0.0, %v4082
        %4084 = vmatmul.f32.gmra.mxu0 %v4024
        %v4085 = vpop.f32.mrf.mxu0
        %v4086 = vadd.f32 0.0, %v4085
        %4087 = vmatmul.f32.gmra.mxu0 %v4025
        %v4088 = vpop.f32.mrf.mxu0
        %v4089 = vadd.f32 0.0, %v4088
        %4090 = vdwg.mxu0
        %v4091 = vpack.c.bf16 %v4047, %v4044
        %v4092 = vpack.c.bf16 %v4053, %v4050
        %v4093 = vpack.c.bf16 %v4059, %v4056
        %v4094 = vpack.c.bf16 %v4065, %v4062
        %v4095 = vpack.c.bf16 %v4071, %v4068
        %v4096 = vpack.c.bf16 %v4077, %v4074
        %v4097 = vpack.c.bf16 %v4083, %v4080
        %v4098 = vpack.c.bf16 %v4089, %v4086
        %s4099 = scalar_lea.vmem %s514, 48
        %v4100 = vld [vmem:[%s4099] sm:$0xf]
        %v4101 = vld [vmem:[%s4099 + $0x4] sm:$0xf]
        %v4102 = vld [vmem:[%s4099 + $0x8] sm:$0xf]
        %v4103 = vld [vmem:[%s4099 + $0xc] sm:$0xf]
        %v4108 = vunpack.c.l.b16 %v4100
        %v4109 = vunpack.c.l.b16 %v4101
        %v4110 = vunpack.c.l.b16 %v4102
        %v4111 = vunpack.c.l.b16 %v4103
        %v4112 = vpack.c.b16 %v4109, %v4108
        %v4113 = vpack.c.b16 %v4111, %v4110
        %v4117 = vsel %vm1275, %v4091, 0
        %v4120 = vsel %vm1275, %v4092, 0
        %v4123 = vsel %vm1275, %v4093, 0
        %v4126 = vsel %vm1275, %v4094, 0
        %v4129 = vsel %vm1275, %v4095, 0
        %v4132 = vsel %vm1275, %v4096, 0
        %v4135 = vsel %vm1275, %v4097, 0
        %v4138 = vsel %vm1275, %v4098, 0
        %4140 = vmatpush.bf16.msra.mxu0 0
        %4141 = vmatpush.bf16.msra.mxu0 0
        %4142 = vmatpush.bf16.msra.mxu0 0
        %4143 = vmatpush.bf16.msra.mxu0 0
        %4144 = vmatpush.bf16.msra.mxu0 0
        %4145 = vmatpush.bf16.msra.mxu0 0
        %4146 = vmatpush.bf16.msra.mxu0 %v4113
        %4147 = vmatpush.bf16.msra.mxu0 %v4112
        %4148 = vmatmul.bf16.gmra.mxu0 %v4117
        %v4149 = vpop.f32.mrf.mxu0
        %v4150 = vadd.f32 0.0, %v4149
        %v4151 = vpop.f32.mrf.mxu0
        %v4152 = vadd.f32 0.0, %v4151
        %4153 = vmatmul.bf16.gmra.mxu0 %v4120
        %v4154 = vpop.f32.mrf.mxu0
        %v4155 = vadd.f32 0.0, %v4154
        %v4156 = vpop.f32.mrf.mxu0
        %v4157 = vadd.f32 0.0, %v4156
        %4158 = vmatmul.bf16.gmra.mxu0 %v4123
        %v4159 = vpop.f32.mrf.mxu0
        %v4160 = vadd.f32 0.0, %v4159
        %v4161 = vpop.f32.mrf.mxu0
        %v4162 = vadd.f32 0.0, %v4161
        %4163 = vmatmul.bf16.gmra.mxu0 %v4126
        %v4164 = vpop.f32.mrf.mxu0
        %v4165 = vadd.f32 0.0, %v4164
        %v4166 = vpop.f32.mrf.mxu0
        %v4167 = vadd.f32 0.0, %v4166
        %4168 = vmatmul.bf16.gmra.mxu0 %v4129
        %v4169 = vpop.f32.mrf.mxu0
        %v4170 = vadd.f32 0.0, %v4169
        %v4171 = vpop.f32.mrf.mxu0
        %v4172 = vadd.f32 0.0, %v4171
        %4173 = vmatmul.bf16.gmra.mxu0 %v4132
        %v4174 = vpop.f32.mrf.mxu0
        %v4175 = vadd.f32 0.0, %v4174
        %v4176 = vpop.f32.mrf.mxu0
        %v4177 = vadd.f32 0.0, %v4176
        %4178 = vmatmul.bf16.gmra.mxu0 %v4135
        %v4179 = vpop.f32.mrf.mxu0
        %v4180 = vadd.f32 0.0, %v4179
        %v4181 = vpop.f32.mrf.mxu0
        %v4182 = vadd.f32 0.0, %v4181
        %4183 = vmatmul.bf16.gmra.mxu0 %v4138
        %v4184 = vpop.f32.mrf.mxu0
        %v4185 = vadd.f32 0.0, %v4184
        %v4186 = vpop.f32.mrf.mxu0
        %v4187 = vadd.f32 0.0, %v4186
        %4188 = vdwg.mxu0
        %v4189 = vadd.f32 %v3363, %v4150
        %v4190 = vadd.f32 %v3364, %v4152
        %v4191 = vadd.f32 %v3365, %v4155
        %v4192 = vadd.f32 %v3366, %v4157
        %v4193 = vadd.f32 %v3367, %v4160
        %v4194 = vadd.f32 %v3368, %v4162
        %v4195 = vadd.f32 %v3369, %v4165
        %v4196 = vadd.f32 %v3370, %v4167
        %v4197 = vadd.f32 %v3371, %v4170
        %v4198 = vadd.f32 %v3372, %v4172
        %v4199 = vadd.f32 %v3373, %v4175
        %v4200 = vadd.f32 %v3374, %v4177
        %v4201 = vadd.f32 %v3375, %v4180
        %v4202 = vadd.f32 %v3376, %v4182
        %v4203 = vadd.f32 %v3377, %v4185
        %v4204 = vadd.f32 %v3378, %v4187
        %v4205 = vadd.f32 %v565, %v4189
        %v4206 = vadd.f32 %v566, %v4190
        %v4207 = vadd.f32 %v567, %v4191
        %v4208 = vadd.f32 %v568, %v4192
        %v4209 = vadd.f32 %v569, %v4193
        %v4210 = vadd.f32 %v570, %v4194
        %v4211 = vadd.f32 %v571, %v4195
        %v4212 = vadd.f32 %v572, %v4196
        %v4213 = vadd.f32 %v573, %v4197
        %v4214 = vadd.f32 %v574, %v4198
        %v4215 = vadd.f32 %v575, %v4199
        %v4216 = vadd.f32 %v576, %v4200
        %v4217 = vadd.f32 %v577, %v4201
        %v4218 = vadd.f32 %v578, %v4202
        %v4219 = vadd.f32 %v579, %v4203
        %v4220 = vadd.f32 %v580, %v4204
        %v4221 = vld [vmem:[%s517] sm:$0x1]
        %v4222 = vmul.f32 %v4205, %v4205
        %v4223 = vmul.f32 %v4206, %v4206
        %v4224 = vmul.f32 %v4207, %v4207
        %v4225 = vmul.f32 %v4208, %v4208
        %v4226 = vmul.f32 %v4209, %v4209
        %v4227 = vmul.f32 %v4210, %v4210
        %v4228 = vmul.f32 %v4211, %v4211
        %v4229 = vmul.f32 %v4212, %v4212
        %v4230 = vmul.f32 %v4213, %v4213
        %v4231 = vmul.f32 %v4214, %v4214
        %v4232 = vmul.f32 %v4215, %v4215
        %v4233 = vmul.f32 %v4216, %v4216
        %v4234 = vmul.f32 %v4217, %v4217
        %v4235 = vmul.f32 %v4218, %v4218
        %v4236 = vmul.f32 %v4219, %v4219
        %v4237 = vmul.f32 %v4220, %v4220
        %4238 = vadd.xlane.f32.xlu0 %v4222
        %v4239 = vpop.xlane.xlu0 %4238
        %4240 = vadd.xlane.f32.xlu0 %v4223
        %v4241 = vpop.xlane.xlu0 %4240
        %4242 = vadd.xlane.f32.xlu0 %v4224
        %v4243 = vpop.xlane.xlu0 %4242
        %4244 = vadd.xlane.f32.xlu0 %v4225
        %v4245 = vpop.xlane.xlu0 %4244
        %4246 = vadd.xlane.f32.xlu0 %v4226
        %v4247 = vpop.xlane.xlu0 %4246
        %4248 = vadd.xlane.f32.xlu0 %v4227
        %v4249 = vpop.xlane.xlu0 %4248
        %4250 = vadd.xlane.f32.xlu0 %v4228
        %v4251 = vpop.xlane.xlu0 %4250
        %4252 = vadd.xlane.f32.xlu0 %v4229
        %v4253 = vpop.xlane.xlu0 %4252
        %4254 = vadd.xlane.f32.xlu0 %v4230
        %v4255 = vpop.xlane.xlu0 %4254
        %4256 = vadd.xlane.f32.xlu0 %v4231
        %v4257 = vpop.xlane.xlu0 %4256
        %4258 = vadd.xlane.f32.xlu0 %v4232
        %v4259 = vpop.xlane.xlu0 %4258
        %4260 = vadd.xlane.f32.xlu0 %v4233
        %v4261 = vpop.xlane.xlu0 %4260
        %4262 = vadd.xlane.f32.xlu0 %v4234
        %v4263 = vpop.xlane.xlu0 %4262
        %4264 = vadd.xlane.f32.xlu0 %v4235
        %v4265 = vpop.xlane.xlu0 %4264
        %4266 = vadd.xlane.f32.xlu0 %v4236
        %v4267 = vpop.xlane.xlu0 %4266
        %4268 = vadd.xlane.f32.xlu0 %v4237
        %v4269 = vpop.xlane.xlu0 %4268
        %v4270 = vmul.f32 %v4239, %v652
        %v4271 = vmul.f32 %v4241, %v652
        %v4272 = vmul.f32 %v4243, %v652
        %v4273 = vmul.f32 %v4245, %v652
        %v4274 = vmul.f32 %v4247, %v652
        %v4275 = vmul.f32 %v4249, %v652
        %v4276 = vmul.f32 %v4251, %v652
        %v4277 = vmul.f32 %v4253, %v652
        %v4278 = vmul.f32 %v4255, %v652
        %v4279 = vmul.f32 %v4257, %v652
        %v4280 = vmul.f32 %v4259, %v652
        %v4281 = vmul.f32 %v4261, %v652
        %v4282 = vmul.f32 %v4263, %v652
        %v4283 = vmul.f32 %v4265, %v652
        %v4284 = vmul.f32 %v4267, %v652
        %v4285 = vmul.f32 %v4269, %v652
        %v4286 = vrsqrt.pop %v4270
        %v4287 = vmul.f32 %v4286, %v4270
        %v4288 = vmul.f32 %v4287, %v4286
        %v4289 = vmul.f32 0.5, %v4288
        %v4290 = vsub.f32 1.5, %v4289
        %v4291 = vmul.f32 %v4286, %v4290
        %v4292 = vmul.f32 %v4270, %v4291
        %vm4293 = vcmp.eq.f32.partialorder %v4270, inf
        %v4294 = vsel %vm4293, %v4270, %v4292
        %vm4295 = vcmp.eq.f32.partialorder %v4270, 0.0
        %v4296 = vand.u32 %v4270, 2147483648
        %v4297 = vsel %vm4295, %v4296, %v4294
        %v4298 = vrsqrt.pop %v4271
        %v4299 = vmul.f32 %v4298, %v4271
        %v4300 = vmul.f32 %v4299, %v4298
        %v4301 = vmul.f32 0.5, %v4300
        %v4302 = vsub.f32 1.5, %v4301
        %v4303 = vmul.f32 %v4298, %v4302
        %v4304 = vmul.f32 %v4271, %v4303
        %vm4305 = vcmp.eq.f32.partialorder %v4271, inf
        %v4306 = vsel %vm4305, %v4271, %v4304
        %vm4307 = vcmp.eq.f32.partialorder %v4271, 0.0
        %v4308 = vand.u32 %v4271, 2147483648
        %v4309 = vsel %vm4307, %v4308, %v4306
        %v4310 = vrsqrt.pop %v4272
        %v4311 = vmul.f32 %v4310, %v4272
        %v4312 = vmul.f32 %v4311, %v4310
        %v4313 = vmul.f32 0.5, %v4312
        %v4314 = vsub.f32 1.5, %v4313
        %v4315 = vmul.f32 %v4310, %v4314
        %v4316 = vmul.f32 %v4272, %v4315
        %vm4317 = vcmp.eq.f32.partialorder %v4272, inf
        %v4318 = vsel %vm4317, %v4272, %v4316
        %vm4319 = vcmp.eq.f32.partialorder %v4272, 0.0
        %v4320 = vand.u32 %v4272, 2147483648
        %v4321 = vsel %vm4319, %v4320, %v4318
        %v4322 = vrsqrt.pop %v4273
        %v4323 = vmul.f32 %v4322, %v4273
        %v4324 = vmul.f32 %v4323, %v4322
        %v4325 = vmul.f32 0.5, %v4324
        %v4326 = vsub.f32 1.5, %v4325
        %v4327 = vmul.f32 %v4322, %v4326
        %v4328 = vmul.f32 %v4273, %v4327
        %vm4329 = vcmp.eq.f32.partialorder %v4273, inf
        %v4330 = vsel %vm4329, %v4273, %v4328
        %vm4331 = vcmp.eq.f32.partialorder %v4273, 0.0
        %v4332 = vand.u32 %v4273, 2147483648
        %v4333 = vsel %vm4331, %v4332, %v4330
        %v4334 = vrsqrt.pop %v4274
        %v4335 = vmul.f32 %v4334, %v4274
        %v4336 = vmul.f32 %v4335, %v4334
        %v4337 = vmul.f32 0.5, %v4336
        %v4338 = vsub.f32 1.5, %v4337
        %v4339 = vmul.f32 %v4334, %v4338
        %v4340 = vmul.f32 %v4274, %v4339
        %vm4341 = vcmp.eq.f32.partialorder %v4274, inf
        %v4342 = vsel %vm4341, %v4274, %v4340
        %vm4343 = vcmp.eq.f32.partialorder %v4274, 0.0
        %v4344 = vand.u32 %v4274, 2147483648
        %v4345 = vsel %vm4343, %v4344, %v4342
        %v4346 = vrsqrt.pop %v4275
        %v4347 = vmul.f32 %v4346, %v4275
        %v4348 = vmul.f32 %v4347, %v4346
        %v4349 = vmul.f32 0.5, %v4348
        %v4350 = vsub.f32 1.5, %v4349
        %v4351 = vmul.f32 %v4346, %v4350
        %v4352 = vmul.f32 %v4275, %v4351
        %vm4353 = vcmp.eq.f32.partialorder %v4275, inf
        %v4354 = vsel %vm4353, %v4275, %v4352
        %vm4355 = vcmp.eq.f32.partialorder %v4275, 0.0
        %v4356 = vand.u32 %v4275, 2147483648
        %v4357 = vsel %vm4355, %v4356, %v4354
        %v4358 = vrsqrt.pop %v4276
        %v4359 = vmul.f32 %v4358, %v4276
        %v4360 = vmul.f32 %v4359, %v4358
        %v4361 = vmul.f32 0.5, %v4360
        %v4362 = vsub.f32 1.5, %v4361
        %v4363 = vmul.f32 %v4358, %v4362
        %v4364 = vmul.f32 %v4276, %v4363
        %vm4365 = vcmp.eq.f32.partialorder %v4276, inf
        %v4366 = vsel %vm4365, %v4276, %v4364
        %vm4367 = vcmp.eq.f32.partialorder %v4276, 0.0
        %v4368 = vand.u32 %v4276, 2147483648
        %v4369 = vsel %vm4367, %v4368, %v4366
        %v4370 = vrsqrt.pop %v4277
        %v4371 = vmul.f32 %v4370, %v4277
        %v4372 = vmul.f32 %v4371, %v4370
        %v4373 = vmul.f32 0.5, %v4372
        %v4374 = vsub.f32 1.5, %v4373
        %v4375 = vmul.f32 %v4370, %v4374
        %v4376 = vmul.f32 %v4277, %v4375
        %vm4377 = vcmp.eq.f32.partialorder %v4277, inf
        %v4378 = vsel %vm4377, %v4277, %v4376
        %vm4379 = vcmp.eq.f32.partialorder %v4277, 0.0
        %v4380 = vand.u32 %v4277, 2147483648
        %v4381 = vsel %vm4379, %v4380, %v4378
        %v4382 = vrsqrt.pop %v4278
        %v4383 = vmul.f32 %v4382, %v4278
        %v4384 = vmul.f32 %v4383, %v4382
        %v4385 = vmul.f32 0.5, %v4384
        %v4386 = vsub.f32 1.5, %v4385
        %v4387 = vmul.f32 %v4382, %v4386
        %v4388 = vmul.f32 %v4278, %v4387
        %vm4389 = vcmp.eq.f32.partialorder %v4278, inf
        %v4390 = vsel %vm4389, %v4278, %v4388
        %vm4391 = vcmp.eq.f32.partialorder %v4278, 0.0
        %v4392 = vand.u32 %v4278, 2147483648
        %v4393 = vsel %vm4391, %v4392, %v4390
        %v4394 = vrsqrt.pop %v4279
        %v4395 = vmul.f32 %v4394, %v4279
        %v4396 = vmul.f32 %v4395, %v4394
        %v4397 = vmul.f32 0.5, %v4396
        %v4398 = vsub.f32 1.5, %v4397
        %v4399 = vmul.f32 %v4394, %v4398
        %v4400 = vmul.f32 %v4279, %v4399
        %vm4401 = vcmp.eq.f32.partialorder %v4279, inf
        %v4402 = vsel %vm4401, %v4279, %v4400
        %vm4403 = vcmp.eq.f32.partialorder %v4279, 0.0
        %v4404 = vand.u32 %v4279, 2147483648
        %v4405 = vsel %vm4403, %v4404, %v4402
        %v4406 = vrsqrt.pop %v4280
        %v4407 = vmul.f32 %v4406, %v4280
        %v4408 = vmul.f32 %v4407, %v4406
        %v4409 = vmul.f32 0.5, %v4408
        %v4410 = vsub.f32 1.5, %v4409
        %v4411 = vmul.f32 %v4406, %v4410
        %v4412 = vmul.f32 %v4280, %v4411
        %vm4413 = vcmp.eq.f32.partialorder %v4280, inf
        %v4414 = vsel %vm4413, %v4280, %v4412
        %vm4415 = vcmp.eq.f32.partialorder %v4280, 0.0
        %v4416 = vand.u32 %v4280, 2147483648
        %v4417 = vsel %vm4415, %v4416, %v4414
        %v4418 = vrsqrt.pop %v4281
        %v4419 = vmul.f32 %v4418, %v4281
        %v4420 = vmul.f32 %v4419, %v4418
        %v4421 = vmul.f32 0.5, %v4420
        %v4422 = vsub.f32 1.5, %v4421
        %v4423 = vmul.f32 %v4418, %v4422
        %v4424 = vmul.f32 %v4281, %v4423
        %vm4425 = vcmp.eq.f32.partialorder %v4281, inf
        %v4426 = vsel %vm4425, %v4281, %v4424
        %vm4427 = vcmp.eq.f32.partialorder %v4281, 0.0
        %v4428 = vand.u32 %v4281, 2147483648
        %v4429 = vsel %vm4427, %v4428, %v4426
        %v4430 = vrsqrt.pop %v4282
        %v4431 = vmul.f32 %v4430, %v4282
        %v4432 = vmul.f32 %v4431, %v4430
        %v4433 = vmul.f32 0.5, %v4432
        %v4434 = vsub.f32 1.5, %v4433
        %v4435 = vmul.f32 %v4430, %v4434
        %v4436 = vmul.f32 %v4282, %v4435
        %vm4437 = vcmp.eq.f32.partialorder %v4282, inf
        %v4438 = vsel %vm4437, %v4282, %v4436
        %vm4439 = vcmp.eq.f32.partialorder %v4282, 0.0
        %v4440 = vand.u32 %v4282, 2147483648
        %v4441 = vsel %vm4439, %v4440, %v4438
        %v4442 = vrsqrt.pop %v4283
        %v4443 = vmul.f32 %v4442, %v4283
        %v4444 = vmul.f32 %v4443, %v4442
        %v4445 = vmul.f32 0.5, %v4444
        %v4446 = vsub.f32 1.5, %v4445
        %v4447 = vmul.f32 %v4442, %v4446
        %v4448 = vmul.f32 %v4283, %v4447
        %vm4449 = vcmp.eq.f32.partialorder %v4283, inf
        %v4450 = vsel %vm4449, %v4283, %v4448
        %vm4451 = vcmp.eq.f32.partialorder %v4283, 0.0
        %v4452 = vand.u32 %v4283, 2147483648
        %v4453 = vsel %vm4451, %v4452, %v4450
        %v4454 = vrsqrt.pop %v4284
        %v4455 = vmul.f32 %v4454, %v4284
        %v4456 = vmul.f32 %v4455, %v4454
        %v4457 = vmul.f32 0.5, %v4456
        %v4458 = vsub.f32 1.5, %v4457
        %v4459 = vmul.f32 %v4454, %v4458
        %v4460 = vmul.f32 %v4284, %v4459
        %vm4461 = vcmp.eq.f32.partialorder %v4284, inf
        %v4462 = vsel %vm4461, %v4284, %v4460
        %vm4463 = vcmp.eq.f32.partialorder %v4284, 0.0
        %v4464 = vand.u32 %v4284, 2147483648
        %v4465 = vsel %vm4463, %v4464, %v4462
        %v4466 = vrsqrt.pop %v4285
        %v4467 = vmul.f32 %v4466, %v4285
        %v4468 = vmul.f32 %v4467, %v4466
        %v4469 = vmul.f32 0.5, %v4468
        %v4470 = vsub.f32 1.5, %v4469
        %v4471 = vmul.f32 %v4466, %v4470
        %v4472 = vmul.f32 %v4285, %v4471
        %vm4473 = vcmp.eq.f32.partialorder %v4285, inf
        %v4474 = vsel %vm4473, %v4285, %v4472
        %vm4475 = vcmp.eq.f32.partialorder %v4285, 0.0
        %v4476 = vand.u32 %v4285, 2147483648
        %v4477 = vsel %vm4475, %v4476, %v4474
        %v4478 = vadd.f32 %v4297, 1e-06
        %v4479 = vadd.f32 %v4309, 1e-06
        %v4480 = vadd.f32 %v4321, 1e-06
        %v4481 = vadd.f32 %v4333, 1e-06
        %v4482 = vadd.f32 %v4345, 1e-06
        %v4483 = vadd.f32 %v4357, 1e-06
        %v4484 = vadd.f32 %v4369, 1e-06
        %v4485 = vadd.f32 %v4381, 1e-06
        %v4486 = vadd.f32 %v4393, 1e-06
        %v4487 = vadd.f32 %v4405, 1e-06
        %v4488 = vadd.f32 %v4417, 1e-06
        %v4489 = vadd.f32 %v4429, 1e-06
        %v4490 = vadd.f32 %v4441, 1e-06
        %v4491 = vadd.f32 %v4453, 1e-06
        %v4492 = vadd.f32 %v4465, 1e-06
        %v4493 = vadd.f32 %v4477, 1e-06
        %v4494 = vrcp.pop %v4478
        %v4495 = vrcp.pop %v4479
        %v4496 = vrcp.pop %v4480
        %v4497 = vrcp.pop %v4481
        %v4498 = vrcp.pop %v4482
        %v4499 = vrcp.pop %v4483
        %v4500 = vrcp.pop %v4484
        %v4501 = vrcp.pop %v4485
        %v4502 = vrcp.pop %v4486
        %v4503 = vrcp.pop %v4487
        %v4504 = vrcp.pop %v4488
        %v4505 = vrcp.pop %v4489
        %v4506 = vrcp.pop %v4490
        %v4507 = vrcp.pop %v4491
        %v4508 = vrcp.pop %v4492
        %v4509 = vrcp.pop %v4493
        %v4511 = vperm.slane %v4221, 0
        %v4513 = vmul.f32 %v4511, %v4205
        %v4514 = vmul.f32 %v4511, %v4206
        %v4515 = vmul.f32 %v4511, %v4207
        %v4516 = vmul.f32 %v4511, %v4208
        %v4517 = vmul.f32 %v4511, %v4209
        %v4518 = vmul.f32 %v4511, %v4210
        %v4519 = vmul.f32 %v4511, %v4211
        %v4520 = vmul.f32 %v4511, %v4212
        %v4521 = vmul.f32 %v4511, %v4213
        %v4522 = vmul.f32 %v4511, %v4214
        %v4523 = vmul.f32 %v4511, %v4215
        %v4524 = vmul.f32 %v4511, %v4216
        %v4525 = vmul.f32 %v4511, %v4217
        %v4526 = vmul.f32 %v4511, %v4218
        %v4527 = vmul.f32 %v4511, %v4219
        %v4528 = vmul.f32 %v4511, %v4220
        %v4529 = vmul.f32 %v4513, %v4494
        %v4530 = vmul.f32 %v4514, %v4495
        %v4531 = vmul.f32 %v4515, %v4496
        %v4532 = vmul.f32 %v4516, %v4497
        %v4533 = vmul.f32 %v4517, %v4498
        %v4534 = vmul.f32 %v4518, %v4499
        %v4535 = vmul.f32 %v4519, %v4500
        %v4536 = vmul.f32 %v4520, %v4501
        %v4537 = vmul.f32 %v4521, %v4502
        %v4538 = vmul.f32 %v4522, %v4503
        %v4539 = vmul.f32 %v4523, %v4504
        %v4540 = vmul.f32 %v4524, %v4505
        %v4541 = vmul.f32 %v4525, %v4506
        %v4542 = vmul.f32 %v4526, %v4507
        %v4543 = vmul.f32 %v4527, %v4508
        %v4544 = vmul.f32 %v4528, %v4509
        %v4545 = vpack.c.bf16 %v4530, %v4529
        %v4546 = vpack.c.bf16 %v4532, %v4531
        %v4547 = vpack.c.bf16 %v4534, %v4533
        %v4548 = vpack.c.bf16 %v4536, %v4535
        %v4549 = vpack.c.bf16 %v4538, %v4537
        %v4550 = vpack.c.bf16 %v4540, %v4539
        %v4551 = vpack.c.bf16 %v4542, %v4541
        %v4552 = vpack.c.bf16 %v4544, %v4543
        %v4553 = vld [vmem:[%s522] sm:$0xff]
        %v4554 = vld [vmem:[%s522 + $0x8] sm:$0xff]
        %v4555 = vld [vmem:[%s522 + $0x10] sm:$0xff]
        %v4556 = vld [vmem:[%s522 + $0x18] sm:$0xff]
        %v4557 = vld [vmem:[%s522 + $0x20] sm:$0xff]
        %v4558 = vld [vmem:[%s522 + $0x28] sm:$0xff]
        %v4559 = vld [vmem:[%s522 + $0x30] sm:$0xff]
        %v4560 = vld [vmem:[%s522 + $0x38] sm:$0xff]
        %v4561 = vld [vmem:[%s522 + $0x40] sm:$0xff]
        %v4562 = vld [vmem:[%s522 + $0x48] sm:$0xff]
        %v4563 = vld [vmem:[%s522 + $0x50] sm:$0xff]
        %v4564 = vld [vmem:[%s522 + $0x58] sm:$0xff]
        %v4565 = vld [vmem:[%s522 + $0x60] sm:$0xff]
        %v4566 = vld [vmem:[%s522 + $0x68] sm:$0xff]
        %v4567 = vld [vmem:[%s522 + $0x70] sm:$0xff]
        %v4568 = vld [vmem:[%s522 + $0x78] sm:$0xff]
        %v4569 = vld [vmem:[%s522 + $0x80] sm:$0xff]
        %v4570 = vld [vmem:[%s522 + $0x88] sm:$0xff]
        %v4571 = vld [vmem:[%s522 + $0x90] sm:$0xff]
        %v4572 = vld [vmem:[%s522 + $0x98] sm:$0xff]
        %v4573 = vld [vmem:[%s522 + $0xa0] sm:$0xff]
        %v4574 = vld [vmem:[%s522 + $0xa8] sm:$0xff]
        %v4575 = vld [vmem:[%s522 + $0xb0] sm:$0xff]
        %v4576 = vld [vmem:[%s522 + $0xb8] sm:$0xff]
        %v4577 = vld [vmem:[%s522 + $0xc0] sm:$0xff]
        %v4578 = vld [vmem:[%s522 + $0xc8] sm:$0xff]
        %v4579 = vld [vmem:[%s522 + $0xd0] sm:$0xff]
        %v4580 = vld [vmem:[%s522 + $0xd8] sm:$0xff]
        %v4581 = vld [vmem:[%s522 + $0xe0] sm:$0xff]
        %v4582 = vld [vmem:[%s522 + $0xe8] sm:$0xff]
        %v4583 = vld [vmem:[%s522 + $0xf0] sm:$0xff]
        %v4584 = vld [vmem:[%s522 + $0xf8] sm:$0xff]
        %v4617 = vunpack.c.l.b16 %v4553
        %v4618 = vunpack.c.h.b16 %v4553
        %v4619 = vunpack.c.l.b16 %v4554
        %v4620 = vunpack.c.h.b16 %v4554
        %v4621 = vunpack.c.l.b16 %v4555
        %v4622 = vunpack.c.h.b16 %v4555
        %v4623 = vunpack.c.l.b16 %v4556
        %v4624 = vunpack.c.h.b16 %v4556
        %v4625 = vunpack.c.l.b16 %v4557
        %v4626 = vunpack.c.h.b16 %v4557
        %v4627 = vunpack.c.l.b16 %v4558
        %v4628 = vunpack.c.h.b16 %v4558
        %v4629 = vunpack.c.l.b16 %v4559
        %v4630 = vunpack.c.h.b16 %v4559
        %v4631 = vunpack.c.l.b16 %v4560
        %v4632 = vunpack.c.h.b16 %v4560
        %v4633 = vunpack.c.l.b16 %v4561
        %v4634 = vunpack.c.h.b16 %v4561
        %v4635 = vunpack.c.l.b16 %v4562
        %v4636 = vunpack.c.h.b16 %v4562
        %v4637 = vunpack.c.l.b16 %v4563
        %v4638 = vunpack.c.h.b16 %v4563
        %v4639 = vunpack.c.l.b16 %v4564
        %v4640 = vunpack.c.h.b16 %v4564
        %v4641 = vunpack.c.l.b16 %v4565
        %v4642 = vunpack.c.h.b16 %v4565
        %v4643 = vunpack.c.l.b16 %v4566
        %v4644 = vunpack.c.h.b16 %v4566
        %v4645 = vunpack.c.l.b16 %v4567
        %v4646 = vunpack.c.h.b16 %v4567
        %v4647 = vunpack.c.l.b16 %v4568
        %v4648 = vunpack.c.h.b16 %v4568
        %v4649 = vunpack.c.l.b16 %v4569
        %v4650 = vunpack.c.h.b16 %v4569
        %v4651 = vunpack.c.l.b16 %v4570
        %v4652 = vunpack.c.h.b16 %v4570
        %v4653 = vunpack.c.l.b16 %v4571
        %v4654 = vunpack.c.h.b16 %v4571
        %v4655 = vunpack.c.l.b16 %v4572
        %v4656 = vunpack.c.h.b16 %v4572
        %v4657 = vunpack.c.l.b16 %v4573
        %v4658 = vunpack.c.h.b16 %v4573
        %v4659 = vunpack.c.l.b16 %v4574
        %v4660 = vunpack.c.h.b16 %v4574
        %v4661 = vunpack.c.l.b16 %v4575
        %v4662 = vunpack.c.h.b16 %v4575
        %v4663 = vunpack.c.l.b16 %v4576
        %v4664 = vunpack.c.h.b16 %v4576
        %v4665 = vunpack.c.l.b16 %v4577
        %v4666 = vunpack.c.h.b16 %v4577
        %v4667 = vunpack.c.l.b16 %v4578
        %v4668 = vunpack.c.h.b16 %v4578
        %v4669 = vunpack.c.l.b16 %v4579
        %v4670 = vunpack.c.h.b16 %v4579
        %v4671 = vunpack.c.l.b16 %v4580
        %v4672 = vunpack.c.h.b16 %v4580
        %v4673 = vunpack.c.l.b16 %v4581
        %v4674 = vunpack.c.h.b16 %v4581
        %v4675 = vunpack.c.l.b16 %v4582
        %v4676 = vunpack.c.h.b16 %v4582
        %v4677 = vunpack.c.l.b16 %v4583
        %v4678 = vunpack.c.h.b16 %v4583
        %v4679 = vunpack.c.l.b16 %v4584
        %v4680 = vunpack.c.h.b16 %v4584
        %v4681 = vpack.c.b16 %v4621, %v4617
        %v4682 = vpack.c.b16 %v4622, %v4618
        %v4683 = vpack.c.b16 %v4623, %v4619
        %v4684 = vpack.c.b16 %v4624, %v4620
        %v4685 = vpack.c.b16 %v4629, %v4625
        %v4686 = vpack.c.b16 %v4630, %v4626
        %v4687 = vpack.c.b16 %v4631, %v4627
        %v4688 = vpack.c.b16 %v4632, %v4628
        %v4689 = vpack.c.b16 %v4637, %v4633
        %v4690 = vpack.c.b16 %v4638, %v4634
        %v4691 = vpack.c.b16 %v4639, %v4635
        %v4692 = vpack.c.b16 %v4640, %v4636
        %v4693 = vpack.c.b16 %v4645, %v4641
        %v4694 = vpack.c.b16 %v4646, %v4642
        %v4695 = vpack.c.b16 %v4647, %v4643
        %v4696 = vpack.c.b16 %v4648, %v4644
        %v4697 = vpack.c.b16 %v4653, %v4649
        %v4698 = vpack.c.b16 %v4654, %v4650
        %v4699 = vpack.c.b16 %v4655, %v4651
        %v4700 = vpack.c.b16 %v4656, %v4652
        %v4701 = vpack.c.b16 %v4661, %v4657
        %v4702 = vpack.c.b16 %v4662, %v4658
        %v4703 = vpack.c.b16 %v4663, %v4659
        %v4704 = vpack.c.b16 %v4664, %v4660
        %v4705 = vpack.c.b16 %v4669, %v4665
        %v4706 = vpack.c.b16 %v4670, %v4666
        %v4707 = vpack.c.b16 %v4671, %v4667
        %v4708 = vpack.c.b16 %v4672, %v4668
        %v4709 = vpack.c.b16 %v4677, %v4673
        %v4710 = vpack.c.b16 %v4678, %v4674
        %v4711 = vpack.c.b16 %v4679, %v4675
        %v4712 = vpack.c.b16 %v4680, %v4676
        %4745 = vmatpush.bf16.msra.mxu0 %v4709
        %4746 = vmatpush.bf16.msra.mxu0 %v4705
        %4747 = vmatpush.bf16.msra.mxu0 %v4701
        %4748 = vmatpush.bf16.msra.mxu0 %v4697
        %4749 = vmatpush.bf16.msra.mxu0 %v4693
        %4750 = vmatpush.bf16.msra.mxu0 %v4689
        %4751 = vmatpush.bf16.msra.mxu0 %v4685
        %4752 = vmatpush.bf16.msra.mxu0 %v4681
        %4753 = vmatmul.bf16.gmra.mxu0 %v4545
        %v4754 = vpop.f32.mrf.mxu0
        %v4755 = vadd.f32 0.0, %v4754
        %v4756 = vpop.f32.mrf.mxu0
        %v4757 = vadd.f32 0.0, %v4756
        %4758 = vmatmul.bf16.gmra.mxu0 %v4546
        %v4759 = vpop.f32.mrf.mxu0
        %v4760 = vadd.f32 0.0, %v4759
        %v4761 = vpop.f32.mrf.mxu0
        %v4762 = vadd.f32 0.0, %v4761
        %4763 = vmatmul.bf16.gmra.mxu0 %v4547
        %v4764 = vpop.f32.mrf.mxu0
        %v4765 = vadd.f32 0.0, %v4764
        %v4766 = vpop.f32.mrf.mxu0
        %v4767 = vadd.f32 0.0, %v4766
        %4768 = vmatmul.bf16.gmra.mxu0 %v4548
        %v4769 = vpop.f32.mrf.mxu0
        %v4770 = vadd.f32 0.0, %v4769
        %v4771 = vpop.f32.mrf.mxu0
        %v4772 = vadd.f32 0.0, %v4771
        %4773 = vmatmul.bf16.gmra.mxu0 %v4549
        %v4774 = vpop.f32.mrf.mxu0
        %v4775 = vadd.f32 0.0, %v4774
        %v4776 = vpop.f32.mrf.mxu0
        %v4777 = vadd.f32 0.0, %v4776
        %4778 = vmatmul.bf16.gmra.mxu0 %v4550
        %v4779 = vpop.f32.mrf.mxu0
        %v4780 = vadd.f32 0.0, %v4779
        %v4781 = vpop.f32.mrf.mxu0
        %v4782 = vadd.f32 0.0, %v4781
        %4783 = vmatmul.bf16.gmra.mxu0 %v4551
        %v4784 = vpop.f32.mrf.mxu0
        %v4785 = vadd.f32 0.0, %v4784
        %v4786 = vpop.f32.mrf.mxu0
        %v4787 = vadd.f32 0.0, %v4786
        %4788 = vmatmul.bf16.gmra.mxu0 %v4552
        %v4789 = vpop.f32.mrf.mxu0
        %v4790 = vadd.f32 0.0, %v4789
        %v4791 = vpop.f32.mrf.mxu0
        %v4792 = vadd.f32 0.0, %v4791
        %4793 = vdwg.mxu0
        %4794 = vmatpush.bf16.msra.mxu0 %v4710
        %4795 = vmatpush.bf16.msra.mxu0 %v4706
        %4796 = vmatpush.bf16.msra.mxu0 %v4702
        %4797 = vmatpush.bf16.msra.mxu0 %v4698
        %4798 = vmatpush.bf16.msra.mxu0 %v4694
        %4799 = vmatpush.bf16.msra.mxu0 %v4690
        %4800 = vmatpush.bf16.msra.mxu0 %v4686
        %4801 = vmatpush.bf16.msra.mxu0 %v4682
        %4802 = vmatmul.bf16.gmra.mxu0 %v4545
        %v4803 = vpop.f32.mrf.mxu0
        %v4804 = vadd.f32 0.0, %v4803
        %v4805 = vpop.f32.mrf.mxu0
        %v4806 = vadd.f32 0.0, %v4805
        %4807 = vmatmul.bf16.gmra.mxu0 %v4546
        %v4808 = vpop.f32.mrf.mxu0
        %v4809 = vadd.f32 0.0, %v4808
        %v4810 = vpop.f32.mrf.mxu0
        %v4811 = vadd.f32 0.0, %v4810
        %4812 = vmatmul.bf16.gmra.mxu0 %v4547
        %v4813 = vpop.f32.mrf.mxu0
        %v4814 = vadd.f32 0.0, %v4813
        %v4815 = vpop.f32.mrf.mxu0
        %v4816 = vadd.f32 0.0, %v4815
        %4817 = vmatmul.bf16.gmra.mxu0 %v4548
        %v4818 = vpop.f32.mrf.mxu0
        %v4819 = vadd.f32 0.0, %v4818
        %v4820 = vpop.f32.mrf.mxu0
        %v4821 = vadd.f32 0.0, %v4820
        %4822 = vmatmul.bf16.gmra.mxu0 %v4549
        %v4823 = vpop.f32.mrf.mxu0
        %v4824 = vadd.f32 0.0, %v4823
        %v4825 = vpop.f32.mrf.mxu0
        %v4826 = vadd.f32 0.0, %v4825
        %4827 = vmatmul.bf16.gmra.mxu0 %v4550
        %v4828 = vpop.f32.mrf.mxu0
        %v4829 = vadd.f32 0.0, %v4828
        %v4830 = vpop.f32.mrf.mxu0
        %v4831 = vadd.f32 0.0, %v4830
        %4832 = vmatmul.bf16.gmra.mxu0 %v4551
        %v4833 = vpop.f32.mrf.mxu0
        %v4834 = vadd.f32 0.0, %v4833
        %v4835 = vpop.f32.mrf.mxu0
        %v4836 = vadd.f32 0.0, %v4835
        %4837 = vmatmul.bf16.gmra.mxu0 %v4552
        %v4838 = vpop.f32.mrf.mxu0
        %v4839 = vadd.f32 0.0, %v4838
        %v4840 = vpop.f32.mrf.mxu0
        %v4841 = vadd.f32 0.0, %v4840
        %4842 = vdwg.mxu0
        %4843 = vmatpush.bf16.msra.mxu0 %v4711
        %4844 = vmatpush.bf16.msra.mxu0 %v4707
        %4845 = vmatpush.bf16.msra.mxu0 %v4703
        %4846 = vmatpush.bf16.msra.mxu0 %v4699
        %4847 = vmatpush.bf16.msra.mxu0 %v4695
        %4848 = vmatpush.bf16.msra.mxu0 %v4691
        %4849 = vmatpush.bf16.msra.mxu0 %v4687
        %4850 = vmatpush.bf16.msra.mxu0 %v4683
        %4851 = vmatmul.bf16.gmra.mxu0 %v4545
        %v4852 = vpop.f32.mrf.mxu0
        %v4853 = vadd.f32 0.0, %v4852
        %v4854 = vpop.f32.mrf.mxu0
        %v4855 = vadd.f32 0.0, %v4854
        %4856 = vmatmul.bf16.gmra.mxu0 %v4546
        %v4857 = vpop.f32.mrf.mxu0
        %v4858 = vadd.f32 0.0, %v4857
        %v4859 = vpop.f32.mrf.mxu0
        %v4860 = vadd.f32 0.0, %v4859
        %4861 = vmatmul.bf16.gmra.mxu0 %v4547
        %v4862 = vpop.f32.mrf.mxu0
        %v4863 = vadd.f32 0.0, %v4862
        %v4864 = vpop.f32.mrf.mxu0
        %v4865 = vadd.f32 0.0, %v4864
        %4866 = vmatmul.bf16.gmra.mxu0 %v4548
        %v4867 = vpop.f32.mrf.mxu0
        %v4868 = vadd.f32 0.0, %v4867
        %v4869 = vpop.f32.mrf.mxu0
        %v4870 = vadd.f32 0.0, %v4869
        %4871 = vmatmul.bf16.gmra.mxu0 %v4549
        %v4872 = vpop.f32.mrf.mxu0
        %v4873 = vadd.f32 0.0, %v4872
        %v4874 = vpop.f32.mrf.mxu0
        %v4875 = vadd.f32 0.0, %v4874
        %4876 = vmatmul.bf16.gmra.mxu0 %v4550
        %v4877 = vpop.f32.mrf.mxu0
        %v4878 = vadd.f32 0.0, %v4877
        %v4879 = vpop.f32.mrf.mxu0
        %v4880 = vadd.f32 0.0, %v4879
        %4881 = vmatmul.bf16.gmra.mxu0 %v4551
        %v4882 = vpop.f32.mrf.mxu0
        %v4883 = vadd.f32 0.0, %v4882
        %v4884 = vpop.f32.mrf.mxu0
        %v4885 = vadd.f32 0.0, %v4884
        %4886 = vmatmul.bf16.gmra.mxu0 %v4552
        %v4887 = vpop.f32.mrf.mxu0
        %v4888 = vadd.f32 0.0, %v4887
        %v4889 = vpop.f32.mrf.mxu0
        %v4890 = vadd.f32 0.0, %v4889
        %4891 = vdwg.mxu0
        %4892 = vmatpush.bf16.msra.mxu0 %v4712
        %4893 = vmatpush.bf16.msra.mxu0 %v4708
        %4894 = vmatpush.bf16.msra.mxu0 %v4704
        %4895 = vmatpush.bf16.msra.mxu0 %v4700
        %4896 = vmatpush.bf16.msra.mxu0 %v4696
        %4897 = vmatpush.bf16.msra.mxu0 %v4692
        %4898 = vmatpush.bf16.msra.mxu0 %v4688
        %4899 = vmatpush.bf16.msra.mxu0 %v4684
        %4900 = vmatmul.bf16.gmra.mxu0 %v4545
        %v4901 = vpop.f32.mrf.mxu0
        %v4902 = vadd.f32 0.0, %v4901
        %v4903 = vpop.f32.mrf.mxu0
        %v4904 = vadd.f32 0.0, %v4903
        %4905 = vmatmul.bf16.gmra.mxu0 %v4546
        %v4906 = vpop.f32.mrf.mxu0
        %v4907 = vadd.f32 0.0, %v4906
        %v4908 = vpop.f32.mrf.mxu0
        %v4909 = vadd.f32 0.0, %v4908
        %4910 = vmatmul.bf16.gmra.mxu0 %v4547
        %v4911 = vpop.f32.mrf.mxu0
        %v4912 = vadd.f32 0.0, %v4911
        %v4913 = vpop.f32.mrf.mxu0
        %v4914 = vadd.f32 0.0, %v4913
        %4915 = vmatmul.bf16.gmra.mxu0 %v4548
        %v4916 = vpop.f32.mrf.mxu0
        %v4917 = vadd.f32 0.0, %v4916
        %v4918 = vpop.f32.mrf.mxu0
        %v4919 = vadd.f32 0.0, %v4918
        %4920 = vmatmul.bf16.gmra.mxu0 %v4549
        %v4921 = vpop.f32.mrf.mxu0
        %v4922 = vadd.f32 0.0, %v4921
        %v4923 = vpop.f32.mrf.mxu0
        %v4924 = vadd.f32 0.0, %v4923
        %4925 = vmatmul.bf16.gmra.mxu0 %v4550
        %v4926 = vpop.f32.mrf.mxu0
        %v4927 = vadd.f32 0.0, %v4926
        %v4928 = vpop.f32.mrf.mxu0
        %v4929 = vadd.f32 0.0, %v4928
        %4930 = vmatmul.bf16.gmra.mxu0 %v4551
        %v4931 = vpop.f32.mrf.mxu0
        %v4932 = vadd.f32 0.0, %v4931
        %v4933 = vpop.f32.mrf.mxu0
        %v4934 = vadd.f32 0.0, %v4933
        %4935 = vmatmul.bf16.gmra.mxu0 %v4552
        %v4936 = vpop.f32.mrf.mxu0
        %v4937 = vadd.f32 0.0, %v4936
        %v4938 = vpop.f32.mrf.mxu0
        %v4939 = vadd.f32 0.0, %v4938
        %4940 = vdwg.mxu0
        %v4941 = vmul.f32 %v4755, 0.5
        %v4942 = vmul.f32 %v4804, 0.5
        %v4943 = vmul.f32 %v4853, 0.5
        %v4944 = vmul.f32 %v4902, 0.5
        %v4945 = vmul.f32 %v4757, 0.5
        %v4946 = vmul.f32 %v4806, 0.5
        %v4947 = vmul.f32 %v4855, 0.5
        %v4948 = vmul.f32 %v4904, 0.5
        %v4949 = vmul.f32 %v4760, 0.5
        %v4950 = vmul.f32 %v4809, 0.5
        %v4951 = vmul.f32 %v4858, 0.5
        %v4952 = vmul.f32 %v4907, 0.5
        %v4953 = vmul.f32 %v4762, 0.5
        %v4954 = vmul.f32 %v4811, 0.5
        %v4955 = vmul.f32 %v4860, 0.5
        %v4956 = vmul.f32 %v4909, 0.5
        %v4957 = vmul.f32 %v4765, 0.5
        %v4958 = vmul.f32 %v4814, 0.5
        %v4959 = vmul.f32 %v4863, 0.5
        %v4960 = vmul.f32 %v4912, 0.5
        %v4961 = vmul.f32 %v4767, 0.5
        %v4962 = vmul.f32 %v4816, 0.5
        %v4963 = vmul.f32 %v4865, 0.5
        %v4964 = vmul.f32 %v4914, 0.5
        %v4965 = vmul.f32 %v4770, 0.5
        %v4966 = vmul.f32 %v4819, 0.5
        %v4967 = vmul.f32 %v4868, 0.5
        %v4968 = vmul.f32 %v4917, 0.5
        %v4969 = vmul.f32 %v4772, 0.5
        %v4970 = vmul.f32 %v4821, 0.5
        %v4971 = vmul.f32 %v4870, 0.5
        %v4972 = vmul.f32 %v4919, 0.5
        %v4973 = vmul.f32 %v4775, 0.5
        %v4974 = vmul.f32 %v4824, 0.5
        %v4975 = vmul.f32 %v4873, 0.5
        %v4976 = vmul.f32 %v4922, 0.5
        %v4977 = vmul.f32 %v4777, 0.5
        %v4978 = vmul.f32 %v4826, 0.5
        %v4979 = vmul.f32 %v4875, 0.5
        %v4980 = vmul.f32 %v4924, 0.5
        %v4981 = vmul.f32 %v4780, 0.5
        %v4982 = vmul.f32 %v4829, 0.5
        %v4983 = vmul.f32 %v4878, 0.5
        %v4984 = vmul.f32 %v4927, 0.5
        %v4985 = vmul.f32 %v4782, 0.5
        %v4986 = vmul.f32 %v4831, 0.5
        %v4987 = vmul.f32 %v4880, 0.5
        %v4988 = vmul.f32 %v4929, 0.5
        %v4989 = vmul.f32 %v4785, 0.5
        %v4990 = vmul.f32 %v4834, 0.5
        %v4991 = vmul.f32 %v4883, 0.5
        %v4992 = vmul.f32 %v4932, 0.5
        %v4993 = vmul.f32 %v4787, 0.5
        %v4994 = vmul.f32 %v4836, 0.5
        %v4995 = vmul.f32 %v4885, 0.5
        %v4996 = vmul.f32 %v4934, 0.5
        %v4997 = vmul.f32 %v4790, 0.5
        %v4998 = vmul.f32 %v4839, 0.5
        %v4999 = vmul.f32 %v4888, 0.5
        %v5000 = vmul.f32 %v4937, 0.5
        %v5001 = vmul.f32 %v4792, 0.5
        %v5002 = vmul.f32 %v4841, 0.5
        %v5003 = vmul.f32 %v4890, 0.5
        %v5004 = vmul.f32 %v4939, 0.5
        %v5005 = vmul.f32 %v4755, 0.70710677
        %v5006 = vmul.f32 %v4804, 0.70710677
        %v5007 = vmul.f32 %v4853, 0.70710677
        %v5008 = vmul.f32 %v4902, 0.70710677
        %v5009 = vmul.f32 %v4757, 0.70710677
        %v5010 = vmul.f32 %v4806, 0.70710677
        %v5011 = vmul.f32 %v4855, 0.70710677
        %v5012 = vmul.f32 %v4904, 0.70710677
        %v5013 = vmul.f32 %v4760, 0.70710677
        %v5014 = vmul.f32 %v4809, 0.70710677
        %v5015 = vmul.f32 %v4858, 0.70710677
        %v5016 = vmul.f32 %v4907, 0.70710677
        %v5017 = vmul.f32 %v4762, 0.70710677
        %v5018 = vmul.f32 %v4811, 0.70710677
        %v5019 = vmul.f32 %v4860, 0.70710677
        %v5020 = vmul.f32 %v4909, 0.70710677
        %v5021 = vmul.f32 %v4765, 0.70710677
        %v5022 = vmul.f32 %v4814, 0.70710677
        %v5023 = vmul.f32 %v4863, 0.70710677
        %v5024 = vmul.f32 %v4912, 0.70710677
        %v5025 = vmul.f32 %v4767, 0.70710677
        %v5026 = vmul.f32 %v4816, 0.70710677
        %v5027 = vmul.f32 %v4865, 0.70710677
        %v5028 = vmul.f32 %v4914, 0.70710677
        %v5029 = vmul.f32 %v4770, 0.70710677
        %v5030 = vmul.f32 %v4819, 0.70710677
        %v5031 = vmul.f32 %v4868, 0.70710677
        %v5032 = vmul.f32 %v4917, 0.70710677
        %v5033 = vmul.f32 %v4772, 0.70710677
        %v5034 = vmul.f32 %v4821, 0.70710677
        %v5035 = vmul.f32 %v4870, 0.70710677
        %v5036 = vmul.f32 %v4919, 0.70710677
        %v5037 = vmul.f32 %v4775, 0.70710677
        %v5038 = vmul.f32 %v4824, 0.70710677
        %v5039 = vmul.f32 %v4873, 0.70710677
        %v5040 = vmul.f32 %v4922, 0.70710677
        %v5041 = vmul.f32 %v4777, 0.70710677
        %v5042 = vmul.f32 %v4826, 0.70710677
        %v5043 = vmul.f32 %v4875, 0.70710677
        %v5044 = vmul.f32 %v4924, 0.70710677
        %v5045 = vmul.f32 %v4780, 0.70710677
        %v5046 = vmul.f32 %v4829, 0.70710677
        %v5047 = vmul.f32 %v4878, 0.70710677
        %v5048 = vmul.f32 %v4927, 0.70710677
        %v5049 = vmul.f32 %v4782, 0.70710677
        %v5050 = vmul.f32 %v4831, 0.70710677
        %v5051 = vmul.f32 %v4880, 0.70710677
        %v5052 = vmul.f32 %v4929, 0.70710677
        %v5053 = vmul.f32 %v4785, 0.70710677
        %v5054 = vmul.f32 %v4834, 0.70710677
        %v5055 = vmul.f32 %v4883, 0.70710677
        %v5056 = vmul.f32 %v4932, 0.70710677
        %v5057 = vmul.f32 %v4787, 0.70710677
        %v5058 = vmul.f32 %v4836, 0.70710677
        %v5059 = vmul.f32 %v4885, 0.70710677
        %v5060 = vmul.f32 %v4934, 0.70710677
        %v5061 = vmul.f32 %v4790, 0.70710677
        %v5062 = vmul.f32 %v4839, 0.70710677
        %v5063 = vmul.f32 %v4888, 0.70710677
        %v5064 = vmul.f32 %v4937, 0.70710677
        %v5065 = vmul.f32 %v4792, 0.70710677
        %v5066 = vmul.f32 %v4841, 0.70710677
        %v5067 = vmul.f32 %v4890, 0.70710677
        %v5068 = vmul.f32 %v4939, 0.70710677
        %v5069 = vmul.f32 %v5005, %v5005
        %v5070 = vmin.f32 16.0, %v5069
        %v5071 = vmul.f32 %v5070, 2.1237322e-06
        %v5072 = vadd.f32 %v5071, 0.00028619796
        %v5073 = vmul.f32 %v5070, %v5072
        %v5074 = vadd.f32 %v5073, 0.0036580483
        %v5075 = vmul.f32 %v5070, %v5074
        %v5076 = vadd.f32 %v5075, 0.05243302
        %v5077 = vmul.f32 %v5070, %v5076
        %v5078 = vadd.f32 %v5077, 0.18741608
        %v5079 = vmul.f32 %v5070, %v5078
        %v5080 = vadd.f32 %v5079, 1.1283791
        %v5081 = vmul.f32 %v5005, %v5080
        %v5082 = vmul.f32 %v5070, 3.8918573e-05
        %v5083 = vadd.f32 %v5082, 0.001143296
        %v5084 = vmul.f32 %v5070, %v5083
        %v5085 = vadd.f32 %v5084, 0.014752088
        %v5086 = vmul.f32 %v5070, %v5085
        %v5087 = vadd.f32 %v5086, 0.112945676
        %v5088 = vmul.f32 %v5070, %v5087
        %v5089 = vadd.f32 %v5088, 0.4994258
        %v5090 = vmul.f32 %v5070, %v5089
        %v5091 = vadd.f32 %v5090, 1.0
        %v5092 = vrcp.pop %v5091
        %v5093 = vmul.f32 %v5091, %v5092
        %v5094 = vsub.f32 1.0, %v5093
        %v5095 = vmul.f32 %v5092, %v5094
        %v5096 = vadd.f32 %v5092, %v5095
        %vm5097 = vweird.f32 %v5091
        %vm5098 = vweird.f32 %v5092
        %vm5099 = vmor %vm5097, %vm5098
        %v5100 = vsel %vm5099, %v5092, %v5096
        %v5101 = vand.u32 2147483647, %v5091
        %vm5102 = vcmp.eq.f32.partialorder %v5101, 8.507059e+37
        %v5103 = vand.u32 %v5091, 2147483648
        %v5104 = vor.u32 1.1754944e-38, %v5103
        %v5105 = vsel %vm5102, %v5104, %v5100
        %v5106 = vmul.f32 %v5081, %v5105
        %v5107 = vmin.f32 %v5106, 1.0
        %v5108 = vmax.f32 %v5107, -1.0
        %v5109 = vmul.f32 %v5006, %v5006
        %v5110 = vmin.f32 16.0, %v5109
        %v5111 = vmul.f32 %v5110, 2.1237322e-06
        %v5112 = vadd.f32 %v5111, 0.00028619796
        %v5113 = vmul.f32 %v5110, %v5112
        %v5114 = vadd.f32 %v5113, 0.0036580483
        %v5115 = vmul.f32 %v5110, %v5114
        %v5116 = vadd.f32 %v5115, 0.05243302
        %v5117 = vmul.f32 %v5110, %v5116
        %v5118 = vadd.f32 %v5117, 0.18741608
        %v5119 = vmul.f32 %v5110, %v5118
        %v5120 = vadd.f32 %v5119, 1.1283791
        %v5121 = vmul.f32 %v5006, %v5120
        %v5122 = vmul.f32 %v5110, 3.8918573e-05
        %v5123 = vadd.f32 %v5122, 0.001143296
        %v5124 = vmul.f32 %v5110, %v5123
        %v5125 = vadd.f32 %v5124, 0.014752088
        %v5126 = vmul.f32 %v5110, %v5125
        %v5127 = vadd.f32 %v5126, 0.112945676
        %v5128 = vmul.f32 %v5110, %v5127
        %v5129 = vadd.f32 %v5128, 0.4994258
        %v5130 = vmul.f32 %v5110, %v5129
        %v5131 = vadd.f32 %v5130, 1.0
        %v5132 = vrcp.pop %v5131
        %v5133 = vmul.f32 %v5131, %v5132
        %v5134 = vsub.f32 1.0, %v5133
        %v5135 = vmul.f32 %v5132, %v5134
        %v5136 = vadd.f32 %v5132, %v5135
        %vm5137 = vweird.f32 %v5131
        %vm5138 = vweird.f32 %v5132
        %vm5139 = vmor %vm5137, %vm5138
        %v5140 = vsel %vm5139, %v5132, %v5136
        %v5141 = vand.u32 2147483647, %v5131
        %vm5142 = vcmp.eq.f32.partialorder %v5141, 8.507059e+37
        %v5143 = vand.u32 %v5131, 2147483648
        %v5144 = vor.u32 1.1754944e-38, %v5143
        %v5145 = vsel %vm5142, %v5144, %v5140
        %v5146 = vmul.f32 %v5121, %v5145
        %v5147 = vmin.f32 %v5146, 1.0
        %v5148 = vmax.f32 %v5147, -1.0
        %v5149 = vmul.f32 %v5007, %v5007
        %v5150 = vmin.f32 16.0, %v5149
        %v5151 = vmul.f32 %v5150, 2.1237322e-06
        %v5152 = vadd.f32 %v5151, 0.00028619796
        %v5153 = vmul.f32 %v5150, %v5152
        %v5154 = vadd.f32 %v5153, 0.0036580483
        %v5155 = vmul.f32 %v5150, %v5154
        %v5156 = vadd.f32 %v5155, 0.05243302
        %v5157 = vmul.f32 %v5150, %v5156
        %v5158 = vadd.f32 %v5157, 0.18741608
        %v5159 = vmul.f32 %v5150, %v5158
        %v5160 = vadd.f32 %v5159, 1.1283791
        %v5161 = vmul.f32 %v5007, %v5160
        %v5162 = vmul.f32 %v5150, 3.8918573e-05
        %v5163 = vadd.f32 %v5162, 0.001143296
        %v5164 = vmul.f32 %v5150, %v5163
        %v5165 = vadd.f32 %v5164, 0.014752088
        %v5166 = vmul.f32 %v5150, %v5165
        %v5167 = vadd.f32 %v5166, 0.112945676
        %v5168 = vmul.f32 %v5150, %v5167
        %v5169 = vadd.f32 %v5168, 0.4994258
        %v5170 = vmul.f32 %v5150, %v5169
        %v5171 = vadd.f32 %v5170, 1.0
        %v5172 = vrcp.pop %v5171
        %v5173 = vmul.f32 %v5171, %v5172
        %v5174 = vsub.f32 1.0, %v5173
        %v5175 = vmul.f32 %v5172, %v5174
        %v5176 = vadd.f32 %v5172, %v5175
        %vm5177 = vweird.f32 %v5171
        %vm5178 = vweird.f32 %v5172
        %vm5179 = vmor %vm5177, %vm5178
        %v5180 = vsel %vm5179, %v5172, %v5176
        %v5181 = vand.u32 2147483647, %v5171
        %vm5182 = vcmp.eq.f32.partialorder %v5181, 8.507059e+37
        %v5183 = vand.u32 %v5171, 2147483648
        %v5184 = vor.u32 1.1754944e-38, %v5183
        %v5185 = vsel %vm5182, %v5184, %v5180
        %v5186 = vmul.f32 %v5161, %v5185
        %v5187 = vmin.f32 %v5186, 1.0
        %v5188 = vmax.f32 %v5187, -1.0
        %v5189 = vmul.f32 %v5008, %v5008
        %v5190 = vmin.f32 16.0, %v5189
        %v5191 = vmul.f32 %v5190, 2.1237322e-06
        %v5192 = vadd.f32 %v5191, 0.00028619796
        %v5193 = vmul.f32 %v5190, %v5192
        %v5194 = vadd.f32 %v5193, 0.0036580483
        %v5195 = vmul.f32 %v5190, %v5194
        %v5196 = vadd.f32 %v5195, 0.05243302
        %v5197 = vmul.f32 %v5190, %v5196
        %v5198 = vadd.f32 %v5197, 0.18741608
        %v5199 = vmul.f32 %v5190, %v5198
        %v5200 = vadd.f32 %v5199, 1.1283791
        %v5201 = vmul.f32 %v5008, %v5200
        %v5202 = vmul.f32 %v5190, 3.8918573e-05
        %v5203 = vadd.f32 %v5202, 0.001143296
        %v5204 = vmul.f32 %v5190, %v5203
        %v5205 = vadd.f32 %v5204, 0.014752088
        %v5206 = vmul.f32 %v5190, %v5205
        %v5207 = vadd.f32 %v5206, 0.112945676
        %v5208 = vmul.f32 %v5190, %v5207
        %v5209 = vadd.f32 %v5208, 0.4994258
        %v5210 = vmul.f32 %v5190, %v5209
        %v5211 = vadd.f32 %v5210, 1.0
        %v5212 = vrcp.pop %v5211
        %v5213 = vmul.f32 %v5211, %v5212
        %v5214 = vsub.f32 1.0, %v5213
        %v5215 = vmul.f32 %v5212, %v5214
        %v5216 = vadd.f32 %v5212, %v5215
        %vm5217 = vweird.f32 %v5211
        %vm5218 = vweird.f32 %v5212
        %vm5219 = vmor %vm5217, %vm5218
        %v5220 = vsel %vm5219, %v5212, %v5216
        %v5221 = vand.u32 2147483647, %v5211
        %vm5222 = vcmp.eq.f32.partialorder %v5221, 8.507059e+37
        %v5223 = vand.u32 %v5211, 2147483648
        %v5224 = vor.u32 1.1754944e-38, %v5223
        %v5225 = vsel %vm5222, %v5224, %v5220
        %v5226 = vmul.f32 %v5201, %v5225
        %v5227 = vmin.f32 %v5226, 1.0
        %v5228 = vmax.f32 %v5227, -1.0
        %v5229 = vmul.f32 %v5009, %v5009
        %v5230 = vmin.f32 16.0, %v5229
        %v5231 = vmul.f32 %v5230, 2.1237322e-06
        %v5232 = vadd.f32 %v5231, 0.00028619796
        %v5233 = vmul.f32 %v5230, %v5232
        %v5234 = vadd.f32 %v5233, 0.0036580483
        %v5235 = vmul.f32 %v5230, %v5234
        %v5236 = vadd.f32 %v5235, 0.05243302
        %v5237 = vmul.f32 %v5230, %v5236
        %v5238 = vadd.f32 %v5237, 0.18741608
        %v5239 = vmul.f32 %v5230, %v5238
        %v5240 = vadd.f32 %v5239, 1.1283791
        %v5241 = vmul.f32 %v5009, %v5240
        %v5242 = vmul.f32 %v5230, 3.8918573e-05
        %v5243 = vadd.f32 %v5242, 0.001143296
        %v5244 = vmul.f32 %v5230, %v5243
        %v5245 = vadd.f32 %v5244, 0.014752088
        %v5246 = vmul.f32 %v5230, %v5245
        %v5247 = vadd.f32 %v5246, 0.112945676
        %v5248 = vmul.f32 %v5230, %v5247
        %v5249 = vadd.f32 %v5248, 0.4994258
        %v5250 = vmul.f32 %v5230, %v5249
        %v5251 = vadd.f32 %v5250, 1.0
        %v5252 = vrcp.pop %v5251
        %v5253 = vmul.f32 %v5251, %v5252
        %v5254 = vsub.f32 1.0, %v5253
        %v5255 = vmul.f32 %v5252, %v5254
        %v5256 = vadd.f32 %v5252, %v5255
        %vm5257 = vweird.f32 %v5251
        %vm5258 = vweird.f32 %v5252
        %vm5259 = vmor %vm5257, %vm5258
        %v5260 = vsel %vm5259, %v5252, %v5256
        %v5261 = vand.u32 2147483647, %v5251
        %vm5262 = vcmp.eq.f32.partialorder %v5261, 8.507059e+37
        %v5263 = vand.u32 %v5251, 2147483648
        %v5264 = vor.u32 1.1754944e-38, %v5263
        %v5265 = vsel %vm5262, %v5264, %v5260
        %v5266 = vmul.f32 %v5241, %v5265
        %v5267 = vmin.f32 %v5266, 1.0
        %v5268 = vmax.f32 %v5267, -1.0
        %v5269 = vmul.f32 %v5010, %v5010
        %v5270 = vmin.f32 16.0, %v5269
        %v5271 = vmul.f32 %v5270, 2.1237322e-06
        %v5272 = vadd.f32 %v5271, 0.00028619796
        %v5273 = vmul.f32 %v5270, %v5272
        %v5274 = vadd.f32 %v5273, 0.0036580483
        %v5275 = vmul.f32 %v5270, %v5274
        %v5276 = vadd.f32 %v5275, 0.05243302
        %v5277 = vmul.f32 %v5270, %v5276
        %v5278 = vadd.f32 %v5277, 0.18741608
        %v5279 = vmul.f32 %v5270, %v5278
        %v5280 = vadd.f32 %v5279, 1.1283791
        %v5281 = vmul.f32 %v5010, %v5280
        %v5282 = vmul.f32 %v5270, 3.8918573e-05
        %v5283 = vadd.f32 %v5282, 0.001143296
        %v5284 = vmul.f32 %v5270, %v5283
        %v5285 = vadd.f32 %v5284, 0.014752088
        %v5286 = vmul.f32 %v5270, %v5285
        %v5287 = vadd.f32 %v5286, 0.112945676
        %v5288 = vmul.f32 %v5270, %v5287
        %v5289 = vadd.f32 %v5288, 0.4994258
        %v5290 = vmul.f32 %v5270, %v5289
        %v5291 = vadd.f32 %v5290, 1.0
        %v5292 = vrcp.pop %v5291
        %v5293 = vmul.f32 %v5291, %v5292
        %v5294 = vsub.f32 1.0, %v5293
        %v5295 = vmul.f32 %v5292, %v5294
        %v5296 = vadd.f32 %v5292, %v5295
        %vm5297 = vweird.f32 %v5291
        %vm5298 = vweird.f32 %v5292
        %vm5299 = vmor %vm5297, %vm5298
        %v5300 = vsel %vm5299, %v5292, %v5296
        %v5301 = vand.u32 2147483647, %v5291
        %vm5302 = vcmp.eq.f32.partialorder %v5301, 8.507059e+37
        %v5303 = vand.u32 %v5291, 2147483648
        %v5304 = vor.u32 1.1754944e-38, %v5303
        %v5305 = vsel %vm5302, %v5304, %v5300
        %v5306 = vmul.f32 %v5281, %v5305
        %v5307 = vmin.f32 %v5306, 1.0
        %v5308 = vmax.f32 %v5307, -1.0
        %v5309 = vmul.f32 %v5011, %v5011
        %v5310 = vmin.f32 16.0, %v5309
        %v5311 = vmul.f32 %v5310, 2.1237322e-06
        %v5312 = vadd.f32 %v5311, 0.00028619796
        %v5313 = vmul.f32 %v5310, %v5312
        %v5314 = vadd.f32 %v5313, 0.0036580483
        %v5315 = vmul.f32 %v5310, %v5314
        %v5316 = vadd.f32 %v5315, 0.05243302
        %v5317 = vmul.f32 %v5310, %v5316
        %v5318 = vadd.f32 %v5317, 0.18741608
        %v5319 = vmul.f32 %v5310, %v5318
        %v5320 = vadd.f32 %v5319, 1.1283791
        %v5321 = vmul.f32 %v5011, %v5320
        %v5322 = vmul.f32 %v5310, 3.8918573e-05
        %v5323 = vadd.f32 %v5322, 0.001143296
        %v5324 = vmul.f32 %v5310, %v5323
        %v5325 = vadd.f32 %v5324, 0.014752088
        %v5326 = vmul.f32 %v5310, %v5325
        %v5327 = vadd.f32 %v5326, 0.112945676
        %v5328 = vmul.f32 %v5310, %v5327
        %v5329 = vadd.f32 %v5328, 0.4994258
        %v5330 = vmul.f32 %v5310, %v5329
        %v5331 = vadd.f32 %v5330, 1.0
        %v5332 = vrcp.pop %v5331
        %v5333 = vmul.f32 %v5331, %v5332
        %v5334 = vsub.f32 1.0, %v5333
        %v5335 = vmul.f32 %v5332, %v5334
        %v5336 = vadd.f32 %v5332, %v5335
        %vm5337 = vweird.f32 %v5331
        %vm5338 = vweird.f32 %v5332
        %vm5339 = vmor %vm5337, %vm5338
        %v5340 = vsel %vm5339, %v5332, %v5336
        %v5341 = vand.u32 2147483647, %v5331
        %vm5342 = vcmp.eq.f32.partialorder %v5341, 8.507059e+37
        %v5343 = vand.u32 %v5331, 2147483648
        %v5344 = vor.u32 1.1754944e-38, %v5343
        %v5345 = vsel %vm5342, %v5344, %v5340
        %v5346 = vmul.f32 %v5321, %v5345
        %v5347 = vmin.f32 %v5346, 1.0
        %v5348 = vmax.f32 %v5347, -1.0
        %v5349 = vmul.f32 %v5012, %v5012
        %v5350 = vmin.f32 16.0, %v5349
        %v5351 = vmul.f32 %v5350, 2.1237322e-06
        %v5352 = vadd.f32 %v5351, 0.00028619796
        %v5353 = vmul.f32 %v5350, %v5352
        %v5354 = vadd.f32 %v5353, 0.0036580483
        %v5355 = vmul.f32 %v5350, %v5354
        %v5356 = vadd.f32 %v5355, 0.05243302
        %v5357 = vmul.f32 %v5350, %v5356
        %v5358 = vadd.f32 %v5357, 0.18741608
        %v5359 = vmul.f32 %v5350, %v5358
        %v5360 = vadd.f32 %v5359, 1.1283791
        %v5361 = vmul.f32 %v5012, %v5360
        %v5362 = vmul.f32 %v5350, 3.8918573e-05
        %v5363 = vadd.f32 %v5362, 0.001143296
        %v5364 = vmul.f32 %v5350, %v5363
        %v5365 = vadd.f32 %v5364, 0.014752088
        %v5366 = vmul.f32 %v5350, %v5365
        %v5367 = vadd.f32 %v5366, 0.112945676
        %v5368 = vmul.f32 %v5350, %v5367
        %v5369 = vadd.f32 %v5368, 0.4994258
        %v5370 = vmul.f32 %v5350, %v5369
        %v5371 = vadd.f32 %v5370, 1.0
        %v5372 = vrcp.pop %v5371
        %v5373 = vmul.f32 %v5371, %v5372
        %v5374 = vsub.f32 1.0, %v5373
        %v5375 = vmul.f32 %v5372, %v5374
        %v5376 = vadd.f32 %v5372, %v5375
        %vm5377 = vweird.f32 %v5371
        %vm5378 = vweird.f32 %v5372
        %vm5379 = vmor %vm5377, %vm5378
        %v5380 = vsel %vm5379, %v5372, %v5376
        %v5381 = vand.u32 2147483647, %v5371
        %vm5382 = vcmp.eq.f32.partialorder %v5381, 8.507059e+37
        %v5383 = vand.u32 %v5371, 2147483648
        %v5384 = vor.u32 1.1754944e-38, %v5383
        %v5385 = vsel %vm5382, %v5384, %v5380
        %v5386 = vmul.f32 %v5361, %v5385
        %v5387 = vmin.f32 %v5386, 1.0
        %v5388 = vmax.f32 %v5387, -1.0
        %v5389 = vmul.f32 %v5013, %v5013
        %v5390 = vmin.f32 16.0, %v5389
        %v5391 = vmul.f32 %v5390, 2.1237322e-06
        %v5392 = vadd.f32 %v5391, 0.00028619796
        %v5393 = vmul.f32 %v5390, %v5392
        %v5394 = vadd.f32 %v5393, 0.0036580483
        %v5395 = vmul.f32 %v5390, %v5394
        %v5396 = vadd.f32 %v5395, 0.05243302
        %v5397 = vmul.f32 %v5390, %v5396
        %v5398 = vadd.f32 %v5397, 0.18741608
        %v5399 = vmul.f32 %v5390, %v5398
        %v5400 = vadd.f32 %v5399, 1.1283791
        %v5401 = vmul.f32 %v5013, %v5400
        %v5402 = vmul.f32 %v5390, 3.8918573e-05
        %v5403 = vadd.f32 %v5402, 0.001143296
        %v5404 = vmul.f32 %v5390, %v5403
        %v5405 = vadd.f32 %v5404, 0.014752088
        %v5406 = vmul.f32 %v5390, %v5405
        %v5407 = vadd.f32 %v5406, 0.112945676
        %v5408 = vmul.f32 %v5390, %v5407
        %v5409 = vadd.f32 %v5408, 0.4994258
        %v5410 = vmul.f32 %v5390, %v5409
        %v5411 = vadd.f32 %v5410, 1.0
        %v5412 = vrcp.pop %v5411
        %v5413 = vmul.f32 %v5411, %v5412
        %v5414 = vsub.f32 1.0, %v5413
        %v5415 = vmul.f32 %v5412, %v5414
        %v5416 = vadd.f32 %v5412, %v5415
        %vm5417 = vweird.f32 %v5411
        %vm5418 = vweird.f32 %v5412
        %vm5419 = vmor %vm5417, %vm5418
        %v5420 = vsel %vm5419, %v5412, %v5416
        %v5421 = vand.u32 2147483647, %v5411
        %vm5422 = vcmp.eq.f32.partialorder %v5421, 8.507059e+37
        %v5423 = vand.u32 %v5411, 2147483648
        %v5424 = vor.u32 1.1754944e-38, %v5423
        %v5425 = vsel %vm5422, %v5424, %v5420
        %v5426 = vmul.f32 %v5401, %v5425
        %v5427 = vmin.f32 %v5426, 1.0
        %v5428 = vmax.f32 %v5427, -1.0
        %v5429 = vmul.f32 %v5014, %v5014
        %v5430 = vmin.f32 16.0, %v5429
        %v5431 = vmul.f32 %v5430, 2.1237322e-06
        %v5432 = vadd.f32 %v5431, 0.00028619796
        %v5433 = vmul.f32 %v5430, %v5432
        %v5434 = vadd.f32 %v5433, 0.0036580483
        %v5435 = vmul.f32 %v5430, %v5434
        %v5436 = vadd.f32 %v5435, 0.05243302
        %v5437 = vmul.f32 %v5430, %v5436
        %v5438 = vadd.f32 %v5437, 0.18741608
        %v5439 = vmul.f32 %v5430, %v5438
        %v5440 = vadd.f32 %v5439, 1.1283791
        %v5441 = vmul.f32 %v5014, %v5440
        %v5442 = vmul.f32 %v5430, 3.8918573e-05
        %v5443 = vadd.f32 %v5442, 0.001143296
        %v5444 = vmul.f32 %v5430, %v5443
        %v5445 = vadd.f32 %v5444, 0.014752088
        %v5446 = vmul.f32 %v5430, %v5445
        %v5447 = vadd.f32 %v5446, 0.112945676
        %v5448 = vmul.f32 %v5430, %v5447
        %v5449 = vadd.f32 %v5448, 0.4994258
        %v5450 = vmul.f32 %v5430, %v5449
        %v5451 = vadd.f32 %v5450, 1.0
        %v5452 = vrcp.pop %v5451
        %v5453 = vmul.f32 %v5451, %v5452
        %v5454 = vsub.f32 1.0, %v5453
        %v5455 = vmul.f32 %v5452, %v5454
        %v5456 = vadd.f32 %v5452, %v5455
        %vm5457 = vweird.f32 %v5451
        %vm5458 = vweird.f32 %v5452
        %vm5459 = vmor %vm5457, %vm5458
        %v5460 = vsel %vm5459, %v5452, %v5456
        %v5461 = vand.u32 2147483647, %v5451
        %vm5462 = vcmp.eq.f32.partialorder %v5461, 8.507059e+37
        %v5463 = vand.u32 %v5451, 2147483648
        %v5464 = vor.u32 1.1754944e-38, %v5463
        %v5465 = vsel %vm5462, %v5464, %v5460
        %v5466 = vmul.f32 %v5441, %v5465
        %v5467 = vmin.f32 %v5466, 1.0
        %v5468 = vmax.f32 %v5467, -1.0
        %v5469 = vmul.f32 %v5015, %v5015
        %v5470 = vmin.f32 16.0, %v5469
        %v5471 = vmul.f32 %v5470, 2.1237322e-06
        %v5472 = vadd.f32 %v5471, 0.00028619796
        %v5473 = vmul.f32 %v5470, %v5472
        %v5474 = vadd.f32 %v5473, 0.0036580483
        %v5475 = vmul.f32 %v5470, %v5474
        %v5476 = vadd.f32 %v5475, 0.05243302
        %v5477 = vmul.f32 %v5470, %v5476
        %v5478 = vadd.f32 %v5477, 0.18741608
        %v5479 = vmul.f32 %v5470, %v5478
        %v5480 = vadd.f32 %v5479, 1.1283791
        %v5481 = vmul.f32 %v5015, %v5480
        %v5482 = vmul.f32 %v5470, 3.8918573e-05
        %v5483 = vadd.f32 %v5482, 0.001143296
        %v5484 = vmul.f32 %v5470, %v5483
        %v5485 = vadd.f32 %v5484, 0.014752088
        %v5486 = vmul.f32 %v5470, %v5485
        %v5487 = vadd.f32 %v5486, 0.112945676
        %v5488 = vmul.f32 %v5470, %v5487
        %v5489 = vadd.f32 %v5488, 0.4994258
        %v5490 = vmul.f32 %v5470, %v5489
        %v5491 = vadd.f32 %v5490, 1.0
        %v5492 = vrcp.pop %v5491
        %v5493 = vmul.f32 %v5491, %v5492
        %v5494 = vsub.f32 1.0, %v5493
        %v5495 = vmul.f32 %v5492, %v5494
        %v5496 = vadd.f32 %v5492, %v5495
        %vm5497 = vweird.f32 %v5491
        %vm5498 = vweird.f32 %v5492
        %vm5499 = vmor %vm5497, %vm5498
        %v5500 = vsel %vm5499, %v5492, %v5496
        %v5501 = vand.u32 2147483647, %v5491
        %vm5502 = vcmp.eq.f32.partialorder %v5501, 8.507059e+37
        %v5503 = vand.u32 %v5491, 2147483648
        %v5504 = vor.u32 1.1754944e-38, %v5503
        %v5505 = vsel %vm5502, %v5504, %v5500
        %v5506 = vmul.f32 %v5481, %v5505
        %v5507 = vmin.f32 %v5506, 1.0
        %v5508 = vmax.f32 %v5507, -1.0
        %v5509 = vmul.f32 %v5016, %v5016
        %v5510 = vmin.f32 16.0, %v5509
        %v5511 = vmul.f32 %v5510, 2.1237322e-06
        %v5512 = vadd.f32 %v5511, 0.00028619796
        %v5513 = vmul.f32 %v5510, %v5512
        %v5514 = vadd.f32 %v5513, 0.0036580483
        %v5515 = vmul.f32 %v5510, %v5514
        %v5516 = vadd.f32 %v5515, 0.05243302
        %v5517 = vmul.f32 %v5510, %v5516
        %v5518 = vadd.f32 %v5517, 0.18741608
        %v5519 = vmul.f32 %v5510, %v5518
        %v5520 = vadd.f32 %v5519, 1.1283791
        %v5521 = vmul.f32 %v5016, %v5520
        %v5522 = vmul.f32 %v5510, 3.8918573e-05
        %v5523 = vadd.f32 %v5522, 0.001143296
        %v5524 = vmul.f32 %v5510, %v5523
        %v5525 = vadd.f32 %v5524, 0.014752088
        %v5526 = vmul.f32 %v5510, %v5525
        %v5527 = vadd.f32 %v5526, 0.112945676
        %v5528 = vmul.f32 %v5510, %v5527
        %v5529 = vadd.f32 %v5528, 0.4994258
        %v5530 = vmul.f32 %v5510, %v5529
        %v5531 = vadd.f32 %v5530, 1.0
        %v5532 = vrcp.pop %v5531
        %v5533 = vmul.f32 %v5531, %v5532
        %v5534 = vsub.f32 1.0, %v5533
        %v5535 = vmul.f32 %v5532, %v5534
        %v5536 = vadd.f32 %v5532, %v5535
        %vm5537 = vweird.f32 %v5531
        %vm5538 = vweird.f32 %v5532
        %vm5539 = vmor %vm5537, %vm5538
        %v5540 = vsel %vm5539, %v5532, %v5536
        %v5541 = vand.u32 2147483647, %v5531
        %vm5542 = vcmp.eq.f32.partialorder %v5541, 8.507059e+37
        %v5543 = vand.u32 %v5531, 2147483648
        %v5544 = vor.u32 1.1754944e-38, %v5543
        %v5545 = vsel %vm5542, %v5544, %v5540
        %v5546 = vmul.f32 %v5521, %v5545
        %v5547 = vmin.f32 %v5546, 1.0
        %v5548 = vmax.f32 %v5547, -1.0
        %v5549 = vmul.f32 %v5017, %v5017
        %v5550 = vmin.f32 16.0, %v5549
        %v5551 = vmul.f32 %v5550, 2.1237322e-06
        %v5552 = vadd.f32 %v5551, 0.00028619796
        %v5553 = vmul.f32 %v5550, %v5552
        %v5554 = vadd.f32 %v5553, 0.0036580483
        %v5555 = vmul.f32 %v5550, %v5554
        %v5556 = vadd.f32 %v5555, 0.05243302
        %v5557 = vmul.f32 %v5550, %v5556
        %v5558 = vadd.f32 %v5557, 0.18741608
        %v5559 = vmul.f32 %v5550, %v5558
        %v5560 = vadd.f32 %v5559, 1.1283791
        %v5561 = vmul.f32 %v5017, %v5560
        %v5562 = vmul.f32 %v5550, 3.8918573e-05
        %v5563 = vadd.f32 %v5562, 0.001143296
        %v5564 = vmul.f32 %v5550, %v5563
        %v5565 = vadd.f32 %v5564, 0.014752088
        %v5566 = vmul.f32 %v5550, %v5565
        %v5567 = vadd.f32 %v5566, 0.112945676
        %v5568 = vmul.f32 %v5550, %v5567
        %v5569 = vadd.f32 %v5568, 0.4994258
        %v5570 = vmul.f32 %v5550, %v5569
        %v5571 = vadd.f32 %v5570, 1.0
        %v5572 = vrcp.pop %v5571
        %v5573 = vmul.f32 %v5571, %v5572
        %v5574 = vsub.f32 1.0, %v5573
        %v5575 = vmul.f32 %v5572, %v5574
        %v5576 = vadd.f32 %v5572, %v5575
        %vm5577 = vweird.f32 %v5571
        %vm5578 = vweird.f32 %v5572
        %vm5579 = vmor %vm5577, %vm5578
        %v5580 = vsel %vm5579, %v5572, %v5576
        %v5581 = vand.u32 2147483647, %v5571
        %vm5582 = vcmp.eq.f32.partialorder %v5581, 8.507059e+37
        %v5583 = vand.u32 %v5571, 2147483648
        %v5584 = vor.u32 1.1754944e-38, %v5583
        %v5585 = vsel %vm5582, %v5584, %v5580
        %v5586 = vmul.f32 %v5561, %v5585
        %v5587 = vmin.f32 %v5586, 1.0
        %v5588 = vmax.f32 %v5587, -1.0
        %v5589 = vmul.f32 %v5018, %v5018
        %v5590 = vmin.f32 16.0, %v5589
        %v5591 = vmul.f32 %v5590, 2.1237322e-06
        %v5592 = vadd.f32 %v5591, 0.00028619796
        %v5593 = vmul.f32 %v5590, %v5592
        %v5594 = vadd.f32 %v5593, 0.0036580483
        %v5595 = vmul.f32 %v5590, %v5594
        %v5596 = vadd.f32 %v5595, 0.05243302
        %v5597 = vmul.f32 %v5590, %v5596
        %v5598 = vadd.f32 %v5597, 0.18741608
        %v5599 = vmul.f32 %v5590, %v5598
        %v5600 = vadd.f32 %v5599, 1.1283791
        %v5601 = vmul.f32 %v5018, %v5600
        %v5602 = vmul.f32 %v5590, 3.8918573e-05
        %v5603 = vadd.f32 %v5602, 0.001143296
        %v5604 = vmul.f32 %v5590, %v5603
        %v5605 = vadd.f32 %v5604, 0.014752088
        %v5606 = vmul.f32 %v5590, %v5605
        %v5607 = vadd.f32 %v5606, 0.112945676
        %v5608 = vmul.f32 %v5590, %v5607
        %v5609 = vadd.f32 %v5608, 0.4994258
        %v5610 = vmul.f32 %v5590, %v5609
        %v5611 = vadd.f32 %v5610, 1.0
        %v5612 = vrcp.pop %v5611
        %v5613 = vmul.f32 %v5611, %v5612
        %v5614 = vsub.f32 1.0, %v5613
        %v5615 = vmul.f32 %v5612, %v5614
        %v5616 = vadd.f32 %v5612, %v5615
        %vm5617 = vweird.f32 %v5611
        %vm5618 = vweird.f32 %v5612
        %vm5619 = vmor %vm5617, %vm5618
        %v5620 = vsel %vm5619, %v5612, %v5616
        %v5621 = vand.u32 2147483647, %v5611
        %vm5622 = vcmp.eq.f32.partialorder %v5621, 8.507059e+37
        %v5623 = vand.u32 %v5611, 2147483648
        %v5624 = vor.u32 1.1754944e-38, %v5623
        %v5625 = vsel %vm5622, %v5624, %v5620
        %v5626 = vmul.f32 %v5601, %v5625
        %v5627 = vmin.f32 %v5626, 1.0
        %v5628 = vmax.f32 %v5627, -1.0
        %v5629 = vmul.f32 %v5019, %v5019
        %v5630 = vmin.f32 16.0, %v5629
        %v5631 = vmul.f32 %v5630, 2.1237322e-06
        %v5632 = vadd.f32 %v5631, 0.00028619796
        %v5633 = vmul.f32 %v5630, %v5632
        %v5634 = vadd.f32 %v5633, 0.0036580483
        %v5635 = vmul.f32 %v5630, %v5634
        %v5636 = vadd.f32 %v5635, 0.05243302
        %v5637 = vmul.f32 %v5630, %v5636
        %v5638 = vadd.f32 %v5637, 0.18741608
        %v5639 = vmul.f32 %v5630, %v5638
        %v5640 = vadd.f32 %v5639, 1.1283791
        %v5641 = vmul.f32 %v5019, %v5640
        %v5642 = vmul.f32 %v5630, 3.8918573e-05
        %v5643 = vadd.f32 %v5642, 0.001143296
        %v5644 = vmul.f32 %v5630, %v5643
        %v5645 = vadd.f32 %v5644, 0.014752088
        %v5646 = vmul.f32 %v5630, %v5645
        %v5647 = vadd.f32 %v5646, 0.112945676
        %v5648 = vmul.f32 %v5630, %v5647
        %v5649 = vadd.f32 %v5648, 0.4994258
        %v5650 = vmul.f32 %v5630, %v5649
        %v5651 = vadd.f32 %v5650, 1.0
        %v5652 = vrcp.pop %v5651
        %v5653 = vmul.f32 %v5651, %v5652
        %v5654 = vsub.f32 1.0, %v5653
        %v5655 = vmul.f32 %v5652, %v5654
        %v5656 = vadd.f32 %v5652, %v5655
        %vm5657 = vweird.f32 %v5651
        %vm5658 = vweird.f32 %v5652
        %vm5659 = vmor %vm5657, %vm5658
        %v5660 = vsel %vm5659, %v5652, %v5656
        %v5661 = vand.u32 2147483647, %v5651
        %vm5662 = vcmp.eq.f32.partialorder %v5661, 8.507059e+37
        %v5663 = vand.u32 %v5651, 2147483648
        %v5664 = vor.u32 1.1754944e-38, %v5663
        %v5665 = vsel %vm5662, %v5664, %v5660
        %v5666 = vmul.f32 %v5641, %v5665
        %v5667 = vmin.f32 %v5666, 1.0
        %v5668 = vmax.f32 %v5667, -1.0
        %v5669 = vmul.f32 %v5020, %v5020
        %v5670 = vmin.f32 16.0, %v5669
        %v5671 = vmul.f32 %v5670, 2.1237322e-06
        %v5672 = vadd.f32 %v5671, 0.00028619796
        %v5673 = vmul.f32 %v5670, %v5672
        %v5674 = vadd.f32 %v5673, 0.0036580483
        %v5675 = vmul.f32 %v5670, %v5674
        %v5676 = vadd.f32 %v5675, 0.05243302
        %v5677 = vmul.f32 %v5670, %v5676
        %v5678 = vadd.f32 %v5677, 0.18741608
        %v5679 = vmul.f32 %v5670, %v5678
        %v5680 = vadd.f32 %v5679, 1.1283791
        %v5681 = vmul.f32 %v5020, %v5680
        %v5682 = vmul.f32 %v5670, 3.8918573e-05
        %v5683 = vadd.f32 %v5682, 0.001143296
        %v5684 = vmul.f32 %v5670, %v5683
        %v5685 = vadd.f32 %v5684, 0.014752088
        %v5686 = vmul.f32 %v5670, %v5685
        %v5687 = vadd.f32 %v5686, 0.112945676
        %v5688 = vmul.f32 %v5670, %v5687
        %v5689 = vadd.f32 %v5688, 0.4994258
        %v5690 = vmul.f32 %v5670, %v5689
        %v5691 = vadd.f32 %v5690, 1.0
        %v5692 = vrcp.pop %v5691
        %v5693 = vmul.f32 %v5691, %v5692
        %v5694 = vsub.f32 1.0, %v5693
        %v5695 = vmul.f32 %v5692, %v5694
        %v5696 = vadd.f32 %v5692, %v5695
        %vm5697 = vweird.f32 %v5691
        %vm5698 = vweird.f32 %v5692
        %vm5699 = vmor %vm5697, %vm5698
        %v5700 = vsel %vm5699, %v5692, %v5696
        %v5701 = vand.u32 2147483647, %v5691
        %vm5702 = vcmp.eq.f32.partialorder %v5701, 8.507059e+37
        %v5703 = vand.u32 %v5691, 2147483648
        %v5704 = vor.u32 1.1754944e-38, %v5703
        %v5705 = vsel %vm5702, %v5704, %v5700
        %v5706 = vmul.f32 %v5681, %v5705
        %v5707 = vmin.f32 %v5706, 1.0
        %v5708 = vmax.f32 %v5707, -1.0
        %v5709 = vmul.f32 %v5021, %v5021
        %v5710 = vmin.f32 16.0, %v5709
        %v5711 = vmul.f32 %v5710, 2.1237322e-06
        %v5712 = vadd.f32 %v5711, 0.00028619796
        %v5713 = vmul.f32 %v5710, %v5712
        %v5714 = vadd.f32 %v5713, 0.0036580483
        %v5715 = vmul.f32 %v5710, %v5714
        %v5716 = vadd.f32 %v5715, 0.05243302
        %v5717 = vmul.f32 %v5710, %v5716
        %v5718 = vadd.f32 %v5717, 0.18741608
        %v5719 = vmul.f32 %v5710, %v5718
        %v5720 = vadd.f32 %v5719, 1.1283791
        %v5721 = vmul.f32 %v5021, %v5720
        %v5722 = vmul.f32 %v5710, 3.8918573e-05
        %v5723 = vadd.f32 %v5722, 0.001143296
        %v5724 = vmul.f32 %v5710, %v5723
        %v5725 = vadd.f32 %v5724, 0.014752088
        %v5726 = vmul.f32 %v5710, %v5725
        %v5727 = vadd.f32 %v5726, 0.112945676
        %v5728 = vmul.f32 %v5710, %v5727
        %v5729 = vadd.f32 %v5728, 0.4994258
        %v5730 = vmul.f32 %v5710, %v5729
        %v5731 = vadd.f32 %v5730, 1.0
        %v5732 = vrcp.pop %v5731
        %v5733 = vmul.f32 %v5731, %v5732
        %v5734 = vsub.f32 1.0, %v5733
        %v5735 = vmul.f32 %v5732, %v5734
        %v5736 = vadd.f32 %v5732, %v5735
        %vm5737 = vweird.f32 %v5731
        %vm5738 = vweird.f32 %v5732
        %vm5739 = vmor %vm5737, %vm5738
        %v5740 = vsel %vm5739, %v5732, %v5736
        %v5741 = vand.u32 2147483647, %v5731
        %vm5742 = vcmp.eq.f32.partialorder %v5741, 8.507059e+37
        %v5743 = vand.u32 %v5731, 2147483648
        %v5744 = vor.u32 1.1754944e-38, %v5743
        %v5745 = vsel %vm5742, %v5744, %v5740
        %v5746 = vmul.f32 %v5721, %v5745
        %v5747 = vmin.f32 %v5746, 1.0
        %v5748 = vmax.f32 %v5747, -1.0
        %v5749 = vmul.f32 %v5022, %v5022
        %v5750 = vmin.f32 16.0, %v5749
        %v5751 = vmul.f32 %v5750, 2.1237322e-06
        %v5752 = vadd.f32 %v5751, 0.00028619796
        %v5753 = vmul.f32 %v5750, %v5752
        %v5754 = vadd.f32 %v5753, 0.0036580483
        %v5755 = vmul.f32 %v5750, %v5754
        %v5756 = vadd.f32 %v5755, 0.05243302
        %v5757 = vmul.f32 %v5750, %v5756
        %v5758 = vadd.f32 %v5757, 0.18741608
        %v5759 = vmul.f32 %v5750, %v5758
        %v5760 = vadd.f32 %v5759, 1.1283791
        %v5761 = vmul.f32 %v5022, %v5760
        %v5762 = vmul.f32 %v5750, 3.8918573e-05
        %v5763 = vadd.f32 %v5762, 0.001143296
        %v5764 = vmul.f32 %v5750, %v5763
        %v5765 = vadd.f32 %v5764, 0.014752088
        %v5766 = vmul.f32 %v5750, %v5765
        %v5767 = vadd.f32 %v5766, 0.112945676
        %v5768 = vmul.f32 %v5750, %v5767
        %v5769 = vadd.f32 %v5768, 0.4994258
        %v5770 = vmul.f32 %v5750, %v5769
        %v5771 = vadd.f32 %v5770, 1.0
        %v5772 = vrcp.pop %v5771
        %v5773 = vmul.f32 %v5771, %v5772
        %v5774 = vsub.f32 1.0, %v5773
        %v5775 = vmul.f32 %v5772, %v5774
        %v5776 = vadd.f32 %v5772, %v5775
        %vm5777 = vweird.f32 %v5771
        %vm5778 = vweird.f32 %v5772
        %vm5779 = vmor %vm5777, %vm5778
        %v5780 = vsel %vm5779, %v5772, %v5776
        %v5781 = vand.u32 2147483647, %v5771
        %vm5782 = vcmp.eq.f32.partialorder %v5781, 8.507059e+37
        %v5783 = vand.u32 %v5771, 2147483648
        %v5784 = vor.u32 1.1754944e-38, %v5783
        %v5785 = vsel %vm5782, %v5784, %v5780
        %v5786 = vmul.f32 %v5761, %v5785
        %v5787 = vmin.f32 %v5786, 1.0
        %v5788 = vmax.f32 %v5787, -1.0
        %v5789 = vmul.f32 %v5023, %v5023
        %v5790 = vmin.f32 16.0, %v5789
        %v5791 = vmul.f32 %v5790, 2.1237322e-06
        %v5792 = vadd.f32 %v5791, 0.00028619796
        %v5793 = vmul.f32 %v5790, %v5792
        %v5794 = vadd.f32 %v5793, 0.0036580483
        %v5795 = vmul.f32 %v5790, %v5794
        %v5796 = vadd.f32 %v5795, 0.05243302
        %v5797 = vmul.f32 %v5790, %v5796
        %v5798 = vadd.f32 %v5797, 0.18741608
        %v5799 = vmul.f32 %v5790, %v5798
        %v5800 = vadd.f32 %v5799, 1.1283791
        %v5801 = vmul.f32 %v5023, %v5800
        %v5802 = vmul.f32 %v5790, 3.8918573e-05
        %v5803 = vadd.f32 %v5802, 0.001143296
        %v5804 = vmul.f32 %v5790, %v5803
        %v5805 = vadd.f32 %v5804, 0.014752088
        %v5806 = vmul.f32 %v5790, %v5805
        %v5807 = vadd.f32 %v5806, 0.112945676
        %v5808 = vmul.f32 %v5790, %v5807
        %v5809 = vadd.f32 %v5808, 0.4994258
        %v5810 = vmul.f32 %v5790, %v5809
        %v5811 = vadd.f32 %v5810, 1.0
        %v5812 = vrcp.pop %v5811
        %v5813 = vmul.f32 %v5811, %v5812
        %v5814 = vsub.f32 1.0, %v5813
        %v5815 = vmul.f32 %v5812, %v5814
        %v5816 = vadd.f32 %v5812, %v5815
        %vm5817 = vweird.f32 %v5811
        %vm5818 = vweird.f32 %v5812
        %vm5819 = vmor %vm5817, %vm5818
        %v5820 = vsel %vm5819, %v5812, %v5816
        %v5821 = vand.u32 2147483647, %v5811
        %vm5822 = vcmp.eq.f32.partialorder %v5821, 8.507059e+37
        %v5823 = vand.u32 %v5811, 2147483648
        %v5824 = vor.u32 1.1754944e-38, %v5823
        %v5825 = vsel %vm5822, %v5824, %v5820
        %v5826 = vmul.f32 %v5801, %v5825
        %v5827 = vmin.f32 %v5826, 1.0
        %v5828 = vmax.f32 %v5827, -1.0
        %v5829 = vmul.f32 %v5024, %v5024
        %v5830 = vmin.f32 16.0, %v5829
        %v5831 = vmul.f32 %v5830, 2.1237322e-06
        %v5832 = vadd.f32 %v5831, 0.00028619796
        %v5833 = vmul.f32 %v5830, %v5832
        %v5834 = vadd.f32 %v5833, 0.0036580483
        %v5835 = vmul.f32 %v5830, %v5834
        %v5836 = vadd.f32 %v5835, 0.05243302
        %v5837 = vmul.f32 %v5830, %v5836
        %v5838 = vadd.f32 %v5837, 0.18741608
        %v5839 = vmul.f32 %v5830, %v5838
        %v5840 = vadd.f32 %v5839, 1.1283791
        %v5841 = vmul.f32 %v5024, %v5840
        %v5842 = vmul.f32 %v5830, 3.8918573e-05
        %v5843 = vadd.f32 %v5842, 0.001143296
        %v5844 = vmul.f32 %v5830, %v5843
        %v5845 = vadd.f32 %v5844, 0.014752088
        %v5846 = vmul.f32 %v5830, %v5845
        %v5847 = vadd.f32 %v5846, 0.112945676
        %v5848 = vmul.f32 %v5830, %v5847
        %v5849 = vadd.f32 %v5848, 0.4994258
        %v5850 = vmul.f32 %v5830, %v5849
        %v5851 = vadd.f32 %v5850, 1.0
        %v5852 = vrcp.pop %v5851
        %v5853 = vmul.f32 %v5851, %v5852
        %v5854 = vsub.f32 1.0, %v5853
        %v5855 = vmul.f32 %v5852, %v5854
        %v5856 = vadd.f32 %v5852, %v5855
        %vm5857 = vweird.f32 %v5851
        %vm5858 = vweird.f32 %v5852
        %vm5859 = vmor %vm5857, %vm5858
        %v5860 = vsel %vm5859, %v5852, %v5856
        %v5861 = vand.u32 2147483647, %v5851
        %vm5862 = vcmp.eq.f32.partialorder %v5861, 8.507059e+37
        %v5863 = vand.u32 %v5851, 2147483648
        %v5864 = vor.u32 1.1754944e-38, %v5863
        %v5865 = vsel %vm5862, %v5864, %v5860
        %v5866 = vmul.f32 %v5841, %v5865
        %v5867 = vmin.f32 %v5866, 1.0
        %v5868 = vmax.f32 %v5867, -1.0
        %v5869 = vmul.f32 %v5025, %v5025
        %v5870 = vmin.f32 16.0, %v5869
        %v5871 = vmul.f32 %v5870, 2.1237322e-06
        %v5872 = vadd.f32 %v5871, 0.00028619796
        %v5873 = vmul.f32 %v5870, %v5872
        %v5874 = vadd.f32 %v5873, 0.0036580483
        %v5875 = vmul.f32 %v5870, %v5874
        %v5876 = vadd.f32 %v5875, 0.05243302
        %v5877 = vmul.f32 %v5870, %v5876
        %v5878 = vadd.f32 %v5877, 0.18741608
        %v5879 = vmul.f32 %v5870, %v5878
        %v5880 = vadd.f32 %v5879, 1.1283791
        %v5881 = vmul.f32 %v5025, %v5880
        %v5882 = vmul.f32 %v5870, 3.8918573e-05
        %v5883 = vadd.f32 %v5882, 0.001143296
        %v5884 = vmul.f32 %v5870, %v5883
        %v5885 = vadd.f32 %v5884, 0.014752088
        %v5886 = vmul.f32 %v5870, %v5885
        %v5887 = vadd.f32 %v5886, 0.112945676
        %v5888 = vmul.f32 %v5870, %v5887
        %v5889 = vadd.f32 %v5888, 0.4994258
        %v5890 = vmul.f32 %v5870, %v5889
        %v5891 = vadd.f32 %v5890, 1.0
        %v5892 = vrcp.pop %v5891
        %v5893 = vmul.f32 %v5891, %v5892
        %v5894 = vsub.f32 1.0, %v5893
        %v5895 = vmul.f32 %v5892, %v5894
        %v5896 = vadd.f32 %v5892, %v5895
        %vm5897 = vweird.f32 %v5891
        %vm5898 = vweird.f32 %v5892
        %vm5899 = vmor %vm5897, %vm5898
        %v5900 = vsel %vm5899, %v5892, %v5896
        %v5901 = vand.u32 2147483647, %v5891
        %vm5902 = vcmp.eq.f32.partialorder %v5901, 8.507059e+37
        %v5903 = vand.u32 %v5891, 2147483648
        %v5904 = vor.u32 1.1754944e-38, %v5903
        %v5905 = vsel %vm5902, %v5904, %v5900
        %v5906 = vmul.f32 %v5881, %v5905
        %v5907 = vmin.f32 %v5906, 1.0
        %v5908 = vmax.f32 %v5907, -1.0
        %v5909 = vmul.f32 %v5026, %v5026
        %v5910 = vmin.f32 16.0, %v5909
        %v5911 = vmul.f32 %v5910, 2.1237322e-06
        %v5912 = vadd.f32 %v5911, 0.00028619796
        %v5913 = vmul.f32 %v5910, %v5912
        %v5914 = vadd.f32 %v5913, 0.0036580483
        %v5915 = vmul.f32 %v5910, %v5914
        %v5916 = vadd.f32 %v5915, 0.05243302
        %v5917 = vmul.f32 %v5910, %v5916
        %v5918 = vadd.f32 %v5917, 0.18741608
        %v5919 = vmul.f32 %v5910, %v5918
        %v5920 = vadd.f32 %v5919, 1.1283791
        %v5921 = vmul.f32 %v5026, %v5920
        %v5922 = vmul.f32 %v5910, 3.8918573e-05
        %v5923 = vadd.f32 %v5922, 0.001143296
        %v5924 = vmul.f32 %v5910, %v5923
        %v5925 = vadd.f32 %v5924, 0.014752088
        %v5926 = vmul.f32 %v5910, %v5925
        %v5927 = vadd.f32 %v5926, 0.112945676
        %v5928 = vmul.f32 %v5910, %v5927
        %v5929 = vadd.f32 %v5928, 0.4994258
        %v5930 = vmul.f32 %v5910, %v5929
        %v5931 = vadd.f32 %v5930, 1.0
        %v5932 = vrcp.pop %v5931
        %v5933 = vmul.f32 %v5931, %v5932
        %v5934 = vsub.f32 1.0, %v5933
        %v5935 = vmul.f32 %v5932, %v5934
        %v5936 = vadd.f32 %v5932, %v5935
        %vm5937 = vweird.f32 %v5931
        %vm5938 = vweird.f32 %v5932
        %vm5939 = vmor %vm5937, %vm5938
        %v5940 = vsel %vm5939, %v5932, %v5936
        %v5941 = vand.u32 2147483647, %v5931
        %vm5942 = vcmp.eq.f32.partialorder %v5941, 8.507059e+37
        %v5943 = vand.u32 %v5931, 2147483648
        %v5944 = vor.u32 1.1754944e-38, %v5943
        %v5945 = vsel %vm5942, %v5944, %v5940
        %v5946 = vmul.f32 %v5921, %v5945
        %v5947 = vmin.f32 %v5946, 1.0
        %v5948 = vmax.f32 %v5947, -1.0
        %v5949 = vmul.f32 %v5027, %v5027
        %v5950 = vmin.f32 16.0, %v5949
        %v5951 = vmul.f32 %v5950, 2.1237322e-06
        %v5952 = vadd.f32 %v5951, 0.00028619796
        %v5953 = vmul.f32 %v5950, %v5952
        %v5954 = vadd.f32 %v5953, 0.0036580483
        %v5955 = vmul.f32 %v5950, %v5954
        %v5956 = vadd.f32 %v5955, 0.05243302
        %v5957 = vmul.f32 %v5950, %v5956
        %v5958 = vadd.f32 %v5957, 0.18741608
        %v5959 = vmul.f32 %v5950, %v5958
        %v5960 = vadd.f32 %v5959, 1.1283791
        %v5961 = vmul.f32 %v5027, %v5960
        %v5962 = vmul.f32 %v5950, 3.8918573e-05
        %v5963 = vadd.f32 %v5962, 0.001143296
        %v5964 = vmul.f32 %v5950, %v5963
        %v5965 = vadd.f32 %v5964, 0.014752088
        %v5966 = vmul.f32 %v5950, %v5965
        %v5967 = vadd.f32 %v5966, 0.112945676
        %v5968 = vmul.f32 %v5950, %v5967
        %v5969 = vadd.f32 %v5968, 0.4994258
        %v5970 = vmul.f32 %v5950, %v5969
        %v5971 = vadd.f32 %v5970, 1.0
        %v5972 = vrcp.pop %v5971
        %v5973 = vmul.f32 %v5971, %v5972
        %v5974 = vsub.f32 1.0, %v5973
        %v5975 = vmul.f32 %v5972, %v5974
        %v5976 = vadd.f32 %v5972, %v5975
        %vm5977 = vweird.f32 %v5971
        %vm5978 = vweird.f32 %v5972
        %vm5979 = vmor %vm5977, %vm5978
        %v5980 = vsel %vm5979, %v5972, %v5976
        %v5981 = vand.u32 2147483647, %v5971
        %vm5982 = vcmp.eq.f32.partialorder %v5981, 8.507059e+37
        %v5983 = vand.u32 %v5971, 2147483648
        %v5984 = vor.u32 1.1754944e-38, %v5983
        %v5985 = vsel %vm5982, %v5984, %v5980
        %v5986 = vmul.f32 %v5961, %v5985
        %v5987 = vmin.f32 %v5986, 1.0
        %v5988 = vmax.f32 %v5987, -1.0
        %v5989 = vmul.f32 %v5028, %v5028
        %v5990 = vmin.f32 16.0, %v5989
        %v5991 = vmul.f32 %v5990, 2.1237322e-06
        %v5992 = vadd.f32 %v5991, 0.00028619796
        %v5993 = vmul.f32 %v5990, %v5992
        %v5994 = vadd.f32 %v5993, 0.0036580483
        %v5995 = vmul.f32 %v5990, %v5994
        %v5996 = vadd.f32 %v5995, 0.05243302
        %v5997 = vmul.f32 %v5990, %v5996
        %v5998 = vadd.f32 %v5997, 0.18741608
        %v5999 = vmul.f32 %v5990, %v5998
        %v6000 = vadd.f32 %v5999, 1.1283791
        %v6001 = vmul.f32 %v5028, %v6000
        %v6002 = vmul.f32 %v5990, 3.8918573e-05
        %v6003 = vadd.f32 %v6002, 0.001143296
        %v6004 = vmul.f32 %v5990, %v6003
        %v6005 = vadd.f32 %v6004, 0.014752088
        %v6006 = vmul.f32 %v5990, %v6005
        %v6007 = vadd.f32 %v6006, 0.112945676
        %v6008 = vmul.f32 %v5990, %v6007
        %v6009 = vadd.f32 %v6008, 0.4994258
        %v6010 = vmul.f32 %v5990, %v6009
        %v6011 = vadd.f32 %v6010, 1.0
        %v6012 = vrcp.pop %v6011
        %v6013 = vmul.f32 %v6011, %v6012
        %v6014 = vsub.f32 1.0, %v6013
        %v6015 = vmul.f32 %v6012, %v6014
        %v6016 = vadd.f32 %v6012, %v6015
        %vm6017 = vweird.f32 %v6011
        %vm6018 = vweird.f32 %v6012
        %vm6019 = vmor %vm6017, %vm6018
        %v6020 = vsel %vm6019, %v6012, %v6016
        %v6021 = vand.u32 2147483647, %v6011
        %vm6022 = vcmp.eq.f32.partialorder %v6021, 8.507059e+37
        %v6023 = vand.u32 %v6011, 2147483648
        %v6024 = vor.u32 1.1754944e-38, %v6023
        %v6025 = vsel %vm6022, %v6024, %v6020
        %v6026 = vmul.f32 %v6001, %v6025
        %v6027 = vmin.f32 %v6026, 1.0
        %v6028 = vmax.f32 %v6027, -1.0
        %v6029 = vmul.f32 %v5029, %v5029
        %v6030 = vmin.f32 16.0, %v6029
        %v6031 = vmul.f32 %v6030, 2.1237322e-06
        %v6032 = vadd.f32 %v6031, 0.00028619796
        %v6033 = vmul.f32 %v6030, %v6032
        %v6034 = vadd.f32 %v6033, 0.0036580483
        %v6035 = vmul.f32 %v6030, %v6034
        %v6036 = vadd.f32 %v6035, 0.05243302
        %v6037 = vmul.f32 %v6030, %v6036
        %v6038 = vadd.f32 %v6037, 0.18741608
        %v6039 = vmul.f32 %v6030, %v6038
        %v6040 = vadd.f32 %v6039, 1.1283791
        %v6041 = vmul.f32 %v5029, %v6040
        %v6042 = vmul.f32 %v6030, 3.8918573e-05
        %v6043 = vadd.f32 %v6042, 0.001143296
        %v6044 = vmul.f32 %v6030, %v6043
        %v6045 = vadd.f32 %v6044, 0.014752088
        %v6046 = vmul.f32 %v6030, %v6045
        %v6047 = vadd.f32 %v6046, 0.112945676
        %v6048 = vmul.f32 %v6030, %v6047
        %v6049 = vadd.f32 %v6048, 0.4994258
        %v6050 = vmul.f32 %v6030, %v6049
        %v6051 = vadd.f32 %v6050, 1.0
        %v6052 = vrcp.pop %v6051
        %v6053 = vmul.f32 %v6051, %v6052
        %v6054 = vsub.f32 1.0, %v6053
        %v6055 = vmul.f32 %v6052, %v6054
        %v6056 = vadd.f32 %v6052, %v6055
        %vm6057 = vweird.f32 %v6051
        %vm6058 = vweird.f32 %v6052
        %vm6059 = vmor %vm6057, %vm6058
        %v6060 = vsel %vm6059, %v6052, %v6056
        %v6061 = vand.u32 2147483647, %v6051
        %vm6062 = vcmp.eq.f32.partialorder %v6061, 8.507059e+37
        %v6063 = vand.u32 %v6051, 2147483648
        %v6064 = vor.u32 1.1754944e-38, %v6063
        %v6065 = vsel %vm6062, %v6064, %v6060
        %v6066 = vmul.f32 %v6041, %v6065
        %v6067 = vmin.f32 %v6066, 1.0
        %v6068 = vmax.f32 %v6067, -1.0
        %v6069 = vmul.f32 %v5030, %v5030
        %v6070 = vmin.f32 16.0, %v6069
        %v6071 = vmul.f32 %v6070, 2.1237322e-06
        %v6072 = vadd.f32 %v6071, 0.00028619796
        %v6073 = vmul.f32 %v6070, %v6072
        %v6074 = vadd.f32 %v6073, 0.0036580483
        %v6075 = vmul.f32 %v6070, %v6074
        %v6076 = vadd.f32 %v6075, 0.05243302
        %v6077 = vmul.f32 %v6070, %v6076
        %v6078 = vadd.f32 %v6077, 0.18741608
        %v6079 = vmul.f32 %v6070, %v6078
        %v6080 = vadd.f32 %v6079, 1.1283791
        %v6081 = vmul.f32 %v5030, %v6080
        %v6082 = vmul.f32 %v6070, 3.8918573e-05
        %v6083 = vadd.f32 %v6082, 0.001143296
        %v6084 = vmul.f32 %v6070, %v6083
        %v6085 = vadd.f32 %v6084, 0.014752088
        %v6086 = vmul.f32 %v6070, %v6085
        %v6087 = vadd.f32 %v6086, 0.112945676
        %v6088 = vmul.f32 %v6070, %v6087
        %v6089 = vadd.f32 %v6088, 0.4994258
        %v6090 = vmul.f32 %v6070, %v6089
        %v6091 = vadd.f32 %v6090, 1.0
        %v6092 = vrcp.pop %v6091
        %v6093 = vmul.f32 %v6091, %v6092
        %v6094 = vsub.f32 1.0, %v6093
        %v6095 = vmul.f32 %v6092, %v6094
        %v6096 = vadd.f32 %v6092, %v6095
        %vm6097 = vweird.f32 %v6091
        %vm6098 = vweird.f32 %v6092
        %vm6099 = vmor %vm6097, %vm6098
        %v6100 = vsel %vm6099, %v6092, %v6096
        %v6101 = vand.u32 2147483647, %v6091
        %vm6102 = vcmp.eq.f32.partialorder %v6101, 8.507059e+37
        %v6103 = vand.u32 %v6091, 2147483648
        %v6104 = vor.u32 1.1754944e-38, %v6103
        %v6105 = vsel %vm6102, %v6104, %v6100
        %v6106 = vmul.f32 %v6081, %v6105
        %v6107 = vmin.f32 %v6106, 1.0
        %v6108 = vmax.f32 %v6107, -1.0
        %v6109 = vmul.f32 %v5031, %v5031
        %v6110 = vmin.f32 16.0, %v6109
        %v6111 = vmul.f32 %v6110, 2.1237322e-06
        %v6112 = vadd.f32 %v6111, 0.00028619796
        %v6113 = vmul.f32 %v6110, %v6112
        %v6114 = vadd.f32 %v6113, 0.0036580483
        %v6115 = vmul.f32 %v6110, %v6114
        %v6116 = vadd.f32 %v6115, 0.05243302
        %v6117 = vmul.f32 %v6110, %v6116
        %v6118 = vadd.f32 %v6117, 0.18741608
        %v6119 = vmul.f32 %v6110, %v6118
        %v6120 = vadd.f32 %v6119, 1.1283791
        %v6121 = vmul.f32 %v5031, %v6120
        %v6122 = vmul.f32 %v6110, 3.8918573e-05
        %v6123 = vadd.f32 %v6122, 0.001143296
        %v6124 = vmul.f32 %v6110, %v6123
        %v6125 = vadd.f32 %v6124, 0.014752088
        %v6126 = vmul.f32 %v6110, %v6125
        %v6127 = vadd.f32 %v6126, 0.112945676
        %v6128 = vmul.f32 %v6110, %v6127
        %v6129 = vadd.f32 %v6128, 0.4994258
        %v6130 = vmul.f32 %v6110, %v6129
        %v6131 = vadd.f32 %v6130, 1.0
        %v6132 = vrcp.pop %v6131
        %v6133 = vmul.f32 %v6131, %v6132
        %v6134 = vsub.f32 1.0, %v6133
        %v6135 = vmul.f32 %v6132, %v6134
        %v6136 = vadd.f32 %v6132, %v6135
        %vm6137 = vweird.f32 %v6131
        %vm6138 = vweird.f32 %v6132
        %vm6139 = vmor %vm6137, %vm6138
        %v6140 = vsel %vm6139, %v6132, %v6136
        %v6141 = vand.u32 2147483647, %v6131
        %vm6142 = vcmp.eq.f32.partialorder %v6141, 8.507059e+37
        %v6143 = vand.u32 %v6131, 2147483648
        %v6144 = vor.u32 1.1754944e-38, %v6143
        %v6145 = vsel %vm6142, %v6144, %v6140
        %v6146 = vmul.f32 %v6121, %v6145
        %v6147 = vmin.f32 %v6146, 1.0
        %v6148 = vmax.f32 %v6147, -1.0
        %v6149 = vmul.f32 %v5032, %v5032
        %v6150 = vmin.f32 16.0, %v6149
        %v6151 = vmul.f32 %v6150, 2.1237322e-06
        %v6152 = vadd.f32 %v6151, 0.00028619796
        %v6153 = vmul.f32 %v6150, %v6152
        %v6154 = vadd.f32 %v6153, 0.0036580483
        %v6155 = vmul.f32 %v6150, %v6154
        %v6156 = vadd.f32 %v6155, 0.05243302
        %v6157 = vmul.f32 %v6150, %v6156
        %v6158 = vadd.f32 %v6157, 0.18741608
        %v6159 = vmul.f32 %v6150, %v6158
        %v6160 = vadd.f32 %v6159, 1.1283791
        %v6161 = vmul.f32 %v5032, %v6160
        %v6162 = vmul.f32 %v6150, 3.8918573e-05
        %v6163 = vadd.f32 %v6162, 0.001143296
        %v6164 = vmul.f32 %v6150, %v6163
        %v6165 = vadd.f32 %v6164, 0.014752088
        %v6166 = vmul.f32 %v6150, %v6165
        %v6167 = vadd.f32 %v6166, 0.112945676
        %v6168 = vmul.f32 %v6150, %v6167
        %v6169 = vadd.f32 %v6168, 0.4994258
        %v6170 = vmul.f32 %v6150, %v6169
        %v6171 = vadd.f32 %v6170, 1.0
        %v6172 = vrcp.pop %v6171
        %v6173 = vmul.f32 %v6171, %v6172
        %v6174 = vsub.f32 1.0, %v6173
        %v6175 = vmul.f32 %v6172, %v6174
        %v6176 = vadd.f32 %v6172, %v6175
        %vm6177 = vweird.f32 %v6171
        %vm6178 = vweird.f32 %v6172
        %vm6179 = vmor %vm6177, %vm6178
        %v6180 = vsel %vm6179, %v6172, %v6176
        %v6181 = vand.u32 2147483647, %v6171
        %vm6182 = vcmp.eq.f32.partialorder %v6181, 8.507059e+37
        %v6183 = vand.u32 %v6171, 2147483648
        %v6184 = vor.u32 1.1754944e-38, %v6183
        %v6185 = vsel %vm6182, %v6184, %v6180
        %v6186 = vmul.f32 %v6161, %v6185
        %v6187 = vmin.f32 %v6186, 1.0
        %v6188 = vmax.f32 %v6187, -1.0
        %v6189 = vmul.f32 %v5033, %v5033
        %v6190 = vmin.f32 16.0, %v6189
        %v6191 = vmul.f32 %v6190, 2.1237322e-06
        %v6192 = vadd.f32 %v6191, 0.00028619796
        %v6193 = vmul.f32 %v6190, %v6192
        %v6194 = vadd.f32 %v6193, 0.0036580483
        %v6195 = vmul.f32 %v6190, %v6194
        %v6196 = vadd.f32 %v6195, 0.05243302
        %v6197 = vmul.f32 %v6190, %v6196
        %v6198 = vadd.f32 %v6197, 0.18741608
        %v6199 = vmul.f32 %v6190, %v6198
        %v6200 = vadd.f32 %v6199, 1.1283791
        %v6201 = vmul.f32 %v5033, %v6200
        %v6202 = vmul.f32 %v6190, 3.8918573e-05
        %v6203 = vadd.f32 %v6202, 0.001143296
        %v6204 = vmul.f32 %v6190, %v6203
        %v6205 = vadd.f32 %v6204, 0.014752088
        %v6206 = vmul.f32 %v6190, %v6205
        %v6207 = vadd.f32 %v6206, 0.112945676
        %v6208 = vmul.f32 %v6190, %v6207
        %v6209 = vadd.f32 %v6208, 0.4994258
        %v6210 = vmul.f32 %v6190, %v6209
        %v6211 = vadd.f32 %v6210, 1.0
        %v6212 = vrcp.pop %v6211
        %v6213 = vmul.f32 %v6211, %v6212
        %v6214 = vsub.f32 1.0, %v6213
        %v6215 = vmul.f32 %v6212, %v6214
        %v6216 = vadd.f32 %v6212, %v6215
        %vm6217 = vweird.f32 %v6211
        %vm6218 = vweird.f32 %v6212
        %vm6219 = vmor %vm6217, %vm6218
        %v6220 = vsel %vm6219, %v6212, %v6216
        %v6221 = vand.u32 2147483647, %v6211
        %vm6222 = vcmp.eq.f32.partialorder %v6221, 8.507059e+37
        %v6223 = vand.u32 %v6211, 2147483648
        %v6224 = vor.u32 1.1754944e-38, %v6223
        %v6225 = vsel %vm6222, %v6224, %v6220
        %v6226 = vmul.f32 %v6201, %v6225
        %v6227 = vmin.f32 %v6226, 1.0
        %v6228 = vmax.f32 %v6227, -1.0
        %v6229 = vmul.f32 %v5034, %v5034
        %v6230 = vmin.f32 16.0, %v6229
        %v6231 = vmul.f32 %v6230, 2.1237322e-06
        %v6232 = vadd.f32 %v6231, 0.00028619796
        %v6233 = vmul.f32 %v6230, %v6232
        %v6234 = vadd.f32 %v6233, 0.0036580483
        %v6235 = vmul.f32 %v6230, %v6234
        %v6236 = vadd.f32 %v6235, 0.05243302
        %v6237 = vmul.f32 %v6230, %v6236
        %v6238 = vadd.f32 %v6237, 0.18741608
        %v6239 = vmul.f32 %v6230, %v6238
        %v6240 = vadd.f32 %v6239, 1.1283791
        %v6241 = vmul.f32 %v5034, %v6240
        %v6242 = vmul.f32 %v6230, 3.8918573e-05
        %v6243 = vadd.f32 %v6242, 0.001143296
        %v6244 = vmul.f32 %v6230, %v6243
        %v6245 = vadd.f32 %v6244, 0.014752088
        %v6246 = vmul.f32 %v6230, %v6245
        %v6247 = vadd.f32 %v6246, 0.112945676
        %v6248 = vmul.f32 %v6230, %v6247
        %v6249 = vadd.f32 %v6248, 0.4994258
        %v6250 = vmul.f32 %v6230, %v6249
        %v6251 = vadd.f32 %v6250, 1.0
        %v6252 = vrcp.pop %v6251
        %v6253 = vmul.f32 %v6251, %v6252
        %v6254 = vsub.f32 1.0, %v6253
        %v6255 = vmul.f32 %v6252, %v6254
        %v6256 = vadd.f32 %v6252, %v6255
        %vm6257 = vweird.f32 %v6251
        %vm6258 = vweird.f32 %v6252
        %vm6259 = vmor %vm6257, %vm6258
        %v6260 = vsel %vm6259, %v6252, %v6256
        %v6261 = vand.u32 2147483647, %v6251
        %vm6262 = vcmp.eq.f32.partialorder %v6261, 8.507059e+37
        %v6263 = vand.u32 %v6251, 2147483648
        %v6264 = vor.u32 1.1754944e-38, %v6263
        %v6265 = vsel %vm6262, %v6264, %v6260
        %v6266 = vmul.f32 %v6241, %v6265
        %v6267 = vmin.f32 %v6266, 1.0
        %v6268 = vmax.f32 %v6267, -1.0
        %v6269 = vmul.f32 %v5035, %v5035
        %v6270 = vmin.f32 16.0, %v6269
        %v6271 = vmul.f32 %v6270, 2.1237322e-06
        %v6272 = vadd.f32 %v6271, 0.00028619796
        %v6273 = vmul.f32 %v6270, %v6272
        %v6274 = vadd.f32 %v6273, 0.0036580483
        %v6275 = vmul.f32 %v6270, %v6274
        %v6276 = vadd.f32 %v6275, 0.05243302
        %v6277 = vmul.f32 %v6270, %v6276
        %v6278 = vadd.f32 %v6277, 0.18741608
        %v6279 = vmul.f32 %v6270, %v6278
        %v6280 = vadd.f32 %v6279, 1.1283791
        %v6281 = vmul.f32 %v5035, %v6280
        %v6282 = vmul.f32 %v6270, 3.8918573e-05
        %v6283 = vadd.f32 %v6282, 0.001143296
        %v6284 = vmul.f32 %v6270, %v6283
        %v6285 = vadd.f32 %v6284, 0.014752088
        %v6286 = vmul.f32 %v6270, %v6285
        %v6287 = vadd.f32 %v6286, 0.112945676
        %v6288 = vmul.f32 %v6270, %v6287
        %v6289 = vadd.f32 %v6288, 0.4994258
        %v6290 = vmul.f32 %v6270, %v6289
        %v6291 = vadd.f32 %v6290, 1.0
        %v6292 = vrcp.pop %v6291
        %v6293 = vmul.f32 %v6291, %v6292
        %v6294 = vsub.f32 1.0, %v6293
        %v6295 = vmul.f32 %v6292, %v6294
        %v6296 = vadd.f32 %v6292, %v6295
        %vm6297 = vweird.f32 %v6291
        %vm6298 = vweird.f32 %v6292
        %vm6299 = vmor %vm6297, %vm6298
        %v6300 = vsel %vm6299, %v6292, %v6296
        %v6301 = vand.u32 2147483647, %v6291
        %vm6302 = vcmp.eq.f32.partialorder %v6301, 8.507059e+37
        %v6303 = vand.u32 %v6291, 2147483648
        %v6304 = vor.u32 1.1754944e-38, %v6303
        %v6305 = vsel %vm6302, %v6304, %v6300
        %v6306 = vmul.f32 %v6281, %v6305
        %v6307 = vmin.f32 %v6306, 1.0
        %v6308 = vmax.f32 %v6307, -1.0
        %v6309 = vmul.f32 %v5036, %v5036
        %v6310 = vmin.f32 16.0, %v6309
        %v6311 = vmul.f32 %v6310, 2.1237322e-06
        %v6312 = vadd.f32 %v6311, 0.00028619796
        %v6313 = vmul.f32 %v6310, %v6312
        %v6314 = vadd.f32 %v6313, 0.0036580483
        %v6315 = vmul.f32 %v6310, %v6314
        %v6316 = vadd.f32 %v6315, 0.05243302
        %v6317 = vmul.f32 %v6310, %v6316
        %v6318 = vadd.f32 %v6317, 0.18741608
        %v6319 = vmul.f32 %v6310, %v6318
        %v6320 = vadd.f32 %v6319, 1.1283791
        %v6321 = vmul.f32 %v5036, %v6320
        %v6322 = vmul.f32 %v6310, 3.8918573e-05
        %v6323 = vadd.f32 %v6322, 0.001143296
        %v6324 = vmul.f32 %v6310, %v6323
        %v6325 = vadd.f32 %v6324, 0.014752088
        %v6326 = vmul.f32 %v6310, %v6325
        %v6327 = vadd.f32 %v6326, 0.112945676
        %v6328 = vmul.f32 %v6310, %v6327
        %v6329 = vadd.f32 %v6328, 0.4994258
        %v6330 = vmul.f32 %v6310, %v6329
        %v6331 = vadd.f32 %v6330, 1.0
        %v6332 = vrcp.pop %v6331
        %v6333 = vmul.f32 %v6331, %v6332
        %v6334 = vsub.f32 1.0, %v6333
        %v6335 = vmul.f32 %v6332, %v6334
        %v6336 = vadd.f32 %v6332, %v6335
        %vm6337 = vweird.f32 %v6331
        %vm6338 = vweird.f32 %v6332
        %vm6339 = vmor %vm6337, %vm6338
        %v6340 = vsel %vm6339, %v6332, %v6336
        %v6341 = vand.u32 2147483647, %v6331
        %vm6342 = vcmp.eq.f32.partialorder %v6341, 8.507059e+37
        %v6343 = vand.u32 %v6331, 2147483648
        %v6344 = vor.u32 1.1754944e-38, %v6343
        %v6345 = vsel %vm6342, %v6344, %v6340
        %v6346 = vmul.f32 %v6321, %v6345
        %v6347 = vmin.f32 %v6346, 1.0
        %v6348 = vmax.f32 %v6347, -1.0
        %v6349 = vmul.f32 %v5037, %v5037
        %v6350 = vmin.f32 16.0, %v6349
        %v6351 = vmul.f32 %v6350, 2.1237322e-06
        %v6352 = vadd.f32 %v6351, 0.00028619796
        %v6353 = vmul.f32 %v6350, %v6352
        %v6354 = vadd.f32 %v6353, 0.0036580483
        %v6355 = vmul.f32 %v6350, %v6354
        %v6356 = vadd.f32 %v6355, 0.05243302
        %v6357 = vmul.f32 %v6350, %v6356
        %v6358 = vadd.f32 %v6357, 0.18741608
        %v6359 = vmul.f32 %v6350, %v6358
        %v6360 = vadd.f32 %v6359, 1.1283791
        %v6361 = vmul.f32 %v5037, %v6360
        %v6362 = vmul.f32 %v6350, 3.8918573e-05
        %v6363 = vadd.f32 %v6362, 0.001143296
        %v6364 = vmul.f32 %v6350, %v6363
        %v6365 = vadd.f32 %v6364, 0.014752088
        %v6366 = vmul.f32 %v6350, %v6365
        %v6367 = vadd.f32 %v6366, 0.112945676
        %v6368 = vmul.f32 %v6350, %v6367
        %v6369 = vadd.f32 %v6368, 0.4994258
        %v6370 = vmul.f32 %v6350, %v6369
        %v6371 = vadd.f32 %v6370, 1.0
        %v6372 = vrcp.pop %v6371
        %v6373 = vmul.f32 %v6371, %v6372
        %v6374 = vsub.f32 1.0, %v6373
        %v6375 = vmul.f32 %v6372, %v6374
        %v6376 = vadd.f32 %v6372, %v6375
        %vm6377 = vweird.f32 %v6371
        %vm6378 = vweird.f32 %v6372
        %vm6379 = vmor %vm6377, %vm6378
        %v6380 = vsel %vm6379, %v6372, %v6376
        %v6381 = vand.u32 2147483647, %v6371
        %vm6382 = vcmp.eq.f32.partialorder %v6381, 8.507059e+37
        %v6383 = vand.u32 %v6371, 2147483648
        %v6384 = vor.u32 1.1754944e-38, %v6383
        %v6385 = vsel %vm6382, %v6384, %v6380
        %v6386 = vmul.f32 %v6361, %v6385
        %v6387 = vmin.f32 %v6386, 1.0
        %v6388 = vmax.f32 %v6387, -1.0
        %v6389 = vmul.f32 %v5038, %v5038
        %v6390 = vmin.f32 16.0, %v6389
        %v6391 = vmul.f32 %v6390, 2.1237322e-06
        %v6392 = vadd.f32 %v6391, 0.00028619796
        %v6393 = vmul.f32 %v6390, %v6392
        %v6394 = vadd.f32 %v6393, 0.0036580483
        %v6395 = vmul.f32 %v6390, %v6394
        %v6396 = vadd.f32 %v6395, 0.05243302
        %v6397 = vmul.f32 %v6390, %v6396
        %v6398 = vadd.f32 %v6397, 0.18741608
        %v6399 = vmul.f32 %v6390, %v6398
        %v6400 = vadd.f32 %v6399, 1.1283791
        %v6401 = vmul.f32 %v5038, %v6400
        %v6402 = vmul.f32 %v6390, 3.8918573e-05
        %v6403 = vadd.f32 %v6402, 0.001143296
        %v6404 = vmul.f32 %v6390, %v6403
        %v6405 = vadd.f32 %v6404, 0.014752088
        %v6406 = vmul.f32 %v6390, %v6405
        %v6407 = vadd.f32 %v6406, 0.112945676
        %v6408 = vmul.f32 %v6390, %v6407
        %v6409 = vadd.f32 %v6408, 0.4994258
        %v6410 = vmul.f32 %v6390, %v6409
        %v6411 = vadd.f32 %v6410, 1.0
        %v6412 = vrcp.pop %v6411
        %v6413 = vmul.f32 %v6411, %v6412
        %v6414 = vsub.f32 1.0, %v6413
        %v6415 = vmul.f32 %v6412, %v6414
        %v6416 = vadd.f32 %v6412, %v6415
        %vm6417 = vweird.f32 %v6411
        %vm6418 = vweird.f32 %v6412
        %vm6419 = vmor %vm6417, %vm6418
        %v6420 = vsel %vm6419, %v6412, %v6416
        %v6421 = vand.u32 2147483647, %v6411
        %vm6422 = vcmp.eq.f32.partialorder %v6421, 8.507059e+37
        %v6423 = vand.u32 %v6411, 2147483648
        %v6424 = vor.u32 1.1754944e-38, %v6423
        %v6425 = vsel %vm6422, %v6424, %v6420
        %v6426 = vmul.f32 %v6401, %v6425
        %v6427 = vmin.f32 %v6426, 1.0
        %v6428 = vmax.f32 %v6427, -1.0
        %v6429 = vmul.f32 %v5039, %v5039
        %v6430 = vmin.f32 16.0, %v6429
        %v6431 = vmul.f32 %v6430, 2.1237322e-06
        %v6432 = vadd.f32 %v6431, 0.00028619796
        %v6433 = vmul.f32 %v6430, %v6432
        %v6434 = vadd.f32 %v6433, 0.0036580483
        %v6435 = vmul.f32 %v6430, %v6434
        %v6436 = vadd.f32 %v6435, 0.05243302
        %v6437 = vmul.f32 %v6430, %v6436
        %v6438 = vadd.f32 %v6437, 0.18741608
        %v6439 = vmul.f32 %v6430, %v6438
        %v6440 = vadd.f32 %v6439, 1.1283791
        %v6441 = vmul.f32 %v5039, %v6440
        %v6442 = vmul.f32 %v6430, 3.8918573e-05
        %v6443 = vadd.f32 %v6442, 0.001143296
        %v6444 = vmul.f32 %v6430, %v6443
        %v6445 = vadd.f32 %v6444, 0.014752088
        %v6446 = vmul.f32 %v6430, %v6445
        %v6447 = vadd.f32 %v6446, 0.112945676
        %v6448 = vmul.f32 %v6430, %v6447
        %v6449 = vadd.f32 %v6448, 0.4994258
        %v6450 = vmul.f32 %v6430, %v6449
        %v6451 = vadd.f32 %v6450, 1.0
        %v6452 = vrcp.pop %v6451
        %v6453 = vmul.f32 %v6451, %v6452
        %v6454 = vsub.f32 1.0, %v6453
        %v6455 = vmul.f32 %v6452, %v6454
        %v6456 = vadd.f32 %v6452, %v6455
        %vm6457 = vweird.f32 %v6451
        %vm6458 = vweird.f32 %v6452
        %vm6459 = vmor %vm6457, %vm6458
        %v6460 = vsel %vm6459, %v6452, %v6456
        %v6461 = vand.u32 2147483647, %v6451
        %vm6462 = vcmp.eq.f32.partialorder %v6461, 8.507059e+37
        %v6463 = vand.u32 %v6451, 2147483648
        %v6464 = vor.u32 1.1754944e-38, %v6463
        %v6465 = vsel %vm6462, %v6464, %v6460
        %v6466 = vmul.f32 %v6441, %v6465
        %v6467 = vmin.f32 %v6466, 1.0
        %v6468 = vmax.f32 %v6467, -1.0
        %v6469 = vmul.f32 %v5040, %v5040
        %v6470 = vmin.f32 16.0, %v6469
        %v6471 = vmul.f32 %v6470, 2.1237322e-06
        %v6472 = vadd.f32 %v6471, 0.00028619796
        %v6473 = vmul.f32 %v6470, %v6472
        %v6474 = vadd.f32 %v6473, 0.0036580483
        %v6475 = vmul.f32 %v6470, %v6474
        %v6476 = vadd.f32 %v6475, 0.05243302
        %v6477 = vmul.f32 %v6470, %v6476
        %v6478 = vadd.f32 %v6477, 0.18741608
        %v6479 = vmul.f32 %v6470, %v6478
        %v6480 = vadd.f32 %v6479, 1.1283791
        %v6481 = vmul.f32 %v5040, %v6480
        %v6482 = vmul.f32 %v6470, 3.8918573e-05
        %v6483 = vadd.f32 %v6482, 0.001143296
        %v6484 = vmul.f32 %v6470, %v6483
        %v6485 = vadd.f32 %v6484, 0.014752088
        %v6486 = vmul.f32 %v6470, %v6485
        %v6487 = vadd.f32 %v6486, 0.112945676
        %v6488 = vmul.f32 %v6470, %v6487
        %v6489 = vadd.f32 %v6488, 0.4994258
        %v6490 = vmul.f32 %v6470, %v6489
        %v6491 = vadd.f32 %v6490, 1.0
        %v6492 = vrcp.pop %v6491
        %v6493 = vmul.f32 %v6491, %v6492
        %v6494 = vsub.f32 1.0, %v6493
        %v6495 = vmul.f32 %v6492, %v6494
        %v6496 = vadd.f32 %v6492, %v6495
        %vm6497 = vweird.f32 %v6491
        %vm6498 = vweird.f32 %v6492
        %vm6499 = vmor %vm6497, %vm6498
        %v6500 = vsel %vm6499, %v6492, %v6496
        %v6501 = vand.u32 2147483647, %v6491
        %vm6502 = vcmp.eq.f32.partialorder %v6501, 8.507059e+37
        %v6503 = vand.u32 %v6491, 2147483648
        %v6504 = vor.u32 1.1754944e-38, %v6503
        %v6505 = vsel %vm6502, %v6504, %v6500
        %v6506 = vmul.f32 %v6481, %v6505
        %v6507 = vmin.f32 %v6506, 1.0
        %v6508 = vmax.f32 %v6507, -1.0
        %v6509 = vmul.f32 %v5041, %v5041
        %v6510 = vmin.f32 16.0, %v6509
        %v6511 = vmul.f32 %v6510, 2.1237322e-06
        %v6512 = vadd.f32 %v6511, 0.00028619796
        %v6513 = vmul.f32 %v6510, %v6512
        %v6514 = vadd.f32 %v6513, 0.0036580483
        %v6515 = vmul.f32 %v6510, %v6514
        %v6516 = vadd.f32 %v6515, 0.05243302
        %v6517 = vmul.f32 %v6510, %v6516
        %v6518 = vadd.f32 %v6517, 0.18741608
        %v6519 = vmul.f32 %v6510, %v6518
        %v6520 = vadd.f32 %v6519, 1.1283791
        %v6521 = vmul.f32 %v5041, %v6520
        %v6522 = vmul.f32 %v6510, 3.8918573e-05
        %v6523 = vadd.f32 %v6522, 0.001143296
        %v6524 = vmul.f32 %v6510, %v6523
        %v6525 = vadd.f32 %v6524, 0.014752088
        %v6526 = vmul.f32 %v6510, %v6525
        %v6527 = vadd.f32 %v6526, 0.112945676
        %v6528 = vmul.f32 %v6510, %v6527
        %v6529 = vadd.f32 %v6528, 0.4994258
        %v6530 = vmul.f32 %v6510, %v6529
        %v6531 = vadd.f32 %v6530, 1.0
        %v6532 = vrcp.pop %v6531
        %v6533 = vmul.f32 %v6531, %v6532
        %v6534 = vsub.f32 1.0, %v6533
        %v6535 = vmul.f32 %v6532, %v6534
        %v6536 = vadd.f32 %v6532, %v6535
        %vm6537 = vweird.f32 %v6531
        %vm6538 = vweird.f32 %v6532
        %vm6539 = vmor %vm6537, %vm6538
        %v6540 = vsel %vm6539, %v6532, %v6536
        %v6541 = vand.u32 2147483647, %v6531
        %vm6542 = vcmp.eq.f32.partialorder %v6541, 8.507059e+37
        %v6543 = vand.u32 %v6531, 2147483648
        %v6544 = vor.u32 1.1754944e-38, %v6543
        %v6545 = vsel %vm6542, %v6544, %v6540
        %v6546 = vmul.f32 %v6521, %v6545
        %v6547 = vmin.f32 %v6546, 1.0
        %v6548 = vmax.f32 %v6547, -1.0
        %v6549 = vmul.f32 %v5042, %v5042
        %v6550 = vmin.f32 16.0, %v6549
        %v6551 = vmul.f32 %v6550, 2.1237322e-06
        %v6552 = vadd.f32 %v6551, 0.00028619796
        %v6553 = vmul.f32 %v6550, %v6552
        %v6554 = vadd.f32 %v6553, 0.0036580483
        %v6555 = vmul.f32 %v6550, %v6554
        %v6556 = vadd.f32 %v6555, 0.05243302
        %v6557 = vmul.f32 %v6550, %v6556
        %v6558 = vadd.f32 %v6557, 0.18741608
        %v6559 = vmul.f32 %v6550, %v6558
        %v6560 = vadd.f32 %v6559, 1.1283791
        %v6561 = vmul.f32 %v5042, %v6560
        %v6562 = vmul.f32 %v6550, 3.8918573e-05
        %v6563 = vadd.f32 %v6562, 0.001143296
        %v6564 = vmul.f32 %v6550, %v6563
        %v6565 = vadd.f32 %v6564, 0.014752088
        %v6566 = vmul.f32 %v6550, %v6565
        %v6567 = vadd.f32 %v6566, 0.112945676
        %v6568 = vmul.f32 %v6550, %v6567
        %v6569 = vadd.f32 %v6568, 0.4994258
        %v6570 = vmul.f32 %v6550, %v6569
        %v6571 = vadd.f32 %v6570, 1.0
        %v6572 = vrcp.pop %v6571
        %v6573 = vmul.f32 %v6571, %v6572
        %v6574 = vsub.f32 1.0, %v6573
        %v6575 = vmul.f32 %v6572, %v6574
        %v6576 = vadd.f32 %v6572, %v6575
        %vm6577 = vweird.f32 %v6571
        %vm6578 = vweird.f32 %v6572
        %vm6579 = vmor %vm6577, %vm6578
        %v6580 = vsel %vm6579, %v6572, %v6576
        %v6581 = vand.u32 2147483647, %v6571
        %vm6582 = vcmp.eq.f32.partialorder %v6581, 8.507059e+37
        %v6583 = vand.u32 %v6571, 2147483648
        %v6584 = vor.u32 1.1754944e-38, %v6583
        %v6585 = vsel %vm6582, %v6584, %v6580
        %v6586 = vmul.f32 %v6561, %v6585
        %v6587 = vmin.f32 %v6586, 1.0
        %v6588 = vmax.f32 %v6587, -1.0
        %v6589 = vmul.f32 %v5043, %v5043
        %v6590 = vmin.f32 16.0, %v6589
        %v6591 = vmul.f32 %v6590, 2.1237322e-06
        %v6592 = vadd.f32 %v6591, 0.00028619796
        %v6593 = vmul.f32 %v6590, %v6592
        %v6594 = vadd.f32 %v6593, 0.0036580483
        %v6595 = vmul.f32 %v6590, %v6594
        %v6596 = vadd.f32 %v6595, 0.05243302
        %v6597 = vmul.f32 %v6590, %v6596
        %v6598 = vadd.f32 %v6597, 0.18741608
        %v6599 = vmul.f32 %v6590, %v6598
        %v6600 = vadd.f32 %v6599, 1.1283791
        %v6601 = vmul.f32 %v5043, %v6600
        %v6602 = vmul.f32 %v6590, 3.8918573e-05
        %v6603 = vadd.f32 %v6602, 0.001143296
        %v6604 = vmul.f32 %v6590, %v6603
        %v6605 = vadd.f32 %v6604, 0.014752088
        %v6606 = vmul.f32 %v6590, %v6605
        %v6607 = vadd.f32 %v6606, 0.112945676
        %v6608 = vmul.f32 %v6590, %v6607
        %v6609 = vadd.f32 %v6608, 0.4994258
        %v6610 = vmul.f32 %v6590, %v6609
        %v6611 = vadd.f32 %v6610, 1.0
        %v6612 = vrcp.pop %v6611
        %v6613 = vmul.f32 %v6611, %v6612
        %v6614 = vsub.f32 1.0, %v6613
        %v6615 = vmul.f32 %v6612, %v6614
        %v6616 = vadd.f32 %v6612, %v6615
        %vm6617 = vweird.f32 %v6611
        %vm6618 = vweird.f32 %v6612
        %vm6619 = vmor %vm6617, %vm6618
        %v6620 = vsel %vm6619, %v6612, %v6616
        %v6621 = vand.u32 2147483647, %v6611
        %vm6622 = vcmp.eq.f32.partialorder %v6621, 8.507059e+37
        %v6623 = vand.u32 %v6611, 2147483648
        %v6624 = vor.u32 1.1754944e-38, %v6623
        %v6625 = vsel %vm6622, %v6624, %v6620
        %v6626 = vmul.f32 %v6601, %v6625
        %v6627 = vmin.f32 %v6626, 1.0
        %v6628 = vmax.f32 %v6627, -1.0
        %v6629 = vmul.f32 %v5044, %v5044
        %v6630 = vmin.f32 16.0, %v6629
        %v6631 = vmul.f32 %v6630, 2.1237322e-06
        %v6632 = vadd.f32 %v6631, 0.00028619796
        %v6633 = vmul.f32 %v6630, %v6632
        %v6634 = vadd.f32 %v6633, 0.0036580483
        %v6635 = vmul.f32 %v6630, %v6634
        %v6636 = vadd.f32 %v6635, 0.05243302
        %v6637 = vmul.f32 %v6630, %v6636
        %v6638 = vadd.f32 %v6637, 0.18741608
        %v6639 = vmul.f32 %v6630, %v6638
        %v6640 = vadd.f32 %v6639, 1.1283791
        %v6641 = vmul.f32 %v5044, %v6640
        %v6642 = vmul.f32 %v6630, 3.8918573e-05
        %v6643 = vadd.f32 %v6642, 0.001143296
        %v6644 = vmul.f32 %v6630, %v6643
        %v6645 = vadd.f32 %v6644, 0.014752088
        %v6646 = vmul.f32 %v6630, %v6645
        %v6647 = vadd.f32 %v6646, 0.112945676
        %v6648 = vmul.f32 %v6630, %v6647
        %v6649 = vadd.f32 %v6648, 0.4994258
        %v6650 = vmul.f32 %v6630, %v6649
        %v6651 = vadd.f32 %v6650, 1.0
        %v6652 = vrcp.pop %v6651
        %v6653 = vmul.f32 %v6651, %v6652
        %v6654 = vsub.f32 1.0, %v6653
        %v6655 = vmul.f32 %v6652, %v6654
        %v6656 = vadd.f32 %v6652, %v6655
        %vm6657 = vweird.f32 %v6651
        %vm6658 = vweird.f32 %v6652
        %vm6659 = vmor %vm6657, %vm6658
        %v6660 = vsel %vm6659, %v6652, %v6656
        %v6661 = vand.u32 2147483647, %v6651
        %vm6662 = vcmp.eq.f32.partialorder %v6661, 8.507059e+37
        %v6663 = vand.u32 %v6651, 2147483648
        %v6664 = vor.u32 1.1754944e-38, %v6663
        %v6665 = vsel %vm6662, %v6664, %v6660
        %v6666 = vmul.f32 %v6641, %v6665
        %v6667 = vmin.f32 %v6666, 1.0
        %v6668 = vmax.f32 %v6667, -1.0
        %v6669 = vmul.f32 %v5045, %v5045
        %v6670 = vmin.f32 16.0, %v6669
        %v6671 = vmul.f32 %v6670, 2.1237322e-06
        %v6672 = vadd.f32 %v6671, 0.00028619796
        %v6673 = vmul.f32 %v6670, %v6672
        %v6674 = vadd.f32 %v6673, 0.0036580483
        %v6675 = vmul.f32 %v6670, %v6674
        %v6676 = vadd.f32 %v6675, 0.05243302
        %v6677 = vmul.f32 %v6670, %v6676
        %v6678 = vadd.f32 %v6677, 0.18741608
        %v6679 = vmul.f32 %v6670, %v6678
        %v6680 = vadd.f32 %v6679, 1.1283791
        %v6681 = vmul.f32 %v5045, %v6680
        %v6682 = vmul.f32 %v6670, 3.8918573e-05
        %v6683 = vadd.f32 %v6682, 0.001143296
        %v6684 = vmul.f32 %v6670, %v6683
        %v6685 = vadd.f32 %v6684, 0.014752088
        %v6686 = vmul.f32 %v6670, %v6685
        %v6687 = vadd.f32 %v6686, 0.112945676
        %v6688 = vmul.f32 %v6670, %v6687
        %v6689 = vadd.f32 %v6688, 0.4994258
        %v6690 = vmul.f32 %v6670, %v6689
        %v6691 = vadd.f32 %v6690, 1.0
        %v6692 = vrcp.pop %v6691
        %v6693 = vmul.f32 %v6691, %v6692
        %v6694 = vsub.f32 1.0, %v6693
        %v6695 = vmul.f32 %v6692, %v6694
        %v6696 = vadd.f32 %v6692, %v6695
        %vm6697 = vweird.f32 %v6691
        %vm6698 = vweird.f32 %v6692
        %vm6699 = vmor %vm6697, %vm6698
        %v6700 = vsel %vm6699, %v6692, %v6696
        %v6701 = vand.u32 2147483647, %v6691
        %vm6702 = vcmp.eq.f32.partialorder %v6701, 8.507059e+37
        %v6703 = vand.u32 %v6691, 2147483648
        %v6704 = vor.u32 1.1754944e-38, %v6703
        %v6705 = vsel %vm6702, %v6704, %v6700
        %v6706 = vmul.f32 %v6681, %v6705
        %v6707 = vmin.f32 %v6706, 1.0
        %v6708 = vmax.f32 %v6707, -1.0
        %v6709 = vmul.f32 %v5046, %v5046
        %v6710 = vmin.f32 16.0, %v6709
        %v6711 = vmul.f32 %v6710, 2.1237322e-06
        %v6712 = vadd.f32 %v6711, 0.00028619796
        %v6713 = vmul.f32 %v6710, %v6712
        %v6714 = vadd.f32 %v6713, 0.0036580483
        %v6715 = vmul.f32 %v6710, %v6714
        %v6716 = vadd.f32 %v6715, 0.05243302
        %v6717 = vmul.f32 %v6710, %v6716
        %v6718 = vadd.f32 %v6717, 0.18741608
        %v6719 = vmul.f32 %v6710, %v6718
        %v6720 = vadd.f32 %v6719, 1.1283791
        %v6721 = vmul.f32 %v5046, %v6720
        %v6722 = vmul.f32 %v6710, 3.8918573e-05
        %v6723 = vadd.f32 %v6722, 0.001143296
        %v6724 = vmul.f32 %v6710, %v6723
        %v6725 = vadd.f32 %v6724, 0.014752088
        %v6726 = vmul.f32 %v6710, %v6725
        %v6727 = vadd.f32 %v6726, 0.112945676
        %v6728 = vmul.f32 %v6710, %v6727
        %v6729 = vadd.f32 %v6728, 0.4994258
        %v6730 = vmul.f32 %v6710, %v6729
        %v6731 = vadd.f32 %v6730, 1.0
        %v6732 = vrcp.pop %v6731
        %v6733 = vmul.f32 %v6731, %v6732
        %v6734 = vsub.f32 1.0, %v6733
        %v6735 = vmul.f32 %v6732, %v6734
        %v6736 = vadd.f32 %v6732, %v6735
        %vm6737 = vweird.f32 %v6731
        %vm6738 = vweird.f32 %v6732
        %vm6739 = vmor %vm6737, %vm6738
        %v6740 = vsel %vm6739, %v6732, %v6736
        %v6741 = vand.u32 2147483647, %v6731
        %vm6742 = vcmp.eq.f32.partialorder %v6741, 8.507059e+37
        %v6743 = vand.u32 %v6731, 2147483648
        %v6744 = vor.u32 1.1754944e-38, %v6743
        %v6745 = vsel %vm6742, %v6744, %v6740
        %v6746 = vmul.f32 %v6721, %v6745
        %v6747 = vmin.f32 %v6746, 1.0
        %v6748 = vmax.f32 %v6747, -1.0
        %v6749 = vmul.f32 %v5047, %v5047
        %v6750 = vmin.f32 16.0, %v6749
        %v6751 = vmul.f32 %v6750, 2.1237322e-06
        %v6752 = vadd.f32 %v6751, 0.00028619796
        %v6753 = vmul.f32 %v6750, %v6752
        %v6754 = vadd.f32 %v6753, 0.0036580483
        %v6755 = vmul.f32 %v6750, %v6754
        %v6756 = vadd.f32 %v6755, 0.05243302
        %v6757 = vmul.f32 %v6750, %v6756
        %v6758 = vadd.f32 %v6757, 0.18741608
        %v6759 = vmul.f32 %v6750, %v6758
        %v6760 = vadd.f32 %v6759, 1.1283791
        %v6761 = vmul.f32 %v5047, %v6760
        %v6762 = vmul.f32 %v6750, 3.8918573e-05
        %v6763 = vadd.f32 %v6762, 0.001143296
        %v6764 = vmul.f32 %v6750, %v6763
        %v6765 = vadd.f32 %v6764, 0.014752088
        %v6766 = vmul.f32 %v6750, %v6765
        %v6767 = vadd.f32 %v6766, 0.112945676
        %v6768 = vmul.f32 %v6750, %v6767
        %v6769 = vadd.f32 %v6768, 0.4994258
        %v6770 = vmul.f32 %v6750, %v6769
        %v6771 = vadd.f32 %v6770, 1.0
        %v6772 = vrcp.pop %v6771
        %v6773 = vmul.f32 %v6771, %v6772
        %v6774 = vsub.f32 1.0, %v6773
        %v6775 = vmul.f32 %v6772, %v6774
        %v6776 = vadd.f32 %v6772, %v6775
        %vm6777 = vweird.f32 %v6771
        %vm6778 = vweird.f32 %v6772
        %vm6779 = vmor %vm6777, %vm6778
        %v6780 = vsel %vm6779, %v6772, %v6776
        %v6781 = vand.u32 2147483647, %v6771
        %vm6782 = vcmp.eq.f32.partialorder %v6781, 8.507059e+37
        %v6783 = vand.u32 %v6771, 2147483648
        %v6784 = vor.u32 1.1754944e-38, %v6783
        %v6785 = vsel %vm6782, %v6784, %v6780
        %v6786 = vmul.f32 %v6761, %v6785
        %v6787 = vmin.f32 %v6786, 1.0
        %v6788 = vmax.f32 %v6787, -1.0
        %v6789 = vmul.f32 %v5048, %v5048
        %v6790 = vmin.f32 16.0, %v6789
        %v6791 = vmul.f32 %v6790, 2.1237322e-06
        %v6792 = vadd.f32 %v6791, 0.00028619796
        %v6793 = vmul.f32 %v6790, %v6792
        %v6794 = vadd.f32 %v6793, 0.0036580483
        %v6795 = vmul.f32 %v6790, %v6794
        %v6796 = vadd.f32 %v6795, 0.05243302
        %v6797 = vmul.f32 %v6790, %v6796
        %v6798 = vadd.f32 %v6797, 0.18741608
        %v6799 = vmul.f32 %v6790, %v6798
        %v6800 = vadd.f32 %v6799, 1.1283791
        %v6801 = vmul.f32 %v5048, %v6800
        %v6802 = vmul.f32 %v6790, 3.8918573e-05
        %v6803 = vadd.f32 %v6802, 0.001143296
        %v6804 = vmul.f32 %v6790, %v6803
        %v6805 = vadd.f32 %v6804, 0.014752088
        %v6806 = vmul.f32 %v6790, %v6805
        %v6807 = vadd.f32 %v6806, 0.112945676
        %v6808 = vmul.f32 %v6790, %v6807
        %v6809 = vadd.f32 %v6808, 0.4994258
        %v6810 = vmul.f32 %v6790, %v6809
        %v6811 = vadd.f32 %v6810, 1.0
        %v6812 = vrcp.pop %v6811
        %v6813 = vmul.f32 %v6811, %v6812
        %v6814 = vsub.f32 1.0, %v6813
        %v6815 = vmul.f32 %v6812, %v6814
        %v6816 = vadd.f32 %v6812, %v6815
        %vm6817 = vweird.f32 %v6811
        %vm6818 = vweird.f32 %v6812
        %vm6819 = vmor %vm6817, %vm6818
        %v6820 = vsel %vm6819, %v6812, %v6816
        %v6821 = vand.u32 2147483647, %v6811
        %vm6822 = vcmp.eq.f32.partialorder %v6821, 8.507059e+37
        %v6823 = vand.u32 %v6811, 2147483648
        %v6824 = vor.u32 1.1754944e-38, %v6823
        %v6825 = vsel %vm6822, %v6824, %v6820
        %v6826 = vmul.f32 %v6801, %v6825
        %v6827 = vmin.f32 %v6826, 1.0
        %v6828 = vmax.f32 %v6827, -1.0
        %v6829 = vmul.f32 %v5049, %v5049
        %v6830 = vmin.f32 16.0, %v6829
        %v6831 = vmul.f32 %v6830, 2.1237322e-06
        %v6832 = vadd.f32 %v6831, 0.00028619796
        %v6833 = vmul.f32 %v6830, %v6832
        %v6834 = vadd.f32 %v6833, 0.0036580483
        %v6835 = vmul.f32 %v6830, %v6834
        %v6836 = vadd.f32 %v6835, 0.05243302
        %v6837 = vmul.f32 %v6830, %v6836
        %v6838 = vadd.f32 %v6837, 0.18741608
        %v6839 = vmul.f32 %v6830, %v6838
        %v6840 = vadd.f32 %v6839, 1.1283791
        %v6841 = vmul.f32 %v5049, %v6840
        %v6842 = vmul.f32 %v6830, 3.8918573e-05
        %v6843 = vadd.f32 %v6842, 0.001143296
        %v6844 = vmul.f32 %v6830, %v6843
        %v6845 = vadd.f32 %v6844, 0.014752088
        %v6846 = vmul.f32 %v6830, %v6845
        %v6847 = vadd.f32 %v6846, 0.112945676
        %v6848 = vmul.f32 %v6830, %v6847
        %v6849 = vadd.f32 %v6848, 0.4994258
        %v6850 = vmul.f32 %v6830, %v6849
        %v6851 = vadd.f32 %v6850, 1.0
        %v6852 = vrcp.pop %v6851
        %v6853 = vmul.f32 %v6851, %v6852
        %v6854 = vsub.f32 1.0, %v6853
        %v6855 = vmul.f32 %v6852, %v6854
        %v6856 = vadd.f32 %v6852, %v6855
        %vm6857 = vweird.f32 %v6851
        %vm6858 = vweird.f32 %v6852
        %vm6859 = vmor %vm6857, %vm6858
        %v6860 = vsel %vm6859, %v6852, %v6856
        %v6861 = vand.u32 2147483647, %v6851
        %vm6862 = vcmp.eq.f32.partialorder %v6861, 8.507059e+37
        %v6863 = vand.u32 %v6851, 2147483648
        %v6864 = vor.u32 1.1754944e-38, %v6863
        %v6865 = vsel %vm6862, %v6864, %v6860
        %v6866 = vmul.f32 %v6841, %v6865
        %v6867 = vmin.f32 %v6866, 1.0
        %v6868 = vmax.f32 %v6867, -1.0
        %v6869 = vmul.f32 %v5050, %v5050
        %v6870 = vmin.f32 16.0, %v6869
        %v6871 = vmul.f32 %v6870, 2.1237322e-06
        %v6872 = vadd.f32 %v6871, 0.00028619796
        %v6873 = vmul.f32 %v6870, %v6872
        %v6874 = vadd.f32 %v6873, 0.0036580483
        %v6875 = vmul.f32 %v6870, %v6874
        %v6876 = vadd.f32 %v6875, 0.05243302
        %v6877 = vmul.f32 %v6870, %v6876
        %v6878 = vadd.f32 %v6877, 0.18741608
        %v6879 = vmul.f32 %v6870, %v6878
        %v6880 = vadd.f32 %v6879, 1.1283791
        %v6881 = vmul.f32 %v5050, %v6880
        %v6882 = vmul.f32 %v6870, 3.8918573e-05
        %v6883 = vadd.f32 %v6882, 0.001143296
        %v6884 = vmul.f32 %v6870, %v6883
        %v6885 = vadd.f32 %v6884, 0.014752088
        %v6886 = vmul.f32 %v6870, %v6885
        %v6887 = vadd.f32 %v6886, 0.112945676
        %v6888 = vmul.f32 %v6870, %v6887
        %v6889 = vadd.f32 %v6888, 0.4994258
        %v6890 = vmul.f32 %v6870, %v6889
        %v6891 = vadd.f32 %v6890, 1.0
        %v6892 = vrcp.pop %v6891
        %v6893 = vmul.f32 %v6891, %v6892
        %v6894 = vsub.f32 1.0, %v6893
        %v6895 = vmul.f32 %v6892, %v6894
        %v6896 = vadd.f32 %v6892, %v6895
        %vm6897 = vweird.f32 %v6891
        %vm6898 = vweird.f32 %v6892
        %vm6899 = vmor %vm6897, %vm6898
        %v6900 = vsel %vm6899, %v6892, %v6896
        %v6901 = vand.u32 2147483647, %v6891
        %vm6902 = vcmp.eq.f32.partialorder %v6901, 8.507059e+37
        %v6903 = vand.u32 %v6891, 2147483648
        %v6904 = vor.u32 1.1754944e-38, %v6903
        %v6905 = vsel %vm6902, %v6904, %v6900
        %v6906 = vmul.f32 %v6881, %v6905
        %v6907 = vmin.f32 %v6906, 1.0
        %v6908 = vmax.f32 %v6907, -1.0
        %v6909 = vmul.f32 %v5051, %v5051
        %v6910 = vmin.f32 16.0, %v6909
        %v6911 = vmul.f32 %v6910, 2.1237322e-06
        %v6912 = vadd.f32 %v6911, 0.00028619796
        %v6913 = vmul.f32 %v6910, %v6912
        %v6914 = vadd.f32 %v6913, 0.0036580483
        %v6915 = vmul.f32 %v6910, %v6914
        %v6916 = vadd.f32 %v6915, 0.05243302
        %v6917 = vmul.f32 %v6910, %v6916
        %v6918 = vadd.f32 %v6917, 0.18741608
        %v6919 = vmul.f32 %v6910, %v6918
        %v6920 = vadd.f32 %v6919, 1.1283791
        %v6921 = vmul.f32 %v5051, %v6920
        %v6922 = vmul.f32 %v6910, 3.8918573e-05
        %v6923 = vadd.f32 %v6922, 0.001143296
        %v6924 = vmul.f32 %v6910, %v6923
        %v6925 = vadd.f32 %v6924, 0.014752088
        %v6926 = vmul.f32 %v6910, %v6925
        %v6927 = vadd.f32 %v6926, 0.112945676
        %v6928 = vmul.f32 %v6910, %v6927
        %v6929 = vadd.f32 %v6928, 0.4994258
        %v6930 = vmul.f32 %v6910, %v6929
        %v6931 = vadd.f32 %v6930, 1.0
        %v6932 = vrcp.pop %v6931
        %v6933 = vmul.f32 %v6931, %v6932
        %v6934 = vsub.f32 1.0, %v6933
        %v6935 = vmul.f32 %v6932, %v6934
        %v6936 = vadd.f32 %v6932, %v6935
        %vm6937 = vweird.f32 %v6931
        %vm6938 = vweird.f32 %v6932
        %vm6939 = vmor %vm6937, %vm6938
        %v6940 = vsel %vm6939, %v6932, %v6936
        %v6941 = vand.u32 2147483647, %v6931
        %vm6942 = vcmp.eq.f32.partialorder %v6941, 8.507059e+37
        %v6943 = vand.u32 %v6931, 2147483648
        %v6944 = vor.u32 1.1754944e-38, %v6943
        %v6945 = vsel %vm6942, %v6944, %v6940
        %v6946 = vmul.f32 %v6921, %v6945
        %v6947 = vmin.f32 %v6946, 1.0
        %v6948 = vmax.f32 %v6947, -1.0
        %v6949 = vmul.f32 %v5052, %v5052
        %v6950 = vmin.f32 16.0, %v6949
        %v6951 = vmul.f32 %v6950, 2.1237322e-06
        %v6952 = vadd.f32 %v6951, 0.00028619796
        %v6953 = vmul.f32 %v6950, %v6952
        %v6954 = vadd.f32 %v6953, 0.0036580483
        %v6955 = vmul.f32 %v6950, %v6954
        %v6956 = vadd.f32 %v6955, 0.05243302
        %v6957 = vmul.f32 %v6950, %v6956
        %v6958 = vadd.f32 %v6957, 0.18741608
        %v6959 = vmul.f32 %v6950, %v6958
        %v6960 = vadd.f32 %v6959, 1.1283791
        %v6961 = vmul.f32 %v5052, %v6960
        %v6962 = vmul.f32 %v6950, 3.8918573e-05
        %v6963 = vadd.f32 %v6962, 0.001143296
        %v6964 = vmul.f32 %v6950, %v6963
        %v6965 = vadd.f32 %v6964, 0.014752088
        %v6966 = vmul.f32 %v6950, %v6965
        %v6967 = vadd.f32 %v6966, 0.112945676
        %v6968 = vmul.f32 %v6950, %v6967
        %v6969 = vadd.f32 %v6968, 0.4994258
        %v6970 = vmul.f32 %v6950, %v6969
        %v6971 = vadd.f32 %v6970, 1.0
        %v6972 = vrcp.pop %v6971
        %v6973 = vmul.f32 %v6971, %v6972
        %v6974 = vsub.f32 1.0, %v6973
        %v6975 = vmul.f32 %v6972, %v6974
        %v6976 = vadd.f32 %v6972, %v6975
        %vm6977 = vweird.f32 %v6971
        %vm6978 = vweird.f32 %v6972
        %vm6979 = vmor %vm6977, %vm6978
        %v6980 = vsel %vm6979, %v6972, %v6976
        %v6981 = vand.u32 2147483647, %v6971
        %vm6982 = vcmp.eq.f32.partialorder %v6981, 8.507059e+37
        %v6983 = vand.u32 %v6971, 2147483648
        %v6984 = vor.u32 1.1754944e-38, %v6983
        %v6985 = vsel %vm6982, %v6984, %v6980
        %v6986 = vmul.f32 %v6961, %v6985
        %v6987 = vmin.f32 %v6986, 1.0
        %v6988 = vmax.f32 %v6987, -1.0
        %v6989 = vmul.f32 %v5053, %v5053
        %v6990 = vmin.f32 16.0, %v6989
        %v6991 = vmul.f32 %v6990, 2.1237322e-06
        %v6992 = vadd.f32 %v6991, 0.00028619796
        %v6993 = vmul.f32 %v6990, %v6992
        %v6994 = vadd.f32 %v6993, 0.0036580483
        %v6995 = vmul.f32 %v6990, %v6994
        %v6996 = vadd.f32 %v6995, 0.05243302
        %v6997 = vmul.f32 %v6990, %v6996
        %v6998 = vadd.f32 %v6997, 0.18741608
        %v6999 = vmul.f32 %v6990, %v6998
        %v7000 = vadd.f32 %v6999, 1.1283791
        %v7001 = vmul.f32 %v5053, %v7000
        %v7002 = vmul.f32 %v6990, 3.8918573e-05
        %v7003 = vadd.f32 %v7002, 0.001143296
        %v7004 = vmul.f32 %v6990, %v7003
        %v7005 = vadd.f32 %v7004, 0.014752088
        %v7006 = vmul.f32 %v6990, %v7005
        %v7007 = vadd.f32 %v7006, 0.112945676
        %v7008 = vmul.f32 %v6990, %v7007
        %v7009 = vadd.f32 %v7008, 0.4994258
        %v7010 = vmul.f32 %v6990, %v7009
        %v7011 = vadd.f32 %v7010, 1.0
        %v7012 = vrcp.pop %v7011
        %v7013 = vmul.f32 %v7011, %v7012
        %v7014 = vsub.f32 1.0, %v7013
        %v7015 = vmul.f32 %v7012, %v7014
        %v7016 = vadd.f32 %v7012, %v7015
        %vm7017 = vweird.f32 %v7011
        %vm7018 = vweird.f32 %v7012
        %vm7019 = vmor %vm7017, %vm7018
        %v7020 = vsel %vm7019, %v7012, %v7016
        %v7021 = vand.u32 2147483647, %v7011
        %vm7022 = vcmp.eq.f32.partialorder %v7021, 8.507059e+37
        %v7023 = vand.u32 %v7011, 2147483648
        %v7024 = vor.u32 1.1754944e-38, %v7023
        %v7025 = vsel %vm7022, %v7024, %v7020
        %v7026 = vmul.f32 %v7001, %v7025
        %v7027 = vmin.f32 %v7026, 1.0
        %v7028 = vmax.f32 %v7027, -1.0
        %v7029 = vmul.f32 %v5054, %v5054
        %v7030 = vmin.f32 16.0, %v7029
        %v7031 = vmul.f32 %v7030, 2.1237322e-06
        %v7032 = vadd.f32 %v7031, 0.00028619796
        %v7033 = vmul.f32 %v7030, %v7032
        %v7034 = vadd.f32 %v7033, 0.0036580483
        %v7035 = vmul.f32 %v7030, %v7034
        %v7036 = vadd.f32 %v7035, 0.05243302
        %v7037 = vmul.f32 %v7030, %v7036
        %v7038 = vadd.f32 %v7037, 0.18741608
        %v7039 = vmul.f32 %v7030, %v7038
        %v7040 = vadd.f32 %v7039, 1.1283791
        %v7041 = vmul.f32 %v5054, %v7040
        %v7042 = vmul.f32 %v7030, 3.8918573e-05
        %v7043 = vadd.f32 %v7042, 0.001143296
        %v7044 = vmul.f32 %v7030, %v7043
        %v7045 = vadd.f32 %v7044, 0.014752088
        %v7046 = vmul.f32 %v7030, %v7045
        %v7047 = vadd.f32 %v7046, 0.112945676
        %v7048 = vmul.f32 %v7030, %v7047
        %v7049 = vadd.f32 %v7048, 0.4994258
        %v7050 = vmul.f32 %v7030, %v7049
        %v7051 = vadd.f32 %v7050, 1.0
        %v7052 = vrcp.pop %v7051
        %v7053 = vmul.f32 %v7051, %v7052
        %v7054 = vsub.f32 1.0, %v7053
        %v7055 = vmul.f32 %v7052, %v7054
        %v7056 = vadd.f32 %v7052, %v7055
        %vm7057 = vweird.f32 %v7051
        %vm7058 = vweird.f32 %v7052
        %vm7059 = vmor %vm7057, %vm7058
        %v7060 = vsel %vm7059, %v7052, %v7056
        %v7061 = vand.u32 2147483647, %v7051
        %vm7062 = vcmp.eq.f32.partialorder %v7061, 8.507059e+37
        %v7063 = vand.u32 %v7051, 2147483648
        %v7064 = vor.u32 1.1754944e-38, %v7063
        %v7065 = vsel %vm7062, %v7064, %v7060
        %v7066 = vmul.f32 %v7041, %v7065
        %v7067 = vmin.f32 %v7066, 1.0
        %v7068 = vmax.f32 %v7067, -1.0
        %v7069 = vmul.f32 %v5055, %v5055
        %v7070 = vmin.f32 16.0, %v7069
        %v7071 = vmul.f32 %v7070, 2.1237322e-06
        %v7072 = vadd.f32 %v7071, 0.00028619796
        %v7073 = vmul.f32 %v7070, %v7072
        %v7074 = vadd.f32 %v7073, 0.0036580483
        %v7075 = vmul.f32 %v7070, %v7074
        %v7076 = vadd.f32 %v7075, 0.05243302
        %v7077 = vmul.f32 %v7070, %v7076
        %v7078 = vadd.f32 %v7077, 0.18741608
        %v7079 = vmul.f32 %v7070, %v7078
        %v7080 = vadd.f32 %v7079, 1.1283791
        %v7081 = vmul.f32 %v5055, %v7080
        %v7082 = vmul.f32 %v7070, 3.8918573e-05
        %v7083 = vadd.f32 %v7082, 0.001143296
        %v7084 = vmul.f32 %v7070, %v7083
        %v7085 = vadd.f32 %v7084, 0.014752088
        %v7086 = vmul.f32 %v7070, %v7085
        %v7087 = vadd.f32 %v7086, 0.112945676
        %v7088 = vmul.f32 %v7070, %v7087
        %v7089 = vadd.f32 %v7088, 0.4994258
        %v7090 = vmul.f32 %v7070, %v7089
        %v7091 = vadd.f32 %v7090, 1.0
        %v7092 = vrcp.pop %v7091
        %v7093 = vmul.f32 %v7091, %v7092
        %v7094 = vsub.f32 1.0, %v7093
        %v7095 = vmul.f32 %v7092, %v7094
        %v7096 = vadd.f32 %v7092, %v7095
        %vm7097 = vweird.f32 %v7091
        %vm7098 = vweird.f32 %v7092
        %vm7099 = vmor %vm7097, %vm7098
        %v7100 = vsel %vm7099, %v7092, %v7096
        %v7101 = vand.u32 2147483647, %v7091
        %vm7102 = vcmp.eq.f32.partialorder %v7101, 8.507059e+37
        %v7103 = vand.u32 %v7091, 2147483648
        %v7104 = vor.u32 1.1754944e-38, %v7103
        %v7105 = vsel %vm7102, %v7104, %v7100
        %v7106 = vmul.f32 %v7081, %v7105
        %v7107 = vmin.f32 %v7106, 1.0
        %v7108 = vmax.f32 %v7107, -1.0
        %v7109 = vmul.f32 %v5056, %v5056
        %v7110 = vmin.f32 16.0, %v7109
        %v7111 = vmul.f32 %v7110, 2.1237322e-06
        %v7112 = vadd.f32 %v7111, 0.00028619796
        %v7113 = vmul.f32 %v7110, %v7112
        %v7114 = vadd.f32 %v7113, 0.0036580483
        %v7115 = vmul.f32 %v7110, %v7114
        %v7116 = vadd.f32 %v7115, 0.05243302
        %v7117 = vmul.f32 %v7110, %v7116
        %v7118 = vadd.f32 %v7117, 0.18741608
        %v7119 = vmul.f32 %v7110, %v7118
        %v7120 = vadd.f32 %v7119, 1.1283791
        %v7121 = vmul.f32 %v5056, %v7120
        %v7122 = vmul.f32 %v7110, 3.8918573e-05
        %v7123 = vadd.f32 %v7122, 0.001143296
        %v7124 = vmul.f32 %v7110, %v7123
        %v7125 = vadd.f32 %v7124, 0.014752088
        %v7126 = vmul.f32 %v7110, %v7125
        %v7127 = vadd.f32 %v7126, 0.112945676
        %v7128 = vmul.f32 %v7110, %v7127
        %v7129 = vadd.f32 %v7128, 0.4994258
        %v7130 = vmul.f32 %v7110, %v7129
        %v7131 = vadd.f32 %v7130, 1.0
        %v7132 = vrcp.pop %v7131
        %v7133 = vmul.f32 %v7131, %v7132
        %v7134 = vsub.f32 1.0, %v7133
        %v7135 = vmul.f32 %v7132, %v7134
        %v7136 = vadd.f32 %v7132, %v7135
        %vm7137 = vweird.f32 %v7131
        %vm7138 = vweird.f32 %v7132
        %vm7139 = vmor %vm7137, %vm7138
        %v7140 = vsel %vm7139, %v7132, %v7136
        %v7141 = vand.u32 2147483647, %v7131
        %vm7142 = vcmp.eq.f32.partialorder %v7141, 8.507059e+37
        %v7143 = vand.u32 %v7131, 2147483648
        %v7144 = vor.u32 1.1754944e-38, %v7143
        %v7145 = vsel %vm7142, %v7144, %v7140
        %v7146 = vmul.f32 %v7121, %v7145
        %v7147 = vmin.f32 %v7146, 1.0
        %v7148 = vmax.f32 %v7147, -1.0
        %v7149 = vmul.f32 %v5057, %v5057
        %v7150 = vmin.f32 16.0, %v7149
        %v7151 = vmul.f32 %v7150, 2.1237322e-06
        %v7152 = vadd.f32 %v7151, 0.00028619796
        %v7153 = vmul.f32 %v7150, %v7152
        %v7154 = vadd.f32 %v7153, 0.0036580483
        %v7155 = vmul.f32 %v7150, %v7154
        %v7156 = vadd.f32 %v7155, 0.05243302
        %v7157 = vmul.f32 %v7150, %v7156
        %v7158 = vadd.f32 %v7157, 0.18741608
        %v7159 = vmul.f32 %v7150, %v7158
        %v7160 = vadd.f32 %v7159, 1.1283791
        %v7161 = vmul.f32 %v5057, %v7160
        %v7162 = vmul.f32 %v7150, 3.8918573e-05
        %v7163 = vadd.f32 %v7162, 0.001143296
        %v7164 = vmul.f32 %v7150, %v7163
        %v7165 = vadd.f32 %v7164, 0.014752088
        %v7166 = vmul.f32 %v7150, %v7165
        %v7167 = vadd.f32 %v7166, 0.112945676
        %v7168 = vmul.f32 %v7150, %v7167
        %v7169 = vadd.f32 %v7168, 0.4994258
        %v7170 = vmul.f32 %v7150, %v7169
        %v7171 = vadd.f32 %v7170, 1.0
        %v7172 = vrcp.pop %v7171
        %v7173 = vmul.f32 %v7171, %v7172
        %v7174 = vsub.f32 1.0, %v7173
        %v7175 = vmul.f32 %v7172, %v7174
        %v7176 = vadd.f32 %v7172, %v7175
        %vm7177 = vweird.f32 %v7171
        %vm7178 = vweird.f32 %v7172
        %vm7179 = vmor %vm7177, %vm7178
        %v7180 = vsel %vm7179, %v7172, %v7176
        %v7181 = vand.u32 2147483647, %v7171
        %vm7182 = vcmp.eq.f32.partialorder %v7181, 8.507059e+37
        %v7183 = vand.u32 %v7171, 2147483648
        %v7184 = vor.u32 1.1754944e-38, %v7183
        %v7185 = vsel %vm7182, %v7184, %v7180
        %v7186 = vmul.f32 %v7161, %v7185
        %v7187 = vmin.f32 %v7186, 1.0
        %v7188 = vmax.f32 %v7187, -1.0
        %v7189 = vmul.f32 %v5058, %v5058
        %v7190 = vmin.f32 16.0, %v7189
        %v7191 = vmul.f32 %v7190, 2.1237322e-06
        %v7192 = vadd.f32 %v7191, 0.00028619796
        %v7193 = vmul.f32 %v7190, %v7192
        %v7194 = vadd.f32 %v7193, 0.0036580483
        %v7195 = vmul.f32 %v7190, %v7194
        %v7196 = vadd.f32 %v7195, 0.05243302
        %v7197 = vmul.f32 %v7190, %v7196
        %v7198 = vadd.f32 %v7197, 0.18741608
        %v7199 = vmul.f32 %v7190, %v7198
        %v7200 = vadd.f32 %v7199, 1.1283791
        %v7201 = vmul.f32 %v5058, %v7200
        %v7202 = vmul.f32 %v7190, 3.8918573e-05
        %v7203 = vadd.f32 %v7202, 0.001143296
        %v7204 = vmul.f32 %v7190, %v7203
        %v7205 = vadd.f32 %v7204, 0.014752088
        %v7206 = vmul.f32 %v7190, %v7205
        %v7207 = vadd.f32 %v7206, 0.112945676
        %v7208 = vmul.f32 %v7190, %v7207
        %v7209 = vadd.f32 %v7208, 0.4994258
        %v7210 = vmul.f32 %v7190, %v7209
        %v7211 = vadd.f32 %v7210, 1.0
        %v7212 = vrcp.pop %v7211
        %v7213 = vmul.f32 %v7211, %v7212
        %v7214 = vsub.f32 1.0, %v7213
        %v7215 = vmul.f32 %v7212, %v7214
        %v7216 = vadd.f32 %v7212, %v7215
        %vm7217 = vweird.f32 %v7211
        %vm7218 = vweird.f32 %v7212
        %vm7219 = vmor %vm7217, %vm7218
        %v7220 = vsel %vm7219, %v7212, %v7216
        %v7221 = vand.u32 2147483647, %v7211
        %vm7222 = vcmp.eq.f32.partialorder %v7221, 8.507059e+37
        %v7223 = vand.u32 %v7211, 2147483648
        %v7224 = vor.u32 1.1754944e-38, %v7223
        %v7225 = vsel %vm7222, %v7224, %v7220
        %v7226 = vmul.f32 %v7201, %v7225
        %v7227 = vmin.f32 %v7226, 1.0
        %v7228 = vmax.f32 %v7227, -1.0
        %v7229 = vmul.f32 %v5059, %v5059
        %v7230 = vmin.f32 16.0, %v7229
        %v7231 = vmul.f32 %v7230, 2.1237322e-06
        %v7232 = vadd.f32 %v7231, 0.00028619796
        %v7233 = vmul.f32 %v7230, %v7232
        %v7234 = vadd.f32 %v7233, 0.0036580483
        %v7235 = vmul.f32 %v7230, %v7234
        %v7236 = vadd.f32 %v7235, 0.05243302
        %v7237 = vmul.f32 %v7230, %v7236
        %v7238 = vadd.f32 %v7237, 0.18741608
        %v7239 = vmul.f32 %v7230, %v7238
        %v7240 = vadd.f32 %v7239, 1.1283791
        %v7241 = vmul.f32 %v5059, %v7240
        %v7242 = vmul.f32 %v7230, 3.8918573e-05
        %v7243 = vadd.f32 %v7242, 0.001143296
        %v7244 = vmul.f32 %v7230, %v7243
        %v7245 = vadd.f32 %v7244, 0.014752088
        %v7246 = vmul.f32 %v7230, %v7245
        %v7247 = vadd.f32 %v7246, 0.112945676
        %v7248 = vmul.f32 %v7230, %v7247
        %v7249 = vadd.f32 %v7248, 0.4994258
        %v7250 = vmul.f32 %v7230, %v7249
        %v7251 = vadd.f32 %v7250, 1.0
        %v7252 = vrcp.pop %v7251
        %v7253 = vmul.f32 %v7251, %v7252
        %v7254 = vsub.f32 1.0, %v7253
        %v7255 = vmul.f32 %v7252, %v7254
        %v7256 = vadd.f32 %v7252, %v7255
        %vm7257 = vweird.f32 %v7251
        %vm7258 = vweird.f32 %v7252
        %vm7259 = vmor %vm7257, %vm7258
        %v7260 = vsel %vm7259, %v7252, %v7256
        %v7261 = vand.u32 2147483647, %v7251
        %vm7262 = vcmp.eq.f32.partialorder %v7261, 8.507059e+37
        %v7263 = vand.u32 %v7251, 2147483648
        %v7264 = vor.u32 1.1754944e-38, %v7263
        %v7265 = vsel %vm7262, %v7264, %v7260
        %v7266 = vmul.f32 %v7241, %v7265
        %v7267 = vmin.f32 %v7266, 1.0
        %v7268 = vmax.f32 %v7267, -1.0
        %v7269 = vmul.f32 %v5060, %v5060
        %v7270 = vmin.f32 16.0, %v7269
        %v7271 = vmul.f32 %v7270, 2.1237322e-06
        %v7272 = vadd.f32 %v7271, 0.00028619796
        %v7273 = vmul.f32 %v7270, %v7272
        %v7274 = vadd.f32 %v7273, 0.0036580483
        %v7275 = vmul.f32 %v7270, %v7274
        %v7276 = vadd.f32 %v7275, 0.05243302
        %v7277 = vmul.f32 %v7270, %v7276
        %v7278 = vadd.f32 %v7277, 0.18741608
        %v7279 = vmul.f32 %v7270, %v7278
        %v7280 = vadd.f32 %v7279, 1.1283791
        %v7281 = vmul.f32 %v5060, %v7280
        %v7282 = vmul.f32 %v7270, 3.8918573e-05
        %v7283 = vadd.f32 %v7282, 0.001143296
        %v7284 = vmul.f32 %v7270, %v7283
        %v7285 = vadd.f32 %v7284, 0.014752088
        %v7286 = vmul.f32 %v7270, %v7285
        %v7287 = vadd.f32 %v7286, 0.112945676
        %v7288 = vmul.f32 %v7270, %v7287
        %v7289 = vadd.f32 %v7288, 0.4994258
        %v7290 = vmul.f32 %v7270, %v7289
        %v7291 = vadd.f32 %v7290, 1.0
        %v7292 = vrcp.pop %v7291
        %v7293 = vmul.f32 %v7291, %v7292
        %v7294 = vsub.f32 1.0, %v7293
        %v7295 = vmul.f32 %v7292, %v7294
        %v7296 = vadd.f32 %v7292, %v7295
        %vm7297 = vweird.f32 %v7291
        %vm7298 = vweird.f32 %v7292
        %vm7299 = vmor %vm7297, %vm7298
        %v7300 = vsel %vm7299, %v7292, %v7296
        %v7301 = vand.u32 2147483647, %v7291
        %vm7302 = vcmp.eq.f32.partialorder %v7301, 8.507059e+37
        %v7303 = vand.u32 %v7291, 2147483648
        %v7304 = vor.u32 1.1754944e-38, %v7303
        %v7305 = vsel %vm7302, %v7304, %v7300
        %v7306 = vmul.f32 %v7281, %v7305
        %v7307 = vmin.f32 %v7306, 1.0
        %v7308 = vmax.f32 %v7307, -1.0
        %v7309 = vmul.f32 %v5061, %v5061
        %v7310 = vmin.f32 16.0, %v7309
        %v7311 = vmul.f32 %v7310, 2.1237322e-06
        %v7312 = vadd.f32 %v7311, 0.00028619796
        %v7313 = vmul.f32 %v7310, %v7312
        %v7314 = vadd.f32 %v7313, 0.0036580483
        %v7315 = vmul.f32 %v7310, %v7314
        %v7316 = vadd.f32 %v7315, 0.05243302
        %v7317 = vmul.f32 %v7310, %v7316
        %v7318 = vadd.f32 %v7317, 0.18741608
        %v7319 = vmul.f32 %v7310, %v7318
        %v7320 = vadd.f32 %v7319, 1.1283791
        %v7321 = vmul.f32 %v5061, %v7320
        %v7322 = vmul.f32 %v7310, 3.8918573e-05
        %v7323 = vadd.f32 %v7322, 0.001143296
        %v7324 = vmul.f32 %v7310, %v7323
        %v7325 = vadd.f32 %v7324, 0.014752088
        %v7326 = vmul.f32 %v7310, %v7325
        %v7327 = vadd.f32 %v7326, 0.112945676
        %v7328 = vmul.f32 %v7310, %v7327
        %v7329 = vadd.f32 %v7328, 0.4994258
        %v7330 = vmul.f32 %v7310, %v7329
        %v7331 = vadd.f32 %v7330, 1.0
        %v7332 = vrcp.pop %v7331
        %v7333 = vmul.f32 %v7331, %v7332
        %v7334 = vsub.f32 1.0, %v7333
        %v7335 = vmul.f32 %v7332, %v7334
        %v7336 = vadd.f32 %v7332, %v7335
        %vm7337 = vweird.f32 %v7331
        %vm7338 = vweird.f32 %v7332
        %vm7339 = vmor %vm7337, %vm7338
        %v7340 = vsel %vm7339, %v7332, %v7336
        %v7341 = vand.u32 2147483647, %v7331
        %vm7342 = vcmp.eq.f32.partialorder %v7341, 8.507059e+37
        %v7343 = vand.u32 %v7331, 2147483648
        %v7344 = vor.u32 1.1754944e-38, %v7343
        %v7345 = vsel %vm7342, %v7344, %v7340
        %v7346 = vmul.f32 %v7321, %v7345
        %v7347 = vmin.f32 %v7346, 1.0
        %v7348 = vmax.f32 %v7347, -1.0
        %v7349 = vmul.f32 %v5062, %v5062
        %v7350 = vmin.f32 16.0, %v7349
        %v7351 = vmul.f32 %v7350, 2.1237322e-06
        %v7352 = vadd.f32 %v7351, 0.00028619796
        %v7353 = vmul.f32 %v7350, %v7352
        %v7354 = vadd.f32 %v7353, 0.0036580483
        %v7355 = vmul.f32 %v7350, %v7354
        %v7356 = vadd.f32 %v7355, 0.05243302
        %v7357 = vmul.f32 %v7350, %v7356
        %v7358 = vadd.f32 %v7357, 0.18741608
        %v7359 = vmul.f32 %v7350, %v7358
        %v7360 = vadd.f32 %v7359, 1.1283791
        %v7361 = vmul.f32 %v5062, %v7360
        %v7362 = vmul.f32 %v7350, 3.8918573e-05
        %v7363 = vadd.f32 %v7362, 0.001143296
        %v7364 = vmul.f32 %v7350, %v7363
        %v7365 = vadd.f32 %v7364, 0.014752088
        %v7366 = vmul.f32 %v7350, %v7365
        %v7367 = vadd.f32 %v7366, 0.112945676
        %v7368 = vmul.f32 %v7350, %v7367
        %v7369 = vadd.f32 %v7368, 0.4994258
        %v7370 = vmul.f32 %v7350, %v7369
        %v7371 = vadd.f32 %v7370, 1.0
        %v7372 = vrcp.pop %v7371
        %v7373 = vmul.f32 %v7371, %v7372
        %v7374 = vsub.f32 1.0, %v7373
        %v7375 = vmul.f32 %v7372, %v7374
        %v7376 = vadd.f32 %v7372, %v7375
        %vm7377 = vweird.f32 %v7371
        %vm7378 = vweird.f32 %v7372
        %vm7379 = vmor %vm7377, %vm7378
        %v7380 = vsel %vm7379, %v7372, %v7376
        %v7381 = vand.u32 2147483647, %v7371
        %vm7382 = vcmp.eq.f32.partialorder %v7381, 8.507059e+37
        %v7383 = vand.u32 %v7371, 2147483648
        %v7384 = vor.u32 1.1754944e-38, %v7383
        %v7385 = vsel %vm7382, %v7384, %v7380
        %v7386 = vmul.f32 %v7361, %v7385
        %v7387 = vmin.f32 %v7386, 1.0
        %v7388 = vmax.f32 %v7387, -1.0
        %v7389 = vmul.f32 %v5063, %v5063
        %v7390 = vmin.f32 16.0, %v7389
        %v7391 = vmul.f32 %v7390, 2.1237322e-06
        %v7392 = vadd.f32 %v7391, 0.00028619796
        %v7393 = vmul.f32 %v7390, %v7392
        %v7394 = vadd.f32 %v7393, 0.0036580483
        %v7395 = vmul.f32 %v7390, %v7394
        %v7396 = vadd.f32 %v7395, 0.05243302
        %v7397 = vmul.f32 %v7390, %v7396
        %v7398 = vadd.f32 %v7397, 0.18741608
        %v7399 = vmul.f32 %v7390, %v7398
        %v7400 = vadd.f32 %v7399, 1.1283791
        %v7401 = vmul.f32 %v5063, %v7400
        %v7402 = vmul.f32 %v7390, 3.8918573e-05
        %v7403 = vadd.f32 %v7402, 0.001143296
        %v7404 = vmul.f32 %v7390, %v7403
        %v7405 = vadd.f32 %v7404, 0.014752088
        %v7406 = vmul.f32 %v7390, %v7405
        %v7407 = vadd.f32 %v7406, 0.112945676
        %v7408 = vmul.f32 %v7390, %v7407
        %v7409 = vadd.f32 %v7408, 0.4994258
        %v7410 = vmul.f32 %v7390, %v7409
        %v7411 = vadd.f32 %v7410, 1.0
        %v7412 = vrcp.pop %v7411
        %v7413 = vmul.f32 %v7411, %v7412
        %v7414 = vsub.f32 1.0, %v7413
        %v7415 = vmul.f32 %v7412, %v7414
        %v7416 = vadd.f32 %v7412, %v7415
        %vm7417 = vweird.f32 %v7411
        %vm7418 = vweird.f32 %v7412
        %vm7419 = vmor %vm7417, %vm7418
        %v7420 = vsel %vm7419, %v7412, %v7416
        %v7421 = vand.u32 2147483647, %v7411
        %vm7422 = vcmp.eq.f32.partialorder %v7421, 8.507059e+37
        %v7423 = vand.u32 %v7411, 2147483648
        %v7424 = vor.u32 1.1754944e-38, %v7423
        %v7425 = vsel %vm7422, %v7424, %v7420
        %v7426 = vmul.f32 %v7401, %v7425
        %v7427 = vmin.f32 %v7426, 1.0
        %v7428 = vmax.f32 %v7427, -1.0
        %v7429 = vmul.f32 %v5064, %v5064
        %v7430 = vmin.f32 16.0, %v7429
        %v7431 = vmul.f32 %v7430, 2.1237322e-06
        %v7432 = vadd.f32 %v7431, 0.00028619796
        %v7433 = vmul.f32 %v7430, %v7432
        %v7434 = vadd.f32 %v7433, 0.0036580483
        %v7435 = vmul.f32 %v7430, %v7434
        %v7436 = vadd.f32 %v7435, 0.05243302
        %v7437 = vmul.f32 %v7430, %v7436
        %v7438 = vadd.f32 %v7437, 0.18741608
        %v7439 = vmul.f32 %v7430, %v7438
        %v7440 = vadd.f32 %v7439, 1.1283791
        %v7441 = vmul.f32 %v5064, %v7440
        %v7442 = vmul.f32 %v7430, 3.8918573e-05
        %v7443 = vadd.f32 %v7442, 0.001143296
        %v7444 = vmul.f32 %v7430, %v7443
        %v7445 = vadd.f32 %v7444, 0.014752088
        %v7446 = vmul.f32 %v7430, %v7445
        %v7447 = vadd.f32 %v7446, 0.112945676
        %v7448 = vmul.f32 %v7430, %v7447
        %v7449 = vadd.f32 %v7448, 0.4994258
        %v7450 = vmul.f32 %v7430, %v7449
        %v7451 = vadd.f32 %v7450, 1.0
        %v7452 = vrcp.pop %v7451
        %v7453 = vmul.f32 %v7451, %v7452
        %v7454 = vsub.f32 1.0, %v7453
        %v7455 = vmul.f32 %v7452, %v7454
        %v7456 = vadd.f32 %v7452, %v7455
        %vm7457 = vweird.f32 %v7451
        %vm7458 = vweird.f32 %v7452
        %vm7459 = vmor %vm7457, %vm7458
        %v7460 = vsel %vm7459, %v7452, %v7456
        %v7461 = vand.u32 2147483647, %v7451
        %vm7462 = vcmp.eq.f32.partialorder %v7461, 8.507059e+37
        %v7463 = vand.u32 %v7451, 2147483648
        %v7464 = vor.u32 1.1754944e-38, %v7463
        %v7465 = vsel %vm7462, %v7464, %v7460
        %v7466 = vmul.f32 %v7441, %v7465
        %v7467 = vmin.f32 %v7466, 1.0
        %v7468 = vmax.f32 %v7467, -1.0
        %v7469 = vmul.f32 %v5065, %v5065
        %v7470 = vmin.f32 16.0, %v7469
        %v7471 = vmul.f32 %v7470, 2.1237322e-06
        %v7472 = vadd.f32 %v7471, 0.00028619796
        %v7473 = vmul.f32 %v7470, %v7472
        %v7474 = vadd.f32 %v7473, 0.0036580483
        %v7475 = vmul.f32 %v7470, %v7474
        %v7476 = vadd.f32 %v7475, 0.05243302
        %v7477 = vmul.f32 %v7470, %v7476
        %v7478 = vadd.f32 %v7477, 0.18741608
        %v7479 = vmul.f32 %v7470, %v7478
        %v7480 = vadd.f32 %v7479, 1.1283791
        %v7481 = vmul.f32 %v5065, %v7480
        %v7482 = vmul.f32 %v7470, 3.8918573e-05
        %v7483 = vadd.f32 %v7482, 0.001143296
        %v7484 = vmul.f32 %v7470, %v7483
        %v7485 = vadd.f32 %v7484, 0.014752088
        %v7486 = vmul.f32 %v7470, %v7485
        %v7487 = vadd.f32 %v7486, 0.112945676
        %v7488 = vmul.f32 %v7470, %v7487
        %v7489 = vadd.f32 %v7488, 0.4994258
        %v7490 = vmul.f32 %v7470, %v7489
        %v7491 = vadd.f32 %v7490, 1.0
        %v7492 = vrcp.pop %v7491
        %v7493 = vmul.f32 %v7491, %v7492
        %v7494 = vsub.f32 1.0, %v7493
        %v7495 = vmul.f32 %v7492, %v7494
        %v7496 = vadd.f32 %v7492, %v7495
        %vm7497 = vweird.f32 %v7491
        %vm7498 = vweird.f32 %v7492
        %vm7499 = vmor %vm7497, %vm7498
        %v7500 = vsel %vm7499, %v7492, %v7496
        %v7501 = vand.u32 2147483647, %v7491
        %vm7502 = vcmp.eq.f32.partialorder %v7501, 8.507059e+37
        %v7503 = vand.u32 %v7491, 2147483648
        %v7504 = vor.u32 1.1754944e-38, %v7503
        %v7505 = vsel %vm7502, %v7504, %v7500
        %v7506 = vmul.f32 %v7481, %v7505
        %v7507 = vmin.f32 %v7506, 1.0
        %v7508 = vmax.f32 %v7507, -1.0
        %v7509 = vmul.f32 %v5066, %v5066
        %v7510 = vmin.f32 16.0, %v7509
        %v7511 = vmul.f32 %v7510, 2.1237322e-06
        %v7512 = vadd.f32 %v7511, 0.00028619796
        %v7513 = vmul.f32 %v7510, %v7512
        %v7514 = vadd.f32 %v7513, 0.0036580483
        %v7515 = vmul.f32 %v7510, %v7514
        %v7516 = vadd.f32 %v7515, 0.05243302
        %v7517 = vmul.f32 %v7510, %v7516
        %v7518 = vadd.f32 %v7517, 0.18741608
        %v7519 = vmul.f32 %v7510, %v7518
        %v7520 = vadd.f32 %v7519, 1.1283791
        %v7521 = vmul.f32 %v5066, %v7520
        %v7522 = vmul.f32 %v7510, 3.8918573e-05
        %v7523 = vadd.f32 %v7522, 0.001143296
        %v7524 = vmul.f32 %v7510, %v7523
        %v7525 = vadd.f32 %v7524, 0.014752088
        %v7526 = vmul.f32 %v7510, %v7525
        %v7527 = vadd.f32 %v7526, 0.112945676
        %v7528 = vmul.f32 %v7510, %v7527
        %v7529 = vadd.f32 %v7528, 0.4994258
        %v7530 = vmul.f32 %v7510, %v7529
        %v7531 = vadd.f32 %v7530, 1.0
        %v7532 = vrcp.pop %v7531
        %v7533 = vmul.f32 %v7531, %v7532
        %v7534 = vsub.f32 1.0, %v7533
        %v7535 = vmul.f32 %v7532, %v7534
        %v7536 = vadd.f32 %v7532, %v7535
        %vm7537 = vweird.f32 %v7531
        %vm7538 = vweird.f32 %v7532
        %vm7539 = vmor %vm7537, %vm7538
        %v7540 = vsel %vm7539, %v7532, %v7536
        %v7541 = vand.u32 2147483647, %v7531
        %vm7542 = vcmp.eq.f32.partialorder %v7541, 8.507059e+37
        %v7543 = vand.u32 %v7531, 2147483648
        %v7544 = vor.u32 1.1754944e-38, %v7543
        %v7545 = vsel %vm7542, %v7544, %v7540
        %v7546 = vmul.f32 %v7521, %v7545
        %v7547 = vmin.f32 %v7546, 1.0
        %v7548 = vmax.f32 %v7547, -1.0
        %v7549 = vmul.f32 %v5067, %v5067
        %v7550 = vmin.f32 16.0, %v7549
        %v7551 = vmul.f32 %v7550, 2.1237322e-06
        %v7552 = vadd.f32 %v7551, 0.00028619796
        %v7553 = vmul.f32 %v7550, %v7552
        %v7554 = vadd.f32 %v7553, 0.0036580483
        %v7555 = vmul.f32 %v7550, %v7554
        %v7556 = vadd.f32 %v7555, 0.05243302
        %v7557 = vmul.f32 %v7550, %v7556
        %v7558 = vadd.f32 %v7557, 0.18741608
        %v7559 = vmul.f32 %v7550, %v7558
        %v7560 = vadd.f32 %v7559, 1.1283791
        %v7561 = vmul.f32 %v5067, %v7560
        %v7562 = vmul.f32 %v7550, 3.8918573e-05
        %v7563 = vadd.f32 %v7562, 0.001143296
        %v7564 = vmul.f32 %v7550, %v7563
        %v7565 = vadd.f32 %v7564, 0.014752088
        %v7566 = vmul.f32 %v7550, %v7565
        %v7567 = vadd.f32 %v7566, 0.112945676
        %v7568 = vmul.f32 %v7550, %v7567
        %v7569 = vadd.f32 %v7568, 0.4994258
        %v7570 = vmul.f32 %v7550, %v7569
        %v7571 = vadd.f32 %v7570, 1.0
        %v7572 = vrcp.pop %v7571
        %v7573 = vmul.f32 %v7571, %v7572
        %v7574 = vsub.f32 1.0, %v7573
        %v7575 = vmul.f32 %v7572, %v7574
        %v7576 = vadd.f32 %v7572, %v7575
        %vm7577 = vweird.f32 %v7571
        %vm7578 = vweird.f32 %v7572
        %vm7579 = vmor %vm7577, %vm7578
        %v7580 = vsel %vm7579, %v7572, %v7576
        %v7581 = vand.u32 2147483647, %v7571
        %vm7582 = vcmp.eq.f32.partialorder %v7581, 8.507059e+37
        %v7583 = vand.u32 %v7571, 2147483648
        %v7584 = vor.u32 1.1754944e-38, %v7583
        %v7585 = vsel %vm7582, %v7584, %v7580
        %v7586 = vmul.f32 %v7561, %v7585
        %v7587 = vmin.f32 %v7586, 1.0
        %v7588 = vmax.f32 %v7587, -1.0
        %v7589 = vmul.f32 %v5068, %v5068
        %v7590 = vmin.f32 16.0, %v7589
        %v7591 = vmul.f32 %v7590, 2.1237322e-06
        %v7592 = vadd.f32 %v7591, 0.00028619796
        %v7593 = vmul.f32 %v7590, %v7592
        %v7594 = vadd.f32 %v7593, 0.0036580483
        %v7595 = vmul.f32 %v7590, %v7594
        %v7596 = vadd.f32 %v7595, 0.05243302
        %v7597 = vmul.f32 %v7590, %v7596
        %v7598 = vadd.f32 %v7597, 0.18741608
        %v7599 = vmul.f32 %v7590, %v7598
        %v7600 = vadd.f32 %v7599, 1.1283791
        %v7601 = vmul.f32 %v5068, %v7600
        %v7602 = vmul.f32 %v7590, 3.8918573e-05
        %v7603 = vadd.f32 %v7602, 0.001143296
        %v7604 = vmul.f32 %v7590, %v7603
        %v7605 = vadd.f32 %v7604, 0.014752088
        %v7606 = vmul.f32 %v7590, %v7605
        %v7607 = vadd.f32 %v7606, 0.112945676
        %v7608 = vmul.f32 %v7590, %v7607
        %v7609 = vadd.f32 %v7608, 0.4994258
        %v7610 = vmul.f32 %v7590, %v7609
        %v7611 = vadd.f32 %v7610, 1.0
        %v7612 = vrcp.pop %v7611
        %v7613 = vmul.f32 %v7611, %v7612
        %v7614 = vsub.f32 1.0, %v7613
        %v7615 = vmul.f32 %v7612, %v7614
        %v7616 = vadd.f32 %v7612, %v7615
        %vm7617 = vweird.f32 %v7611
        %vm7618 = vweird.f32 %v7612
        %vm7619 = vmor %vm7617, %vm7618
        %v7620 = vsel %vm7619, %v7612, %v7616
        %v7621 = vand.u32 2147483647, %v7611
        %vm7622 = vcmp.eq.f32.partialorder %v7621, 8.507059e+37
        %v7623 = vand.u32 %v7611, 2147483648
        %v7624 = vor.u32 1.1754944e-38, %v7623
        %v7625 = vsel %vm7622, %v7624, %v7620
        %v7626 = vmul.f32 %v7601, %v7625
        %v7627 = vmin.f32 %v7626, 1.0
        %v7628 = vmax.f32 %v7627, -1.0
        %v7629 = vadd.f32 %v5108, 1.0
        %v7630 = vadd.f32 %v5148, 1.0
        %v7631 = vadd.f32 %v5188, 1.0
        %v7632 = vadd.f32 %v5228, 1.0
        %v7633 = vadd.f32 %v5268, 1.0
        %v7634 = vadd.f32 %v5308, 1.0
        %v7635 = vadd.f32 %v5348, 1.0
        %v7636 = vadd.f32 %v5388, 1.0
        %v7637 = vadd.f32 %v5428, 1.0
        %v7638 = vadd.f32 %v5468, 1.0
        %v7639 = vadd.f32 %v5508, 1.0
        %v7640 = vadd.f32 %v5548, 1.0
        %v7641 = vadd.f32 %v5588, 1.0
        %v7642 = vadd.f32 %v5628, 1.0
        %v7643 = vadd.f32 %v5668, 1.0
        %v7644 = vadd.f32 %v5708, 1.0
        %v7645 = vadd.f32 %v5748, 1.0
        %v7646 = vadd.f32 %v5788, 1.0
        %v7647 = vadd.f32 %v5828, 1.0
        %v7648 = vadd.f32 %v5868, 1.0
        %v7649 = vadd.f32 %v5908, 1.0
        %v7650 = vadd.f32 %v5948, 1.0
        %v7651 = vadd.f32 %v5988, 1.0
        %v7652 = vadd.f32 %v6028, 1.0
        %v7653 = vadd.f32 %v6068, 1.0
        %v7654 = vadd.f32 %v6108, 1.0
        %v7655 = vadd.f32 %v6148, 1.0
        %v7656 = vadd.f32 %v6188, 1.0
        %v7657 = vadd.f32 %v6228, 1.0
        %v7658 = vadd.f32 %v6268, 1.0
        %v7659 = vadd.f32 %v6308, 1.0
        %v7660 = vadd.f32 %v6348, 1.0
        %v7661 = vadd.f32 %v6388, 1.0
        %v7662 = vadd.f32 %v6428, 1.0
        %v7663 = vadd.f32 %v6468, 1.0
        %v7664 = vadd.f32 %v6508, 1.0
        %v7665 = vadd.f32 %v6548, 1.0
        %v7666 = vadd.f32 %v6588, 1.0
        %v7667 = vadd.f32 %v6628, 1.0
        %v7668 = vadd.f32 %v6668, 1.0
        %v7669 = vadd.f32 %v6708, 1.0
        %v7670 = vadd.f32 %v6748, 1.0
        %v7671 = vadd.f32 %v6788, 1.0
        %v7672 = vadd.f32 %v6828, 1.0
        %v7673 = vadd.f32 %v6868, 1.0
        %v7674 = vadd.f32 %v6908, 1.0
        %v7675 = vadd.f32 %v6948, 1.0
        %v7676 = vadd.f32 %v6988, 1.0
        %v7677 = vadd.f32 %v7028, 1.0
        %v7678 = vadd.f32 %v7068, 1.0
        %v7679 = vadd.f32 %v7108, 1.0
        %v7680 = vadd.f32 %v7148, 1.0
        %v7681 = vadd.f32 %v7188, 1.0
        %v7682 = vadd.f32 %v7228, 1.0
        %v7683 = vadd.f32 %v7268, 1.0
        %v7684 = vadd.f32 %v7308, 1.0
        %v7685 = vadd.f32 %v7348, 1.0
        %v7686 = vadd.f32 %v7388, 1.0
        %v7687 = vadd.f32 %v7428, 1.0
        %v7688 = vadd.f32 %v7468, 1.0
        %v7689 = vadd.f32 %v7508, 1.0
        %v7690 = vadd.f32 %v7548, 1.0
        %v7691 = vadd.f32 %v7588, 1.0
        %v7692 = vadd.f32 %v7628, 1.0
        %v7693 = vmul.f32 %v4941, %v7629
        %v7694 = vmul.f32 %v4942, %v7630
        %v7695 = vmul.f32 %v4943, %v7631
        %v7696 = vmul.f32 %v4944, %v7632
        %v7697 = vmul.f32 %v4945, %v7633
        %v7698 = vmul.f32 %v4946, %v7634
        %v7699 = vmul.f32 %v4947, %v7635
        %v7700 = vmul.f32 %v4948, %v7636
        %v7701 = vmul.f32 %v4949, %v7637
        %v7702 = vmul.f32 %v4950, %v7638
        %v7703 = vmul.f32 %v4951, %v7639
        %v7704 = vmul.f32 %v4952, %v7640
        %v7705 = vmul.f32 %v4953, %v7641
        %v7706 = vmul.f32 %v4954, %v7642
        %v7707 = vmul.f32 %v4955, %v7643
        %v7708 = vmul.f32 %v4956, %v7644
        %v7709 = vmul.f32 %v4957, %v7645
        %v7710 = vmul.f32 %v4958, %v7646
        %v7711 = vmul.f32 %v4959, %v7647
        %v7712 = vmul.f32 %v4960, %v7648
        %v7713 = vmul.f32 %v4961, %v7649
        %v7714 = vmul.f32 %v4962, %v7650
        %v7715 = vmul.f32 %v4963, %v7651
        %v7716 = vmul.f32 %v4964, %v7652
        %v7717 = vmul.f32 %v4965, %v7653
        %v7718 = vmul.f32 %v4966, %v7654
        %v7719 = vmul.f32 %v4967, %v7655
        %v7720 = vmul.f32 %v4968, %v7656
        %v7721 = vmul.f32 %v4969, %v7657
        %v7722 = vmul.f32 %v4970, %v7658
        %v7723 = vmul.f32 %v4971, %v7659
        %v7724 = vmul.f32 %v4972, %v7660
        %v7725 = vmul.f32 %v4973, %v7661
        %v7726 = vmul.f32 %v4974, %v7662
        %v7727 = vmul.f32 %v4975, %v7663
        %v7728 = vmul.f32 %v4976, %v7664
        %v7729 = vmul.f32 %v4977, %v7665
        %v7730 = vmul.f32 %v4978, %v7666
        %v7731 = vmul.f32 %v4979, %v7667
        %v7732 = vmul.f32 %v4980, %v7668
        %v7733 = vmul.f32 %v4981, %v7669
        %v7734 = vmul.f32 %v4982, %v7670
        %v7735 = vmul.f32 %v4983, %v7671
        %v7736 = vmul.f32 %v4984, %v7672
        %v7737 = vmul.f32 %v4985, %v7673
        %v7738 = vmul.f32 %v4986, %v7674
        %v7739 = vmul.f32 %v4987, %v7675
        %v7740 = vmul.f32 %v4988, %v7676
        %v7741 = vmul.f32 %v4989, %v7677
        %v7742 = vmul.f32 %v4990, %v7678
        %v7743 = vmul.f32 %v4991, %v7679
        %v7744 = vmul.f32 %v4992, %v7680
        %v7745 = vmul.f32 %v4993, %v7681
        %v7746 = vmul.f32 %v4994, %v7682
        %v7747 = vmul.f32 %v4995, %v7683
        %v7748 = vmul.f32 %v4996, %v7684
        %v7749 = vmul.f32 %v4997, %v7685
        %v7750 = vmul.f32 %v4998, %v7686
        %v7751 = vmul.f32 %v4999, %v7687
        %v7752 = vmul.f32 %v5000, %v7688
        %v7753 = vmul.f32 %v5001, %v7689
        %v7754 = vmul.f32 %v5002, %v7690
        %v7755 = vmul.f32 %v5003, %v7691
        %v7756 = vmul.f32 %v5004, %v7692
        %v7757 = vpack.c.bf16 %v7697, %v7693
        %v7758 = vpack.c.bf16 %v7698, %v7694
        %v7759 = vpack.c.bf16 %v7699, %v7695
        %v7760 = vpack.c.bf16 %v7700, %v7696
        %v7761 = vpack.c.bf16 %v7705, %v7701
        %v7762 = vpack.c.bf16 %v7706, %v7702
        %v7763 = vpack.c.bf16 %v7707, %v7703
        %v7764 = vpack.c.bf16 %v7708, %v7704
        %v7765 = vpack.c.bf16 %v7713, %v7709
        %v7766 = vpack.c.bf16 %v7714, %v7710
        %v7767 = vpack.c.bf16 %v7715, %v7711
        %v7768 = vpack.c.bf16 %v7716, %v7712
        %v7769 = vpack.c.bf16 %v7721, %v7717
        %v7770 = vpack.c.bf16 %v7722, %v7718
        %v7771 = vpack.c.bf16 %v7723, %v7719
        %v7772 = vpack.c.bf16 %v7724, %v7720
        %v7773 = vpack.c.bf16 %v7729, %v7725
        %v7774 = vpack.c.bf16 %v7730, %v7726
        %v7775 = vpack.c.bf16 %v7731, %v7727
        %v7776 = vpack.c.bf16 %v7732, %v7728
        %v7777 = vpack.c.bf16 %v7737, %v7733
        %v7778 = vpack.c.bf16 %v7738, %v7734
        %v7779 = vpack.c.bf16 %v7739, %v7735
        %v7780 = vpack.c.bf16 %v7740, %v7736
        %v7781 = vpack.c.bf16 %v7745, %v7741
        %v7782 = vpack.c.bf16 %v7746, %v7742
        %v7783 = vpack.c.bf16 %v7747, %v7743
        %v7784 = vpack.c.bf16 %v7748, %v7744
        %v7785 = vpack.c.bf16 %v7753, %v7749
        %v7786 = vpack.c.bf16 %v7754, %v7750
        %v7787 = vpack.c.bf16 %v7755, %v7751
        %v7788 = vpack.c.bf16 %v7756, %v7752
        %v7789 = vld [vmem:[%s527] sm:$0xf]
        %v7790 = vld [vmem:[%s527 + $0x4] sm:$0xf]
        %v7791 = vld [vmem:[%s527 + $0x8] sm:$0xf]
        %v7792 = vld [vmem:[%s527 + $0xc] sm:$0xf]
        %v7793 = vld [vmem:[%s527 + $0x10] sm:$0xf]
        %v7794 = vld [vmem:[%s527 + $0x14] sm:$0xf]
        %v7795 = vld [vmem:[%s527 + $0x18] sm:$0xf]
        %v7796 = vld [vmem:[%s527 + $0x1c] sm:$0xf]
        %v7797 = vld [vmem:[%s527 + $0x20] sm:$0xf]
        %v7798 = vld [vmem:[%s527 + $0x24] sm:$0xf]
        %v7799 = vld [vmem:[%s527 + $0x28] sm:$0xf]
        %v7800 = vld [vmem:[%s527 + $0x2c] sm:$0xf]
        %v7801 = vld [vmem:[%s527 + $0x30] sm:$0xf]
        %v7802 = vld [vmem:[%s527 + $0x34] sm:$0xf]
        %v7803 = vld [vmem:[%s527 + $0x38] sm:$0xf]
        %v7804 = vld [vmem:[%s527 + $0x3c] sm:$0xf]
        %v7805 = vld [vmem:[%s527 + $0x40] sm:$0xf]
        %v7806 = vld [vmem:[%s527 + $0x44] sm:$0xf]
        %v7807 = vld [vmem:[%s527 + $0x48] sm:$0xf]
        %v7808 = vld [vmem:[%s527 + $0x4c] sm:$0xf]
        %v7809 = vld [vmem:[%s527 + $0x50] sm:$0xf]
        %v7810 = vld [vmem:[%s527 + $0x54] sm:$0xf]
        %v7811 = vld [vmem:[%s527 + $0x58] sm:$0xf]
        %v7812 = vld [vmem:[%s527 + $0x5c] sm:$0xf]
        %v7813 = vld [vmem:[%s527 + $0x60] sm:$0xf]
        %v7814 = vld [vmem:[%s527 + $0x64] sm:$0xf]
        %v7815 = vld [vmem:[%s527 + $0x68] sm:$0xf]
        %v7816 = vld [vmem:[%s527 + $0x6c] sm:$0xf]
        %v7817 = vld [vmem:[%s527 + $0x70] sm:$0xf]
        %v7818 = vld [vmem:[%s527 + $0x74] sm:$0xf]
        %v7819 = vld [vmem:[%s527 + $0x78] sm:$0xf]
        %v7820 = vld [vmem:[%s527 + $0x7c] sm:$0xf]
        %v7821 = vld [vmem:[%s527 + $0x80] sm:$0xf]
        %v7822 = vld [vmem:[%s527 + $0x84] sm:$0xf]
        %v7823 = vld [vmem:[%s527 + $0x88] sm:$0xf]
        %v7824 = vld [vmem:[%s527 + $0x8c] sm:$0xf]
        %v7825 = vld [vmem:[%s527 + $0x90] sm:$0xf]
        %v7826 = vld [vmem:[%s527 + $0x94] sm:$0xf]
        %v7827 = vld [vmem:[%s527 + $0x98] sm:$0xf]
        %v7828 = vld [vmem:[%s527 + $0x9c] sm:$0xf]
        %v7829 = vld [vmem:[%s527 + $0xa0] sm:$0xf]
        %v7830 = vld [vmem:[%s527 + $0xa4] sm:$0xf]
        %v7831 = vld [vmem:[%s527 + $0xa8] sm:$0xf]
        %v7832 = vld [vmem:[%s527 + $0xac] sm:$0xf]
        %v7833 = vld [vmem:[%s527 + $0xb0] sm:$0xf]
        %v7834 = vld [vmem:[%s527 + $0xb4] sm:$0xf]
        %v7835 = vld [vmem:[%s527 + $0xb8] sm:$0xf]
        %v7836 = vld [vmem:[%s527 + $0xbc] sm:$0xf]
        %v7837 = vld [vmem:[%s527 + $0xc0] sm:$0xf]
        %v7838 = vld [vmem:[%s527 + $0xc4] sm:$0xf]
        %v7839 = vld [vmem:[%s527 + $0xc8] sm:$0xf]
        %v7840 = vld [vmem:[%s527 + $0xcc] sm:$0xf]
        %v7841 = vld [vmem:[%s527 + $0xd0] sm:$0xf]
        %v7842 = vld [vmem:[%s527 + $0xd4] sm:$0xf]
        %v7843 = vld [vmem:[%s527 + $0xd8] sm:$0xf]
        %v7844 = vld [vmem:[%s527 + $0xdc] sm:$0xf]
        %v7845 = vld [vmem:[%s527 + $0xe0] sm:$0xf]
        %v7846 = vld [vmem:[%s527 + $0xe4] sm:$0xf]
        %v7847 = vld [vmem:[%s527 + $0xe8] sm:$0xf]
        %v7848 = vld [vmem:[%s527 + $0xec] sm:$0xf]
        %v7849 = vld [vmem:[%s527 + $0xf0] sm:$0xf]
        %v7850 = vld [vmem:[%s527 + $0xf4] sm:$0xf]
        %v7851 = vld [vmem:[%s527 + $0xf8] sm:$0xf]
        %v7852 = vld [vmem:[%s527 + $0xfc] sm:$0xf]
        %v7917 = vunpack.c.l.b16 %v7789
        %v7918 = vunpack.c.l.b16 %v7790
        %v7919 = vunpack.c.l.b16 %v7791
        %v7920 = vunpack.c.l.b16 %v7792
        %v7921 = vunpack.c.l.b16 %v7793
        %v7922 = vunpack.c.l.b16 %v7794
        %v7923 = vunpack.c.l.b16 %v7795
        %v7924 = vunpack.c.l.b16 %v7796
        %v7925 = vunpack.c.l.b16 %v7797
        %v7926 = vunpack.c.l.b16 %v7798
        %v7927 = vunpack.c.l.b16 %v7799
        %v7928 = vunpack.c.l.b16 %v7800
        %v7929 = vunpack.c.l.b16 %v7801
        %v7930 = vunpack.c.l.b16 %v7802
        %v7931 = vunpack.c.l.b16 %v7803
        %v7932 = vunpack.c.l.b16 %v7804
        %v7933 = vunpack.c.l.b16 %v7805
        %v7934 = vunpack.c.l.b16 %v7806
        %v7935 = vunpack.c.l.b16 %v7807
        %v7936 = vunpack.c.l.b16 %v7808
        %v7937 = vunpack.c.l.b16 %v7809
        %v7938 = vunpack.c.l.b16 %v7810
        %v7939 = vunpack.c.l.b16 %v7811
        %v7940 = vunpack.c.l.b16 %v7812
        %v7941 = vunpack.c.l.b16 %v7813
        %v7942 = vunpack.c.l.b16 %v7814
        %v7943 = vunpack.c.l.b16 %v7815
        %v7944 = vunpack.c.l.b16 %v7816
        %v7945 = vunpack.c.l.b16 %v7817
        %v7946 = vunpack.c.l.b16 %v7818
        %v7947 = vunpack.c.l.b16 %v7819
        %v7948 = vunpack.c.l.b16 %v7820
        %v7949 = vunpack.c.l.b16 %v7821
        %v7950 = vunpack.c.l.b16 %v7822
        %v7951 = vunpack.c.l.b16 %v7823
        %v7952 = vunpack.c.l.b16 %v7824
        %v7953 = vunpack.c.l.b16 %v7825
        %v7954 = vunpack.c.l.b16 %v7826
        %v7955 = vunpack.c.l.b16 %v7827
        %v7956 = vunpack.c.l.b16 %v7828
        %v7957 = vunpack.c.l.b16 %v7829
        %v7958 = vunpack.c.l.b16 %v7830
        %v7959 = vunpack.c.l.b16 %v7831
        %v7960 = vunpack.c.l.b16 %v7832
        %v7961 = vunpack.c.l.b16 %v7833
        %v7962 = vunpack.c.l.b16 %v7834
        %v7963 = vunpack.c.l.b16 %v7835
        %v7964 = vunpack.c.l.b16 %v7836
        %v7965 = vunpack.c.l.b16 %v7837
        %v7966 = vunpack.c.l.b16 %v7838
        %v7967 = vunpack.c.l.b16 %v7839
        %v7968 = vunpack.c.l.b16 %v7840
        %v7969 = vunpack.c.l.b16 %v7841
        %v7970 = vunpack.c.l.b16 %v7842
        %v7971 = vunpack.c.l.b16 %v7843
        %v7972 = vunpack.c.l.b16 %v7844
        %v7973 = vunpack.c.l.b16 %v7845
        %v7974 = vunpack.c.l.b16 %v7846
        %v7975 = vunpack.c.l.b16 %v7847
        %v7976 = vunpack.c.l.b16 %v7848
        %v7977 = vunpack.c.l.b16 %v7849
        %v7978 = vunpack.c.l.b16 %v7850
        %v7979 = vunpack.c.l.b16 %v7851
        %v7980 = vunpack.c.l.b16 %v7852
        %v7981 = vpack.c.b16 %v7918, %v7917
        %v7982 = vpack.c.b16 %v7920, %v7919
        %v7983 = vpack.c.b16 %v7922, %v7921
        %v7984 = vpack.c.b16 %v7924, %v7923
        %v7985 = vpack.c.b16 %v7926, %v7925
        %v7986 = vpack.c.b16 %v7928, %v7927
        %v7987 = vpack.c.b16 %v7930, %v7929
        %v7988 = vpack.c.b16 %v7932, %v7931
        %v7989 = vpack.c.b16 %v7934, %v7933
        %v7990 = vpack.c.b16 %v7936, %v7935
        %v7991 = vpack.c.b16 %v7938, %v7937
        %v7992 = vpack.c.b16 %v7940, %v7939
        %v7993 = vpack.c.b16 %v7942, %v7941
        %v7994 = vpack.c.b16 %v7944, %v7943
        %v7995 = vpack.c.b16 %v7946, %v7945
        %v7996 = vpack.c.b16 %v7948, %v7947
        %v7997 = vpack.c.b16 %v7950, %v7949
        %v7998 = vpack.c.b16 %v7952, %v7951
        %v7999 = vpack.c.b16 %v7954, %v7953
        %v8000 = vpack.c.b16 %v7956, %v7955
        %v8001 = vpack.c.b16 %v7958, %v7957
        %v8002 = vpack.c.b16 %v7960, %v7959
        %v8003 = vpack.c.b16 %v7962, %v7961
        %v8004 = vpack.c.b16 %v7964, %v7963
        %v8005 = vpack.c.b16 %v7966, %v7965
        %v8006 = vpack.c.b16 %v7968, %v7967
        %v8007 = vpack.c.b16 %v7970, %v7969
        %v8008 = vpack.c.b16 %v7972, %v7971
        %v8009 = vpack.c.b16 %v7974, %v7973
        %v8010 = vpack.c.b16 %v7976, %v7975
        %v8011 = vpack.c.b16 %v7978, %v7977
        %v8012 = vpack.c.b16 %v7980, %v7979
        %8045 = vmatpush.bf16.msra.mxu0 %v7988
        %8046 = vmatpush.bf16.msra.mxu0 %v7987
        %8047 = vmatpush.bf16.msra.mxu0 %v7986
        %8048 = vmatpush.bf16.msra.mxu0 %v7985
        %8049 = vmatpush.bf16.msra.mxu0 %v7984
        %8050 = vmatpush.bf16.msra.mxu0 %v7983
        %8051 = vmatpush.bf16.msra.mxu0 %v7982
        %8052 = vmatpush.bf16.msra.mxu0 %v7981
        %8053 = vmatmul.bf16.gmra.mxu0 %v7757
        %v8054 = vpop.f32.mrf.mxu0
        %v8055 = vadd.f32 0.0, %v8054
        %v8056 = vpop.f32.mrf.mxu0
        %v8057 = vadd.f32 0.0, %v8056
        %8058 = vmatmul.bf16.gmra.mxu0 %v7761
        %v8059 = vpop.f32.mrf.mxu0
        %v8060 = vadd.f32 0.0, %v8059
        %v8061 = vpop.f32.mrf.mxu0
        %v8062 = vadd.f32 0.0, %v8061
        %8063 = vmatmul.bf16.gmra.mxu0 %v7765
        %v8064 = vpop.f32.mrf.mxu0
        %v8065 = vadd.f32 0.0, %v8064
        %v8066 = vpop.f32.mrf.mxu0
        %v8067 = vadd.f32 0.0, %v8066
        %8068 = vmatmul.bf16.gmra.mxu0 %v7769
        %v8069 = vpop.f32.mrf.mxu0
        %v8070 = vadd.f32 0.0, %v8069
        %v8071 = vpop.f32.mrf.mxu0
        %v8072 = vadd.f32 0.0, %v8071
        %8073 = vmatmul.bf16.gmra.mxu0 %v7773
        %v8074 = vpop.f32.mrf.mxu0
        %v8075 = vadd.f32 0.0, %v8074
        %v8076 = vpop.f32.mrf.mxu0
        %v8077 = vadd.f32 0.0, %v8076
        %8078 = vmatmul.bf16.gmra.mxu0 %v7777
        %v8079 = vpop.f32.mrf.mxu0
        %v8080 = vadd.f32 0.0, %v8079
        %v8081 = vpop.f32.mrf.mxu0
        %v8082 = vadd.f32 0.0, %v8081
        %8083 = vmatmul.bf16.gmra.mxu0 %v7781
        %v8084 = vpop.f32.mrf.mxu0
        %v8085 = vadd.f32 0.0, %v8084
        %v8086 = vpop.f32.mrf.mxu0
        %v8087 = vadd.f32 0.0, %v8086
        %8088 = vmatmul.bf16.gmra.mxu0 %v7785
        %v8089 = vpop.f32.mrf.mxu0
        %v8090 = vadd.f32 0.0, %v8089
        %v8091 = vpop.f32.mrf.mxu0
        %v8092 = vadd.f32 0.0, %v8091
        %8093 = vdwg.mxu0
        %8094 = vmatpush.bf16.msra.mxu0 %v7996
        %8095 = vmatpush.bf16.msra.mxu0 %v7995
        %8096 = vmatpush.bf16.msra.mxu0 %v7994
        %8097 = vmatpush.bf16.msra.mxu0 %v7993
        %8098 = vmatpush.bf16.msra.mxu0 %v7992
        %8099 = vmatpush.bf16.msra.mxu0 %v7991
        %8100 = vmatpush.bf16.msra.mxu0 %v7990
        %8101 = vmatpush.bf16.msra.mxu0 %v7989
        %8102 = vmatmul.bf16.gmra.mxu0 %v7758
        %v8103 = vpop.f32.mrf.mxu0
        %v8104 = vadd.f32 %v8055, %v8103
        %v8105 = vpop.f32.mrf.mxu0
        %v8106 = vadd.f32 %v8057, %v8105
        %8107 = vmatmul.bf16.gmra.mxu0 %v7762
        %v8108 = vpop.f32.mrf.mxu0
        %v8109 = vadd.f32 %v8060, %v8108
        %v8110 = vpop.f32.mrf.mxu0
        %v8111 = vadd.f32 %v8062, %v8110
        %8112 = vmatmul.bf16.gmra.mxu0 %v7766
        %v8113 = vpop.f32.mrf.mxu0
        %v8114 = vadd.f32 %v8065, %v8113
        %v8115 = vpop.f32.mrf.mxu0
        %v8116 = vadd.f32 %v8067, %v8115
        %8117 = vmatmul.bf16.gmra.mxu0 %v7770
        %v8118 = vpop.f32.mrf.mxu0
        %v8119 = vadd.f32 %v8070, %v8118
        %v8120 = vpop.f32.mrf.mxu0
        %v8121 = vadd.f32 %v8072, %v8120
        %8122 = vmatmul.bf16.gmra.mxu0 %v7774
        %v8123 = vpop.f32.mrf.mxu0
        %v8124 = vadd.f32 %v8075, %v8123
        %v8125 = vpop.f32.mrf.mxu0
        %v8126 = vadd.f32 %v8077, %v8125
        %8127 = vmatmul.bf16.gmra.mxu0 %v7778
        %v8128 = vpop.f32.mrf.mxu0
        %v8129 = vadd.f32 %v8080, %v8128
        %v8130 = vpop.f32.mrf.mxu0
        %v8131 = vadd.f32 %v8082, %v8130
        %8132 = vmatmul.bf16.gmra.mxu0 %v7782
        %v8133 = vpop.f32.mrf.mxu0
        %v8134 = vadd.f32 %v8085, %v8133
        %v8135 = vpop.f32.mrf.mxu0
        %v8136 = vadd.f32 %v8087, %v8135
        %8137 = vmatmul.bf16.gmra.mxu0 %v7786
        %v8138 = vpop.f32.mrf.mxu0
        %v8139 = vadd.f32 %v8090, %v8138
        %v8140 = vpop.f32.mrf.mxu0
        %v8141 = vadd.f32 %v8092, %v8140
        %8142 = vdwg.mxu0
        %8143 = vmatpush.bf16.msra.mxu0 %v8004
        %8144 = vmatpush.bf16.msra.mxu0 %v8003
        %8145 = vmatpush.bf16.msra.mxu0 %v8002
        %8146 = vmatpush.bf16.msra.mxu0 %v8001
        %8147 = vmatpush.bf16.msra.mxu0 %v8000
        %8148 = vmatpush.bf16.msra.mxu0 %v7999
        %8149 = vmatpush.bf16.msra.mxu0 %v7998
        %8150 = vmatpush.bf16.msra.mxu0 %v7997
        %8151 = vmatmul.bf16.gmra.mxu0 %v7759
        %v8152 = vpop.f32.mrf.mxu0
        %v8153 = vadd.f32 %v8104, %v8152
        %v8154 = vpop.f32.mrf.mxu0
        %v8155 = vadd.f32 %v8106, %v8154
        %8156 = vmatmul.bf16.gmra.mxu0 %v7763
        %v8157 = vpop.f32.mrf.mxu0
        %v8158 = vadd.f32 %v8109, %v8157
        %v8159 = vpop.f32.mrf.mxu0
        %v8160 = vadd.f32 %v8111, %v8159
        %8161 = vmatmul.bf16.gmra.mxu0 %v7767
        %v8162 = vpop.f32.mrf.mxu0
        %v8163 = vadd.f32 %v8114, %v8162
        %v8164 = vpop.f32.mrf.mxu0
        %v8165 = vadd.f32 %v8116, %v8164
        %8166 = vmatmul.bf16.gmra.mxu0 %v7771
        %v8167 = vpop.f32.mrf.mxu0
        %v8168 = vadd.f32 %v8119, %v8167
        %v8169 = vpop.f32.mrf.mxu0
        %v8170 = vadd.f32 %v8121, %v8169
        %8171 = vmatmul.bf16.gmra.mxu0 %v7775
        %v8172 = vpop.f32.mrf.mxu0
        %v8173 = vadd.f32 %v8124, %v8172
        %v8174 = vpop.f32.mrf.mxu0
        %v8175 = vadd.f32 %v8126, %v8174
        %8176 = vmatmul.bf16.gmra.mxu0 %v7779
        %v8177 = vpop.f32.mrf.mxu0
        %v8178 = vadd.f32 %v8129, %v8177
        %v8179 = vpop.f32.mrf.mxu0
        %v8180 = vadd.f32 %v8131, %v8179
        %8181 = vmatmul.bf16.gmra.mxu0 %v7783
        %v8182 = vpop.f32.mrf.mxu0
        %v8183 = vadd.f32 %v8134, %v8182
        %v8184 = vpop.f32.mrf.mxu0
        %v8185 = vadd.f32 %v8136, %v8184
        %8186 = vmatmul.bf16.gmra.mxu0 %v7787
        %v8187 = vpop.f32.mrf.mxu0
        %v8188 = vadd.f32 %v8139, %v8187
        %v8189 = vpop.f32.mrf.mxu0
        %v8190 = vadd.f32 %v8141, %v8189
        %8191 = vdwg.mxu0
        %8192 = vmatpush.bf16.msra.mxu0 %v8012
        %8193 = vmatpush.bf16.msra.mxu0 %v8011
        %8194 = vmatpush.bf16.msra.mxu0 %v8010
        %8195 = vmatpush.bf16.msra.mxu0 %v8009
        %8196 = vmatpush.bf16.msra.mxu0 %v8008
        %8197 = vmatpush.bf16.msra.mxu0 %v8007
        %8198 = vmatpush.bf16.msra.mxu0 %v8006
        %8199 = vmatpush.bf16.msra.mxu0 %v8005
        %8200 = vmatmul.bf16.gmra.mxu0 %v7760
        %v8201 = vpop.f32.mrf.mxu0
        %v8202 = vadd.f32 %v8153, %v8201
        %v8203 = vpop.f32.mrf.mxu0
        %v8204 = vadd.f32 %v8155, %v8203
        %8205 = vmatmul.bf16.gmra.mxu0 %v7764
        %v8206 = vpop.f32.mrf.mxu0
        %v8207 = vadd.f32 %v8158, %v8206
        %v8208 = vpop.f32.mrf.mxu0
        %v8209 = vadd.f32 %v8160, %v8208
        %8210 = vmatmul.bf16.gmra.mxu0 %v7768
        %v8211 = vpop.f32.mrf.mxu0
        %v8212 = vadd.f32 %v8163, %v8211
        %v8213 = vpop.f32.mrf.mxu0
        %v8214 = vadd.f32 %v8165, %v8213
        %8215 = vmatmul.bf16.gmra.mxu0 %v7772
        %v8216 = vpop.f32.mrf.mxu0
        %v8217 = vadd.f32 %v8168, %v8216
        %v8218 = vpop.f32.mrf.mxu0
        %v8219 = vadd.f32 %v8170, %v8218
        %8220 = vmatmul.bf16.gmra.mxu0 %v7776
        %v8221 = vpop.f32.mrf.mxu0
        %v8222 = vadd.f32 %v8173, %v8221
        %v8223 = vpop.f32.mrf.mxu0
        %v8224 = vadd.f32 %v8175, %v8223
        %8225 = vmatmul.bf16.gmra.mxu0 %v7780
        %v8226 = vpop.f32.mrf.mxu0
        %v8227 = vadd.f32 %v8178, %v8226
        %v8228 = vpop.f32.mrf.mxu0
        %v8229 = vadd.f32 %v8180, %v8228
        %8230 = vmatmul.bf16.gmra.mxu0 %v7784
        %v8231 = vpop.f32.mrf.mxu0
        %v8232 = vadd.f32 %v8183, %v8231
        %v8233 = vpop.f32.mrf.mxu0
        %v8234 = vadd.f32 %v8185, %v8233
        %8235 = vmatmul.bf16.gmra.mxu0 %v7788
        %v8236 = vpop.f32.mrf.mxu0
        %v8237 = vadd.f32 %v8188, %v8236
        %v8238 = vpop.f32.mrf.mxu0
        %v8239 = vadd.f32 %v8190, %v8238
        %8240 = vdwg.mxu0
        %v8241 = vadd.f32 %v4205, %v8202
        %v8242 = vadd.f32 %v4206, %v8204
        %v8243 = vadd.f32 %v4207, %v8207
        %v8244 = vadd.f32 %v4208, %v8209
        %v8245 = vadd.f32 %v4209, %v8212
        %v8246 = vadd.f32 %v4210, %v8214
        %v8247 = vadd.f32 %v4211, %v8217
        %v8248 = vadd.f32 %v4212, %v8219
        %v8249 = vadd.f32 %v4213, %v8222
        %v8250 = vadd.f32 %v4214, %v8224
        %v8251 = vadd.f32 %v4215, %v8227
        %v8252 = vadd.f32 %v4216, %v8229
        %v8253 = vadd.f32 %v4217, %v8232
        %v8254 = vadd.f32 %v4218, %v8234
        %v8255 = vadd.f32 %v4219, %v8237
        %v8256 = vadd.f32 %v4220, %v8239
        %8257 = vst [vmem:[#allocation2] sm:$0xff] %v8241
        %8258 = vst [vmem:[#allocation2 + $0x8] sm:$0xff] %v8242
        %8259 = vst [vmem:[#allocation2 + $0x10] sm:$0xff] %v8243
        %8260 = vst [vmem:[#allocation2 + $0x18] sm:$0xff] %v8244
        %8261 = vst [vmem:[#allocation2 + $0x20] sm:$0xff] %v8245
        %8262 = vst [vmem:[#allocation2 + $0x28] sm:$0xff] %v8246
        %8263 = vst [vmem:[#allocation2 + $0x30] sm:$0xff] %v8247
        %8264 = vst [vmem:[#allocation2 + $0x38] sm:$0xff] %v8248
        %8265 = vst [vmem:[#allocation2 + $0x40] sm:$0xff] %v8249
        %8266 = vst [vmem:[#allocation2 + $0x48] sm:$0xff] %v8250
        %8267 = vst [vmem:[#allocation2 + $0x50] sm:$0xff] %v8251
        %8268 = vst [vmem:[#allocation2 + $0x58] sm:$0xff] %v8252
        %8269 = vst [vmem:[#allocation2 + $0x60] sm:$0xff] %v8253
        %8270 = vst [vmem:[#allocation2 + $0x68] sm:$0xff] %v8254
        %8271 = vst [vmem:[#allocation2 + $0x70] sm:$0xff] %v8255
        %8272 = vst [vmem:[#allocation2 + $0x78] sm:$0xff] %v8256
        %p8273 = scmp.eq.s32.totalorder %s24, 1
        // Predicated region
        $region73: #{tpu_custom_call.1} parent=67 // pred_check
          %p8274 = pneg %p8273
        $region74: #{tpu_custom_call.1} parent=67 // pred_check_branch
          %8276 = sbr.rel (%p8274) target = $region76
        $region75: #{tpu_custom_call.1} parent=67 // pred_region
          %v8277 = vld [vmem:[%s10] sm:$0x1]
          %v8278 = vmul.f32 %v8241, %v8241
          %v8279 = vmul.f32 %v8242, %v8242
          %v8280 = vmul.f32 %v8243, %v8243
          %v8281 = vmul.f32 %v8244, %v8244
          %v8282 = vmul.f32 %v8245, %v8245
          %v8283 = vmul.f32 %v8246, %v8246
          %v8284 = vmul.f32 %v8247, %v8247
          %v8285 = vmul.f32 %v8248, %v8248
          %v8286 = vmul.f32 %v8249, %v8249
          %v8287 = vmul.f32 %v8250, %v8250
          %v8288 = vmul.f32 %v8251, %v8251
          %v8289 = vmul.f32 %v8252, %v8252
          %v8290 = vmul.f32 %v8253, %v8253
          %v8291 = vmul.f32 %v8254, %v8254
          %v8292 = vmul.f32 %v8255, %v8255
          %v8293 = vmul.f32 %v8256, %v8256
          %8294 = vadd.xlane.f32.xlu0 %v8278
          %v8295 = vpop.xlane.xlu0 %8294
          %8296 = vadd.xlane.f32.xlu0 %v8279
          %v8297 = vpop.xlane.xlu0 %8296
          %8298 = vadd.xlane.f32.xlu0 %v8280
          %v8299 = vpop.xlane.xlu0 %8298
          %8300 = vadd.xlane.f32.xlu0 %v8281
          %v8301 = vpop.xlane.xlu0 %8300
          %8302 = vadd.xlane.f32.xlu0 %v8282
          %v8303 = vpop.xlane.xlu0 %8302
          %8304 = vadd.xlane.f32.xlu0 %v8283
          %v8305 = vpop.xlane.xlu0 %8304
          %8306 = vadd.xlane.f32.xlu0 %v8284
          %v8307 = vpop.xlane.xlu0 %8306
          %8308 = vadd.xlane.f32.xlu0 %v8285
          %v8309 = vpop.xlane.xlu0 %8308
          %8310 = vadd.xlane.f32.xlu0 %v8286
          %v8311 = vpop.xlane.xlu0 %8310
          %8312 = vadd.xlane.f32.xlu0 %v8287
          %v8313 = vpop.xlane.xlu0 %8312
          %8314 = vadd.xlane.f32.xlu0 %v8288
          %v8315 = vpop.xlane.xlu0 %8314
          %8316 = vadd.xlane.f32.xlu0 %v8289
          %v8317 = vpop.xlane.xlu0 %8316
          %8318 = vadd.xlane.f32.xlu0 %v8290
          %v8319 = vpop.xlane.xlu0 %8318
          %8320 = vadd.xlane.f32.xlu0 %v8291
          %v8321 = vpop.xlane.xlu0 %8320
          %8322 = vadd.xlane.f32.xlu0 %v8292
          %v8323 = vpop.xlane.xlu0 %8322
          %8324 = vadd.xlane.f32.xlu0 %v8293
          %v8325 = vpop.xlane.xlu0 %8324
          %v8326 = vmul.f32 %v8295, %v652
          %v8327 = vmul.f32 %v8297, %v652
          %v8328 = vmul.f32 %v8299, %v652
          %v8329 = vmul.f32 %v8301, %v652
          %v8330 = vmul.f32 %v8303, %v652
          %v8331 = vmul.f32 %v8305, %v652
          %v8332 = vmul.f32 %v8307, %v652
          %v8333 = vmul.f32 %v8309, %v652
          %v8334 = vmul.f32 %v8311, %v652
          %v8335 = vmul.f32 %v8313, %v652
          %v8336 = vmul.f32 %v8315, %v652
          %v8337 = vmul.f32 %v8317, %v652
          %v8338 = vmul.f32 %v8319, %v652
          %v8339 = vmul.f32 %v8321, %v652
          %v8340 = vmul.f32 %v8323, %v652
          %v8341 = vmul.f32 %v8325, %v652
          %v8342 = vrsqrt.pop %v8326
          %v8343 = vmul.f32 %v8342, %v8326
          %v8344 = vmul.f32 %v8343, %v8342
          %v8345 = vmul.f32 0.5, %v8344
          %v8346 = vsub.f32 1.5, %v8345
          %v8347 = vmul.f32 %v8342, %v8346
          %v8348 = vmul.f32 %v8326, %v8347
          %vm8349 = vcmp.eq.f32.partialorder %v8326, inf
          %v8350 = vsel %vm8349, %v8326, %v8348
          %vm8351 = vcmp.eq.f32.partialorder %v8326, 0.0
          %v8352 = vand.u32 %v8326, 2147483648
          %v8353 = vsel %vm8351, %v8352, %v8350
          %v8354 = vrsqrt.pop %v8327
          %v8355 = vmul.f32 %v8354, %v8327
          %v8356 = vmul.f32 %v8355, %v8354
          %v8357 = vmul.f32 0.5, %v8356
          %v8358 = vsub.f32 1.5, %v8357
          %v8359 = vmul.f32 %v8354, %v8358
          %v8360 = vmul.f32 %v8327, %v8359
          %vm8361 = vcmp.eq.f32.partialorder %v8327, inf
          %v8362 = vsel %vm8361, %v8327, %v8360
          %vm8363 = vcmp.eq.f32.partialorder %v8327, 0.0
          %v8364 = vand.u32 %v8327, 2147483648
          %v8365 = vsel %vm8363, %v8364, %v8362
          %v8366 = vrsqrt.pop %v8328
          %v8367 = vmul.f32 %v8366, %v8328
          %v8368 = vmul.f32 %v8367, %v8366
          %v8369 = vmul.f32 0.5, %v8368
          %v8370 = vsub.f32 1.5, %v8369
          %v8371 = vmul.f32 %v8366, %v8370
          %v8372 = vmul.f32 %v8328, %v8371
          %vm8373 = vcmp.eq.f32.partialorder %v8328, inf
          %v8374 = vsel %vm8373, %v8328, %v8372
          %vm8375 = vcmp.eq.f32.partialorder %v8328, 0.0
          %v8376 = vand.u32 %v8328, 2147483648
          %v8377 = vsel %vm8375, %v8376, %v8374
          %v8378 = vrsqrt.pop %v8329
          %v8379 = vmul.f32 %v8378, %v8329
          %v8380 = vmul.f32 %v8379, %v8378
          %v8381 = vmul.f32 0.5, %v8380
          %v8382 = vsub.f32 1.5, %v8381
          %v8383 = vmul.f32 %v8378, %v8382
          %v8384 = vmul.f32 %v8329, %v8383
          %vm8385 = vcmp.eq.f32.partialorder %v8329, inf
          %v8386 = vsel %vm8385, %v8329, %v8384
          %vm8387 = vcmp.eq.f32.partialorder %v8329, 0.0
          %v8388 = vand.u32 %v8329, 2147483648
          %v8389 = vsel %vm8387, %v8388, %v8386
          %v8390 = vrsqrt.pop %v8330
          %v8391 = vmul.f32 %v8390, %v8330
          %v8392 = vmul.f32 %v8391, %v8390
          %v8393 = vmul.f32 0.5, %v8392
          %v8394 = vsub.f32 1.5, %v8393
          %v8395 = vmul.f32 %v8390, %v8394
          %v8396 = vmul.f32 %v8330, %v8395
          %vm8397 = vcmp.eq.f32.partialorder %v8330, inf
          %v8398 = vsel %vm8397, %v8330, %v8396
          %vm8399 = vcmp.eq.f32.partialorder %v8330, 0.0
          %v8400 = vand.u32 %v8330, 2147483648
          %v8401 = vsel %vm8399, %v8400, %v8398
          %v8402 = vrsqrt.pop %v8331
          %v8403 = vmul.f32 %v8402, %v8331
          %v8404 = vmul.f32 %v8403, %v8402
          %v8405 = vmul.f32 0.5, %v8404
          %v8406 = vsub.f32 1.5, %v8405
          %v8407 = vmul.f32 %v8402, %v8406
          %v8408 = vmul.f32 %v8331, %v8407
          %vm8409 = vcmp.eq.f32.partialorder %v8331, inf
          %v8410 = vsel %vm8409, %v8331, %v8408
          %vm8411 = vcmp.eq.f32.partialorder %v8331, 0.0
          %v8412 = vand.u32 %v8331, 2147483648
          %v8413 = vsel %vm8411, %v8412, %v8410
          %v8414 = vrsqrt.pop %v8332
          %v8415 = vmul.f32 %v8414, %v8332
          %v8416 = vmul.f32 %v8415, %v8414
          %v8417 = vmul.f32 0.5, %v8416
          %v8418 = vsub.f32 1.5, %v8417
          %v8419 = vmul.f32 %v8414, %v8418
          %v8420 = vmul.f32 %v8332, %v8419
          %vm8421 = vcmp.eq.f32.partialorder %v8332, inf
          %v8422 = vsel %vm8421, %v8332, %v8420
          %vm8423 = vcmp.eq.f32.partialorder %v8332, 0.0
          %v8424 = vand.u32 %v8332, 2147483648
          %v8425 = vsel %vm8423, %v8424, %v8422
          %v8426 = vrsqrt.pop %v8333
          %v8427 = vmul.f32 %v8426, %v8333
          %v8428 = vmul.f32 %v8427, %v8426
          %v8429 = vmul.f32 0.5, %v8428
          %v8430 = vsub.f32 1.5, %v8429
          %v8431 = vmul.f32 %v8426, %v8430
          %v8432 = vmul.f32 %v8333, %v8431
          %vm8433 = vcmp.eq.f32.partialorder %v8333, inf
          %v8434 = vsel %vm8433, %v8333, %v8432
          %vm8435 = vcmp.eq.f32.partialorder %v8333, 0.0
          %v8436 = vand.u32 %v8333, 2147483648
          %v8437 = vsel %vm8435, %v8436, %v8434
          %v8438 = vrsqrt.pop %v8334
          %v8439 = vmul.f32 %v8438, %v8334
          %v8440 = vmul.f32 %v8439, %v8438
          %v8441 = vmul.f32 0.5, %v8440
          %v8442 = vsub.f32 1.5, %v8441
          %v8443 = vmul.f32 %v8438, %v8442
          %v8444 = vmul.f32 %v8334, %v8443
          %vm8445 = vcmp.eq.f32.partialorder %v8334, inf
          %v8446 = vsel %vm8445, %v8334, %v8444
          %vm8447 = vcmp.eq.f32.partialorder %v8334, 0.0
          %v8448 = vand.u32 %v8334, 2147483648
          %v8449 = vsel %vm8447, %v8448, %v8446
          %v8450 = vrsqrt.pop %v8335
          %v8451 = vmul.f32 %v8450, %v8335
          %v8452 = vmul.f32 %v8451, %v8450
          %v8453 = vmul.f32 0.5, %v8452
          %v8454 = vsub.f32 1.5, %v8453
          %v8455 = vmul.f32 %v8450, %v8454
          %v8456 = vmul.f32 %v8335, %v8455
          %vm8457 = vcmp.eq.f32.partialorder %v8335, inf
          %v8458 = vsel %vm8457, %v8335, %v8456
          %vm8459 = vcmp.eq.f32.partialorder %v8335, 0.0
          %v8460 = vand.u32 %v8335, 2147483648
          %v8461 = vsel %vm8459, %v8460, %v8458
          %v8462 = vrsqrt.pop %v8336
          %v8463 = vmul.f32 %v8462, %v8336
          %v8464 = vmul.f32 %v8463, %v8462
          %v8465 = vmul.f32 0.5, %v8464
          %v8466 = vsub.f32 1.5, %v8465
          %v8467 = vmul.f32 %v8462, %v8466
          %v8468 = vmul.f32 %v8336, %v8467
          %vm8469 = vcmp.eq.f32.partialorder %v8336, inf
          %v8470 = vsel %vm8469, %v8336, %v8468
          %vm8471 = vcmp.eq.f32.partialorder %v8336, 0.0
          %v8472 = vand.u32 %v8336, 2147483648
          %v8473 = vsel %vm8471, %v8472, %v8470
          %v8474 = vrsqrt.pop %v8337
          %v8475 = vmul.f32 %v8474, %v8337
          %v8476 = vmul.f32 %v8475, %v8474
          %v8477 = vmul.f32 0.5, %v8476
          %v8478 = vsub.f32 1.5, %v8477
          %v8479 = vmul.f32 %v8474, %v8478
          %v8480 = vmul.f32 %v8337, %v8479
          %vm8481 = vcmp.eq.f32.partialorder %v8337, inf
          %v8482 = vsel %vm8481, %v8337, %v8480
          %vm8483 = vcmp.eq.f32.partialorder %v8337, 0.0
          %v8484 = vand.u32 %v8337, 2147483648
          %v8485 = vsel %vm8483, %v8484, %v8482
          %v8486 = vrsqrt.pop %v8338
          %v8487 = vmul.f32 %v8486, %v8338
          %v8488 = vmul.f32 %v8487, %v8486
          %v8489 = vmul.f32 0.5, %v8488
          %v8490 = vsub.f32 1.5, %v8489
          %v8491 = vmul.f32 %v8486, %v8490
          %v8492 = vmul.f32 %v8338, %v8491
          %vm8493 = vcmp.eq.f32.partialorder %v8338, inf
          %v8494 = vsel %vm8493, %v8338, %v8492
          %vm8495 = vcmp.eq.f32.partialorder %v8338, 0.0
          %v8496 = vand.u32 %v8338, 2147483648
          %v8497 = vsel %vm8495, %v8496, %v8494
          %v8498 = vrsqrt.pop %v8339
          %v8499 = vmul.f32 %v8498, %v8339
          %v8500 = vmul.f32 %v8499, %v8498
          %v8501 = vmul.f32 0.5, %v8500
          %v8502 = vsub.f32 1.5, %v8501
          %v8503 = vmul.f32 %v8498, %v8502
          %v8504 = vmul.f32 %v8339, %v8503
          %vm8505 = vcmp.eq.f32.partialorder %v8339, inf
          %v8506 = vsel %vm8505, %v8339, %v8504
          %vm8507 = vcmp.eq.f32.partialorder %v8339, 0.0
          %v8508 = vand.u32 %v8339, 2147483648
          %v8509 = vsel %vm8507, %v8508, %v8506
          %v8510 = vrsqrt.pop %v8340
          %v8511 = vmul.f32 %v8510, %v8340
          %v8512 = vmul.f32 %v8511, %v8510
          %v8513 = vmul.f32 0.5, %v8512
          %v8514 = vsub.f32 1.5, %v8513
          %v8515 = vmul.f32 %v8510, %v8514
          %v8516 = vmul.f32 %v8340, %v8515
          %vm8517 = vcmp.eq.f32.partialorder %v8340, inf
          %v8518 = vsel %vm8517, %v8340, %v8516
          %vm8519 = vcmp.eq.f32.partialorder %v8340, 0.0
          %v8520 = vand.u32 %v8340, 2147483648
          %v8521 = vsel %vm8519, %v8520, %v8518
          %v8522 = vrsqrt.pop %v8341
          %v8523 = vmul.f32 %v8522, %v8341
          %v8524 = vmul.f32 %v8523, %v8522
          %v8525 = vmul.f32 0.5, %v8524
          %v8526 = vsub.f32 1.5, %v8525
          %v8527 = vmul.f32 %v8522, %v8526
          %v8528 = vmul.f32 %v8341, %v8527
          %vm8529 = vcmp.eq.f32.partialorder %v8341, inf
          %v8530 = vsel %vm8529, %v8341, %v8528
          %vm8531 = vcmp.eq.f32.partialorder %v8341, 0.0
          %v8532 = vand.u32 %v8341, 2147483648
          %v8533 = vsel %vm8531, %v8532, %v8530
          %v8534 = vadd.f32 %v8353, 1e-06
          %v8535 = vadd.f32 %v8365, 1e-06
          %v8536 = vadd.f32 %v8377, 1e-06
          %v8537 = vadd.f32 %v8389, 1e-06
          %v8538 = vadd.f32 %v8401, 1e-06
          %v8539 = vadd.f32 %v8413, 1e-06
          %v8540 = vadd.f32 %v8425, 1e-06
          %v8541 = vadd.f32 %v8437, 1e-06
          %v8542 = vadd.f32 %v8449, 1e-06
          %v8543 = vadd.f32 %v8461, 1e-06
          %v8544 = vadd.f32 %v8473, 1e-06
          %v8545 = vadd.f32 %v8485, 1e-06
          %v8546 = vadd.f32 %v8497, 1e-06
          %v8547 = vadd.f32 %v8509, 1e-06
          %v8548 = vadd.f32 %v8521, 1e-06
          %v8549 = vadd.f32 %v8533, 1e-06
          %v8550 = vrcp.pop %v8534
          %v8551 = vrcp.pop %v8535
          %v8552 = vrcp.pop %v8536
          %v8553 = vrcp.pop %v8537
          %v8554 = vrcp.pop %v8538
          %v8555 = vrcp.pop %v8539
          %v8556 = vrcp.pop %v8540
          %v8557 = vrcp.pop %v8541
          %v8558 = vrcp.pop %v8542
          %v8559 = vrcp.pop %v8543
          %v8560 = vrcp.pop %v8544
          %v8561 = vrcp.pop %v8545
          %v8562 = vrcp.pop %v8546
          %v8563 = vrcp.pop %v8547
          %v8564 = vrcp.pop %v8548
          %v8565 = vrcp.pop %v8549
          %v8567 = vperm.slane %v8277, 0
          %v8569 = vmul.f32 %v8567, %v8241
          %v8570 = vmul.f32 %v8567, %v8242
          %v8571 = vmul.f32 %v8567, %v8243
          %v8572 = vmul.f32 %v8567, %v8244
          %v8573 = vmul.f32 %v8567, %v8245
          %v8574 = vmul.f32 %v8567, %v8246
          %v8575 = vmul.f32 %v8567, %v8247
          %v8576 = vmul.f32 %v8567, %v8248
          %v8577 = vmul.f32 %v8567, %v8249
          %v8578 = vmul.f32 %v8567, %v8250
          %v8579 = vmul.f32 %v8567, %v8251
          %v8580 = vmul.f32 %v8567, %v8252
          %v8581 = vmul.f32 %v8567, %v8253
          %v8582 = vmul.f32 %v8567, %v8254
          %v8583 = vmul.f32 %v8567, %v8255
          %v8584 = vmul.f32 %v8567, %v8256
          %v8585 = vmul.f32 %v8569, %v8550
          %v8586 = vmul.f32 %v8570, %v8551
          %v8587 = vmul.f32 %v8571, %v8552
          %v8588 = vmul.f32 %v8572, %v8553
          %v8589 = vmul.f32 %v8573, %v8554
          %v8590 = vmul.f32 %v8574, %v8555
          %v8591 = vmul.f32 %v8575, %v8556
          %v8592 = vmul.f32 %v8576, %v8557
          %v8593 = vmul.f32 %v8577, %v8558
          %v8594 = vmul.f32 %v8578, %v8559
          %v8595 = vmul.f32 %v8579, %v8560
          %v8596 = vmul.f32 %v8580, %v8561
          %v8597 = vmul.f32 %v8581, %v8562
          %v8598 = vmul.f32 %v8582, %v8563
          %v8599 = vmul.f32 %v8583, %v8564
          %v8600 = vmul.f32 %v8584, %v8565
          %v8601 = vpack.c.bf16 %v8586, %v8585
          %v8602 = vpack.c.bf16 %v8588, %v8587
          %v8603 = vpack.c.bf16 %v8590, %v8589
          %v8604 = vpack.c.bf16 %v8592, %v8591
          %v8605 = vpack.c.bf16 %v8594, %v8593
          %v8606 = vpack.c.bf16 %v8596, %v8595
          %v8607 = vpack.c.bf16 %v8598, %v8597
          %v8608 = vpack.c.bf16 %v8600, %v8599
          %v8609 = vld [vmem:[%s11] sm:$0xff]
          %v8610 = vld [vmem:[%s11 + $0x8] sm:$0xff]
          %v8611 = vld [vmem:[%s11 + $0x10] sm:$0xff]
          %v8612 = vld [vmem:[%s11 + $0x18] sm:$0xff]
          %v8613 = vld [vmem:[%s11 + $0x20] sm:$0xff]
          %v8614 = vld [vmem:[%s11 + $0x28] sm:$0xff]
          %v8615 = vld [vmem:[%s11 + $0x30] sm:$0xff]
          %v8616 = vld [vmem:[%s11 + $0x38] sm:$0xff]
          %v8617 = vld [vmem:[%s11 + $0x40] sm:$0xff]
          %v8618 = vld [vmem:[%s11 + $0x48] sm:$0xff]
          %v8619 = vld [vmem:[%s11 + $0x50] sm:$0xff]
          %v8620 = vld [vmem:[%s11 + $0x58] sm:$0xff]
          %v8621 = vld [vmem:[%s11 + $0x60] sm:$0xff]
          %v8622 = vld [vmem:[%s11 + $0x68] sm:$0xff]
          %v8623 = vld [vmem:[%s11 + $0x70] sm:$0xff]
          %v8624 = vld [vmem:[%s11 + $0x78] sm:$0xff]
          %v8641 = vunpack.c.l.b16 %v8609
          %v8642 = vunpack.c.h.b16 %v8609
          %v8643 = vunpack.c.l.b16 %v8610
          %v8644 = vunpack.c.h.b16 %v8610
          %v8645 = vunpack.c.l.b16 %v8611
          %v8646 = vunpack.c.h.b16 %v8611
          %v8647 = vunpack.c.l.b16 %v8612
          %v8648 = vunpack.c.h.b16 %v8612
          %v8649 = vunpack.c.l.b16 %v8613
          %v8650 = vunpack.c.h.b16 %v8613
          %v8651 = vunpack.c.l.b16 %v8614
          %v8652 = vunpack.c.h.b16 %v8614
          %v8653 = vunpack.c.l.b16 %v8615
          %v8654 = vunpack.c.h.b16 %v8615
          %v8655 = vunpack.c.l.b16 %v8616
          %v8656 = vunpack.c.h.b16 %v8616
          %v8657 = vunpack.c.l.b16 %v8617
          %v8658 = vunpack.c.h.b16 %v8617
          %v8659 = vunpack.c.l.b16 %v8618
          %v8660 = vunpack.c.h.b16 %v8618
          %v8661 = vunpack.c.l.b16 %v8619
          %v8662 = vunpack.c.h.b16 %v8619
          %v8663 = vunpack.c.l.b16 %v8620
          %v8664 = vunpack.c.h.b16 %v8620
          %v8665 = vunpack.c.l.b16 %v8621
          %v8666 = vunpack.c.h.b16 %v8621
          %v8667 = vunpack.c.l.b16 %v8622
          %v8668 = vunpack.c.h.b16 %v8622
          %v8669 = vunpack.c.l.b16 %v8623
          %v8670 = vunpack.c.h.b16 %v8623
          %v8671 = vunpack.c.l.b16 %v8624
          %v8672 = vunpack.c.h.b16 %v8624
          %v8673 = vpack.c.b16 %v8643, %v8641
          %v8674 = vpack.c.b16 %v8644, %v8642
          %v8675 = vpack.c.b16 %v8647, %v8645
          %v8676 = vpack.c.b16 %v8648, %v8646
          %v8677 = vpack.c.b16 %v8651, %v8649
          %v8678 = vpack.c.b16 %v8652, %v8650
          %v8679 = vpack.c.b16 %v8655, %v8653
          %v8680 = vpack.c.b16 %v8656, %v8654
          %v8681 = vpack.c.b16 %v8659, %v8657
          %v8682 = vpack.c.b16 %v8660, %v8658
          %v8683 = vpack.c.b16 %v8663, %v8661
          %v8684 = vpack.c.b16 %v8664, %v8662
          %v8685 = vpack.c.b16 %v8667, %v8665
          %v8686 = vpack.c.b16 %v8668, %v8666
          %v8687 = vpack.c.b16 %v8671, %v8669
          %v8688 = vpack.c.b16 %v8672, %v8670
          %8705 = vmatpush.bf16.msra.mxu0 %v8687
          %8706 = vmatpush.bf16.msra.mxu0 %v8685
          %8707 = vmatpush.bf16.msra.mxu0 %v8683
          %8708 = vmatpush.bf16.msra.mxu0 %v8681
          %8709 = vmatpush.bf16.msra.mxu0 %v8679
          %8710 = vmatpush.bf16.msra.mxu0 %v8677
          %8711 = vmatpush.bf16.msra.mxu0 %v8675
          %8712 = vmatpush.bf16.msra.mxu0 %v8673
          %8713 = vmatmul.bf16.gmra.mxu0 %v8601
          %v8714 = vpop.f32.mrf.mxu0
          %v8715 = vadd.f32 0.0, %v8714
          %v8716 = vpop.f32.mrf.mxu0
          %v8717 = vadd.f32 0.0, %v8716
          %8718 = vmatmul.bf16.gmra.mxu0 %v8602
          %v8719 = vpop.f32.mrf.mxu0
          %v8720 = vadd.f32 0.0, %v8719
          %v8721 = vpop.f32.mrf.mxu0
          %v8722 = vadd.f32 0.0, %v8721
          %8723 = vmatmul.bf16.gmra.mxu0 %v8603
          %v8724 = vpop.f32.mrf.mxu0
          %v8725 = vadd.f32 0.0, %v8724
          %v8726 = vpop.f32.mrf.mxu0
          %v8727 = vadd.f32 0.0, %v8726
          %8728 = vmatmul.bf16.gmra.mxu0 %v8604
          %v8729 = vpop.f32.mrf.mxu0
          %v8730 = vadd.f32 0.0, %v8729
          %v8731 = vpop.f32.mrf.mxu0
          %v8732 = vadd.f32 0.0, %v8731
          %8733 = vmatmul.bf16.gmra.mxu0 %v8605
          %v8734 = vpop.f32.mrf.mxu0
          %v8735 = vadd.f32 0.0, %v8734
          %v8736 = vpop.f32.mrf.mxu0
          %v8737 = vadd.f32 0.0, %v8736
          %8738 = vmatmul.bf16.gmra.mxu0 %v8606
          %v8739 = vpop.f32.mrf.mxu0
          %v8740 = vadd.f32 0.0, %v8739
          %v8741 = vpop.f32.mrf.mxu0
          %v8742 = vadd.f32 0.0, %v8741
          %8743 = vmatmul.bf16.gmra.mxu0 %v8607
          %v8744 = vpop.f32.mrf.mxu0
          %v8745 = vadd.f32 0.0, %v8744
          %v8746 = vpop.f32.mrf.mxu0
          %v8747 = vadd.f32 0.0, %v8746
          %8748 = vmatmul.bf16.gmra.mxu0 %v8608
          %v8749 = vpop.f32.mrf.mxu0
          %v8750 = vadd.f32 0.0, %v8749
          %v8751 = vpop.f32.mrf.mxu0
          %v8752 = vadd.f32 0.0, %v8751
          %8753 = vdwg.mxu0
          %8754 = vmatpush.bf16.msra.mxu0 %v8688
          %8755 = vmatpush.bf16.msra.mxu0 %v8686
          %8756 = vmatpush.bf16.msra.mxu0 %v8684
          %8757 = vmatpush.bf16.msra.mxu0 %v8682
          %8758 = vmatpush.bf16.msra.mxu0 %v8680
          %8759 = vmatpush.bf16.msra.mxu0 %v8678
          %8760 = vmatpush.bf16.msra.mxu0 %v8676
          %8761 = vmatpush.bf16.msra.mxu0 %v8674
          %8762 = vmatmul.bf16.gmra.mxu0 %v8601
          %v8763 = vpop.f32.mrf.mxu0
          %v8764 = vadd.f32 0.0, %v8763
          %v8765 = vpop.f32.mrf.mxu0
          %v8766 = vadd.f32 0.0, %v8765
          %8767 = vmatmul.bf16.gmra.mxu0 %v8602
          %v8768 = vpop.f32.mrf.mxu0
          %v8769 = vadd.f32 0.0, %v8768
          %v8770 = vpop.f32.mrf.mxu0
          %v8771 = vadd.f32 0.0, %v8770
          %8772 = vmatmul.bf16.gmra.mxu0 %v8603
          %v8773 = vpop.f32.mrf.mxu0
          %v8774 = vadd.f32 0.0, %v8773
          %v8775 = vpop.f32.mrf.mxu0
          %v8776 = vadd.f32 0.0, %v8775
          %8777 = vmatmul.bf16.gmra.mxu0 %v8604
          %v8778 = vpop.f32.mrf.mxu0
          %v8779 = vadd.f32 0.0, %v8778
          %v8780 = vpop.f32.mrf.mxu0
          %v8781 = vadd.f32 0.0, %v8780
          %8782 = vmatmul.bf16.gmra.mxu0 %v8605
          %v8783 = vpop.f32.mrf.mxu0
          %v8784 = vadd.f32 0.0, %v8783
          %v8785 = vpop.f32.mrf.mxu0
          %v8786 = vadd.f32 0.0, %v8785
          %8787 = vmatmul.bf16.gmra.mxu0 %v8606
          %v8788 = vpop.f32.mrf.mxu0
          %v8789 = vadd.f32 0.0, %v8788
          %v8790 = vpop.f32.mrf.mxu0
          %v8791 = vadd.f32 0.0, %v8790
          %8792 = vmatmul.bf16.gmra.mxu0 %v8607
          %v8793 = vpop.f32.mrf.mxu0
          %v8794 = vadd.f32 0.0, %v8793
          %v8795 = vpop.f32.mrf.mxu0
          %v8796 = vadd.f32 0.0, %v8795
          %8797 = vmatmul.bf16.gmra.mxu0 %v8608
          %v8798 = vpop.f32.mrf.mxu0
          %v8799 = vadd.f32 0.0, %v8798
          %v8800 = vpop.f32.mrf.mxu0
          %v8801 = vadd.f32 0.0, %v8800
          %8802 = vdwg.mxu0
          %8803 = vst [vmem:[#allocation3] sm:$0xff] %v8715
          %8804 = vst [vmem:[#allocation3 + $0x8] sm:$0xff] %v8764
          %8805 = vst [vmem:[#allocation3 + $0x10] sm:$0xff] %v8717
          %8806 = vst [vmem:[#allocation3 + $0x18] sm:$0xff] %v8766
          %8807 = vst [vmem:[#allocation3 + $0x20] sm:$0xff] %v8720
          %8808 = vst [vmem:[#allocation3 + $0x28] sm:$0xff] %v8769
          %8809 = vst [vmem:[#allocation3 + $0x30] sm:$0xff] %v8722
          %8810 = vst [vmem:[#allocation3 + $0x38] sm:$0xff] %v8771
          %8811 = vst [vmem:[#allocation3 + $0x40] sm:$0xff] %v8725
          %8812 = vst [vmem:[#allocation3 + $0x48] sm:$0xff] %v8774
          %8813 = vst [vmem:[#allocation3 + $0x50] sm:$0xff] %v8727
          %8814 = vst [vmem:[#allocation3 + $0x58] sm:$0xff] %v8776
          %8815 = vst [vmem:[#allocation3 + $0x60] sm:$0xff] %v8730
          %8816 = vst [vmem:[#allocation3 + $0x68] sm:$0xff] %v8779
          %8817 = vst [vmem:[#allocation3 + $0x70] sm:$0xff] %v8732
          %8818 = vst [vmem:[#allocation3 + $0x78] sm:$0xff] %v8781
          %8819 = vst [vmem:[#allocation3 + $0x80] sm:$0xff] %v8735
          %8820 = vst [vmem:[#allocation3 + $0x88] sm:$0xff] %v8784
          %8821 = vst [vmem:[#allocation3 + $0x90] sm:$0xff] %v8737
          %8822 = vst [vmem:[#allocation3 + $0x98] sm:$0xff] %v8786
          %8823 = vst [vmem:[#allocation3 + $0xa0] sm:$0xff] %v8740
          %8824 = vst [vmem:[#allocation3 + $0xa8] sm:$0xff] %v8789
          %8825 = vst [vmem:[#allocation3 + $0xb0] sm:$0xff] %v8742
          %8826 = vst [vmem:[#allocation3 + $0xb8] sm:$0xff] %v8791
          %8827 = vst [vmem:[#allocation3 + $0xc0] sm:$0xff] %v8745
          %8828 = vst [vmem:[#allocation3 + $0xc8] sm:$0xff] %v8794
          %8829 = vst [vmem:[#allocation3 + $0xd0] sm:$0xff] %v8747
          %8830 = vst [vmem:[#allocation3 + $0xd8] sm:$0xff] %v8796
          %8831 = vst [vmem:[#allocation3 + $0xe0] sm:$0xff] %v8750
          %8832 = vst [vmem:[#allocation3 + $0xe8] sm:$0xff] %v8799
          %8833 = vst [vmem:[#allocation3 + $0xf0] sm:$0xff] %v8752
          %8834 = vst [vmem:[#allocation3 + $0xf8] sm:$0xff] %v8801
        $region76: #{tpu_custom_call.1} parent=67 // pred_fallthru
          _
        // Predicated region
        $region77: #{tpu_custom_call.1} parent=67 // pred_check
          %p8835 = pneg %p329
        $region78: #{tpu_custom_call.1} parent=67 // pred_check_branch
          %8837 = sbr.rel (%p8835) target = $region80
        $region79: #{tpu_custom_call.1} parent=67 // pred_region
          %8839 = vsyncadd [#allocation4], 0
          %s8840 = sshll.u32 [#allocation3], 4
          %s8841 = int_to_ptr.vmem [resolvable:$true] %s8840
          %s8842 = sshll.u32 %s12, 4
          %s8843 = int_to_ptr.hbm [resolvable:$true] %s8842
          %8848 = dma.vmem_to_hbm [thread:$0]  %s8841, 4096, %s8843, [#allocation4], 256, 256, 16
        $region80: #{tpu_custom_call.1} parent=67 // pred_fallthru
          _
        // Predicated region
        $region81: #{tpu_custom_call.1} parent=67 // pred_check
          %p8849 = pneg %p329
        $region82: #{tpu_custom_call.1} parent=67 // pred_check_branch
          %8851 = sbr.rel (%p8849) target = $region84
        $region83: #{tpu_custom_call.1} parent=67 // pred_region
          %8853 = dma.done [#allocation4], 4096
        $region84: #{tpu_custom_call.1} parent=67 // pred_fallthru
          _
      $region68: #{tpu_custom_call.1} parent=5 // pred_fallthru
        _
      %p8854 = scmp.le.s32.totalorder 2, %s19
      // Predicated region
      $region85: #{tpu_custom_call.1} parent=5 // pred_check
        %p8855 = pneg %p8854
      $region86: #{tpu_custom_call.1} parent=5 // pred_check_branch
        %8857 = sbr.rel (%p8855) target = $region88
      $region87: #{tpu_custom_call.1} parent=5 // pred_region
        %s8858 = ssub.s32 %s19, 2
      $region88: #{tpu_custom_call.1} parent=5 // pred_fallthru
        _
    $region6: #{tpu_custom_call.1} parent=1 // loop_footer
      %s23 = sadd.s32 1, %s19
    $region7: #{tpu_custom_call.1} parent=1 // loop_footer_branch
      %18 = sbr.rel target = $region3
    $region8: #{tpu_custom_call.1} parent=1 // loop_exit
      _
    %8859 = vsyncpa [#allocation4], 1
    %s8860 = scalar_lea.sflag [#allocation4], 1
    %8861 = vsyncpa %s8860, 1

</llo_original>
